<compile_context>
chip_gen: v6e
topology: v6e:2x2x1
jax: 0.10.0
libtpu: 0.0.40
codegen_flags: <defaults>
</compile_context>

<pallas_src>
import functools

import jax
import jax.numpy as jnp
from jax import lax
from jax.experimental import pallas as pl
from jax.experimental.pallas import tpu as pltpu


# ------------------------------ fused kernel --------------------------------

def _mm(a, b):
    """MXU matmul: bf16 operands, f32 accumulation."""
    return jnp.dot(a.astype(jnp.bfloat16), b.astype(jnp.bfloat16),
                   preferred_element_type=jnp.float32)


def _net_kernel(x_ref, m1_ref, b1_ref, pr1_ref, pc1_ref,
                m2_ref, b2_ref, pr2_ref, pc2_ref,
                fc1p_ref, fc1b_ref, fc2w_ref, fc2b_ref,
                out_ref, *, tb):
    for i in range(tb):                                   # static unroll over batch tile
        x_img = x_ref[i]                                  # (28, 28) f32

        # ---- conv1 (1 -> 10, k=5): 5 row-structured matmuls -> (240, 24)
        a1 = _mm(m1_ref[0], x_img[:, 0:24])
        for dx in range(1, 5):
            a1 = a1 + _mm(m1_ref[dx], x_img[:, dx:dx + 24])
        a1 = a1 + b1_ref[...]                             # rows = c*24 + oh

        # ---- 2x2 max-pool + ReLU via even/odd selection matmuls -> (120, 12)
        r1 = jnp.maximum(_mm(pr1_ref[0], a1), _mm(pr1_ref[1], a1))   # (120, 24)
        y1 = jnp.maximum(_mm(r1, pc1_ref[0]), _mm(r1, pc1_ref[1]))   # (120, 12)
        y1 = jnp.maximum(y1, 0.0)                         # rows = c*12 + h

        # ---- conv2 (10 -> 20, k=5); Dropout2d is identity in eval mode.
        # TODO(synk): training-mode Dropout2d / F.dropout PRNG masking not implemented.
        a2 = _mm(m2_ref[0], y1[:, 0:8])
        for dx in range(1, 5):
            a2 = a2 + _mm(m2_ref[dx], y1[:, dx:dx + 8])
        a2 = a2 + b2_ref[...]                             # (160, 8), rows = co*8 + oh

        # ---- 2x2 max-pool + ReLU -> (80, 4), rows = co*4 + h
        r2 = jnp.maximum(_mm(pr2_ref[0], a2), _mm(pr2_ref[1], a2))   # (80, 8)
        y2 = jnp.maximum(_mm(r2, pc2_ref[0]), _mm(r2, pc2_ref[1]))   # (80, 4)
        y2 = jnp.maximum(y2, 0.0)

        # ---- fc1 + ReLU (320-contraction split over the 4 pooled columns)
        h = _mm(fc1p_ref[0], y2[:, 0:1])
        for w in range(1, 4):
            h = h + _mm(fc1p_ref[w], y2[:, w:w + 1])
        h = jnp.maximum(h + fc1b_ref[...], 0.0)           # (50, 1)

        # ---- fc2 + numerically stable log_softmax over the 10 classes
        logits = _mm(fc2w_ref[...], h) + fc2b_ref[...]    # (10, 1)
        m = jnp.max(logits, axis=0, keepdims=True)
        s = logits - m
        lse = jnp.log(jnp.sum(jnp.exp(s), axis=0, keepdims=True))
        out_ref[i] = (s - lse).astype(out_ref.dtype)      # (10, 1)


# ------------------------- one-time weight preparation -----------------------

def prepare_params(params):
    """Host-side, one-time restructuring of PyTorch-layout weights."""
    f32, bf16 = jnp.float32, jnp.bfloat16
    w1 = params["conv1_w"].astype(f32)    # (10, 1, 5, 5)
    w2 = params["conv2_w"].astype(f32)    # (20, 10, 5, 5)

    # conv1: M1[dx] (240, 28) with M1[dx][c*24+oh, h] = w1[c,0,h-oh,dx] (0<=h-oh<=4)
    m1 = []
    for dx in range(5):
        t = sum(w1[:, 0, dy, dx][:, None, None] *
                jnp.eye(24, 28, k=dy, dtype=f32)[None] for dy in range(5))   # (10,24,28)
        m1.append(t.reshape(240, 28))
    m1 = jnp.stack(m1, 0).astype(bf16)                                       # (5,240,28)

    # conv2: M2[dx] (160, 120) with M2[dx][co*8+oh, ci*12+h] = w2[co,ci,h-oh,dx]
    m2 = []
    for dx in range(5):
        t = sum(w2[:, :, dy, dx][:, :, None, None] *
                jnp.eye(8, 12, k=dy, dtype=f32)[None, None] for dy in range(5))  # (20,10,8,12)
        m2.append(t.transpose(0, 2, 1, 3).reshape(160, 120))
    m2 = jnp.stack(m2, 0).astype(bf16)                                       # (5,160,120)

    b1 = jnp.repeat(params["conv1_b"].astype(f32), 24)[:, None]              # (240,1)
    b2 = jnp.repeat(params["conv2_b"].astype(f32), 8)[:, None]               # (160,1)

    eye240, eye160 = jnp.eye(240, dtype=f32), jnp.eye(160, dtype=f32)
    eye24, eye8 = jnp.eye(24, dtype=f32), jnp.eye(8, dtype=f32)
    pr1 = jnp.stack([eye240[0::2], eye240[1::2]], 0).astype(bf16)            # (2,120,240)
    pc1 = jnp.stack([eye24[:, 0::2], eye24[:, 1::2]], 0).astype(bf16)        # (2,24,12)
    pr2 = jnp.stack([eye160[0::2], eye160[1::2]], 0).astype(bf16)            # (2,80,160)
    pc2 = jnp.stack([eye8[:, 0::2], eye8[:, 1::2]], 0).astype(bf16)          # (2,8,4)

    fc1w = params["fc1_w"].astype(f32).reshape(50, 20, 4, 4)                 # f = c*16+h*4+w
    fc1p = jnp.stack([fc1w[:, :, :, w].reshape(50, 80) for w in range(4)],
                     0).astype(bf16)                                         # (4,50,80)
    fc1b = params["fc1_b"].astype(f32)[:, None]                              # (50,1)
    fc2w = params["fc2_w"].astype(bf16)                                      # (10,50)
    fc2b = params["fc2_b"].astype(f32)[:, None]                              # (10,1)

    return {"m1": m1, "b1": b1, "pr1": pr1, "pc1": pc1,
            "m2": m2, "b2": b2, "pr2": pr2, "pc2": pc2,
            "fc1p": fc1p, "fc1b": fc1b, "fc2w": fc2w, "fc2b": fc2b}


# ------------------------------- forward pass --------------------------------

def net_forward(prepped, x):
    n = x.shape[0]
    x3 = x.reshape(n, 28, 28).astype(jnp.float32)

    tb = 1
    for cand in (4, 2, 1):                     # batch-tile size dividing N
        if n % cand == 0:
            tb = cand
            break
    nb = n // tb

    full = lambda shape: pl.BlockSpec(shape, lambda b, _r=len(shape): (0,) * _r)

    out = pl.pallas_call(
        functools.partial(_net_kernel, tb=tb),
        out_shape=jax.ShapeDtypeStruct((n, 10, 1), jnp.float32),
        grid_spec=pltpu.PrefetchScalarGridSpec(
            num_scalar_prefetch=0,
            grid=(nb,),
            in_specs=[
                pl.BlockSpec((tb, 28, 28), lambda b: (b, 0, 0)),   # x
                full((5, 240, 28)),                                # m1
                full((240, 1)),                                    # b1
                full((2, 120, 240)),                               # pr1
                full((2, 24, 12)),                                 # pc1
                full((5, 160, 120)),                               # m2
                full((160, 1)),                                    # b2
                full((2, 80, 160)),                                # pr2
                full((2, 8, 4)),                                   # pc2
                full((4, 50, 80)),                                 # fc1p
                full((50, 1)),                                     # fc1b
                full((10, 50)),                                    # fc2w
                full((10, 1)),                                     # fc2b
            ],
            out_specs=pl.BlockSpec((tb, 10, 1), lambda b: (b, 0, 0)),
        ),
        compiler_params=pltpu.CompilerParams(
            dimension_semantics=("parallel",),
            vmem_limit_bytes=32 * 1024 * 1024),
    )(x3, prepped["m1"], prepped["b1"], prepped["pr1"], prepped["pc1"],
      prepped["m2"], prepped["b2"], prepped["pr2"], prepped["pc2"],
      prepped["fc1p"], prepped["fc1b"], prepped["fc2w"], prepped["fc2b"])
    return out[:, :, 0]                                            # (N, 10)


# ------------------------ params init + pure-JAX reference -------------------

def init_params(key):
    ks = jax.random.split(key, 8)

    def u(k, shape, fan_in):
        bound = 1.0 / jnp.sqrt(jnp.float32(fan_in))
        return jax.random.uniform(k, shape, jnp.float32, -bound, bound)

    return {
        "conv1_w": u(ks[0], (10, 1, 5, 5), 1 * 25),
        "conv1_b": u(ks[1], (10,), 1 * 25),
        "conv2_w": u(ks[2], (20, 10, 5, 5), 10 * 25),
        "conv2_b": u(ks[3], (20,), 10 * 25),
        "fc1_w": u(ks[4], (50, 320), 320),
        "fc1_b": u(ks[5], (50,), 320),
        "fc2_w": u(ks[6], (10, 50), 50),
        "fc2_b": u(ks[7], (10,), 50),
    }


def reference_forward(params, x):
    dn = ("NCHW", "OIHW", "NCHW")
    y = lax.conv_general_dilated(x, params["conv1_w"], (1, 1), "VALID",
                                 dimension_numbers=dn)
    y = y + params["conv1_b"][None, :, None, None]
    y = jax.nn.relu(lax.reduce_window(y, -jnp.inf, lax.max,
                                      (1, 1, 2, 2), (1, 1, 2, 2), "VALID"))
    y = lax.conv_general_dilated(y, params["conv2_w"], (1, 1), "VALID",
                                 dimension_numbers=dn)
    y = y + params["conv2_b"][None, :, None, None]
    y = jax.nn.relu(lax.reduce_window(y, -jnp.inf, lax.max,
                                      (1, 1, 2, 2), (1, 1, 2, 2), "VALID"))
    y = y.reshape(x.shape[0], 320)
    y = jax.nn.relu(y @ params["fc1_w"].T + params["fc1_b"])
    y = y @ params["fc2_w"].T + params["fc2_b"]
    return jax.nn.log_softmax(y, axis=-1)


# ----------------------------------- main ------------------------------------

if __name__ == "__main__":
    key = jax.random.PRNGKey(0)
    pkey, xkey = jax.random.split(key)
    params = init_params(pkey)
    prepped = prepare_params(params)

    # MNIST-shaped input (the hard-coded 320 = 20*4*4 in fc1 requires 28x28).
    x = jax.random.normal(xkey, (2, 1, 28, 28), jnp.float32)

    out = jax.jit(net_forward)(prepped, x)
    out = jax.block_until_ready(out)

    assert out.shape == (2, 10)
    assert bool(jnp.all(jnp.isfinite(out)))
    # rows of log_softmax must exponentiate-sum to 1
    assert bool(jnp.allclose(jnp.sum(jnp.exp(out), axis=-1), 1.0, atol=1e-3))
    # compare against a pure-JAX reference (generous tol: bf16 MXU operands)
    ref = reference_forward(params, x)
    err = float(jnp.max(jnp.abs(out - ref)))
    assert err < 0.15, f"mismatch vs reference: {err}"
    print("KERNEL_OK")
</pallas_src>

<mosaic_0001>
module attributes {stable_mosaic.version = 11 : i64} {
  func.func @_net_kernel(%arg0: i32, %arg1: memref<2x28x28xf32, #tpu.memory_space<vmem>>, %arg2: memref<5x240x28xbf16, #tpu.memory_space<vmem>>, %arg3: memref<240x1xf32, #tpu.memory_space<vmem>>, %arg4: memref<2x120x240xbf16, #tpu.memory_space<vmem>>, %arg5: memref<2x24x12xbf16, #tpu.memory_space<vmem>>, %arg6: memref<5x160x120xbf16, #tpu.memory_space<vmem>>, %arg7: memref<160x1xf32, #tpu.memory_space<vmem>>, %arg8: memref<2x80x160xbf16, #tpu.memory_space<vmem>>, %arg9: memref<2x8x4xbf16, #tpu.memory_space<vmem>>, %arg10: memref<4x50x80xbf16, #tpu.memory_space<vmem>>, %arg11: memref<50x1xf32, #tpu.memory_space<vmem>>, %arg12: memref<10x50xbf16, #tpu.memory_space<vmem>>, %arg13: memref<10x1xf32, #tpu.memory_space<vmem>>, %arg14: memref<2x10x1xf32, #tpu.memory_space<vmem>>) attributes {dimension_semantics = [#tpu.dimension_semantics<parallel>], iteration_bounds = array<i64: 1>, scalar_prefetch = 0 : i64, scratch_operands = 0 : i64, tpu.core_type = #tpu.core_type<tc>, window_params = [{transform_indices = @transform_0, window_bounds = array<i64: 2, 28, 28>}, {pipeline_mode = #tpu.pipeline_mode<synchronous>, transform_indices = @transform_1, window_bounds = array<i64: 5, 240, 28>}, {pipeline_mode = #tpu.pipeline_mode<synchronous>, transform_indices = @transform_2, window_bounds = array<i64: 240, 1>}, {pipeline_mode = #tpu.pipeline_mode<synchronous>, transform_indices = @transform_3, window_bounds = array<i64: 2, 120, 240>}, {pipeline_mode = #tpu.pipeline_mode<synchronous>, transform_indices = @transform_4, window_bounds = array<i64: 2, 24, 12>}, {pipeline_mode = #tpu.pipeline_mode<synchronous>, transform_indices = @transform_5, window_bounds = array<i64: 5, 160, 120>}, {pipeline_mode = #tpu.pipeline_mode<synchronous>, transform_indices = @transform_6, window_bounds = array<i64: 160, 1>}, {pipeline_mode = #tpu.pipeline_mode<synchronous>, transform_indices = @transform_7, window_bounds = array<i64: 2, 80, 160>}, {pipeline_mode = #tpu.pipeline_mode<synchronous>, transform_indices = @transform_8, window_bounds = array<i64: 2, 8, 4>}, {pipeline_mode = #tpu.pipeline_mode<synchronous>, transform_indices = @transform_9, window_bounds = array<i64: 4, 50, 80>}, {pipeline_mode = #tpu.pipeline_mode<synchronous>, transform_indices = @transform_10, window_bounds = array<i64: 50, 1>}, {pipeline_mode = #tpu.pipeline_mode<synchronous>, transform_indices = @transform_11, window_bounds = array<i64: 10, 50>}, {pipeline_mode = #tpu.pipeline_mode<synchronous>, transform_indices = @transform_12, window_bounds = array<i64: 10, 1>}, {transform_indices = @transform_13, window_bounds = array<i64: 2, 10, 1>}]} {
    %c0 = arith.constant 0 : index
    %c0_0 = arith.constant 0 : index
    %c0_1 = arith.constant 0 : index
    %0 = vector.load %arg1[%c0, %c0_0, %c0_1] : memref<2x28x28xf32, #tpu.memory_space<vmem>>, vector<1x28x28xf32>
    %1 = vector.shape_cast %0 : vector<1x28x28xf32> to vector<28x28xf32>
    %c0_2 = arith.constant 0 : index
    %c0_3 = arith.constant 0 : index
    %c0_4 = arith.constant 0 : index
    %2 = vector.load %arg2[%c0_2, %c0_3, %c0_4] : memref<5x240x28xbf16, #tpu.memory_space<vmem>>, vector<1x240x28xbf16>
    %3 = vector.shape_cast %2 : vector<1x240x28xbf16> to vector<240x28xbf16>
    %4 = vector.extract_strided_slice %1 {offsets = [0, 0], sizes = [28, 24], strides = [1, 1]} : vector<28x28xf32> to vector<28x24xf32>
    %5 = arith.truncf %4 : vector<28x24xf32> to vector<28x24xbf16>
    %cst = arith.constant dense<0.000000e+00> : vector<240x24xf32>
    %6 = tpu.matmul %3, %5, %cst {dimension_numbers = #tpu.dot_dimension_numbers<[1], [0], [0], [1], [0, 0, 1, 1], [], []>} : vector<240x28xbf16>, vector<28x24xbf16>, vector<240x24xf32> -> vector<240x24xf32>
    %c1 = arith.constant 1 : index
    %c0_5 = arith.constant 0 : index
    %c0_6 = arith.constant 0 : index
    %7 = vector.load %arg2[%c1, %c0_5, %c0_6] : memref<5x240x28xbf16, #tpu.memory_space<vmem>>, vector<1x240x28xbf16>
    %8 = vector.shape_cast %7 : vector<1x240x28xbf16> to vector<240x28xbf16>
    %9 = vector.extract_strided_slice %1 {offsets = [0, 1], sizes = [28, 24], strides = [1, 1]} : vector<28x28xf32> to vector<28x24xf32>
    %10 = arith.truncf %9 : vector<28x24xf32> to vector<28x24xbf16>
    %cst_7 = arith.constant dense<0.000000e+00> : vector<240x24xf32>
    %11 = tpu.matmul %8, %10, %cst_7 {dimension_numbers = #tpu.dot_dimension_numbers<[1], [0], [0], [1], [0, 0, 1, 1], [], []>} : vector<240x28xbf16>, vector<28x24xbf16>, vector<240x24xf32> -> vector<240x24xf32>
    %12 = arith.addf %6, %11 : vector<240x24xf32>
    %c2 = arith.constant 2 : index
    %c0_8 = arith.constant 0 : index
    %c0_9 = arith.constant 0 : index
    %13 = vector.load %arg2[%c2, %c0_8, %c0_9] : memref<5x240x28xbf16, #tpu.memory_space<vmem>>, vector<1x240x28xbf16>
    %14 = vector.shape_cast %13 : vector<1x240x28xbf16> to vector<240x28xbf16>
    %15 = vector.extract_strided_slice %1 {offsets = [0, 2], sizes = [28, 24], strides = [1, 1]} : vector<28x28xf32> to vector<28x24xf32>
    %16 = arith.truncf %15 : vector<28x24xf32> to vector<28x24xbf16>
    %cst_10 = arith.constant dense<0.000000e+00> : vector<240x24xf32>
    %17 = tpu.matmul %14, %16, %cst_10 {dimension_numbers = #tpu.dot_dimension_numbers<[1], [0], [0], [1], [0, 0, 1, 1], [], []>} : vector<240x28xbf16>, vector<28x24xbf16>, vector<240x24xf32> -> vector<240x24xf32>
    %18 = arith.addf %12, %17 : vector<240x24xf32>
    %c3 = arith.constant 3 : index
    %c0_11 = arith.constant 0 : index
    %c0_12 = arith.constant 0 : index
    %19 = vector.load %arg2[%c3, %c0_11, %c0_12] : memref<5x240x28xbf16, #tpu.memory_space<vmem>>, vector<1x240x28xbf16>
    %20 = vector.shape_cast %19 : vector<1x240x28xbf16> to vector<240x28xbf16>
    %21 = vector.extract_strided_slice %1 {offsets = [0, 3], sizes = [28, 24], strides = [1, 1]} : vector<28x28xf32> to vector<28x24xf32>
    %22 = arith.truncf %21 : vector<28x24xf32> to vector<28x24xbf16>
    %cst_13 = arith.constant dense<0.000000e+00> : vector<240x24xf32>
    %23 = tpu.matmul %20, %22, %cst_13 {dimension_numbers = #tpu.dot_dimension_numbers<[1], [0], [0], [1], [0, 0, 1, 1], [], []>} : vector<240x28xbf16>, vector<28x24xbf16>, vector<240x24xf32> -> vector<240x24xf32>
    %24 = arith.addf %18, %23 : vector<240x24xf32>
    %c4 = arith.constant 4 : index
    %c0_14 = arith.constant 0 : index
    %c0_15 = arith.constant 0 : index
    %25 = vector.load %arg2[%c4, %c0_14, %c0_15] : memref<5x240x28xbf16, #tpu.memory_space<vmem>>, vector<1x240x28xbf16>
    %26 = vector.shape_cast %25 : vector<1x240x28xbf16> to vector<240x28xbf16>
    %27 = vector.extract_strided_slice %1 {offsets = [0, 4], sizes = [28, 24], strides = [1, 1]} : vector<28x28xf32> to vector<28x24xf32>
    %28 = arith.truncf %27 : vector<28x24xf32> to vector<28x24xbf16>
    %cst_16 = arith.constant dense<0.000000e+00> : vector<240x24xf32>
    %29 = tpu.matmul %26, %28, %cst_16 {dimension_numbers = #tpu.dot_dimension_numbers<[1], [0], [0], [1], [0, 0, 1, 1], [], []>} : vector<240x28xbf16>, vector<28x24xbf16>, vector<240x24xf32> -> vector<240x24xf32>
    %30 = arith.addf %24, %29 : vector<240x24xf32>
    %c0_17 = arith.constant 0 : index
    %c0_18 = arith.constant 0 : index
    %31 = vector.load %arg3[%c0_17, %c0_18] : memref<240x1xf32, #tpu.memory_space<vmem>>, vector<240x1xf32>
    %32 = vector.broadcast %31 : vector<240x1xf32> to vector<240x24xf32>
    %33 = arith.addf %30, %32 : vector<240x24xf32>
    %c0_19 = arith.constant 0 : index
    %c0_20 = arith.constant 0 : index
    %c0_21 = arith.constant 0 : index
    %34 = vector.load %arg4[%c0_19, %c0_20, %c0_21] : memref<2x120x240xbf16, #tpu.memory_space<vmem>>, vector<1x120x240xbf16>
    %35 = vector.shape_cast %34 : vector<1x120x240xbf16> to vector<120x240xbf16>
    %36 = arith.truncf %33 : vector<240x24xf32> to vector<240x24xbf16>
    %cst_22 = arith.constant dense<0.000000e+00> : vector<120x24xf32>
    %37 = tpu.matmul %35, %36, %cst_22 {dimension_numbers = #tpu.dot_dimension_numbers<[1], [0], [0], [1], [0, 0, 1, 1], [], []>} : vector<120x240xbf16>, vector<240x24xbf16>, vector<120x24xf32> -> vector<120x24xf32>
    %c1_23 = arith.constant 1 : index
    %c0_24 = arith.constant 0 : index
    %c0_25 = arith.constant 0 : index
    %38 = vector.load %arg4[%c1_23, %c0_24, %c0_25] : memref<2x120x240xbf16, #tpu.memory_space<vmem>>, vector<1x120x240xbf16>
    %39 = vector.shape_cast %38 : vector<1x120x240xbf16> to vector<120x240xbf16>
    %40 = arith.truncf %33 : vector<240x24xf32> to vector<240x24xbf16>
    %cst_26 = arith.constant dense<0.000000e+00> : vector<120x24xf32>
    %41 = tpu.matmul %39, %40, %cst_26 {dimension_numbers = #tpu.dot_dimension_numbers<[1], [0], [0], [1], [0, 0, 1, 1], [], []>} : vector<120x240xbf16>, vector<240x24xbf16>, vector<120x24xf32> -> vector<120x24xf32>
    %42 = arith.maximumf %37, %41 : vector<120x24xf32>
    %c0_27 = arith.constant 0 : index
    %c0_28 = arith.constant 0 : index
    %c0_29 = arith.constant 0 : index
    %43 = vector.load %arg5[%c0_27, %c0_28, %c0_29] : memref<2x24x12xbf16, #tpu.memory_space<vmem>>, vector<1x24x12xbf16>
    %44 = vector.shape_cast %43 : vector<1x24x12xbf16> to vector<24x12xbf16>
    %45 = arith.truncf %42 : vector<120x24xf32> to vector<120x24xbf16>
    %cst_30 = arith.constant dense<0.000000e+00> : vector<120x12xf32>
    %46 = tpu.matmul %45, %44, %cst_30 {dimension_numbers = #tpu.dot_dimension_numbers<[1], [0], [0], [1], [0, 0, 1, 1], [], []>} : vector<120x24xbf16>, vector<24x12xbf16>, vector<120x12xf32> -> vector<120x12xf32>
    %c1_31 = arith.constant 1 : index
    %c0_32 = arith.constant 0 : index
    %c0_33 = arith.constant 0 : index
    %47 = vector.load %arg5[%c1_31, %c0_32, %c0_33] : memref<2x24x12xbf16, #tpu.memory_space<vmem>>, vector<1x24x12xbf16>
    %48 = vector.shape_cast %47 : vector<1x24x12xbf16> to vector<24x12xbf16>
    %49 = arith.truncf %42 : vector<120x24xf32> to vector<120x24xbf16>
    %cst_34 = arith.constant dense<0.000000e+00> : vector<120x12xf32>
    %50 = tpu.matmul %49, %48, %cst_34 {dimension_numbers = #tpu.dot_dimension_numbers<[1], [0], [0], [1], [0, 0, 1, 1], [], []>} : vector<120x24xbf16>, vector<24x12xbf16>, vector<120x12xf32> -> vector<120x12xf32>
    %51 = arith.maximumf %46, %50 : vector<120x12xf32>
    %cst_35 = arith.constant 0.000000e+00 : f32
    %52 = vector.broadcast %cst_35 : f32 to vector<120x12xf32>
    %53 = arith.maximumf %51, %52 : vector<120x12xf32>
    %c0_36 = arith.constant 0 : index
    %c0_37 = arith.constant 0 : index
    %c0_38 = arith.constant 0 : index
    %54 = vector.load %arg6[%c0_36, %c0_37, %c0_38] : memref<5x160x120xbf16, #tpu.memory_space<vmem>>, vector<1x160x120xbf16>
    %55 = vector.shape_cast %54 : vector<1x160x120xbf16> to vector<160x120xbf16>
    %56 = vector.extract_strided_slice %53 {offsets = [0, 0], sizes = [120, 8], strides = [1, 1]} : vector<120x12xf32> to vector<120x8xf32>
    %57 = arith.truncf %56 : vector<120x8xf32> to vector<120x8xbf16>
    %cst_39 = arith.constant dense<0.000000e+00> : vector<160x8xf32>
    %58 = tpu.matmul %55, %57, %cst_39 {dimension_numbers = #tpu.dot_dimension_numbers<[1], [0], [0], [1], [0, 0, 1, 1], [], []>} : vector<160x120xbf16>, vector<120x8xbf16>, vector<160x8xf32> -> vector<160x8xf32>
    %c1_40 = arith.constant 1 : index
    %c0_41 = arith.constant 0 : index
    %c0_42 = arith.constant 0 : index
    %59 = vector.load %arg6[%c1_40, %c0_41, %c0_42] : memref<5x160x120xbf16, #tpu.memory_space<vmem>>, vector<1x160x120xbf16>
    %60 = vector.shape_cast %59 : vector<1x160x120xbf16> to vector<160x120xbf16>
    %61 = vector.extract_strided_slice %53 {offsets = [0, 1], sizes = [120, 8], strides = [1, 1]} : vector<120x12xf32> to vector<120x8xf32>
    %62 = arith.truncf %61 : vector<120x8xf32> to vector<120x8xbf16>
    %cst_43 = arith.constant dense<0.000000e+00> : vector<160x8xf32>
    %63 = tpu.matmul %60, %62, %cst_43 {dimension_numbers = #tpu.dot_dimension_numbers<[1], [0], [0], [1], [0, 0, 1, 1], [], []>} : vector<160x120xbf16>, vector<120x8xbf16>, vector<160x8xf32> -> vector<160x8xf32>
    %64 = arith.addf %58, %63 : vector<160x8xf32>
    %c2_44 = arith.constant 2 : index
    %c0_45 = arith.constant 0 : index
    %c0_46 = arith.constant 0 : index
    %65 = vector.load %arg6[%c2_44, %c0_45, %c0_46] : memref<5x160x120xbf16, #tpu.memory_space<vmem>>, vector<1x160x120xbf16>
    %66 = vector.shape_cast %65 : vector<1x160x120xbf16> to vector<160x120xbf16>
    %67 = vector.extract_strided_slice %53 {offsets = [0, 2], sizes = [120, 8], strides = [1, 1]} : vector<120x12xf32> to vector<120x8xf32>
    %68 = arith.truncf %67 : vector<120x8xf32> to vector<120x8xbf16>
    %cst_47 = arith.constant dense<0.000000e+00> : vector<160x8xf32>
    %69 = tpu.matmul %66, %68, %cst_47 {dimension_numbers = #tpu.dot_dimension_numbers<[1], [0], [0], [1], [0, 0, 1, 1], [], []>} : vector<160x120xbf16>, vector<120x8xbf16>, vector<160x8xf32> -> vector<160x8xf32>
    %70 = arith.addf %64, %69 : vector<160x8xf32>
    %c3_48 = arith.constant 3 : index
    %c0_49 = arith.constant 0 : index
    %c0_50 = arith.constant 0 : index
    %71 = vector.load %arg6[%c3_48, %c0_49, %c0_50] : memref<5x160x120xbf16, #tpu.memory_space<vmem>>, vector<1x160x120xbf16>
    %72 = vector.shape_cast %71 : vector<1x160x120xbf16> to vector<160x120xbf16>
    %73 = vector.extract_strided_slice %53 {offsets = [0, 3], sizes = [120, 8], strides = [1, 1]} : vector<120x12xf32> to vector<120x8xf32>
    %74 = arith.truncf %73 : vector<120x8xf32> to vector<120x8xbf16>
    %cst_51 = arith.constant dense<0.000000e+00> : vector<160x8xf32>
    %75 = tpu.matmul %72, %74, %cst_51 {dimension_numbers = #tpu.dot_dimension_numbers<[1], [0], [0], [1], [0, 0, 1, 1], [], []>} : vector<160x120xbf16>, vector<120x8xbf16>, vector<160x8xf32> -> vector<160x8xf32>
    %76 = arith.addf %70, %75 : vector<160x8xf32>
    %c4_52 = arith.constant 4 : index
    %c0_53 = arith.constant 0 : index
    %c0_54 = arith.constant 0 : index
    %77 = vector.load %arg6[%c4_52, %c0_53, %c0_54] : memref<5x160x120xbf16, #tpu.memory_space<vmem>>, vector<1x160x120xbf16>
    %78 = vector.shape_cast %77 : vector<1x160x120xbf16> to vector<160x120xbf16>
    %79 = vector.extract_strided_slice %53 {offsets = [0, 4], sizes = [120, 8], strides = [1, 1]} : vector<120x12xf32> to vector<120x8xf32>
    %80 = arith.truncf %79 : vector<120x8xf32> to vector<120x8xbf16>
    %cst_55 = arith.constant dense<0.000000e+00> : vector<160x8xf32>
    %81 = tpu.matmul %78, %80, %cst_55 {dimension_numbers = #tpu.dot_dimension_numbers<[1], [0], [0], [1], [0, 0, 1, 1], [], []>} : vector<160x120xbf16>, vector<120x8xbf16>, vector<160x8xf32> -> vector<160x8xf32>
    %82 = arith.addf %76, %81 : vector<160x8xf32>
    %c0_56 = arith.constant 0 : index
    %c0_57 = arith.constant 0 : index
    %83 = vector.load %arg7[%c0_56, %c0_57] : memref<160x1xf32, #tpu.memory_space<vmem>>, vector<160x1xf32>
    %84 = vector.broadcast %83 : vector<160x1xf32> to vector<160x8xf32>
    %85 = arith.addf %82, %84 : vector<160x8xf32>
    %c0_58 = arith.constant 0 : index
    %c0_59 = arith.constant 0 : index
    %c0_60 = arith.constant 0 : index
    %86 = vector.load %arg8[%c0_58, %c0_59, %c0_60] : memref<2x80x160xbf16, #tpu.memory_space<vmem>>, vector<1x80x160xbf16>
    %87 = vector.shape_cast %86 : vector<1x80x160xbf16> to vector<80x160xbf16>
    %88 = arith.truncf %85 : vector<160x8xf32> to vector<160x8xbf16>
    %cst_61 = arith.constant dense<0.000000e+00> : vector<80x8xf32>
    %89 = tpu.matmul %87, %88, %cst_61 {dimension_numbers = #tpu.dot_dimension_numbers<[1], [0], [0], [1], [0, 0, 1, 1], [], []>} : vector<80x160xbf16>, vector<160x8xbf16>, vector<80x8xf32> -> vector<80x8xf32>
    %c1_62 = arith.constant 1 : index
    %c0_63 = arith.constant 0 : index
    %c0_64 = arith.constant 0 : index
    %90 = vector.load %arg8[%c1_62, %c0_63, %c0_64] : memref<2x80x160xbf16, #tpu.memory_space<vmem>>, vector<1x80x160xbf16>
    %91 = vector.shape_cast %90 : vector<1x80x160xbf16> to vector<80x160xbf16>
    %92 = arith.truncf %85 : vector<160x8xf32> to vector<160x8xbf16>
    %cst_65 = arith.constant dense<0.000000e+00> : vector<80x8xf32>
    %93 = tpu.matmul %91, %92, %cst_65 {dimension_numbers = #tpu.dot_dimension_numbers<[1], [0], [0], [1], [0, 0, 1, 1], [], []>} : vector<80x160xbf16>, vector<160x8xbf16>, vector<80x8xf32> -> vector<80x8xf32>
    %94 = arith.maximumf %89, %93 : vector<80x8xf32>
    %c0_66 = arith.constant 0 : index
    %c0_67 = arith.constant 0 : index
    %c0_68 = arith.constant 0 : index
    %95 = vector.load %arg9[%c0_66, %c0_67, %c0_68] : memref<2x8x4xbf16, #tpu.memory_space<vmem>>, vector<1x8x4xbf16>
    %96 = vector.shape_cast %95 : vector<1x8x4xbf16> to vector<8x4xbf16>
    %97 = arith.truncf %94 : vector<80x8xf32> to vector<80x8xbf16>
    %cst_69 = arith.constant dense<0.000000e+00> : vector<80x4xf32>
    %98 = tpu.matmul %97, %96, %cst_69 {dimension_numbers = #tpu.dot_dimension_numbers<[1], [0], [0], [1], [0, 0, 1, 1], [], []>} : vector<80x8xbf16>, vector<8x4xbf16>, vector<80x4xf32> -> vector<80x4xf32>
    %c1_70 = arith.constant 1 : index
    %c0_71 = arith.constant 0 : index
    %c0_72 = arith.constant 0 : index
    %99 = vector.load %arg9[%c1_70, %c0_71, %c0_72] : memref<2x8x4xbf16, #tpu.memory_space<vmem>>, vector<1x8x4xbf16>
    %100 = vector.shape_cast %99 : vector<1x8x4xbf16> to vector<8x4xbf16>
    %101 = arith.truncf %94 : vector<80x8xf32> to vector<80x8xbf16>
    %cst_73 = arith.constant dense<0.000000e+00> : vector<80x4xf32>
    %102 = tpu.matmul %101, %100, %cst_73 {dimension_numbers = #tpu.dot_dimension_numbers<[1], [0], [0], [1], [0, 0, 1, 1], [], []>} : vector<80x8xbf16>, vector<8x4xbf16>, vector<80x4xf32> -> vector<80x4xf32>
    %103 = arith.maximumf %98, %102 : vector<80x4xf32>
    %cst_74 = arith.constant 0.000000e+00 : f32
    %104 = vector.broadcast %cst_74 : f32 to vector<80x4xf32>
    %105 = arith.maximumf %103, %104 : vector<80x4xf32>
    %c0_75 = arith.constant 0 : index
    %c0_76 = arith.constant 0 : index
    %c0_77 = arith.constant 0 : index
    %106 = vector.load %arg10[%c0_75, %c0_76, %c0_77] : memref<4x50x80xbf16, #tpu.memory_space<vmem>>, vector<1x50x80xbf16>
    %107 = vector.shape_cast %106 : vector<1x50x80xbf16> to vector<50x80xbf16>
    %108 = vector.extract_strided_slice %105 {offsets = [0, 0], sizes = [80, 1], strides = [1, 1]} : vector<80x4xf32> to vector<80x1xf32>
    %109 = arith.truncf %108 : vector<80x1xf32> to vector<80x1xbf16>
    %cst_78 = arith.constant dense<0.000000e+00> : vector<50x1xf32>
    %110 = tpu.matmul %107, %109, %cst_78 {dimension_numbers = #tpu.dot_dimension_numbers<[1], [0], [0], [1], [0, 0, 1, 1], [], []>} : vector<50x80xbf16>, vector<80x1xbf16>, vector<50x1xf32> -> vector<50x1xf32>
    %c1_79 = arith.constant 1 : index
    %c0_80 = arith.constant 0 : index
    %c0_81 = arith.constant 0 : index
    %111 = vector.load %arg10[%c1_79, %c0_80, %c0_81] : memref<4x50x80xbf16, #tpu.memory_space<vmem>>, vector<1x50x80xbf16>
    %112 = vector.shape_cast %111 : vector<1x50x80xbf16> to vector<50x80xbf16>
    %113 = vector.extract_strided_slice %105 {offsets = [0, 1], sizes = [80, 1], strides = [1, 1]} : vector<80x4xf32> to vector<80x1xf32>
    %114 = arith.truncf %113 : vector<80x1xf32> to vector<80x1xbf16>
    %cst_82 = arith.constant dense<0.000000e+00> : vector<50x1xf32>
    %115 = tpu.matmul %112, %114, %cst_82 {dimension_numbers = #tpu.dot_dimension_numbers<[1], [0], [0], [1], [0, 0, 1, 1], [], []>} : vector<50x80xbf16>, vector<80x1xbf16>, vector<50x1xf32> -> vector<50x1xf32>
    %116 = arith.addf %110, %115 : vector<50x1xf32>
    %c2_83 = arith.constant 2 : index
    %c0_84 = arith.constant 0 : index
    %c0_85 = arith.constant 0 : index
    %117 = vector.load %arg10[%c2_83, %c0_84, %c0_85] : memref<4x50x80xbf16, #tpu.memory_space<vmem>>, vector<1x50x80xbf16>
    %118 = vector.shape_cast %117 : vector<1x50x80xbf16> to vector<50x80xbf16>
    %119 = vector.extract_strided_slice %105 {offsets = [0, 2], sizes = [80, 1], strides = [1, 1]} : vector<80x4xf32> to vector<80x1xf32>
    %120 = arith.truncf %119 : vector<80x1xf32> to vector<80x1xbf16>
    %cst_86 = arith.constant dense<0.000000e+00> : vector<50x1xf32>
    %121 = tpu.matmul %118, %120, %cst_86 {dimension_numbers = #tpu.dot_dimension_numbers<[1], [0], [0], [1], [0, 0, 1, 1], [], []>} : vector<50x80xbf16>, vector<80x1xbf16>, vector<50x1xf32> -> vector<50x1xf32>
    %122 = arith.addf %116, %121 : vector<50x1xf32>
    %c3_87 = arith.constant 3 : index
    %c0_88 = arith.constant 0 : index
    %c0_89 = arith.constant 0 : index
    %123 = vector.load %arg10[%c3_87, %c0_88, %c0_89] : memref<4x50x80xbf16, #tpu.memory_space<vmem>>, vector<1x50x80xbf16>
    %124 = vector.shape_cast %123 : vector<1x50x80xbf16> to vector<50x80xbf16>
    %125 = vector.extract_strided_slice %105 {offsets = [0, 3], sizes = [80, 1], strides = [1, 1]} : vector<80x4xf32> to vector<80x1xf32>
    %126 = arith.truncf %125 : vector<80x1xf32> to vector<80x1xbf16>
    %cst_90 = arith.constant dense<0.000000e+00> : vector<50x1xf32>
    %127 = tpu.matmul %124, %126, %cst_90 {dimension_numbers = #tpu.dot_dimension_numbers<[1], [0], [0], [1], [0, 0, 1, 1], [], []>} : vector<50x80xbf16>, vector<80x1xbf16>, vector<50x1xf32> -> vector<50x1xf32>
    %128 = arith.addf %122, %127 : vector<50x1xf32>
    %c0_91 = arith.constant 0 : index
    %c0_92 = arith.constant 0 : index
    %129 = vector.load %arg11[%c0_91, %c0_92] : memref<50x1xf32, #tpu.memory_space<vmem>>, vector<50x1xf32>
    %130 = arith.addf %128, %129 : vector<50x1xf32>
    %cst_93 = arith.constant 0.000000e+00 : f32
    %131 = vector.broadcast %cst_93 : f32 to vector<50x1xf32>
    %132 = arith.maximumf %130, %131 : vector<50x1xf32>
    %c0_94 = arith.constant 0 : index
    %c0_95 = arith.constant 0 : index
    %133 = vector.load %arg12[%c0_94, %c0_95] : memref<10x50xbf16, #tpu.memory_space<vmem>>, vector<10x50xbf16>
    %134 = arith.truncf %132 : vector<50x1xf32> to vector<50x1xbf16>
    %cst_96 = arith.constant dense<0.000000e+00> : vector<10x1xf32>
    %135 = tpu.matmul %133, %134, %cst_96 {dimension_numbers = #tpu.dot_dimension_numbers<[1], [0], [0], [1], [0, 0, 1, 1], [], []>} : vector<10x50xbf16>, vector<50x1xbf16>, vector<10x1xf32> -> vector<10x1xf32>
    %c0_97 = arith.constant 0 : index
    %c0_98 = arith.constant 0 : index
    %136 = vector.load %arg13[%c0_97, %c0_98] : memref<10x1xf32, #tpu.memory_space<vmem>>, vector<10x1xf32>
    %137 = arith.addf %135, %136 : vector<10x1xf32>
    %cst_99 = arith.constant dense<0xFF800000> : vector<1xf32>
    %138 = vector.multi_reduction <maximumf>, %137, %cst_99 [0] : vector<10x1xf32> to vector<1xf32>
    %139 = vector.shape_cast %138 : vector<1xf32> to vector<1x1xf32>
    %140 = vector.broadcast %139 : vector<1x1xf32> to vector<10x1xf32>
    %141 = arith.subf %137, %140 : vector<10x1xf32>
    %142 = math.exp %141 : vector<10x1xf32>
    %cst_100 = arith.constant dense<0.000000e+00> : vector<1xf32>
    %143 = vector.multi_reduction <add>, %142, %cst_100 [0] : vector<10x1xf32> to vector<1xf32>
    %144 = vector.shape_cast %143 : vector<1xf32> to vector<1x1xf32>
    %145 = math.log %144 : vector<1x1xf32>
    %146 = vector.broadcast %145 : vector<1x1xf32> to vector<10x1xf32>
    %147 = arith.subf %141, %146 : vector<10x1xf32>
    %c0_101 = arith.constant 0 : index
    %c0_102 = arith.constant 0 : index
    %c0_103 = arith.constant 0 : index
    %148 = vector.load %arg14[%c0_101, %c0_102, %c0_103] : memref<2x10x1xf32, #tpu.memory_space<vmem>>, vector<1x10x1xf32>
    %149 = vector.shape_cast %148 : vector<1x10x1xf32> to vector<10x1xf32>
    %150 = vector.shape_cast %147 : vector<10x1xf32> to vector<1x10x1xf32>
    tpu.vector_store %arg14[%c0_101, %c0_102, %c0_103], %150 {strides = array<i32>} : memref<2x10x1xf32, #tpu.memory_space<vmem>>, vector<1x10x1xf32>,
    %c1_104 = arith.constant 1 : index
    %c0_105 = arith.constant 0 : index
    %c0_106 = arith.constant 0 : index
    %151 = vector.load %arg1[%c1_104, %c0_105, %c0_106] : memref<2x28x28xf32, #tpu.memory_space<vmem>>, vector<1x28x28xf32>
    %152 = vector.shape_cast %151 : vector<1x28x28xf32> to vector<28x28xf32>
    %c0_107 = arith.constant 0 : index
    %c0_108 = arith.constant 0 : index
    %c0_109 = arith.constant 0 : index
    %153 = vector.load %arg2[%c0_107, %c0_108, %c0_109] : memref<5x240x28xbf16, #tpu.memory_space<vmem>>, vector<1x240x28xbf16>
    %154 = vector.shape_cast %153 : vector<1x240x28xbf16> to vector<240x28xbf16>
    %155 = vector.extract_strided_slice %152 {offsets = [0, 0], sizes = [28, 24], strides = [1, 1]} : vector<28x28xf32> to vector<28x24xf32>
    %156 = arith.truncf %155 : vector<28x24xf32> to vector<28x24xbf16>
    %cst_110 = arith.constant dense<0.000000e+00> : vector<240x24xf32>
    %157 = tpu.matmul %154, %156, %cst_110 {dimension_numbers = #tpu.dot_dimension_numbers<[1], [0], [0], [1], [0, 0, 1, 1], [], []>} : vector<240x28xbf16>, vector<28x24xbf16>, vector<240x24xf32> -> vector<240x24xf32>
    %c1_111 = arith.constant 1 : index
    %c0_112 = arith.constant 0 : index
    %c0_113 = arith.constant 0 : index
    %158 = vector.load %arg2[%c1_111, %c0_112, %c0_113] : memref<5x240x28xbf16, #tpu.memory_space<vmem>>, vector<1x240x28xbf16>
    %159 = vector.shape_cast %158 : vector<1x240x28xbf16> to vector<240x28xbf16>
    %160 = vector.extract_strided_slice %152 {offsets = [0, 1], sizes = [28, 24], strides = [1, 1]} : vector<28x28xf32> to vector<28x24xf32>
    %161 = arith.truncf %160 : vector<28x24xf32> to vector<28x24xbf16>
    %cst_114 = arith.constant dense<0.000000e+00> : vector<240x24xf32>
    %162 = tpu.matmul %159, %161, %cst_114 {dimension_numbers = #tpu.dot_dimension_numbers<[1], [0], [0], [1], [0, 0, 1, 1], [], []>} : vector<240x28xbf16>, vector<28x24xbf16>, vector<240x24xf32> -> vector<240x24xf32>
    %163 = arith.addf %157, %162 : vector<240x24xf32>
    %c2_115 = arith.constant 2 : index
    %c0_116 = arith.constant 0 : index
    %c0_117 = arith.constant 0 : index
    %164 = vector.load %arg2[%c2_115, %c0_116, %c0_117] : memref<5x240x28xbf16, #tpu.memory_space<vmem>>, vector<1x240x28xbf16>
    %165 = vector.shape_cast %164 : vector<1x240x28xbf16> to vector<240x28xbf16>
    %166 = vector.extract_strided_slice %152 {offsets = [0, 2], sizes = [28, 24], strides = [1, 1]} : vector<28x28xf32> to vector<28x24xf32>
    %167 = arith.truncf %166 : vector<28x24xf32> to vector<28x24xbf16>
    %cst_118 = arith.constant dense<0.000000e+00> : vector<240x24xf32>
    %168 = tpu.matmul %165, %167, %cst_118 {dimension_numbers = #tpu.dot_dimension_numbers<[1], [0], [0], [1], [0, 0, 1, 1], [], []>} : vector<240x28xbf16>, vector<28x24xbf16>, vector<240x24xf32> -> vector<240x24xf32>
    %169 = arith.addf %163, %168 : vector<240x24xf32>
    %c3_119 = arith.constant 3 : index
    %c0_120 = arith.constant 0 : index
    %c0_121 = arith.constant 0 : index
    %170 = vector.load %arg2[%c3_119, %c0_120, %c0_121] : memref<5x240x28xbf16, #tpu.memory_space<vmem>>, vector<1x240x28xbf16>
    %171 = vector.shape_cast %170 : vector<1x240x28xbf16> to vector<240x28xbf16>
    %172 = vector.extract_strided_slice %152 {offsets = [0, 3], sizes = [28, 24], strides = [1, 1]} : vector<28x28xf32> to vector<28x24xf32>
    %173 = arith.truncf %172 : vector<28x24xf32> to vector<28x24xbf16>
    %cst_122 = arith.constant dense<0.000000e+00> : vector<240x24xf32>
    %174 = tpu.matmul %171, %173, %cst_122 {dimension_numbers = #tpu.dot_dimension_numbers<[1], [0], [0], [1], [0, 0, 1, 1], [], []>} : vector<240x28xbf16>, vector<28x24xbf16>, vector<240x24xf32> -> vector<240x24xf32>
    %175 = arith.addf %169, %174 : vector<240x24xf32>
    %c4_123 = arith.constant 4 : index
    %c0_124 = arith.constant 0 : index
    %c0_125 = arith.constant 0 : index
    %176 = vector.load %arg2[%c4_123, %c0_124, %c0_125] : memref<5x240x28xbf16, #tpu.memory_space<vmem>>, vector<1x240x28xbf16>
    %177 = vector.shape_cast %176 : vector<1x240x28xbf16> to vector<240x28xbf16>
    %178 = vector.extract_strided_slice %152 {offsets = [0, 4], sizes = [28, 24], strides = [1, 1]} : vector<28x28xf32> to vector<28x24xf32>
    %179 = arith.truncf %178 : vector<28x24xf32> to vector<28x24xbf16>
    %cst_126 = arith.constant dense<0.000000e+00> : vector<240x24xf32>
    %180 = tpu.matmul %177, %179, %cst_126 {dimension_numbers = #tpu.dot_dimension_numbers<[1], [0], [0], [1], [0, 0, 1, 1], [], []>} : vector<240x28xbf16>, vector<28x24xbf16>, vector<240x24xf32> -> vector<240x24xf32>
    %181 = arith.addf %175, %180 : vector<240x24xf32>
    %c0_127 = arith.constant 0 : index
    %c0_128 = arith.constant 0 : index
    %182 = vector.load %arg3[%c0_127, %c0_128] : memref<240x1xf32, #tpu.memory_space<vmem>>, vector<240x1xf32>
    %183 = vector.broadcast %182 : vector<240x1xf32> to vector<240x24xf32>
    %184 = arith.addf %181, %183 : vector<240x24xf32>
    %c0_129 = arith.constant 0 : index
    %c0_130 = arith.constant 0 : index
    %c0_131 = arith.constant 0 : index
    %185 = vector.load %arg4[%c0_129, %c0_130, %c0_131] : memref<2x120x240xbf16, #tpu.memory_space<vmem>>, vector<1x120x240xbf16>
    %186 = vector.shape_cast %185 : vector<1x120x240xbf16> to vector<120x240xbf16>
    %187 = arith.truncf %184 : vector<240x24xf32> to vector<240x24xbf16>
    %cst_132 = arith.constant dense<0.000000e+00> : vector<120x24xf32>
    %188 = tpu.matmul %186, %187, %cst_132 {dimension_numbers = #tpu.dot_dimension_numbers<[1], [0], [0], [1], [0, 0, 1, 1], [], []>} : vector<120x240xbf16>, vector<240x24xbf16>, vector<120x24xf32> -> vector<120x24xf32>
    %c1_133 = arith.constant 1 : index
    %c0_134 = arith.constant 0 : index
    %c0_135 = arith.constant 0 : index
    %189 = vector.load %arg4[%c1_133, %c0_134, %c0_135] : memref<2x120x240xbf16, #tpu.memory_space<vmem>>, vector<1x120x240xbf16>
    %190 = vector.shape_cast %189 : vector<1x120x240xbf16> to vector<120x240xbf16>
    %191 = arith.truncf %184 : vector<240x24xf32> to vector<240x24xbf16>
    %cst_136 = arith.constant dense<0.000000e+00> : vector<120x24xf32>
    %192 = tpu.matmul %190, %191, %cst_136 {dimension_numbers = #tpu.dot_dimension_numbers<[1], [0], [0], [1], [0, 0, 1, 1], [], []>} : vector<120x240xbf16>, vector<240x24xbf16>, vector<120x24xf32> -> vector<120x24xf32>
    %193 = arith.maximumf %188, %192 : vector<120x24xf32>
    %c0_137 = arith.constant 0 : index
    %c0_138 = arith.constant 0 : index
    %c0_139 = arith.constant 0 : index
    %194 = vector.load %arg5[%c0_137, %c0_138, %c0_139] : memref<2x24x12xbf16, #tpu.memory_space<vmem>>, vector<1x24x12xbf16>
    %195 = vector.shape_cast %194 : vector<1x24x12xbf16> to vector<24x12xbf16>
    %196 = arith.truncf %193 : vector<120x24xf32> to vector<120x24xbf16>
    %cst_140 = arith.constant dense<0.000000e+00> : vector<120x12xf32>
    %197 = tpu.matmul %196, %195, %cst_140 {dimension_numbers = #tpu.dot_dimension_numbers<[1], [0], [0], [1], [0, 0, 1, 1], [], []>} : vector<120x24xbf16>, vector<24x12xbf16>, vector<120x12xf32> -> vector<120x12xf32>
    %c1_141 = arith.constant 1 : index
    %c0_142 = arith.constant 0 : index
    %c0_143 = arith.constant 0 : index
    %198 = vector.load %arg5[%c1_141, %c0_142, %c0_143] : memref<2x24x12xbf16, #tpu.memory_space<vmem>>, vector<1x24x12xbf16>
    %199 = vector.shape_cast %198 : vector<1x24x12xbf16> to vector<24x12xbf16>
    %200 = arith.truncf %193 : vector<120x24xf32> to vector<120x24xbf16>
    %cst_144 = arith.constant dense<0.000000e+00> : vector<120x12xf32>
    %201 = tpu.matmul %200, %199, %cst_144 {dimension_numbers = #tpu.dot_dimension_numbers<[1], [0], [0], [1], [0, 0, 1, 1], [], []>} : vector<120x24xbf16>, vector<24x12xbf16>, vector<120x12xf32> -> vector<120x12xf32>
    %202 = arith.maximumf %197, %201 : vector<120x12xf32>
    %cst_145 = arith.constant 0.000000e+00 : f32
    %203 = vector.broadcast %cst_145 : f32 to vector<120x12xf32>
    %204 = arith.maximumf %202, %203 : vector<120x12xf32>
    %c0_146 = arith.constant 0 : index
    %c0_147 = arith.constant 0 : index
    %c0_148 = arith.constant 0 : index
    %205 = vector.load %arg6[%c0_146, %c0_147, %c0_148] : memref<5x160x120xbf16, #tpu.memory_space<vmem>>, vector<1x160x120xbf16>
    %206 = vector.shape_cast %205 : vector<1x160x120xbf16> to vector<160x120xbf16>
    %207 = vector.extract_strided_slice %204 {offsets = [0, 0], sizes = [120, 8], strides = [1, 1]} : vector<120x12xf32> to vector<120x8xf32>
    %208 = arith.truncf %207 : vector<120x8xf32> to vector<120x8xbf16>
    %cst_149 = arith.constant dense<0.000000e+00> : vector<160x8xf32>
    %209 = tpu.matmul %206, %208, %cst_149 {dimension_numbers = #tpu.dot_dimension_numbers<[1], [0], [0], [1], [0, 0, 1, 1], [], []>} : vector<160x120xbf16>, vector<120x8xbf16>, vector<160x8xf32> -> vector<160x8xf32>
    %c1_150 = arith.constant 1 : index
    %c0_151 = arith.constant 0 : index
    %c0_152 = arith.constant 0 : index
    %210 = vector.load %arg6[%c1_150, %c0_151, %c0_152] : memref<5x160x120xbf16, #tpu.memory_space<vmem>>, vector<1x160x120xbf16>
    %211 = vector.shape_cast %210 : vector<1x160x120xbf16> to vector<160x120xbf16>
    %212 = vector.extract_strided_slice %204 {offsets = [0, 1], sizes = [120, 8], strides = [1, 1]} : vector<120x12xf32> to vector<120x8xf32>
    %213 = arith.truncf %212 : vector<120x8xf32> to vector<120x8xbf16>
    %cst_153 = arith.constant dense<0.000000e+00> : vector<160x8xf32>
    %214 = tpu.matmul %211, %213, %cst_153 {dimension_numbers = #tpu.dot_dimension_numbers<[1], [0], [0], [1], [0, 0, 1, 1], [], []>} : vector<160x120xbf16>, vector<120x8xbf16>, vector<160x8xf32> -> vector<160x8xf32>
    %215 = arith.addf %209, %214 : vector<160x8xf32>
    %c2_154 = arith.constant 2 : index
    %c0_155 = arith.constant 0 : index
    %c0_156 = arith.constant 0 : index
    %216 = vector.load %arg6[%c2_154, %c0_155, %c0_156] : memref<5x160x120xbf16, #tpu.memory_space<vmem>>, vector<1x160x120xbf16>
    %217 = vector.shape_cast %216 : vector<1x160x120xbf16> to vector<160x120xbf16>
    %218 = vector.extract_strided_slice %204 {offsets = [0, 2], sizes = [120, 8], strides = [1, 1]} : vector<120x12xf32> to vector<120x8xf32>
    %219 = arith.truncf %218 : vector<120x8xf32> to vector<120x8xbf16>
    %cst_157 = arith.constant dense<0.000000e+00> : vector<160x8xf32>
    %220 = tpu.matmul %217, %219, %cst_157 {dimension_numbers = #tpu.dot_dimension_numbers<[1], [0], [0], [1], [0, 0, 1, 1], [], []>} : vector<160x120xbf16>, vector<120x8xbf16>, vector<160x8xf32> -> vector<160x8xf32>
    %221 = arith.addf %215, %220 : vector<160x8xf32>
    %c3_158 = arith.constant 3 : index
    %c0_159 = arith.constant 0 : index
    %c0_160 = arith.constant 0 : index
    %222 = vector.load %arg6[%c3_158, %c0_159, %c0_160] : memref<5x160x120xbf16, #tpu.memory_space<vmem>>, vector<1x160x120xbf16>
    %223 = vector.shape_cast %222 : vector<1x160x120xbf16> to vector<160x120xbf16>
    %224 = vector.extract_strided_slice %204 {offsets = [0, 3], sizes = [120, 8], strides = [1, 1]} : vector<120x12xf32> to vector<120x8xf32>
    %225 = arith.truncf %224 : vector<120x8xf32> to vector<120x8xbf16>
    %cst_161 = arith.constant dense<0.000000e+00> : vector<160x8xf32>
    %226 = tpu.matmul %223, %225, %cst_161 {dimension_numbers = #tpu.dot_dimension_numbers<[1], [0], [0], [1], [0, 0, 1, 1], [], []>} : vector<160x120xbf16>, vector<120x8xbf16>, vector<160x8xf32> -> vector<160x8xf32>
    %227 = arith.addf %221, %226 : vector<160x8xf32>
    %c4_162 = arith.constant 4 : index
    %c0_163 = arith.constant 0 : index
    %c0_164 = arith.constant 0 : index
    %228 = vector.load %arg6[%c4_162, %c0_163, %c0_164] : memref<5x160x120xbf16, #tpu.memory_space<vmem>>, vector<1x160x120xbf16>
    %229 = vector.shape_cast %228 : vector<1x160x120xbf16> to vector<160x120xbf16>
    %230 = vector.extract_strided_slice %204 {offsets = [0, 4], sizes = [120, 8], strides = [1, 1]} : vector<120x12xf32> to vector<120x8xf32>
    %231 = arith.truncf %230 : vector<120x8xf32> to vector<120x8xbf16>
    %cst_165 = arith.constant dense<0.000000e+00> : vector<160x8xf32>
    %232 = tpu.matmul %229, %231, %cst_165 {dimension_numbers = #tpu.dot_dimension_numbers<[1], [0], [0], [1], [0, 0, 1, 1], [], []>} : vector<160x120xbf16>, vector<120x8xbf16>, vector<160x8xf32> -> vector<160x8xf32>
    %233 = arith.addf %227, %232 : vector<160x8xf32>
    %c0_166 = arith.constant 0 : index
    %c0_167 = arith.constant 0 : index
    %234 = vector.load %arg7[%c0_166, %c0_167] : memref<160x1xf32, #tpu.memory_space<vmem>>, vector<160x1xf32>
    %235 = vector.broadcast %234 : vector<160x1xf32> to vector<160x8xf32>
    %236 = arith.addf %233, %235 : vector<160x8xf32>
    %c0_168 = arith.constant 0 : index
    %c0_169 = arith.constant 0 : index
    %c0_170 = arith.constant 0 : index
    %237 = vector.load %arg8[%c0_168, %c0_169, %c0_170] : memref<2x80x160xbf16, #tpu.memory_space<vmem>>, vector<1x80x160xbf16>
    %238 = vector.shape_cast %237 : vector<1x80x160xbf16> to vector<80x160xbf16>
    %239 = arith.truncf %236 : vector<160x8xf32> to vector<160x8xbf16>
    %cst_171 = arith.constant dense<0.000000e+00> : vector<80x8xf32>
    %240 = tpu.matmul %238, %239, %cst_171 {dimension_numbers = #tpu.dot_dimension_numbers<[1], [0], [0], [1], [0, 0, 1, 1], [], []>} : vector<80x160xbf16>, vector<160x8xbf16>, vector<80x8xf32> -> vector<80x8xf32>
    %c1_172 = arith.constant 1 : index
    %c0_173 = arith.constant 0 : index
    %c0_174 = arith.constant 0 : index
    %241 = vector.load %arg8[%c1_172, %c0_173, %c0_174] : memref<2x80x160xbf16, #tpu.memory_space<vmem>>, vector<1x80x160xbf16>
    %242 = vector.shape_cast %241 : vector<1x80x160xbf16> to vector<80x160xbf16>
    %243 = arith.truncf %236 : vector<160x8xf32> to vector<160x8xbf16>
    %cst_175 = arith.constant dense<0.000000e+00> : vector<80x8xf32>
    %244 = tpu.matmul %242, %243, %cst_175 {dimension_numbers = #tpu.dot_dimension_numbers<[1], [0], [0], [1], [0, 0, 1, 1], [], []>} : vector<80x160xbf16>, vector<160x8xbf16>, vector<80x8xf32> -> vector<80x8xf32>
    %245 = arith.maximumf %240, %244 : vector<80x8xf32>
    %c0_176 = arith.constant 0 : index
    %c0_177 = arith.constant 0 : index
    %c0_178 = arith.constant 0 : index
    %246 = vector.load %arg9[%c0_176, %c0_177, %c0_178] : memref<2x8x4xbf16, #tpu.memory_space<vmem>>, vector<1x8x4xbf16>
    %247 = vector.shape_cast %246 : vector<1x8x4xbf16> to vector<8x4xbf16>
    %248 = arith.truncf %245 : vector<80x8xf32> to vector<80x8xbf16>
    %cst_179 = arith.constant dense<0.000000e+00> : vector<80x4xf32>
    %249 = tpu.matmul %248, %247, %cst_179 {dimension_numbers = #tpu.dot_dimension_numbers<[1], [0], [0], [1], [0, 0, 1, 1], [], []>} : vector<80x8xbf16>, vector<8x4xbf16>, vector<80x4xf32> -> vector<80x4xf32>
    %c1_180 = arith.constant 1 : index
    %c0_181 = arith.constant 0 : index
    %c0_182 = arith.constant 0 : index
    %250 = vector.load %arg9[%c1_180, %c0_181, %c0_182] : memref<2x8x4xbf16, #tpu.memory_space<vmem>>, vector<1x8x4xbf16>
    %251 = vector.shape_cast %250 : vector<1x8x4xbf16> to vector<8x4xbf16>
    %252 = arith.truncf %245 : vector<80x8xf32> to vector<80x8xbf16>
    %cst_183 = arith.constant dense<0.000000e+00> : vector<80x4xf32>
    %253 = tpu.matmul %252, %251, %cst_183 {dimension_numbers = #tpu.dot_dimension_numbers<[1], [0], [0], [1], [0, 0, 1, 1], [], []>} : vector<80x8xbf16>, vector<8x4xbf16>, vector<80x4xf32> -> vector<80x4xf32>
    %254 = arith.maximumf %249, %253 : vector<80x4xf32>
    %cst_184 = arith.constant 0.000000e+00 : f32
    %255 = vector.broadcast %cst_184 : f32 to vector<80x4xf32>
    %256 = arith.maximumf %254, %255 : vector<80x4xf32>
    %c0_185 = arith.constant 0 : index
    %c0_186 = arith.constant 0 : index
    %c0_187 = arith.constant 0 : index
    %257 = vector.load %arg10[%c0_185, %c0_186, %c0_187] : memref<4x50x80xbf16, #tpu.memory_space<vmem>>, vector<1x50x80xbf16>
    %258 = vector.shape_cast %257 : vector<1x50x80xbf16> to vector<50x80xbf16>
    %259 = vector.extract_strided_slice %256 {offsets = [0, 0], sizes = [80, 1], strides = [1, 1]} : vector<80x4xf32> to vector<80x1xf32>
    %260 = arith.truncf %259 : vector<80x1xf32> to vector<80x1xbf16>
    %cst_188 = arith.constant dense<0.000000e+00> : vector<50x1xf32>
    %261 = tpu.matmul %258, %260, %cst_188 {dimension_numbers = #tpu.dot_dimension_numbers<[1], [0], [0], [1], [0, 0, 1, 1], [], []>} : vector<50x80xbf16>, vector<80x1xbf16>, vector<50x1xf32> -> vector<50x1xf32>
    %c1_189 = arith.constant 1 : index
    %c0_190 = arith.constant 0 : index
    %c0_191 = arith.constant 0 : index
    %262 = vector.load %arg10[%c1_189, %c0_190, %c0_191] : memref<4x50x80xbf16, #tpu.memory_space<vmem>>, vector<1x50x80xbf16>
    %263 = vector.shape_cast %262 : vector<1x50x80xbf16> to vector<50x80xbf16>
    %264 = vector.extract_strided_slice %256 {offsets = [0, 1], sizes = [80, 1], strides = [1, 1]} : vector<80x4xf32> to vector<80x1xf32>
    %265 = arith.truncf %264 : vector<80x1xf32> to vector<80x1xbf16>
    %cst_192 = arith.constant dense<0.000000e+00> : vector<50x1xf32>
    %266 = tpu.matmul %263, %265, %cst_192 {dimension_numbers = #tpu.dot_dimension_numbers<[1], [0], [0], [1], [0, 0, 1, 1], [], []>} : vector<50x80xbf16>, vector<80x1xbf16>, vector<50x1xf32> -> vector<50x1xf32>
    %267 = arith.addf %261, %266 : vector<50x1xf32>
    %c2_193 = arith.constant 2 : index
    %c0_194 = arith.constant 0 : index
    %c0_195 = arith.constant 0 : index
    %268 = vector.load %arg10[%c2_193, %c0_194, %c0_195] : memref<4x50x80xbf16, #tpu.memory_space<vmem>>, vector<1x50x80xbf16>
    %269 = vector.shape_cast %268 : vector<1x50x80xbf16> to vector<50x80xbf16>
    %270 = vector.extract_strided_slice %256 {offsets = [0, 2], sizes = [80, 1], strides = [1, 1]} : vector<80x4xf32> to vector<80x1xf32>
    %271 = arith.truncf %270 : vector<80x1xf32> to vector<80x1xbf16>
    %cst_196 = arith.constant dense<0.000000e+00> : vector<50x1xf32>
    %272 = tpu.matmul %269, %271, %cst_196 {dimension_numbers = #tpu.dot_dimension_numbers<[1], [0], [0], [1], [0, 0, 1, 1], [], []>} : vector<50x80xbf16>, vector<80x1xbf16>, vector<50x1xf32> -> vector<50x1xf32>
    %273 = arith.addf %267, %272 : vector<50x1xf32>
    %c3_197 = arith.constant 3 : index
    %c0_198 = arith.constant 0 : index
    %c0_199 = arith.constant 0 : index
    %274 = vector.load %arg10[%c3_197, %c0_198, %c0_199] : memref<4x50x80xbf16, #tpu.memory_space<vmem>>, vector<1x50x80xbf16>
    %275 = vector.shape_cast %274 : vector<1x50x80xbf16> to vector<50x80xbf16>
    %276 = vector.extract_strided_slice %256 {offsets = [0, 3], sizes = [80, 1], strides = [1, 1]} : vector<80x4xf32> to vector<80x1xf32>
    %277 = arith.truncf %276 : vector<80x1xf32> to vector<80x1xbf16>
    %cst_200 = arith.constant dense<0.000000e+00> : vector<50x1xf32>
    %278 = tpu.matmul %275, %277, %cst_200 {dimension_numbers = #tpu.dot_dimension_numbers<[1], [0], [0], [1], [0, 0, 1, 1], [], []>} : vector<50x80xbf16>, vector<80x1xbf16>, vector<50x1xf32> -> vector<50x1xf32>
    %279 = arith.addf %273, %278 : vector<50x1xf32>
    %c0_201 = arith.constant 0 : index
    %c0_202 = arith.constant 0 : index
    %280 = vector.load %arg11[%c0_201, %c0_202] : memref<50x1xf32, #tpu.memory_space<vmem>>, vector<50x1xf32>
    %281 = arith.addf %279, %280 : vector<50x1xf32>
    %cst_203 = arith.constant 0.000000e+00 : f32
    %282 = vector.broadcast %cst_203 : f32 to vector<50x1xf32>
    %283 = arith.maximumf %281, %282 : vector<50x1xf32>
    %c0_204 = arith.constant 0 : index
    %c0_205 = arith.constant 0 : index
    %284 = vector.load %arg12[%c0_204, %c0_205] : memref<10x50xbf16, #tpu.memory_space<vmem>>, vector<10x50xbf16>
    %285 = arith.truncf %283 : vector<50x1xf32> to vector<50x1xbf16>
    %cst_206 = arith.constant dense<0.000000e+00> : vector<10x1xf32>
    %286 = tpu.matmul %284, %285, %cst_206 {dimension_numbers = #tpu.dot_dimension_numbers<[1], [0], [0], [1], [0, 0, 1, 1], [], []>} : vector<10x50xbf16>, vector<50x1xbf16>, vector<10x1xf32> -> vector<10x1xf32>
    %c0_207 = arith.constant 0 : index
    %c0_208 = arith.constant 0 : index
    %287 = vector.load %arg13[%c0_207, %c0_208] : memref<10x1xf32, #tpu.memory_space<vmem>>, vector<10x1xf32>
    %288 = arith.addf %286, %287 : vector<10x1xf32>
    %cst_209 = arith.constant dense<0xFF800000> : vector<1xf32>
    %289 = vector.multi_reduction <maximumf>, %288, %cst_209 [0] : vector<10x1xf32> to vector<1xf32>
    %290 = vector.shape_cast %289 : vector<1xf32> to vector<1x1xf32>
    %291 = vector.broadcast %290 : vector<1x1xf32> to vector<10x1xf32>
    %292 = arith.subf %288, %291 : vector<10x1xf32>
    %293 = math.exp %292 : vector<10x1xf32>
    %cst_210 = arith.constant dense<0.000000e+00> : vector<1xf32>
    %294 = vector.multi_reduction <add>, %293, %cst_210 [0] : vector<10x1xf32> to vector<1xf32>
    %295 = vector.shape_cast %294 : vector<1xf32> to vector<1x1xf32>
    %296 = math.log %295 : vector<1x1xf32>
    %297 = vector.broadcast %296 : vector<1x1xf32> to vector<10x1xf32>
    %298 = arith.subf %292, %297 : vector<10x1xf32>
    %c1_211 = arith.constant 1 : index
    %c0_212 = arith.constant 0 : index
    %c0_213 = arith.constant 0 : index
    %299 = vector.load %arg14[%c1_211, %c0_212, %c0_213] : memref<2x10x1xf32, #tpu.memory_space<vmem>>, vector<1x10x1xf32>
    %300 = vector.shape_cast %299 : vector<1x10x1xf32> to vector<10x1xf32>
    %301 = vector.shape_cast %298 : vector<10x1xf32> to vector<1x10x1xf32>
    tpu.vector_store %arg14[%c1_211, %c0_212, %c0_213], %301 {strides = array<i32>} : memref<2x10x1xf32, #tpu.memory_space<vmem>>, vector<1x10x1xf32>,
    return
  }
  func.func @transform_0(%arg0: i32) -> (i32, i32, i32) {
    %c0_i32 = arith.constant 0 : i32
    %c0_i32_0 = arith.constant 0 : i32
    %c0_i32_1 = arith.constant 0 : i32
    return %arg0, %c0_i32, %c0_i32_0 : i32, i32, i32
  }
  func.func @transform_1(%arg0: i32) -> (i32, i32, i32) {
    %c0_i32 = arith.constant 0 : i32
    %c0_i32_0 = arith.constant 0 : i32
    %c0_i32_1 = arith.constant 0 : i32
    %c0_i32_2 = arith.constant 0 : i32
    return %c0_i32, %c0_i32_0, %c0_i32_1 : i32, i32, i32
  }
  func.func @transform_2(%arg0: i32) -> (i32, i32) {
    %c0_i32 = arith.constant 0 : i32
    %c0_i32_0 = arith.constant 0 : i32
    %c0_i32_1 = arith.constant 0 : i32
    return %c0_i32, %c0_i32_0 : i32, i32
  }
  func.func @transform_3(%arg0: i32) -> (i32, i32, i32) {
    %c0_i32 = arith.constant 0 : i32
    %c0_i32_0 = arith.constant 0 : i32
    %c0_i32_1 = arith.constant 0 : i32
    %c0_i32_2 = arith.constant 0 : i32
    return %c0_i32, %c0_i32_0, %c0_i32_1 : i32, i32, i32
  }
  func.func @transform_4(%arg0: i32) -> (i32, i32, i32) {
    %c0_i32 = arith.constant 0 : i32
    %c0_i32_0 = arith.constant 0 : i32
    %c0_i32_1 = arith.constant 0 : i32
    %c0_i32_2 = arith.constant 0 : i32
    return %c0_i32, %c0_i32_0, %c0_i32_1 : i32, i32, i32
  }
  func.func @transform_5(%arg0: i32) -> (i32, i32, i32) {
    %c0_i32 = arith.constant 0 : i32
    %c0_i32_0 = arith.constant 0 : i32
    %c0_i32_1 = arith.constant 0 : i32
    %c0_i32_2 = arith.constant 0 : i32
    return %c0_i32, %c0_i32_0, %c0_i32_1 : i32, i32, i32
  }
  func.func @transform_6(%arg0: i32) -> (i32, i32) {
    %c0_i32 = arith.constant 0 : i32
    %c0_i32_0 = arith.constant 0 : i32
    %c0_i32_1 = arith.constant 0 : i32
    return %c0_i32, %c0_i32_0 : i32, i32
  }
  func.func @transform_7(%arg0: i32) -> (i32, i32, i32) {
    %c0_i32 = arith.constant 0 : i32
    %c0_i32_0 = arith.constant 0 : i32
    %c0_i32_1 = arith.constant 0 : i32
    %c0_i32_2 = arith.constant 0 : i32
    return %c0_i32, %c0_i32_0, %c0_i32_1 : i32, i32, i32
  }
  func.func @transform_8(%arg0: i32) -> (i32, i32, i32) {
    %c0_i32 = arith.constant 0 : i32
    %c0_i32_0 = arith.constant 0 : i32
    %c0_i32_1 = arith.constant 0 : i32
    %c0_i32_2 = arith.constant 0 : i32
    return %c0_i32, %c0_i32_0, %c0_i32_1 : i32, i32, i32
  }
  func.func @transform_9(%arg0: i32) -> (i32, i32, i32) {
    %c0_i32 = arith.constant 0 : i32
    %c0_i32_0 = arith.constant 0 : i32
    %c0_i32_1 = arith.constant 0 : i32
    %c0_i32_2 = arith.constant 0 : i32
    return %c0_i32, %c0_i32_0, %c0_i32_1 : i32, i32, i32
  }
  func.func @transform_10(%arg0: i32) -> (i32, i32) {
    %c0_i32 = arith.constant 0 : i32
    %c0_i32_0 = arith.constant 0 : i32
    %c0_i32_1 = arith.constant 0 : i32
    return %c0_i32, %c0_i32_0 : i32, i32
  }
  func.func @transform_11(%arg0: i32) -> (i32, i32) {
    %c0_i32 = arith.constant 0 : i32
    %c0_i32_0 = arith.constant 0 : i32
    %c0_i32_1 = arith.constant 0 : i32
    return %c0_i32, %c0_i32_0 : i32, i32
  }
  func.func @transform_12(%arg0: i32) -> (i32, i32) {
    %c0_i32 = arith.constant 0 : i32
    %c0_i32_0 = arith.constant 0 : i32
    %c0_i32_1 = arith.constant 0 : i32
    return %c0_i32, %c0_i32_0 : i32, i32
  }
  func.func @transform_13(%arg0: i32) -> (i32, i32, i32) {
    %c0_i32 = arith.constant 0 : i32
    %c0_i32_0 = arith.constant 0 : i32
    %c0_i32_1 = arith.constant 0 : i32
    return %arg0, %c0_i32, %c0_i32_0 : i32, i32, i32
  }
}

</mosaic_0001>

<llo_original>
// kernel: net_forward.1
$region0: #{net_forward.1}
  #allocation0 [shape = 'u32[]', space=smem, size = 0x4, offset = 0x4, fixed_abs, tag = 'smem constant byte address 0x4 - core index']
  #allocation1 [shape = 'u32[144,128]{1,0:T(1,128)}', space=vmem, size = 0x12000, scoped, tag = 'internal scratch']
  %s0 = inlined_call_operand.vmem [shape: f32[2,28,28], index: 0, kind: input, shape index: {}]
  %s1 = inlined_call_operand.vmem [shape: bf16[5,240,28], index: 1, kind: input, shape index: {}]
  %s2 = inlined_call_operand.vmem [shape: f32[240,1], index: 2, kind: input, shape index: {}]
  %s3 = inlined_call_operand.vmem [shape: bf16[2,120,240], index: 3, kind: input, shape index: {}]
  %s4 = inlined_call_operand.vmem [shape: bf16[2,24,12], index: 4, kind: input, shape index: {}]
  %s5 = inlined_call_operand.vmem [shape: bf16[5,160,120], index: 5, kind: input, shape index: {}]
  %s6 = inlined_call_operand.vmem [shape: f32[160,1], index: 6, kind: input, shape index: {}]
  %s7 = inlined_call_operand.vmem [shape: bf16[2,80,160], index: 7, kind: input, shape index: {}]
  %s8 = inlined_call_operand.vmem [shape: bf16[2,8,4], index: 8, kind: input, shape index: {}]
  %s9 = inlined_call_operand.vmem [shape: bf16[4,50,80], index: 9, kind: input, shape index: {}]
  %s10 = inlined_call_operand.vmem [shape: f32[50,1], index: 10, kind: input, shape index: {}]
  %s11 = inlined_call_operand.vmem [shape: bf16[10,50], index: 11, kind: input, shape index: {}]
  %s12 = inlined_call_operand.vmem [shape: f32[10,1], index: 12, kind: input, shape index: {}]
  %s13 = inlined_call_operand.vmem [shape: f32[2,10,1], index: 13, kind: output, shape index: {}]
  %s14 = sld [smem:[#allocation0]]
  $region62: #{net_forward.1} parent=0
    _
  %s16 = ssub.s32 1, %s14
  %s17 = scalar_select 0, %s16, %s14
  // Predicated region
  $region2: #{net_forward.1} parent=0 // pred_check
    _
  $region3: #{net_forward.1} parent=0 // pred_check_branch
    %19 = sbr.rel (0) target = $region5
  $region4: #{net_forward.1} parent=0 // pred_region
    _
  $region5: #{net_forward.1} parent=0 // pred_fallthru
    _
  // Predicated region
  $region6: #{net_forward.1} parent=0 // pred_check
    _
  $region7: #{net_forward.1} parent=0 // pred_check_branch
    %21 = sbr.rel (0) target = $region9
  $region8: #{net_forward.1} parent=0 // pred_region
    _
  $region9: #{net_forward.1} parent=0 // pred_fallthru
    _
  // Predicated region
  $region10: #{net_forward.1} parent=0 // pred_check
    _
  $region11: #{net_forward.1} parent=0 // pred_check_branch
    %23 = sbr.rel (0) target = $region13
  $region12: #{net_forward.1} parent=0 // pred_region
    _
  $region13: #{net_forward.1} parent=0 // pred_fallthru
    _
  // Predicated region
  $region14: #{net_forward.1} parent=0 // pred_check
    _
  $region15: #{net_forward.1} parent=0 // pred_check_branch
    %25 = sbr.rel (0) target = $region17
  $region16: #{net_forward.1} parent=0 // pred_region
    _
  $region17: #{net_forward.1} parent=0 // pred_fallthru
    _
  // Predicated region
  $region18: #{net_forward.1} parent=0 // pred_check
    _
  $region19: #{net_forward.1} parent=0 // pred_check_branch
    %27 = sbr.rel (0) target = $region21
  $region20: #{net_forward.1} parent=0 // pred_region
    _
  $region21: #{net_forward.1} parent=0 // pred_fallthru
    _
  // Predicated region
  $region22: #{net_forward.1} parent=0 // pred_check
    _
  $region23: #{net_forward.1} parent=0 // pred_check_branch
    %29 = sbr.rel (0) target = $region25
  $region24: #{net_forward.1} parent=0 // pred_region
    _
  $region25: #{net_forward.1} parent=0 // pred_fallthru
    _
  // Predicated region
  $region26: #{net_forward.1} parent=0 // pred_check
    _
  $region27: #{net_forward.1} parent=0 // pred_check_branch
    %31 = sbr.rel (0) target = $region29
  $region28: #{net_forward.1} parent=0 // pred_region
    _
  $region29: #{net_forward.1} parent=0 // pred_fallthru
    _
  // Predicated region
  $region30: #{net_forward.1} parent=0 // pred_check
    _
  $region31: #{net_forward.1} parent=0 // pred_check_branch
    %33 = sbr.rel (0) target = $region33
  $region32: #{net_forward.1} parent=0 // pred_region
    _
  $region33: #{net_forward.1} parent=0 // pred_fallthru
    _
  // Predicated region
  $region34: #{net_forward.1} parent=0 // pred_check
    _
  $region35: #{net_forward.1} parent=0 // pred_check_branch
    %35 = sbr.rel (0) target = $region37
  $region36: #{net_forward.1} parent=0 // pred_region
    _
  $region37: #{net_forward.1} parent=0 // pred_fallthru
    _
  // Predicated region
  $region38: #{net_forward.1} parent=0 // pred_check
    _
  $region39: #{net_forward.1} parent=0 // pred_check_branch
    %37 = sbr.rel (0) target = $region41
  $region40: #{net_forward.1} parent=0 // pred_region
    _
  $region41: #{net_forward.1} parent=0 // pred_fallthru
    _
  // Predicated region
  $region42: #{net_forward.1} parent=0 // pred_check
    _
  $region43: #{net_forward.1} parent=0 // pred_check_branch
    %39 = sbr.rel (0) target = $region45
  $region44: #{net_forward.1} parent=0 // pred_region
    _
  $region45: #{net_forward.1} parent=0 // pred_fallthru
    _
  // Predicated region
  $region46: #{net_forward.1} parent=0 // pred_check
    _
  $region47: #{net_forward.1} parent=0 // pred_check_branch
    %41 = sbr.rel (0) target = $region49
  $region48: #{net_forward.1} parent=0 // pred_region
    _
  $region49: #{net_forward.1} parent=0 // pred_fallthru
    _
  // Predicated region
  $region50: #{net_forward.1} parent=0 // pred_check
    _
  $region51: #{net_forward.1} parent=0 // pred_check_branch
    %43 = sbr.rel (0) target = $region53
  $region52: #{net_forward.1} parent=0 // pred_region
    _
  $region53: #{net_forward.1} parent=0 // pred_fallthru
    _
  %v45 = vld [vmem:[%s0] sm:$0xff]
  %v46 = vld [vmem:[%s0 + $0x8] sm:$0xff]
  %v47 = vld [vmem:[%s0 + $0x10] sm:$0xff]
  %v48 = vld [vmem:[%s0 + $0x18] sm:$0xf]
  %v49 = vld [vmem:[%s1] sm:$0xf]
  %v50 = vld [vmem:[%s1 + $0x4] sm:$0xf]
  %v51 = vld [vmem:[%s1 + $0x8] sm:$0xf]
  %v52 = vld [vmem:[%s1 + $0xc] sm:$0xf]
  %v53 = vld [vmem:[%s1 + $0x10] sm:$0xf]
  %v54 = vld [vmem:[%s1 + $0x14] sm:$0xf]
  %v55 = vld [vmem:[%s1 + $0x18] sm:$0xf]
  %v56 = vld [vmem:[%s1 + $0x1c] sm:$0xf]
  %v57 = vld [vmem:[%s1 + $0x20] sm:$0xf]
  %v58 = vld [vmem:[%s1 + $0x24] sm:$0xf]
  %v59 = vld [vmem:[%s1 + $0x28] sm:$0xf]
  %v60 = vld [vmem:[%s1 + $0x2c] sm:$0xf]
  %v61 = vld [vmem:[%s1 + $0x30] sm:$0xf]
  %v62 = vld [vmem:[%s1 + $0x34] sm:$0xf]
  %v63 = vld [vmem:[%s1 + $0x38] sm:$0xf]
  %v64 = vld [vmem:[%s1 + $0x3c] sm:$0xf]
  %v65 = vld [vmem:[%s1 + $0x40] sm:$0xf]
  %v66 = vld [vmem:[%s1 + $0x44] sm:$0xf]
  %v67 = vld [vmem:[%s1 + $0x48] sm:$0xf]
  %v68 = vld [vmem:[%s1 + $0x4c] sm:$0xf]
  %v69 = vld [vmem:[%s1 + $0x50] sm:$0xf]
  %v70 = vld [vmem:[%s1 + $0x54] sm:$0xf]
  %v71 = vld [vmem:[%s1 + $0x58] sm:$0xf]
  %v72 = vld [vmem:[%s1 + $0x5c] sm:$0xf]
  %v73 = vld [vmem:[%s1 + $0x60] sm:$0xf]
  %v74 = vld [vmem:[%s1 + $0x64] sm:$0xf]
  %v75 = vld [vmem:[%s1 + $0x68] sm:$0xf]
  %v76 = vld [vmem:[%s1 + $0x6c] sm:$0xf]
  %v77 = vld [vmem:[%s1 + $0x70] sm:$0xf]
  %v78 = vld [vmem:[%s1 + $0x74] sm:$0xf]
  %v79 = vpack.c.bf16 %v46, %v45
  %v80 = vpack.c.bf16 %v48, %v47
  %s81 = scalar_lea.vmem %s1, 120
  %v82 = vld [vmem:[%s81] sm:$0xf]
  %v83 = vld [vmem:[%s81 + $0x4] sm:$0xf]
  %v84 = vld [vmem:[%s81 + $0x8] sm:$0xf]
  %v85 = vld [vmem:[%s81 + $0xc] sm:$0xf]
  %v86 = vld [vmem:[%s81 + $0x10] sm:$0xf]
  %v87 = vld [vmem:[%s81 + $0x14] sm:$0xf]
  %v88 = vld [vmem:[%s81 + $0x18] sm:$0xf]
  %v89 = vld [vmem:[%s81 + $0x1c] sm:$0xf]
  %v90 = vld [vmem:[%s81 + $0x20] sm:$0xf]
  %v91 = vld [vmem:[%s81 + $0x24] sm:$0xf]
  %v92 = vld [vmem:[%s81 + $0x28] sm:$0xf]
  %v93 = vld [vmem:[%s81 + $0x2c] sm:$0xf]
  %v94 = vld [vmem:[%s81 + $0x30] sm:$0xf]
  %v95 = vld [vmem:[%s81 + $0x34] sm:$0xf]
  %v96 = vld [vmem:[%s81 + $0x38] sm:$0xf]
  %v97 = vld [vmem:[%s81 + $0x3c] sm:$0xf]
  %v98 = vld [vmem:[%s81 + $0x40] sm:$0xf]
  %v99 = vld [vmem:[%s81 + $0x44] sm:$0xf]
  %v100 = vld [vmem:[%s81 + $0x48] sm:$0xf]
  %v101 = vld [vmem:[%s81 + $0x4c] sm:$0xf]
  %v102 = vld [vmem:[%s81 + $0x50] sm:$0xf]
  %v103 = vld [vmem:[%s81 + $0x54] sm:$0xf]
  %v104 = vld [vmem:[%s81 + $0x58] sm:$0xf]
  %v105 = vld [vmem:[%s81 + $0x5c] sm:$0xf]
  %v106 = vld [vmem:[%s81 + $0x60] sm:$0xf]
  %v107 = vld [vmem:[%s81 + $0x64] sm:$0xf]
  %v108 = vld [vmem:[%s81 + $0x68] sm:$0xf]
  %v109 = vld [vmem:[%s81 + $0x6c] sm:$0xf]
  %v110 = vld [vmem:[%s81 + $0x70] sm:$0xf]
  %v111 = vld [vmem:[%s81 + $0x74] sm:$0xf]
  %v142 = vunpack.c.l.b16 %v82
  %v143 = vunpack.c.l.b16 %v83
  %v144 = vunpack.c.l.b16 %v84
  %v145 = vunpack.c.l.b16 %v85
  %v146 = vunpack.c.l.b16 %v86
  %v147 = vunpack.c.l.b16 %v87
  %v148 = vunpack.c.l.b16 %v88
  %v149 = vunpack.c.l.b16 %v89
  %v150 = vunpack.c.l.b16 %v90
  %v151 = vunpack.c.l.b16 %v91
  %v152 = vunpack.c.l.b16 %v92
  %v153 = vunpack.c.l.b16 %v93
  %v154 = vunpack.c.l.b16 %v94
  %v155 = vunpack.c.l.b16 %v95
  %v156 = vunpack.c.l.b16 %v96
  %v157 = vunpack.c.l.b16 %v97
  %v158 = vunpack.c.l.b16 %v98
  %v159 = vunpack.c.l.b16 %v99
  %v160 = vunpack.c.l.b16 %v100
  %v161 = vunpack.c.l.b16 %v101
  %v162 = vunpack.c.l.b16 %v102
  %v163 = vunpack.c.l.b16 %v103
  %v164 = vunpack.c.l.b16 %v104
  %v165 = vunpack.c.l.b16 %v105
  %v166 = vunpack.c.l.b16 %v106
  %v167 = vunpack.c.l.b16 %v107
  %v168 = vunpack.c.l.b16 %v108
  %v169 = vunpack.c.l.b16 %v109
  %v170 = vunpack.c.l.b16 %v110
  %v171 = vunpack.c.l.b16 %v111
  %v172 = vpack.c.b16 %v143, %v142
  %v173 = vpack.c.b16 %v145, %v144
  %v174 = vpack.c.b16 %v147, %v146
  %v175 = vpack.c.b16 %v149, %v148
  %v176 = vpack.c.b16 %v151, %v150
  %v177 = vpack.c.b16 %v153, %v152
  %v178 = vpack.c.b16 %v155, %v154
  %v179 = vpack.c.b16 %v157, %v156
  %v180 = vpack.c.b16 %v159, %v158
  %v181 = vpack.c.b16 %v161, %v160
  %v182 = vpack.c.b16 %v163, %v162
  %v183 = vpack.c.b16 %v165, %v164
  %v184 = vpack.c.b16 %v167, %v166
  %v185 = vpack.c.b16 %v169, %v168
  %v186 = vpack.c.b16 %v171, %v170
  %189 = vrot.lane.b32.xlu0 %v79, 127
  %v190 = vpop.permute.xlu0 %189
  %191 = vrot.lane.b32.xlu0 %v80, 127
  %v192 = vpop.permute.xlu0 %191
  %vm194 = vcmask 228352
  %v196 = vsel %vm194, %v172, 0
  %v199 = vsel %vm194, %v173, 0
  %v202 = vsel %vm194, %v174, 0
  %v205 = vsel %vm194, %v175, 0
  %v208 = vsel %vm194, %v176, 0
  %v211 = vsel %vm194, %v177, 0
  %v214 = vsel %vm194, %v178, 0
  %v217 = vsel %vm194, %v179, 0
  %v220 = vsel %vm194, %v180, 0
  %v223 = vsel %vm194, %v181, 0
  %v226 = vsel %vm194, %v182, 0
  %v229 = vsel %vm194, %v183, 0
  %v232 = vsel %vm194, %v184, 0
  %v235 = vsel %vm194, %v185, 0
  %v238 = vsel %vm194, %v186, 0
  %vm240 = vcmask 1045504
  %v242 = vsel %vm240, %v192, 0
  %244 = vmatprep.subr.bf16.mxu0 0
  %245 = vmatpush1.bf16.msra.mxu0 0
  %246 = vmatprep.subr.bf16.mxu0 0
  %247 = vmatpush1.bf16.msra.mxu0 0
  %248 = vmatprep.subr.bf16.mxu0 0
  %249 = vmatpush1.bf16.msra.mxu0 0
  %250 = vmatprep.subr.bf16.mxu0 0
  %251 = vmatpush1.bf16.msra.mxu0 0
  %252 = vmatprep.subr.bf16.mxu0 0
  %253 = vmatpush1.bf16.msra.mxu0 0
  %254 = vmatprep.subr.bf16.mxu0 0
  %255 = vmatpush1.bf16.msra.mxu0 0
  %256 = vmatprep.subr.bf16.mxu0 0
  %257 = vmatpush1.bf16.msra.mxu0 %v242
  %258 = vmatprep.subr.bf16.mxu0 0
  %259 = vmatpush1.bf16.msra.mxu0 %v190
  %260 = vmatprep.subr.bf16.mxu0 0
  %261 = vmatpush2.bf16.msra.mxu0 0
  %262 = vmatprep.subr.bf16.mxu0 0
  %263 = vmatpush2.bf16.msra.mxu0 0
  %264 = vmatprep.subr.bf16.mxu0 0
  %265 = vmatpush2.bf16.msra.mxu0 0
  %266 = vmatprep.subr.bf16.mxu0 0
  %267 = vmatpush2.bf16.msra.mxu0 0
  %268 = vmatprep.subr.bf16.mxu0 0
  %269 = vmatpush2.bf16.msra.mxu0 0
  %270 = vmatprep.subr.bf16.mxu0 0
  %271 = vmatpush2.bf16.msra.mxu0 0
  %272 = vmatprep.subr.bf16.mxu0 0
  %273 = vmatpush2.bf16.msra.mxu0 0
  %274 = vmatprep.subr.bf16.mxu0 0
  %275 = vmatpush2.bf16.msra.mxu0 0
  %276 = vmatprep.mubr.bf16.mxu0 0
  %277 = vmatmul.mubr.bf16.gmra.mxu0 %v196
  %v278 = vpop.f32.mrf.mxu0
  %v279 = vadd.f32 0.0, %v278
  %v280 = vpop.f32.mrf.mxu0
  %v281 = vpop.f32.mrf.mxu0
  %v282 = vadd.f32 0.0, %v281
  %v283 = vpop.f32.mrf.mxu0
  %284 = vmatprep.mubr.bf16.mxu0 0
  %285 = vmatmul.mubr.bf16.gmra.mxu0 %v199
  %v286 = vpop.f32.mrf.mxu0
  %v287 = vadd.f32 0.0, %v286
  %v288 = vpop.f32.mrf.mxu0
  %v289 = vpop.f32.mrf.mxu0
  %v290 = vadd.f32 0.0, %v289
  %v291 = vpop.f32.mrf.mxu0
  %292 = vmatprep.mubr.bf16.mxu0 0
  %293 = vmatmul.mubr.bf16.gmra.mxu0 %v202
  %v294 = vpop.f32.mrf.mxu0
  %v295 = vadd.f32 0.0, %v294
  %v296 = vpop.f32.mrf.mxu0
  %v297 = vpop.f32.mrf.mxu0
  %v298 = vadd.f32 0.0, %v297
  %v299 = vpop.f32.mrf.mxu0
  %300 = vmatprep.mubr.bf16.mxu0 0
  %301 = vmatmul.mubr.bf16.gmra.mxu0 %v205
  %v302 = vpop.f32.mrf.mxu0
  %v303 = vadd.f32 0.0, %v302
  %v304 = vpop.f32.mrf.mxu0
  %v305 = vpop.f32.mrf.mxu0
  %v306 = vadd.f32 0.0, %v305
  %v307 = vpop.f32.mrf.mxu0
  %308 = vmatprep.mubr.bf16.mxu0 0
  %309 = vmatmul.mubr.bf16.gmra.mxu0 %v208
  %v310 = vpop.f32.mrf.mxu0
  %v311 = vadd.f32 0.0, %v310
  %v312 = vpop.f32.mrf.mxu0
  %v313 = vpop.f32.mrf.mxu0
  %v314 = vadd.f32 0.0, %v313
  %v315 = vpop.f32.mrf.mxu0
  %316 = vmatprep.mubr.bf16.mxu0 0
  %317 = vmatmul.mubr.bf16.gmra.mxu0 %v211
  %v318 = vpop.f32.mrf.mxu0
  %v319 = vadd.f32 0.0, %v318
  %v320 = vpop.f32.mrf.mxu0
  %v321 = vpop.f32.mrf.mxu0
  %v322 = vadd.f32 0.0, %v321
  %v323 = vpop.f32.mrf.mxu0
  %324 = vmatprep.mubr.bf16.mxu0 0
  %325 = vmatmul.mubr.bf16.gmra.mxu0 %v214
  %v326 = vpop.f32.mrf.mxu0
  %v327 = vadd.f32 0.0, %v326
  %v328 = vpop.f32.mrf.mxu0
  %v329 = vpop.f32.mrf.mxu0
  %v330 = vadd.f32 0.0, %v329
  %v331 = vpop.f32.mrf.mxu0
  %332 = vmatprep.mubr.bf16.mxu0 0
  %333 = vmatmul.mubr.bf16.gmra.mxu0 %v217
  %v334 = vpop.f32.mrf.mxu0
  %v335 = vadd.f32 0.0, %v334
  %v336 = vpop.f32.mrf.mxu0
  %v337 = vpop.f32.mrf.mxu0
  %v338 = vadd.f32 0.0, %v337
  %v339 = vpop.f32.mrf.mxu0
  %340 = vmatprep.mubr.bf16.mxu0 0
  %341 = vmatmul.mubr.bf16.gmra.mxu0 %v220
  %v342 = vpop.f32.mrf.mxu0
  %v343 = vadd.f32 0.0, %v342
  %v344 = vpop.f32.mrf.mxu0
  %v345 = vpop.f32.mrf.mxu0
  %v346 = vadd.f32 0.0, %v345
  %v347 = vpop.f32.mrf.mxu0
  %348 = vmatprep.mubr.bf16.mxu0 0
  %349 = vmatmul.mubr.bf16.gmra.mxu0 %v223
  %v350 = vpop.f32.mrf.mxu0
  %v351 = vadd.f32 0.0, %v350
  %v352 = vpop.f32.mrf.mxu0
  %v353 = vpop.f32.mrf.mxu0
  %v354 = vadd.f32 0.0, %v353
  %v355 = vpop.f32.mrf.mxu0
  %356 = vmatprep.mubr.bf16.mxu0 0
  %357 = vmatmul.mubr.bf16.gmra.mxu0 %v226
  %v358 = vpop.f32.mrf.mxu0
  %v359 = vadd.f32 0.0, %v358
  %v360 = vpop.f32.mrf.mxu0
  %v361 = vpop.f32.mrf.mxu0
  %v362 = vadd.f32 0.0, %v361
  %v363 = vpop.f32.mrf.mxu0
  %364 = vmatprep.mubr.bf16.mxu0 0
  %365 = vmatmul.mubr.bf16.gmra.mxu0 %v229
  %v366 = vpop.f32.mrf.mxu0
  %v367 = vadd.f32 0.0, %v366
  %v368 = vpop.f32.mrf.mxu0
  %v369 = vpop.f32.mrf.mxu0
  %v370 = vadd.f32 0.0, %v369
  %v371 = vpop.f32.mrf.mxu0
  %372 = vmatprep.mubr.bf16.mxu0 0
  %373 = vmatmul.mubr.bf16.gmra.mxu0 %v232
  %v374 = vpop.f32.mrf.mxu0
  %v375 = vadd.f32 0.0, %v374
  %v376 = vpop.f32.mrf.mxu0
  %v377 = vpop.f32.mrf.mxu0
  %v378 = vadd.f32 0.0, %v377
  %v379 = vpop.f32.mrf.mxu0
  %380 = vmatprep.mubr.bf16.mxu0 0
  %381 = vmatmul.mubr.bf16.gmra.mxu0 %v235
  %v382 = vpop.f32.mrf.mxu0
  %v383 = vadd.f32 0.0, %v382
  %v384 = vpop.f32.mrf.mxu0
  %v385 = vpop.f32.mrf.mxu0
  %v386 = vadd.f32 0.0, %v385
  %v387 = vpop.f32.mrf.mxu0
  %388 = vmatprep.mubr.bf16.mxu0 0
  %389 = vmatmul.mubr.bf16.gmra.mxu0 %v238
  %v390 = vpop.f32.mrf.mxu0
  %v391 = vadd.f32 0.0, %v390
  %v392 = vpop.f32.mrf.mxu0
  %v393 = vpop.f32.mrf.mxu0
  %v394 = vadd.f32 0.0, %v393
  %v395 = vpop.f32.mrf.mxu0
  %396 = vdwg.mxu0
  %v427 = vunpack.c.l.b16 %v49
  %v428 = vunpack.c.l.b16 %v50
  %v429 = vunpack.c.l.b16 %v51
  %v430 = vunpack.c.l.b16 %v52
  %v431 = vunpack.c.l.b16 %v53
  %v432 = vunpack.c.l.b16 %v54
  %v433 = vunpack.c.l.b16 %v55
  %v434 = vunpack.c.l.b16 %v56
  %v435 = vunpack.c.l.b16 %v57
  %v436 = vunpack.c.l.b16 %v58
  %v437 = vunpack.c.l.b16 %v59
  %v438 = vunpack.c.l.b16 %v60
  %v439 = vunpack.c.l.b16 %v61
  %v440 = vunpack.c.l.b16 %v62
  %v441 = vunpack.c.l.b16 %v63
  %v442 = vunpack.c.l.b16 %v64
  %v443 = vunpack.c.l.b16 %v65
  %v444 = vunpack.c.l.b16 %v66
  %v445 = vunpack.c.l.b16 %v67
  %v446 = vunpack.c.l.b16 %v68
  %v447 = vunpack.c.l.b16 %v69
  %v448 = vunpack.c.l.b16 %v70
  %v449 = vunpack.c.l.b16 %v71
  %v450 = vunpack.c.l.b16 %v72
  %v451 = vunpack.c.l.b16 %v73
  %v452 = vunpack.c.l.b16 %v74
  %v453 = vunpack.c.l.b16 %v75
  %v454 = vunpack.c.l.b16 %v76
  %v455 = vunpack.c.l.b16 %v77
  %v456 = vunpack.c.l.b16 %v78
  %v457 = vpack.c.b16 %v428, %v427
  %v458 = vpack.c.b16 %v430, %v429
  %v459 = vpack.c.b16 %v432, %v431
  %v460 = vpack.c.b16 %v434, %v433
  %v461 = vpack.c.b16 %v436, %v435
  %v462 = vpack.c.b16 %v438, %v437
  %v463 = vpack.c.b16 %v440, %v439
  %v464 = vpack.c.b16 %v442, %v441
  %v465 = vpack.c.b16 %v444, %v443
  %v466 = vpack.c.b16 %v446, %v445
  %v467 = vpack.c.b16 %v448, %v447
  %v468 = vpack.c.b16 %v450, %v449
  %v469 = vpack.c.b16 %v452, %v451
  %v470 = vpack.c.b16 %v454, %v453
  %v471 = vpack.c.b16 %v456, %v455
  %v473 = vsel %vm194, %v457, 0
  %v476 = vsel %vm194, %v458, 0
  %v479 = vsel %vm194, %v459, 0
  %v482 = vsel %vm194, %v460, 0
  %v485 = vsel %vm194, %v461, 0
  %v488 = vsel %vm194, %v462, 0
  %v491 = vsel %vm194, %v463, 0
  %v494 = vsel %vm194, %v464, 0
  %v497 = vsel %vm194, %v465, 0
  %v500 = vsel %vm194, %v466, 0
  %v503 = vsel %vm194, %v467, 0
  %v506 = vsel %vm194, %v468, 0
  %v509 = vsel %vm194, %v469, 0
  %v512 = vsel %vm194, %v470, 0
  %v515 = vsel %vm194, %v471, 0
  %v518 = vsel %vm240, %v80, 0
  %520 = vmatprep.subr.bf16.mxu0 0
  %521 = vmatpush1.bf16.msra.mxu0 0
  %522 = vmatprep.subr.bf16.mxu0 0
  %523 = vmatpush1.bf16.msra.mxu0 0
  %524 = vmatprep.subr.bf16.mxu0 0
  %525 = vmatpush1.bf16.msra.mxu0 0
  %526 = vmatprep.subr.bf16.mxu0 0
  %527 = vmatpush1.bf16.msra.mxu0 0
  %528 = vmatprep.subr.bf16.mxu0 0
  %529 = vmatpush1.bf16.msra.mxu0 0
  %530 = vmatprep.subr.bf16.mxu0 0
  %531 = vmatpush1.bf16.msra.mxu0 0
  %532 = vmatprep.subr.bf16.mxu0 0
  %533 = vmatpush1.bf16.msra.mxu0 %v518
  %534 = vmatprep.subr.bf16.mxu0 0
  %535 = vmatpush1.bf16.msra.mxu0 %v79
  %536 = vmatprep.subr.bf16.mxu0 0
  %537 = vmatpush2.bf16.msra.mxu0 0
  %538 = vmatprep.subr.bf16.mxu0 0
  %539 = vmatpush2.bf16.msra.mxu0 0
  %540 = vmatprep.subr.bf16.mxu0 0
  %541 = vmatpush2.bf16.msra.mxu0 0
  %542 = vmatprep.subr.bf16.mxu0 0
  %543 = vmatpush2.bf16.msra.mxu0 0
  %544 = vmatprep.subr.bf16.mxu0 0
  %545 = vmatpush2.bf16.msra.mxu0 0
  %546 = vmatprep.subr.bf16.mxu0 0
  %547 = vmatpush2.bf16.msra.mxu0 0
  %548 = vmatprep.subr.bf16.mxu0 0
  %549 = vmatpush2.bf16.msra.mxu0 0
  %550 = vmatprep.subr.bf16.mxu0 0
  %551 = vmatpush2.bf16.msra.mxu0 0
  %552 = vmatprep.mubr.bf16.mxu0 0
  %553 = vmatmul.mubr.bf16.gmra.mxu0 %v473
  %v554 = vpop.f32.mrf.mxu0
  %v555 = vadd.f32 %v279, %v554
  %v556 = vpop.f32.mrf.mxu0
  %v557 = vpop.f32.mrf.mxu0
  %v558 = vadd.f32 %v282, %v557
  %v559 = vpop.f32.mrf.mxu0
  %560 = vmatprep.mubr.bf16.mxu0 0
  %561 = vmatmul.mubr.bf16.gmra.mxu0 %v476
  %v562 = vpop.f32.mrf.mxu0
  %v563 = vadd.f32 %v287, %v562
  %v564 = vpop.f32.mrf.mxu0
  %v565 = vpop.f32.mrf.mxu0
  %v566 = vadd.f32 %v290, %v565
  %v567 = vpop.f32.mrf.mxu0
  %568 = vmatprep.mubr.bf16.mxu0 0
  %569 = vmatmul.mubr.bf16.gmra.mxu0 %v479
  %v570 = vpop.f32.mrf.mxu0
  %v571 = vadd.f32 %v295, %v570
  %v572 = vpop.f32.mrf.mxu0
  %v573 = vpop.f32.mrf.mxu0
  %v574 = vadd.f32 %v298, %v573
  %v575 = vpop.f32.mrf.mxu0
  %576 = vmatprep.mubr.bf16.mxu0 0
  %577 = vmatmul.mubr.bf16.gmra.mxu0 %v482
  %v578 = vpop.f32.mrf.mxu0
  %v579 = vadd.f32 %v303, %v578
  %v580 = vpop.f32.mrf.mxu0
  %v581 = vpop.f32.mrf.mxu0
  %v582 = vadd.f32 %v306, %v581
  %v583 = vpop.f32.mrf.mxu0
  %584 = vmatprep.mubr.bf16.mxu0 0
  %585 = vmatmul.mubr.bf16.gmra.mxu0 %v485
  %v586 = vpop.f32.mrf.mxu0
  %v587 = vadd.f32 %v311, %v586
  %v588 = vpop.f32.mrf.mxu0
  %v589 = vpop.f32.mrf.mxu0
  %v590 = vadd.f32 %v314, %v589
  %v591 = vpop.f32.mrf.mxu0
  %592 = vmatprep.mubr.bf16.mxu0 0
  %593 = vmatmul.mubr.bf16.gmra.mxu0 %v488
  %v594 = vpop.f32.mrf.mxu0
  %v595 = vadd.f32 %v319, %v594
  %v596 = vpop.f32.mrf.mxu0
  %v597 = vpop.f32.mrf.mxu0
  %v598 = vadd.f32 %v322, %v597
  %v599 = vpop.f32.mrf.mxu0
  %600 = vmatprep.mubr.bf16.mxu0 0
  %601 = vmatmul.mubr.bf16.gmra.mxu0 %v491
  %v602 = vpop.f32.mrf.mxu0
  %v603 = vadd.f32 %v327, %v602
  %v604 = vpop.f32.mrf.mxu0
  %v605 = vpop.f32.mrf.mxu0
  %v606 = vadd.f32 %v330, %v605
  %v607 = vpop.f32.mrf.mxu0
  %608 = vmatprep.mubr.bf16.mxu0 0
  %609 = vmatmul.mubr.bf16.gmra.mxu0 %v494
  %v610 = vpop.f32.mrf.mxu0
  %v611 = vadd.f32 %v335, %v610
  %v612 = vpop.f32.mrf.mxu0
  %v613 = vpop.f32.mrf.mxu0
  %v614 = vadd.f32 %v338, %v613
  %v615 = vpop.f32.mrf.mxu0
  %616 = vmatprep.mubr.bf16.mxu0 0
  %617 = vmatmul.mubr.bf16.gmra.mxu0 %v497
  %v618 = vpop.f32.mrf.mxu0
  %v619 = vadd.f32 %v343, %v618
  %v620 = vpop.f32.mrf.mxu0
  %v621 = vpop.f32.mrf.mxu0
  %v622 = vadd.f32 %v346, %v621
  %v623 = vpop.f32.mrf.mxu0
  %624 = vmatprep.mubr.bf16.mxu0 0
  %625 = vmatmul.mubr.bf16.gmra.mxu0 %v500
  %v626 = vpop.f32.mrf.mxu0
  %v627 = vadd.f32 %v351, %v626
  %v628 = vpop.f32.mrf.mxu0
  %v629 = vpop.f32.mrf.mxu0
  %v630 = vadd.f32 %v354, %v629
  %v631 = vpop.f32.mrf.mxu0
  %632 = vmatprep.mubr.bf16.mxu0 0
  %633 = vmatmul.mubr.bf16.gmra.mxu0 %v503
  %v634 = vpop.f32.mrf.mxu0
  %v635 = vadd.f32 %v359, %v634
  %v636 = vpop.f32.mrf.mxu0
  %v637 = vpop.f32.mrf.mxu0
  %v638 = vadd.f32 %v362, %v637
  %v639 = vpop.f32.mrf.mxu0
  %640 = vmatprep.mubr.bf16.mxu0 0
  %641 = vmatmul.mubr.bf16.gmra.mxu0 %v506
  %v642 = vpop.f32.mrf.mxu0
  %v643 = vadd.f32 %v367, %v642
  %v644 = vpop.f32.mrf.mxu0
  %v645 = vpop.f32.mrf.mxu0
  %v646 = vadd.f32 %v370, %v645
  %v647 = vpop.f32.mrf.mxu0
  %648 = vmatprep.mubr.bf16.mxu0 0
  %649 = vmatmul.mubr.bf16.gmra.mxu0 %v509
  %v650 = vpop.f32.mrf.mxu0
  %v651 = vadd.f32 %v375, %v650
  %v652 = vpop.f32.mrf.mxu0
  %v653 = vpop.f32.mrf.mxu0
  %v654 = vadd.f32 %v378, %v653
  %v655 = vpop.f32.mrf.mxu0
  %656 = vmatprep.mubr.bf16.mxu0 0
  %657 = vmatmul.mubr.bf16.gmra.mxu0 %v512
  %v658 = vpop.f32.mrf.mxu0
  %v659 = vadd.f32 %v383, %v658
  %v660 = vpop.f32.mrf.mxu0
  %v661 = vpop.f32.mrf.mxu0
  %v662 = vadd.f32 %v386, %v661
  %v663 = vpop.f32.mrf.mxu0
  %664 = vmatprep.mubr.bf16.mxu0 0
  %665 = vmatmul.mubr.bf16.gmra.mxu0 %v515
  %v666 = vpop.f32.mrf.mxu0
  %v667 = vadd.f32 %v391, %v666
  %v668 = vpop.f32.mrf.mxu0
  %v669 = vpop.f32.mrf.mxu0
  %v670 = vadd.f32 %v394, %v669
  %v671 = vpop.f32.mrf.mxu0
  %672 = vdwg.mxu0
  %s673 = scalar_lea.vmem %s1, 240
  %v674 = vld [vmem:[%s673] sm:$0xf]
  %v675 = vld [vmem:[%s673 + $0x4] sm:$0xf]
  %v676 = vld [vmem:[%s673 + $0x8] sm:$0xf]
  %v677 = vld [vmem:[%s673 + $0xc] sm:$0xf]
  %v678 = vld [vmem:[%s673 + $0x10] sm:$0xf]
  %v679 = vld [vmem:[%s673 + $0x14] sm:$0xf]
  %v680 = vld [vmem:[%s673 + $0x18] sm:$0xf]
  %v681 = vld [vmem:[%s673 + $0x1c] sm:$0xf]
  %v682 = vld [vmem:[%s673 + $0x20] sm:$0xf]
  %v683 = vld [vmem:[%s673 + $0x24] sm:$0xf]
  %v684 = vld [vmem:[%s673 + $0x28] sm:$0xf]
  %v685 = vld [vmem:[%s673 + $0x2c] sm:$0xf]
  %v686 = vld [vmem:[%s673 + $0x30] sm:$0xf]
  %v687 = vld [vmem:[%s673 + $0x34] sm:$0xf]
  %v688 = vld [vmem:[%s673 + $0x38] sm:$0xf]
  %v689 = vld [vmem:[%s673 + $0x3c] sm:$0xf]
  %v690 = vld [vmem:[%s673 + $0x40] sm:$0xf]
  %v691 = vld [vmem:[%s673 + $0x44] sm:$0xf]
  %v692 = vld [vmem:[%s673 + $0x48] sm:$0xf]
  %v693 = vld [vmem:[%s673 + $0x4c] sm:$0xf]
  %v694 = vld [vmem:[%s673 + $0x50] sm:$0xf]
  %v695 = vld [vmem:[%s673 + $0x54] sm:$0xf]
  %v696 = vld [vmem:[%s673 + $0x58] sm:$0xf]
  %v697 = vld [vmem:[%s673 + $0x5c] sm:$0xf]
  %v698 = vld [vmem:[%s673 + $0x60] sm:$0xf]
  %v699 = vld [vmem:[%s673 + $0x64] sm:$0xf]
  %v700 = vld [vmem:[%s673 + $0x68] sm:$0xf]
  %v701 = vld [vmem:[%s673 + $0x6c] sm:$0xf]
  %v702 = vld [vmem:[%s673 + $0x70] sm:$0xf]
  %v703 = vld [vmem:[%s673 + $0x74] sm:$0xf]
  %v734 = vunpack.c.l.b16 %v674
  %v735 = vunpack.c.l.b16 %v675
  %v736 = vunpack.c.l.b16 %v676
  %v737 = vunpack.c.l.b16 %v677
  %v738 = vunpack.c.l.b16 %v678
  %v739 = vunpack.c.l.b16 %v679
  %v740 = vunpack.c.l.b16 %v680
  %v741 = vunpack.c.l.b16 %v681
  %v742 = vunpack.c.l.b16 %v682
  %v743 = vunpack.c.l.b16 %v683
  %v744 = vunpack.c.l.b16 %v684
  %v745 = vunpack.c.l.b16 %v685
  %v746 = vunpack.c.l.b16 %v686
  %v747 = vunpack.c.l.b16 %v687
  %v748 = vunpack.c.l.b16 %v688
  %v749 = vunpack.c.l.b16 %v689
  %v750 = vunpack.c.l.b16 %v690
  %v751 = vunpack.c.l.b16 %v691
  %v752 = vunpack.c.l.b16 %v692
  %v753 = vunpack.c.l.b16 %v693
  %v754 = vunpack.c.l.b16 %v694
  %v755 = vunpack.c.l.b16 %v695
  %v756 = vunpack.c.l.b16 %v696
  %v757 = vunpack.c.l.b16 %v697
  %v758 = vunpack.c.l.b16 %v698
  %v759 = vunpack.c.l.b16 %v699
  %v760 = vunpack.c.l.b16 %v700
  %v761 = vunpack.c.l.b16 %v701
  %v762 = vunpack.c.l.b16 %v702
  %v763 = vunpack.c.l.b16 %v703
  %v764 = vpack.c.b16 %v735, %v734
  %v765 = vpack.c.b16 %v737, %v736
  %v766 = vpack.c.b16 %v739, %v738
  %v767 = vpack.c.b16 %v741, %v740
  %v768 = vpack.c.b16 %v743, %v742
  %v769 = vpack.c.b16 %v745, %v744
  %v770 = vpack.c.b16 %v747, %v746
  %v771 = vpack.c.b16 %v749, %v748
  %v772 = vpack.c.b16 %v751, %v750
  %v773 = vpack.c.b16 %v753, %v752
  %v774 = vpack.c.b16 %v755, %v754
  %v775 = vpack.c.b16 %v757, %v756
  %v776 = vpack.c.b16 %v759, %v758
  %v777 = vpack.c.b16 %v761, %v760
  %v778 = vpack.c.b16 %v763, %v762
  %779 = vrot.lane.b32.xlu0 %v79, 126
  %v780 = vpop.permute.xlu0 %779
  %781 = vrot.lane.b32.xlu0 %v80, 126
  %v782 = vpop.permute.xlu0 %781
  %v785 = vsel %vm194, %v764, 0
  %v788 = vsel %vm194, %v765, 0
  %v791 = vsel %vm194, %v766, 0
  %v794 = vsel %vm194, %v767, 0
  %v797 = vsel %vm194, %v768, 0
  %v800 = vsel %vm194, %v769, 0
  %v803 = vsel %vm194, %v770, 0
  %v806 = vsel %vm194, %v771, 0
  %v809 = vsel %vm194, %v772, 0
  %v812 = vsel %vm194, %v773, 0
  %v815 = vsel %vm194, %v774, 0
  %v818 = vsel %vm194, %v775, 0
  %v821 = vsel %vm194, %v776, 0
  %v824 = vsel %vm194, %v777, 0
  %v827 = vsel %vm194, %v778, 0
  %v830 = vsel %vm240, %v782, 0
  %832 = vmatprep.subr.bf16.mxu0 0
  %833 = vmatpush1.bf16.msra.mxu0 0
  %834 = vmatprep.subr.bf16.mxu0 0
  %835 = vmatpush1.bf16.msra.mxu0 0
  %836 = vmatprep.subr.bf16.mxu0 0
  %837 = vmatpush1.bf16.msra.mxu0 0
  %838 = vmatprep.subr.bf16.mxu0 0
  %839 = vmatpush1.bf16.msra.mxu0 0
  %840 = vmatprep.subr.bf16.mxu0 0
  %841 = vmatpush1.bf16.msra.mxu0 0
  %842 = vmatprep.subr.bf16.mxu0 0
  %843 = vmatpush1.bf16.msra.mxu0 0
  %844 = vmatprep.subr.bf16.mxu0 0
  %845 = vmatpush1.bf16.msra.mxu0 %v830
  %846 = vmatprep.subr.bf16.mxu0 0
  %847 = vmatpush1.bf16.msra.mxu0 %v780
  %848 = vmatprep.subr.bf16.mxu0 0
  %849 = vmatpush2.bf16.msra.mxu0 0
  %850 = vmatprep.subr.bf16.mxu0 0
  %851 = vmatpush2.bf16.msra.mxu0 0
  %852 = vmatprep.subr.bf16.mxu0 0
  %853 = vmatpush2.bf16.msra.mxu0 0
  %854 = vmatprep.subr.bf16.mxu0 0
  %855 = vmatpush2.bf16.msra.mxu0 0
  %856 = vmatprep.subr.bf16.mxu0 0
  %857 = vmatpush2.bf16.msra.mxu0 0
  %858 = vmatprep.subr.bf16.mxu0 0
  %859 = vmatpush2.bf16.msra.mxu0 0
  %860 = vmatprep.subr.bf16.mxu0 0
  %861 = vmatpush2.bf16.msra.mxu0 0
  %862 = vmatprep.subr.bf16.mxu0 0
  %863 = vmatpush2.bf16.msra.mxu0 0
  %864 = vmatprep.mubr.bf16.mxu0 0
  %865 = vmatmul.mubr.bf16.gmra.mxu0 %v785
  %v866 = vpop.f32.mrf.mxu0
  %v867 = vadd.f32 0.0, %v866
  %v868 = vpop.f32.mrf.mxu0
  %v869 = vpop.f32.mrf.mxu0
  %v870 = vadd.f32 0.0, %v869
  %v871 = vpop.f32.mrf.mxu0
  %872 = vmatprep.mubr.bf16.mxu0 0
  %873 = vmatmul.mubr.bf16.gmra.mxu0 %v788
  %v874 = vpop.f32.mrf.mxu0
  %v875 = vadd.f32 0.0, %v874
  %v876 = vpop.f32.mrf.mxu0
  %v877 = vpop.f32.mrf.mxu0
  %v878 = vadd.f32 0.0, %v877
  %v879 = vpop.f32.mrf.mxu0
  %880 = vmatprep.mubr.bf16.mxu0 0
  %881 = vmatmul.mubr.bf16.gmra.mxu0 %v791
  %v882 = vpop.f32.mrf.mxu0
  %v883 = vadd.f32 0.0, %v882
  %v884 = vpop.f32.mrf.mxu0
  %v885 = vpop.f32.mrf.mxu0
  %v886 = vadd.f32 0.0, %v885
  %v887 = vpop.f32.mrf.mxu0
  %888 = vmatprep.mubr.bf16.mxu0 0
  %889 = vmatmul.mubr.bf16.gmra.mxu0 %v794
  %v890 = vpop.f32.mrf.mxu0
  %v891 = vadd.f32 0.0, %v890
  %v892 = vpop.f32.mrf.mxu0
  %v893 = vpop.f32.mrf.mxu0
  %v894 = vadd.f32 0.0, %v893
  %v895 = vpop.f32.mrf.mxu0
  %896 = vmatprep.mubr.bf16.mxu0 0
  %897 = vmatmul.mubr.bf16.gmra.mxu0 %v797
  %v898 = vpop.f32.mrf.mxu0
  %v899 = vadd.f32 0.0, %v898
  %v900 = vpop.f32.mrf.mxu0
  %v901 = vpop.f32.mrf.mxu0
  %v902 = vadd.f32 0.0, %v901
  %v903 = vpop.f32.mrf.mxu0
  %904 = vmatprep.mubr.bf16.mxu0 0
  %905 = vmatmul.mubr.bf16.gmra.mxu0 %v800
  %v906 = vpop.f32.mrf.mxu0
  %v907 = vadd.f32 0.0, %v906
  %v908 = vpop.f32.mrf.mxu0
  %v909 = vpop.f32.mrf.mxu0
  %v910 = vadd.f32 0.0, %v909
  %v911 = vpop.f32.mrf.mxu0
  %912 = vmatprep.mubr.bf16.mxu0 0
  %913 = vmatmul.mubr.bf16.gmra.mxu0 %v803
  %v914 = vpop.f32.mrf.mxu0
  %v915 = vadd.f32 0.0, %v914
  %v916 = vpop.f32.mrf.mxu0
  %v917 = vpop.f32.mrf.mxu0
  %v918 = vadd.f32 0.0, %v917
  %v919 = vpop.f32.mrf.mxu0
  %920 = vmatprep.mubr.bf16.mxu0 0
  %921 = vmatmul.mubr.bf16.gmra.mxu0 %v806
  %v922 = vpop.f32.mrf.mxu0
  %v923 = vadd.f32 0.0, %v922
  %v924 = vpop.f32.mrf.mxu0
  %v925 = vpop.f32.mrf.mxu0
  %v926 = vadd.f32 0.0, %v925
  %v927 = vpop.f32.mrf.mxu0
  %928 = vmatprep.mubr.bf16.mxu0 0
  %929 = vmatmul.mubr.bf16.gmra.mxu0 %v809
  %v930 = vpop.f32.mrf.mxu0
  %v931 = vadd.f32 0.0, %v930
  %v932 = vpop.f32.mrf.mxu0
  %v933 = vpop.f32.mrf.mxu0
  %v934 = vadd.f32 0.0, %v933
  %v935 = vpop.f32.mrf.mxu0
  %936 = vmatprep.mubr.bf16.mxu0 0
  %937 = vmatmul.mubr.bf16.gmra.mxu0 %v812
  %v938 = vpop.f32.mrf.mxu0
  %v939 = vadd.f32 0.0, %v938
  %v940 = vpop.f32.mrf.mxu0
  %v941 = vpop.f32.mrf.mxu0
  %v942 = vadd.f32 0.0, %v941
  %v943 = vpop.f32.mrf.mxu0
  %944 = vmatprep.mubr.bf16.mxu0 0
  %945 = vmatmul.mubr.bf16.gmra.mxu0 %v815
  %v946 = vpop.f32.mrf.mxu0
  %v947 = vadd.f32 0.0, %v946
  %v948 = vpop.f32.mrf.mxu0
  %v949 = vpop.f32.mrf.mxu0
  %v950 = vadd.f32 0.0, %v949
  %v951 = vpop.f32.mrf.mxu0
  %952 = vmatprep.mubr.bf16.mxu0 0
  %953 = vmatmul.mubr.bf16.gmra.mxu0 %v818
  %v954 = vpop.f32.mrf.mxu0
  %v955 = vadd.f32 0.0, %v954
  %v956 = vpop.f32.mrf.mxu0
  %v957 = vpop.f32.mrf.mxu0
  %v958 = vadd.f32 0.0, %v957
  %v959 = vpop.f32.mrf.mxu0
  %960 = vmatprep.mubr.bf16.mxu0 0
  %961 = vmatmul.mubr.bf16.gmra.mxu0 %v821
  %v962 = vpop.f32.mrf.mxu0
  %v963 = vadd.f32 0.0, %v962
  %v964 = vpop.f32.mrf.mxu0
  %v965 = vpop.f32.mrf.mxu0
  %v966 = vadd.f32 0.0, %v965
  %v967 = vpop.f32.mrf.mxu0
  %968 = vmatprep.mubr.bf16.mxu0 0
  %969 = vmatmul.mubr.bf16.gmra.mxu0 %v824
  %v970 = vpop.f32.mrf.mxu0
  %v971 = vadd.f32 0.0, %v970
  %v972 = vpop.f32.mrf.mxu0
  %v973 = vpop.f32.mrf.mxu0
  %v974 = vadd.f32 0.0, %v973
  %v975 = vpop.f32.mrf.mxu0
  %976 = vmatprep.mubr.bf16.mxu0 0
  %977 = vmatmul.mubr.bf16.gmra.mxu0 %v827
  %v978 = vpop.f32.mrf.mxu0
  %v979 = vadd.f32 0.0, %v978
  %v980 = vpop.f32.mrf.mxu0
  %v981 = vpop.f32.mrf.mxu0
  %v982 = vadd.f32 0.0, %v981
  %v983 = vpop.f32.mrf.mxu0
  %984 = vdwg.mxu0
  %v985 = vadd.f32 %v555, %v867
  %v986 = vadd.f32 %v558, %v870
  %v987 = vadd.f32 %v563, %v875
  %v988 = vadd.f32 %v566, %v878
  %v989 = vadd.f32 %v571, %v883
  %v990 = vadd.f32 %v574, %v886
  %v991 = vadd.f32 %v579, %v891
  %v992 = vadd.f32 %v582, %v894
  %v993 = vadd.f32 %v587, %v899
  %v994 = vadd.f32 %v590, %v902
  %v995 = vadd.f32 %v595, %v907
  %v996 = vadd.f32 %v598, %v910
  %v997 = vadd.f32 %v603, %v915
  %v998 = vadd.f32 %v606, %v918
  %v999 = vadd.f32 %v611, %v923
  %v1000 = vadd.f32 %v614, %v926
  %v1001 = vadd.f32 %v619, %v931
  %v1002 = vadd.f32 %v622, %v934
  %v1003 = vadd.f32 %v627, %v939
  %v1004 = vadd.f32 %v630, %v942
  %v1005 = vadd.f32 %v635, %v947
  %v1006 = vadd.f32 %v638, %v950
  %v1007 = vadd.f32 %v643, %v955
  %v1008 = vadd.f32 %v646, %v958
  %v1009 = vadd.f32 %v651, %v963
  %v1010 = vadd.f32 %v654, %v966
  %v1011 = vadd.f32 %v659, %v971
  %v1012 = vadd.f32 %v662, %v974
  %v1013 = vadd.f32 %v667, %v979
  %v1014 = vadd.f32 %v670, %v982
  %s1015 = scalar_lea.vmem %s1, 360
  %v1016 = vld [vmem:[%s1015] sm:$0xf]
  %v1017 = vld [vmem:[%s1015 + $0x4] sm:$0xf]
  %v1018 = vld [vmem:[%s1015 + $0x8] sm:$0xf]
  %v1019 = vld [vmem:[%s1015 + $0xc] sm:$0xf]
  %v1020 = vld [vmem:[%s1015 + $0x10] sm:$0xf]
  %v1021 = vld [vmem:[%s1015 + $0x14] sm:$0xf]
  %v1022 = vld [vmem:[%s1015 + $0x18] sm:$0xf]
  %v1023 = vld [vmem:[%s1015 + $0x1c] sm:$0xf]
  %v1024 = vld [vmem:[%s1015 + $0x20] sm:$0xf]
  %v1025 = vld [vmem:[%s1015 + $0x24] sm:$0xf]
  %v1026 = vld [vmem:[%s1015 + $0x28] sm:$0xf]
  %v1027 = vld [vmem:[%s1015 + $0x2c] sm:$0xf]
  %v1028 = vld [vmem:[%s1015 + $0x30] sm:$0xf]
  %v1029 = vld [vmem:[%s1015 + $0x34] sm:$0xf]
  %v1030 = vld [vmem:[%s1015 + $0x38] sm:$0xf]
  %v1031 = vld [vmem:[%s1015 + $0x3c] sm:$0xf]
  %v1032 = vld [vmem:[%s1015 + $0x40] sm:$0xf]
  %v1033 = vld [vmem:[%s1015 + $0x44] sm:$0xf]
  %v1034 = vld [vmem:[%s1015 + $0x48] sm:$0xf]
  %v1035 = vld [vmem:[%s1015 + $0x4c] sm:$0xf]
  %v1036 = vld [vmem:[%s1015 + $0x50] sm:$0xf]
  %v1037 = vld [vmem:[%s1015 + $0x54] sm:$0xf]
  %v1038 = vld [vmem:[%s1015 + $0x58] sm:$0xf]
  %v1039 = vld [vmem:[%s1015 + $0x5c] sm:$0xf]
  %v1040 = vld [vmem:[%s1015 + $0x60] sm:$0xf]
  %v1041 = vld [vmem:[%s1015 + $0x64] sm:$0xf]
  %v1042 = vld [vmem:[%s1015 + $0x68] sm:$0xf]
  %v1043 = vld [vmem:[%s1015 + $0x6c] sm:$0xf]
  %v1044 = vld [vmem:[%s1015 + $0x70] sm:$0xf]
  %v1045 = vld [vmem:[%s1015 + $0x74] sm:$0xf]
  %v1076 = vunpack.c.l.b16 %v1016
  %v1077 = vunpack.c.l.b16 %v1017
  %v1078 = vunpack.c.l.b16 %v1018
  %v1079 = vunpack.c.l.b16 %v1019
  %v1080 = vunpack.c.l.b16 %v1020
  %v1081 = vunpack.c.l.b16 %v1021
  %v1082 = vunpack.c.l.b16 %v1022
  %v1083 = vunpack.c.l.b16 %v1023
  %v1084 = vunpack.c.l.b16 %v1024
  %v1085 = vunpack.c.l.b16 %v1025
  %v1086 = vunpack.c.l.b16 %v1026
  %v1087 = vunpack.c.l.b16 %v1027
  %v1088 = vunpack.c.l.b16 %v1028
  %v1089 = vunpack.c.l.b16 %v1029
  %v1090 = vunpack.c.l.b16 %v1030
  %v1091 = vunpack.c.l.b16 %v1031
  %v1092 = vunpack.c.l.b16 %v1032
  %v1093 = vunpack.c.l.b16 %v1033
  %v1094 = vunpack.c.l.b16 %v1034
  %v1095 = vunpack.c.l.b16 %v1035
  %v1096 = vunpack.c.l.b16 %v1036
  %v1097 = vunpack.c.l.b16 %v1037
  %v1098 = vunpack.c.l.b16 %v1038
  %v1099 = vunpack.c.l.b16 %v1039
  %v1100 = vunpack.c.l.b16 %v1040
  %v1101 = vunpack.c.l.b16 %v1041
  %v1102 = vunpack.c.l.b16 %v1042
  %v1103 = vunpack.c.l.b16 %v1043
  %v1104 = vunpack.c.l.b16 %v1044
  %v1105 = vunpack.c.l.b16 %v1045
  %v1106 = vpack.c.b16 %v1077, %v1076
  %v1107 = vpack.c.b16 %v1079, %v1078
  %v1108 = vpack.c.b16 %v1081, %v1080
  %v1109 = vpack.c.b16 %v1083, %v1082
  %v1110 = vpack.c.b16 %v1085, %v1084
  %v1111 = vpack.c.b16 %v1087, %v1086
  %v1112 = vpack.c.b16 %v1089, %v1088
  %v1113 = vpack.c.b16 %v1091, %v1090
  %v1114 = vpack.c.b16 %v1093, %v1092
  %v1115 = vpack.c.b16 %v1095, %v1094
  %v1116 = vpack.c.b16 %v1097, %v1096
  %v1117 = vpack.c.b16 %v1099, %v1098
  %v1118 = vpack.c.b16 %v1101, %v1100
  %v1119 = vpack.c.b16 %v1103, %v1102
  %v1120 = vpack.c.b16 %v1105, %v1104
  %1121 = vrot.lane.b32.xlu0 %v79, 125
  %v1122 = vpop.permute.xlu0 %1121
  %1123 = vrot.lane.b32.xlu0 %v80, 125
  %v1124 = vpop.permute.xlu0 %1123
  %v1127 = vsel %vm194, %v1106, 0
  %v1130 = vsel %vm194, %v1107, 0
  %v1133 = vsel %vm194, %v1108, 0
  %v1136 = vsel %vm194, %v1109, 0
  %v1139 = vsel %vm194, %v1110, 0
  %v1142 = vsel %vm194, %v1111, 0
  %v1145 = vsel %vm194, %v1112, 0
  %v1148 = vsel %vm194, %v1113, 0
  %v1151 = vsel %vm194, %v1114, 0
  %v1154 = vsel %vm194, %v1115, 0
  %v1157 = vsel %vm194, %v1116, 0
  %v1160 = vsel %vm194, %v1117, 0
  %v1163 = vsel %vm194, %v1118, 0
  %v1166 = vsel %vm194, %v1119, 0
  %v1169 = vsel %vm194, %v1120, 0
  %v1172 = vsel %vm240, %v1124, 0
  %1174 = vmatprep.subr.bf16.mxu0 0
  %1175 = vmatpush1.bf16.msra.mxu0 0
  %1176 = vmatprep.subr.bf16.mxu0 0
  %1177 = vmatpush1.bf16.msra.mxu0 0
  %1178 = vmatprep.subr.bf16.mxu0 0
  %1179 = vmatpush1.bf16.msra.mxu0 0
  %1180 = vmatprep.subr.bf16.mxu0 0
  %1181 = vmatpush1.bf16.msra.mxu0 0
  %1182 = vmatprep.subr.bf16.mxu0 0
  %1183 = vmatpush1.bf16.msra.mxu0 0
  %1184 = vmatprep.subr.bf16.mxu0 0
  %1185 = vmatpush1.bf16.msra.mxu0 0
  %1186 = vmatprep.subr.bf16.mxu0 0
  %1187 = vmatpush1.bf16.msra.mxu0 %v1172
  %1188 = vmatprep.subr.bf16.mxu0 0
  %1189 = vmatpush1.bf16.msra.mxu0 %v1122
  %1190 = vmatprep.subr.bf16.mxu0 0
  %1191 = vmatpush2.bf16.msra.mxu0 0
  %1192 = vmatprep.subr.bf16.mxu0 0
  %1193 = vmatpush2.bf16.msra.mxu0 0
  %1194 = vmatprep.subr.bf16.mxu0 0
  %1195 = vmatpush2.bf16.msra.mxu0 0
  %1196 = vmatprep.subr.bf16.mxu0 0
  %1197 = vmatpush2.bf16.msra.mxu0 0
  %1198 = vmatprep.subr.bf16.mxu0 0
  %1199 = vmatpush2.bf16.msra.mxu0 0
  %1200 = vmatprep.subr.bf16.mxu0 0
  %1201 = vmatpush2.bf16.msra.mxu0 0
  %1202 = vmatprep.subr.bf16.mxu0 0
  %1203 = vmatpush2.bf16.msra.mxu0 0
  %1204 = vmatprep.subr.bf16.mxu0 0
  %1205 = vmatpush2.bf16.msra.mxu0 0
  %1206 = vmatprep.mubr.bf16.mxu0 0
  %1207 = vmatmul.mubr.bf16.gmra.mxu0 %v1127
  %v1208 = vpop.f32.mrf.mxu0
  %v1209 = vadd.f32 0.0, %v1208
  %v1210 = vpop.f32.mrf.mxu0
  %v1211 = vpop.f32.mrf.mxu0
  %v1212 = vadd.f32 0.0, %v1211
  %v1213 = vpop.f32.mrf.mxu0
  %1214 = vmatprep.mubr.bf16.mxu0 0
  %1215 = vmatmul.mubr.bf16.gmra.mxu0 %v1130
  %v1216 = vpop.f32.mrf.mxu0
  %v1217 = vadd.f32 0.0, %v1216
  %v1218 = vpop.f32.mrf.mxu0
  %v1219 = vpop.f32.mrf.mxu0
  %v1220 = vadd.f32 0.0, %v1219
  %v1221 = vpop.f32.mrf.mxu0
  %1222 = vmatprep.mubr.bf16.mxu0 0
  %1223 = vmatmul.mubr.bf16.gmra.mxu0 %v1133
  %v1224 = vpop.f32.mrf.mxu0
  %v1225 = vadd.f32 0.0, %v1224
  %v1226 = vpop.f32.mrf.mxu0
  %v1227 = vpop.f32.mrf.mxu0
  %v1228 = vadd.f32 0.0, %v1227
  %v1229 = vpop.f32.mrf.mxu0
  %1230 = vmatprep.mubr.bf16.mxu0 0
  %1231 = vmatmul.mubr.bf16.gmra.mxu0 %v1136
  %v1232 = vpop.f32.mrf.mxu0
  %v1233 = vadd.f32 0.0, %v1232
  %v1234 = vpop.f32.mrf.mxu0
  %v1235 = vpop.f32.mrf.mxu0
  %v1236 = vadd.f32 0.0, %v1235
  %v1237 = vpop.f32.mrf.mxu0
  %1238 = vmatprep.mubr.bf16.mxu0 0
  %1239 = vmatmul.mubr.bf16.gmra.mxu0 %v1139
  %v1240 = vpop.f32.mrf.mxu0
  %v1241 = vadd.f32 0.0, %v1240
  %v1242 = vpop.f32.mrf.mxu0
  %v1243 = vpop.f32.mrf.mxu0
  %v1244 = vadd.f32 0.0, %v1243
  %v1245 = vpop.f32.mrf.mxu0
  %1246 = vmatprep.mubr.bf16.mxu0 0
  %1247 = vmatmul.mubr.bf16.gmra.mxu0 %v1142
  %v1248 = vpop.f32.mrf.mxu0
  %v1249 = vadd.f32 0.0, %v1248
  %v1250 = vpop.f32.mrf.mxu0
  %v1251 = vpop.f32.mrf.mxu0
  %v1252 = vadd.f32 0.0, %v1251
  %v1253 = vpop.f32.mrf.mxu0
  %1254 = vmatprep.mubr.bf16.mxu0 0
  %1255 = vmatmul.mubr.bf16.gmra.mxu0 %v1145
  %v1256 = vpop.f32.mrf.mxu0
  %v1257 = vadd.f32 0.0, %v1256
  %v1258 = vpop.f32.mrf.mxu0
  %v1259 = vpop.f32.mrf.mxu0
  %v1260 = vadd.f32 0.0, %v1259
  %v1261 = vpop.f32.mrf.mxu0
  %1262 = vmatprep.mubr.bf16.mxu0 0
  %1263 = vmatmul.mubr.bf16.gmra.mxu0 %v1148
  %v1264 = vpop.f32.mrf.mxu0
  %v1265 = vadd.f32 0.0, %v1264
  %v1266 = vpop.f32.mrf.mxu0
  %v1267 = vpop.f32.mrf.mxu0
  %v1268 = vadd.f32 0.0, %v1267
  %v1269 = vpop.f32.mrf.mxu0
  %1270 = vmatprep.mubr.bf16.mxu0 0
  %1271 = vmatmul.mubr.bf16.gmra.mxu0 %v1151
  %v1272 = vpop.f32.mrf.mxu0
  %v1273 = vadd.f32 0.0, %v1272
  %v1274 = vpop.f32.mrf.mxu0
  %v1275 = vpop.f32.mrf.mxu0
  %v1276 = vadd.f32 0.0, %v1275
  %v1277 = vpop.f32.mrf.mxu0
  %1278 = vmatprep.mubr.bf16.mxu0 0
  %1279 = vmatmul.mubr.bf16.gmra.mxu0 %v1154
  %v1280 = vpop.f32.mrf.mxu0
  %v1281 = vadd.f32 0.0, %v1280
  %v1282 = vpop.f32.mrf.mxu0
  %v1283 = vpop.f32.mrf.mxu0
  %v1284 = vadd.f32 0.0, %v1283
  %v1285 = vpop.f32.mrf.mxu0
  %1286 = vmatprep.mubr.bf16.mxu0 0
  %1287 = vmatmul.mubr.bf16.gmra.mxu0 %v1157
  %v1288 = vpop.f32.mrf.mxu0
  %v1289 = vadd.f32 0.0, %v1288
  %v1290 = vpop.f32.mrf.mxu0
  %v1291 = vpop.f32.mrf.mxu0
  %v1292 = vadd.f32 0.0, %v1291
  %v1293 = vpop.f32.mrf.mxu0
  %1294 = vmatprep.mubr.bf16.mxu0 0
  %1295 = vmatmul.mubr.bf16.gmra.mxu0 %v1160
  %v1296 = vpop.f32.mrf.mxu0
  %v1297 = vadd.f32 0.0, %v1296
  %v1298 = vpop.f32.mrf.mxu0
  %v1299 = vpop.f32.mrf.mxu0
  %v1300 = vadd.f32 0.0, %v1299
  %v1301 = vpop.f32.mrf.mxu0
  %1302 = vmatprep.mubr.bf16.mxu0 0
  %1303 = vmatmul.mubr.bf16.gmra.mxu0 %v1163
  %v1304 = vpop.f32.mrf.mxu0
  %v1305 = vadd.f32 0.0, %v1304
  %v1306 = vpop.f32.mrf.mxu0
  %v1307 = vpop.f32.mrf.mxu0
  %v1308 = vadd.f32 0.0, %v1307
  %v1309 = vpop.f32.mrf.mxu0
  %1310 = vmatprep.mubr.bf16.mxu0 0
  %1311 = vmatmul.mubr.bf16.gmra.mxu0 %v1166
  %v1312 = vpop.f32.mrf.mxu0
  %v1313 = vadd.f32 0.0, %v1312
  %v1314 = vpop.f32.mrf.mxu0
  %v1315 = vpop.f32.mrf.mxu0
  %v1316 = vadd.f32 0.0, %v1315
  %v1317 = vpop.f32.mrf.mxu0
  %1318 = vmatprep.mubr.bf16.mxu0 0
  %1319 = vmatmul.mubr.bf16.gmra.mxu0 %v1169
  %v1320 = vpop.f32.mrf.mxu0
  %v1321 = vadd.f32 0.0, %v1320
  %v1322 = vpop.f32.mrf.mxu0
  %v1323 = vpop.f32.mrf.mxu0
  %v1324 = vadd.f32 0.0, %v1323
  %v1325 = vpop.f32.mrf.mxu0
  %1326 = vdwg.mxu0
  %v1327 = vadd.f32 %v985, %v1209
  %v1328 = vadd.f32 %v986, %v1212
  %v1329 = vadd.f32 %v987, %v1217
  %v1330 = vadd.f32 %v988, %v1220
  %v1331 = vadd.f32 %v989, %v1225
  %v1332 = vadd.f32 %v990, %v1228
  %v1333 = vadd.f32 %v991, %v1233
  %v1334 = vadd.f32 %v992, %v1236
  %v1335 = vadd.f32 %v993, %v1241
  %v1336 = vadd.f32 %v994, %v1244
  %v1337 = vadd.f32 %v995, %v1249
  %v1338 = vadd.f32 %v996, %v1252
  %v1339 = vadd.f32 %v997, %v1257
  %v1340 = vadd.f32 %v998, %v1260
  %v1341 = vadd.f32 %v999, %v1265
  %v1342 = vadd.f32 %v1000, %v1268
  %v1343 = vadd.f32 %v1001, %v1273
  %v1344 = vadd.f32 %v1002, %v1276
  %v1345 = vadd.f32 %v1003, %v1281
  %v1346 = vadd.f32 %v1004, %v1284
  %v1347 = vadd.f32 %v1005, %v1289
  %v1348 = vadd.f32 %v1006, %v1292
  %v1349 = vadd.f32 %v1007, %v1297
  %v1350 = vadd.f32 %v1008, %v1300
  %v1351 = vadd.f32 %v1009, %v1305
  %v1352 = vadd.f32 %v1010, %v1308
  %v1353 = vadd.f32 %v1011, %v1313
  %v1354 = vadd.f32 %v1012, %v1316
  %v1355 = vadd.f32 %v1013, %v1321
  %v1356 = vadd.f32 %v1014, %v1324
  %s1357 = scalar_lea.vmem %s1, 480
  %v1358 = vld [vmem:[%s1357] sm:$0xf]
  %v1359 = vld [vmem:[%s1357 + $0x4] sm:$0xf]
  %v1360 = vld [vmem:[%s1357 + $0x8] sm:$0xf]
  %v1361 = vld [vmem:[%s1357 + $0xc] sm:$0xf]
  %v1362 = vld [vmem:[%s1357 + $0x10] sm:$0xf]
  %v1363 = vld [vmem:[%s1357 + $0x14] sm:$0xf]
  %v1364 = vld [vmem:[%s1357 + $0x18] sm:$0xf]
  %v1365 = vld [vmem:[%s1357 + $0x1c] sm:$0xf]
  %v1366 = vld [vmem:[%s1357 + $0x20] sm:$0xf]
  %v1367 = vld [vmem:[%s1357 + $0x24] sm:$0xf]
  %v1368 = vld [vmem:[%s1357 + $0x28] sm:$0xf]
  %v1369 = vld [vmem:[%s1357 + $0x2c] sm:$0xf]
  %v1370 = vld [vmem:[%s1357 + $0x30] sm:$0xf]
  %v1371 = vld [vmem:[%s1357 + $0x34] sm:$0xf]
  %v1372 = vld [vmem:[%s1357 + $0x38] sm:$0xf]
  %v1373 = vld [vmem:[%s1357 + $0x3c] sm:$0xf]
  %v1374 = vld [vmem:[%s1357 + $0x40] sm:$0xf]
  %v1375 = vld [vmem:[%s1357 + $0x44] sm:$0xf]
  %v1376 = vld [vmem:[%s1357 + $0x48] sm:$0xf]
  %v1377 = vld [vmem:[%s1357 + $0x4c] sm:$0xf]
  %v1378 = vld [vmem:[%s1357 + $0x50] sm:$0xf]
  %v1379 = vld [vmem:[%s1357 + $0x54] sm:$0xf]
  %v1380 = vld [vmem:[%s1357 + $0x58] sm:$0xf]
  %v1381 = vld [vmem:[%s1357 + $0x5c] sm:$0xf]
  %v1382 = vld [vmem:[%s1357 + $0x60] sm:$0xf]
  %v1383 = vld [vmem:[%s1357 + $0x64] sm:$0xf]
  %v1384 = vld [vmem:[%s1357 + $0x68] sm:$0xf]
  %v1385 = vld [vmem:[%s1357 + $0x6c] sm:$0xf]
  %v1386 = vld [vmem:[%s1357 + $0x70] sm:$0xf]
  %v1387 = vld [vmem:[%s1357 + $0x74] sm:$0xf]
  %v1418 = vunpack.c.l.b16 %v1358
  %v1419 = vunpack.c.l.b16 %v1359
  %v1420 = vunpack.c.l.b16 %v1360
  %v1421 = vunpack.c.l.b16 %v1361
  %v1422 = vunpack.c.l.b16 %v1362
  %v1423 = vunpack.c.l.b16 %v1363
  %v1424 = vunpack.c.l.b16 %v1364
  %v1425 = vunpack.c.l.b16 %v1365
  %v1426 = vunpack.c.l.b16 %v1366
  %v1427 = vunpack.c.l.b16 %v1367
  %v1428 = vunpack.c.l.b16 %v1368
  %v1429 = vunpack.c.l.b16 %v1369
  %v1430 = vunpack.c.l.b16 %v1370
  %v1431 = vunpack.c.l.b16 %v1371
  %v1432 = vunpack.c.l.b16 %v1372
  %v1433 = vunpack.c.l.b16 %v1373
  %v1434 = vunpack.c.l.b16 %v1374
  %v1435 = vunpack.c.l.b16 %v1375
  %v1436 = vunpack.c.l.b16 %v1376
  %v1437 = vunpack.c.l.b16 %v1377
  %v1438 = vunpack.c.l.b16 %v1378
  %v1439 = vunpack.c.l.b16 %v1379
  %v1440 = vunpack.c.l.b16 %v1380
  %v1441 = vunpack.c.l.b16 %v1381
  %v1442 = vunpack.c.l.b16 %v1382
  %v1443 = vunpack.c.l.b16 %v1383
  %v1444 = vunpack.c.l.b16 %v1384
  %v1445 = vunpack.c.l.b16 %v1385
  %v1446 = vunpack.c.l.b16 %v1386
  %v1447 = vunpack.c.l.b16 %v1387
  %v1448 = vpack.c.b16 %v1419, %v1418
  %v1449 = vpack.c.b16 %v1421, %v1420
  %v1450 = vpack.c.b16 %v1423, %v1422
  %v1451 = vpack.c.b16 %v1425, %v1424
  %v1452 = vpack.c.b16 %v1427, %v1426
  %v1453 = vpack.c.b16 %v1429, %v1428
  %v1454 = vpack.c.b16 %v1431, %v1430
  %v1455 = vpack.c.b16 %v1433, %v1432
  %v1456 = vpack.c.b16 %v1435, %v1434
  %v1457 = vpack.c.b16 %v1437, %v1436
  %v1458 = vpack.c.b16 %v1439, %v1438
  %v1459 = vpack.c.b16 %v1441, %v1440
  %v1460 = vpack.c.b16 %v1443, %v1442
  %v1461 = vpack.c.b16 %v1445, %v1444
  %v1462 = vpack.c.b16 %v1447, %v1446
  %1463 = vrot.lane.b32.xlu0 %v79, 124
  %v1464 = vpop.permute.xlu0 %1463
  %1465 = vrot.lane.b32.xlu0 %v80, 124
  %v1466 = vpop.permute.xlu0 %1465
  %v1469 = vsel %vm194, %v1448, 0
  %v1472 = vsel %vm194, %v1449, 0
  %v1475 = vsel %vm194, %v1450, 0
  %v1478 = vsel %vm194, %v1451, 0
  %v1481 = vsel %vm194, %v1452, 0
  %v1484 = vsel %vm194, %v1453, 0
  %v1487 = vsel %vm194, %v1454, 0
  %v1490 = vsel %vm194, %v1455, 0
  %v1493 = vsel %vm194, %v1456, 0
  %v1496 = vsel %vm194, %v1457, 0
  %v1499 = vsel %vm194, %v1458, 0
  %v1502 = vsel %vm194, %v1459, 0
  %v1505 = vsel %vm194, %v1460, 0
  %v1508 = vsel %vm194, %v1461, 0
  %v1511 = vsel %vm194, %v1462, 0
  %v1514 = vsel %vm240, %v1466, 0
  %1516 = vmatprep.subr.bf16.mxu0 0
  %1517 = vmatpush1.bf16.msra.mxu0 0
  %1518 = vmatprep.subr.bf16.mxu0 0
  %1519 = vmatpush1.bf16.msra.mxu0 0
  %1520 = vmatprep.subr.bf16.mxu0 0
  %1521 = vmatpush1.bf16.msra.mxu0 0
  %1522 = vmatprep.subr.bf16.mxu0 0
  %1523 = vmatpush1.bf16.msra.mxu0 0
  %1524 = vmatprep.subr.bf16.mxu0 0
  %1525 = vmatpush1.bf16.msra.mxu0 0
  %1526 = vmatprep.subr.bf16.mxu0 0
  %1527 = vmatpush1.bf16.msra.mxu0 0
  %1528 = vmatprep.subr.bf16.mxu0 0
  %1529 = vmatpush1.bf16.msra.mxu0 %v1514
  %1530 = vmatprep.subr.bf16.mxu0 0
  %1531 = vmatpush1.bf16.msra.mxu0 %v1464
  %1532 = vmatprep.subr.bf16.mxu0 0
  %1533 = vmatpush2.bf16.msra.mxu0 0
  %1534 = vmatprep.subr.bf16.mxu0 0
  %1535 = vmatpush2.bf16.msra.mxu0 0
  %1536 = vmatprep.subr.bf16.mxu0 0
  %1537 = vmatpush2.bf16.msra.mxu0 0
  %1538 = vmatprep.subr.bf16.mxu0 0
  %1539 = vmatpush2.bf16.msra.mxu0 0
  %1540 = vmatprep.subr.bf16.mxu0 0
  %1541 = vmatpush2.bf16.msra.mxu0 0
  %1542 = vmatprep.subr.bf16.mxu0 0
  %1543 = vmatpush2.bf16.msra.mxu0 0
  %1544 = vmatprep.subr.bf16.mxu0 0
  %1545 = vmatpush2.bf16.msra.mxu0 0
  %1546 = vmatprep.subr.bf16.mxu0 0
  %1547 = vmatpush2.bf16.msra.mxu0 0
  %1548 = vmatprep.mubr.bf16.mxu0 0
  %1549 = vmatmul.mubr.bf16.gmra.mxu0 %v1469
  %v1550 = vpop.f32.mrf.mxu0
  %v1551 = vadd.f32 0.0, %v1550
  %v1552 = vpop.f32.mrf.mxu0
  %v1553 = vpop.f32.mrf.mxu0
  %v1554 = vadd.f32 0.0, %v1553
  %v1555 = vpop.f32.mrf.mxu0
  %1556 = vmatprep.mubr.bf16.mxu0 0
  %1557 = vmatmul.mubr.bf16.gmra.mxu0 %v1472
  %v1558 = vpop.f32.mrf.mxu0
  %v1559 = vadd.f32 0.0, %v1558
  %v1560 = vpop.f32.mrf.mxu0
  %v1561 = vpop.f32.mrf.mxu0
  %v1562 = vadd.f32 0.0, %v1561
  %v1563 = vpop.f32.mrf.mxu0
  %1564 = vmatprep.mubr.bf16.mxu0 0
  %1565 = vmatmul.mubr.bf16.gmra.mxu0 %v1475
  %v1566 = vpop.f32.mrf.mxu0
  %v1567 = vadd.f32 0.0, %v1566
  %v1568 = vpop.f32.mrf.mxu0
  %v1569 = vpop.f32.mrf.mxu0
  %v1570 = vadd.f32 0.0, %v1569
  %v1571 = vpop.f32.mrf.mxu0
  %1572 = vmatprep.mubr.bf16.mxu0 0
  %1573 = vmatmul.mubr.bf16.gmra.mxu0 %v1478
  %v1574 = vpop.f32.mrf.mxu0
  %v1575 = vadd.f32 0.0, %v1574
  %v1576 = vpop.f32.mrf.mxu0
  %v1577 = vpop.f32.mrf.mxu0
  %v1578 = vadd.f32 0.0, %v1577
  %v1579 = vpop.f32.mrf.mxu0
  %1580 = vmatprep.mubr.bf16.mxu0 0
  %1581 = vmatmul.mubr.bf16.gmra.mxu0 %v1481
  %v1582 = vpop.f32.mrf.mxu0
  %v1583 = vadd.f32 0.0, %v1582
  %v1584 = vpop.f32.mrf.mxu0
  %v1585 = vpop.f32.mrf.mxu0
  %v1586 = vadd.f32 0.0, %v1585
  %v1587 = vpop.f32.mrf.mxu0
  %1588 = vmatprep.mubr.bf16.mxu0 0
  %1589 = vmatmul.mubr.bf16.gmra.mxu0 %v1484
  %v1590 = vpop.f32.mrf.mxu0
  %v1591 = vadd.f32 0.0, %v1590
  %v1592 = vpop.f32.mrf.mxu0
  %v1593 = vpop.f32.mrf.mxu0
  %v1594 = vadd.f32 0.0, %v1593
  %v1595 = vpop.f32.mrf.mxu0
  %1596 = vmatprep.mubr.bf16.mxu0 0
  %1597 = vmatmul.mubr.bf16.gmra.mxu0 %v1487
  %v1598 = vpop.f32.mrf.mxu0
  %v1599 = vadd.f32 0.0, %v1598
  %v1600 = vpop.f32.mrf.mxu0
  %v1601 = vpop.f32.mrf.mxu0
  %v1602 = vadd.f32 0.0, %v1601
  %v1603 = vpop.f32.mrf.mxu0
  %1604 = vmatprep.mubr.bf16.mxu0 0
  %1605 = vmatmul.mubr.bf16.gmra.mxu0 %v1490
  %v1606 = vpop.f32.mrf.mxu0
  %v1607 = vadd.f32 0.0, %v1606
  %v1608 = vpop.f32.mrf.mxu0
  %v1609 = vpop.f32.mrf.mxu0
  %v1610 = vadd.f32 0.0, %v1609
  %v1611 = vpop.f32.mrf.mxu0
  %1612 = vmatprep.mubr.bf16.mxu0 0
  %1613 = vmatmul.mubr.bf16.gmra.mxu0 %v1493
  %v1614 = vpop.f32.mrf.mxu0
  %v1615 = vadd.f32 0.0, %v1614
  %v1616 = vpop.f32.mrf.mxu0
  %v1617 = vpop.f32.mrf.mxu0
  %v1618 = vadd.f32 0.0, %v1617
  %v1619 = vpop.f32.mrf.mxu0
  %1620 = vmatprep.mubr.bf16.mxu0 0
  %1621 = vmatmul.mubr.bf16.gmra.mxu0 %v1496
  %v1622 = vpop.f32.mrf.mxu0
  %v1623 = vadd.f32 0.0, %v1622
  %v1624 = vpop.f32.mrf.mxu0
  %v1625 = vpop.f32.mrf.mxu0
  %v1626 = vadd.f32 0.0, %v1625
  %v1627 = vpop.f32.mrf.mxu0
  %1628 = vmatprep.mubr.bf16.mxu0 0
  %1629 = vmatmul.mubr.bf16.gmra.mxu0 %v1499
  %v1630 = vpop.f32.mrf.mxu0
  %v1631 = vadd.f32 0.0, %v1630
  %v1632 = vpop.f32.mrf.mxu0
  %v1633 = vpop.f32.mrf.mxu0
  %v1634 = vadd.f32 0.0, %v1633
  %v1635 = vpop.f32.mrf.mxu0
  %1636 = vmatprep.mubr.bf16.mxu0 0
  %1637 = vmatmul.mubr.bf16.gmra.mxu0 %v1502
  %v1638 = vpop.f32.mrf.mxu0
  %v1639 = vadd.f32 0.0, %v1638
  %v1640 = vpop.f32.mrf.mxu0
  %v1641 = vpop.f32.mrf.mxu0
  %v1642 = vadd.f32 0.0, %v1641
  %v1643 = vpop.f32.mrf.mxu0
  %1644 = vmatprep.mubr.bf16.mxu0 0
  %1645 = vmatmul.mubr.bf16.gmra.mxu0 %v1505
  %v1646 = vpop.f32.mrf.mxu0
  %v1647 = vadd.f32 0.0, %v1646
  %v1648 = vpop.f32.mrf.mxu0
  %v1649 = vpop.f32.mrf.mxu0
  %v1650 = vadd.f32 0.0, %v1649
  %v1651 = vpop.f32.mrf.mxu0
  %1652 = vmatprep.mubr.bf16.mxu0 0
  %1653 = vmatmul.mubr.bf16.gmra.mxu0 %v1508
  %v1654 = vpop.f32.mrf.mxu0
  %v1655 = vadd.f32 0.0, %v1654
  %v1656 = vpop.f32.mrf.mxu0
  %v1657 = vpop.f32.mrf.mxu0
  %v1658 = vadd.f32 0.0, %v1657
  %v1659 = vpop.f32.mrf.mxu0
  %1660 = vmatprep.mubr.bf16.mxu0 0
  %1661 = vmatmul.mubr.bf16.gmra.mxu0 %v1511
  %v1662 = vpop.f32.mrf.mxu0
  %v1663 = vadd.f32 0.0, %v1662
  %v1664 = vpop.f32.mrf.mxu0
  %v1665 = vpop.f32.mrf.mxu0
  %v1666 = vadd.f32 0.0, %v1665
  %v1667 = vpop.f32.mrf.mxu0
  %1668 = vdwg.mxu0
  %v1669 = vadd.f32 %v1327, %v1551
  %v1670 = vadd.f32 %v1328, %v1554
  %v1671 = vadd.f32 %v1329, %v1559
  %v1672 = vadd.f32 %v1330, %v1562
  %v1673 = vadd.f32 %v1331, %v1567
  %v1674 = vadd.f32 %v1332, %v1570
  %v1675 = vadd.f32 %v1333, %v1575
  %v1676 = vadd.f32 %v1334, %v1578
  %v1677 = vadd.f32 %v1335, %v1583
  %v1678 = vadd.f32 %v1336, %v1586
  %v1679 = vadd.f32 %v1337, %v1591
  %v1680 = vadd.f32 %v1338, %v1594
  %v1681 = vadd.f32 %v1339, %v1599
  %v1682 = vadd.f32 %v1340, %v1602
  %v1683 = vadd.f32 %v1341, %v1607
  %v1684 = vadd.f32 %v1342, %v1610
  %v1685 = vadd.f32 %v1343, %v1615
  %v1686 = vadd.f32 %v1344, %v1618
  %v1687 = vadd.f32 %v1345, %v1623
  %v1688 = vadd.f32 %v1346, %v1626
  %v1689 = vadd.f32 %v1347, %v1631
  %v1690 = vadd.f32 %v1348, %v1634
  %v1691 = vadd.f32 %v1349, %v1639
  %v1692 = vadd.f32 %v1350, %v1642
  %v1693 = vadd.f32 %v1351, %v1647
  %v1694 = vadd.f32 %v1352, %v1650
  %v1695 = vadd.f32 %v1353, %v1655
  %v1696 = vadd.f32 %v1354, %v1658
  %v1697 = vadd.f32 %v1355, %v1663
  %v1698 = vadd.f32 %v1356, %v1666
  %v1699 = vld [vmem:[%s2] sm:$0xff]
  %v1700 = vld [vmem:[%s2 + $0x8] sm:$0xff]
  %v1701 = vld [vmem:[%s2 + $0x10] sm:$0xff]
  %v1702 = vld [vmem:[%s2 + $0x18] sm:$0xff]
  %v1703 = vld [vmem:[%s2 + $0x20] sm:$0xff]
  %v1704 = vld [vmem:[%s2 + $0x28] sm:$0xff]
  %v1705 = vld [vmem:[%s2 + $0x30] sm:$0xff]
  %v1706 = vld [vmem:[%s2 + $0x38] sm:$0xff]
  %v1707 = vld [vmem:[%s2 + $0x40] sm:$0xff]
  %v1708 = vld [vmem:[%s2 + $0x48] sm:$0xff]
  %v1709 = vld [vmem:[%s2 + $0x50] sm:$0xff]
  %v1710 = vld [vmem:[%s2 + $0x58] sm:$0xff]
  %v1711 = vld [vmem:[%s2 + $0x60] sm:$0xff]
  %v1712 = vld [vmem:[%s2 + $0x68] sm:$0xff]
  %v1713 = vld [vmem:[%s2 + $0x70] sm:$0xff]
  %v1714 = vld [vmem:[%s2 + $0x78] sm:$0xff]
  %v1715 = vld [vmem:[%s2 + $0x80] sm:$0xff]
  %v1716 = vld [vmem:[%s2 + $0x88] sm:$0xff]
  %v1717 = vld [vmem:[%s2 + $0x90] sm:$0xff]
  %v1718 = vld [vmem:[%s2 + $0x98] sm:$0xff]
  %v1719 = vld [vmem:[%s2 + $0xa0] sm:$0xff]
  %v1720 = vld [vmem:[%s2 + $0xa8] sm:$0xff]
  %v1721 = vld [vmem:[%s2 + $0xb0] sm:$0xff]
  %v1722 = vld [vmem:[%s2 + $0xb8] sm:$0xff]
  %v1723 = vld [vmem:[%s2 + $0xc0] sm:$0xff]
  %v1724 = vld [vmem:[%s2 + $0xc8] sm:$0xff]
  %v1725 = vld [vmem:[%s2 + $0xd0] sm:$0xff]
  %v1726 = vld [vmem:[%s2 + $0xd8] sm:$0xff]
  %v1727 = vld [vmem:[%s2 + $0xe0] sm:$0xff]
  %v1728 = vld [vmem:[%s2 + $0xe8] sm:$0xff]
  %1730 = vset.pattern.permute.xlu0 0
  %1731 = vperm.xlu0 %1730, %v1699
  %v1732 = vpop.permute.xlu0 %1731
  %1735 = vset.pattern.permute.xlu0 0
  %1736 = vperm.xlu0 %1735, %v1700
  %v1737 = vpop.permute.xlu0 %1736
  %1740 = vset.pattern.permute.xlu0 0
  %1741 = vperm.xlu0 %1740, %v1701
  %v1742 = vpop.permute.xlu0 %1741
  %1745 = vset.pattern.permute.xlu0 0
  %1746 = vperm.xlu0 %1745, %v1702
  %v1747 = vpop.permute.xlu0 %1746
  %1750 = vset.pattern.permute.xlu0 0
  %1751 = vperm.xlu0 %1750, %v1703
  %v1752 = vpop.permute.xlu0 %1751
  %1755 = vset.pattern.permute.xlu0 0
  %1756 = vperm.xlu0 %1755, %v1704
  %v1757 = vpop.permute.xlu0 %1756
  %1760 = vset.pattern.permute.xlu0 0
  %1761 = vperm.xlu0 %1760, %v1705
  %v1762 = vpop.permute.xlu0 %1761
  %1765 = vset.pattern.permute.xlu0 0
  %1766 = vperm.xlu0 %1765, %v1706
  %v1767 = vpop.permute.xlu0 %1766
  %1770 = vset.pattern.permute.xlu0 0
  %1771 = vperm.xlu0 %1770, %v1707
  %v1772 = vpop.permute.xlu0 %1771
  %1775 = vset.pattern.permute.xlu0 0
  %1776 = vperm.xlu0 %1775, %v1708
  %v1777 = vpop.permute.xlu0 %1776
  %1780 = vset.pattern.permute.xlu0 0
  %1781 = vperm.xlu0 %1780, %v1709
  %v1782 = vpop.permute.xlu0 %1781
  %1785 = vset.pattern.permute.xlu0 0
  %1786 = vperm.xlu0 %1785, %v1710
  %v1787 = vpop.permute.xlu0 %1786
  %1790 = vset.pattern.permute.xlu0 0
  %1791 = vperm.xlu0 %1790, %v1711
  %v1792 = vpop.permute.xlu0 %1791
  %1795 = vset.pattern.permute.xlu0 0
  %1796 = vperm.xlu0 %1795, %v1712
  %v1797 = vpop.permute.xlu0 %1796
  %1800 = vset.pattern.permute.xlu0 0
  %1801 = vperm.xlu0 %1800, %v1713
  %v1802 = vpop.permute.xlu0 %1801
  %1805 = vset.pattern.permute.xlu0 0
  %1806 = vperm.xlu0 %1805, %v1714
  %v1807 = vpop.permute.xlu0 %1806
  %1810 = vset.pattern.permute.xlu0 0
  %1811 = vperm.xlu0 %1810, %v1715
  %v1812 = vpop.permute.xlu0 %1811
  %1815 = vset.pattern.permute.xlu0 0
  %1816 = vperm.xlu0 %1815, %v1716
  %v1817 = vpop.permute.xlu0 %1816
  %1820 = vset.pattern.permute.xlu0 0
  %1821 = vperm.xlu0 %1820, %v1717
  %v1822 = vpop.permute.xlu0 %1821
  %1825 = vset.pattern.permute.xlu0 0
  %1826 = vperm.xlu0 %1825, %v1718
  %v1827 = vpop.permute.xlu0 %1826
  %1830 = vset.pattern.permute.xlu0 0
  %1831 = vperm.xlu0 %1830, %v1719
  %v1832 = vpop.permute.xlu0 %1831
  %1835 = vset.pattern.permute.xlu0 0
  %1836 = vperm.xlu0 %1835, %v1720
  %v1837 = vpop.permute.xlu0 %1836
  %1840 = vset.pattern.permute.xlu0 0
  %1841 = vperm.xlu0 %1840, %v1721
  %v1842 = vpop.permute.xlu0 %1841
  %1845 = vset.pattern.permute.xlu0 0
  %1846 = vperm.xlu0 %1845, %v1722
  %v1847 = vpop.permute.xlu0 %1846
  %1850 = vset.pattern.permute.xlu0 0
  %1851 = vperm.xlu0 %1850, %v1723
  %v1852 = vpop.permute.xlu0 %1851
  %1855 = vset.pattern.permute.xlu0 0
  %1856 = vperm.xlu0 %1855, %v1724
  %v1857 = vpop.permute.xlu0 %1856
  %1860 = vset.pattern.permute.xlu0 0
  %1861 = vperm.xlu0 %1860, %v1725
  %v1862 = vpop.permute.xlu0 %1861
  %1865 = vset.pattern.permute.xlu0 0
  %1866 = vperm.xlu0 %1865, %v1726
  %v1867 = vpop.permute.xlu0 %1866
  %1870 = vset.pattern.permute.xlu0 0
  %1871 = vperm.xlu0 %1870, %v1727
  %v1872 = vpop.permute.xlu0 %1871
  %1875 = vset.pattern.permute.xlu0 0
  %1876 = vperm.xlu0 %1875, %v1728
  %v1877 = vpop.permute.xlu0 %1876
  %v1879 = vadd.f32 %v1669, %v1732
  %v1880 = vadd.f32 %v1670, %v1737
  %v1881 = vadd.f32 %v1671, %v1742
  %v1882 = vadd.f32 %v1672, %v1747
  %v1883 = vadd.f32 %v1673, %v1752
  %v1884 = vadd.f32 %v1674, %v1757
  %v1885 = vadd.f32 %v1675, %v1762
  %v1886 = vadd.f32 %v1676, %v1767
  %v1887 = vadd.f32 %v1677, %v1772
  %v1888 = vadd.f32 %v1678, %v1777
  %v1889 = vadd.f32 %v1679, %v1782
  %v1890 = vadd.f32 %v1680, %v1787
  %v1891 = vadd.f32 %v1681, %v1792
  %v1892 = vadd.f32 %v1682, %v1797
  %v1893 = vadd.f32 %v1683, %v1802
  %v1894 = vadd.f32 %v1684, %v1807
  %v1895 = vadd.f32 %v1685, %v1812
  %v1896 = vadd.f32 %v1686, %v1817
  %v1897 = vadd.f32 %v1687, %v1822
  %v1898 = vadd.f32 %v1688, %v1827
  %v1899 = vadd.f32 %v1689, %v1832
  %v1900 = vadd.f32 %v1690, %v1837
  %v1901 = vadd.f32 %v1691, %v1842
  %v1902 = vadd.f32 %v1692, %v1847
  %v1903 = vadd.f32 %v1693, %v1852
  %v1904 = vadd.f32 %v1694, %v1857
  %v1905 = vadd.f32 %v1695, %v1862
  %v1906 = vadd.f32 %v1696, %v1867
  %v1907 = vadd.f32 %v1697, %v1872
  %v1908 = vadd.f32 %v1698, %v1877
  %v1909 = vld [vmem:[%s3] sm:$0xff]
  %v1910 = vld [vmem:[%s3 + $0x8] sm:$0xff]
  %v1911 = vld [vmem:[%s3 + $0x10] sm:$0xff]
  %v1912 = vld [vmem:[%s3 + $0x18] sm:$0xff]
  %v1913 = vld [vmem:[%s3 + $0x20] sm:$0xff]
  %v1914 = vld [vmem:[%s3 + $0x28] sm:$0xff]
  %v1915 = vld [vmem:[%s3 + $0x30] sm:$0xff]
  %v1916 = vld [vmem:[%s3 + $0x38] sm:$0xff]
  %v1917 = vld [vmem:[%s3 + $0x40] sm:$0xff]
  %v1918 = vld [vmem:[%s3 + $0x48] sm:$0xff]
  %v1919 = vld [vmem:[%s3 + $0x50] sm:$0xff]
  %v1920 = vld [vmem:[%s3 + $0x58] sm:$0xff]
  %v1921 = vld [vmem:[%s3 + $0x60] sm:$0xff]
  %v1922 = vld [vmem:[%s3 + $0x68] sm:$0xff]
  %v1923 = vld [vmem:[%s3 + $0x70] sm:$0xff]
  %v1924 = vpack.c.bf16 %v1880, %v1879
  %v1925 = vpack.c.bf16 %v1882, %v1881
  %v1926 = vpack.c.bf16 %v1884, %v1883
  %v1927 = vpack.c.bf16 %v1886, %v1885
  %v1928 = vpack.c.bf16 %v1888, %v1887
  %v1929 = vpack.c.bf16 %v1890, %v1889
  %v1930 = vpack.c.bf16 %v1892, %v1891
  %v1931 = vpack.c.bf16 %v1894, %v1893
  %v1932 = vpack.c.bf16 %v1896, %v1895
  %v1933 = vpack.c.bf16 %v1898, %v1897
  %v1934 = vpack.c.bf16 %v1900, %v1899
  %v1935 = vpack.c.bf16 %v1902, %v1901
  %v1936 = vpack.c.bf16 %v1904, %v1903
  %v1937 = vpack.c.bf16 %v1906, %v1905
  %v1938 = vpack.c.bf16 %v1908, %v1907
  %v1954 = vunpack.c.l.b16 %v1909
  %v1955 = vunpack.c.h.b16 %v1909
  %v1956 = vunpack.c.l.b16 %v1910
  %v1957 = vunpack.c.h.b16 %v1910
  %v1958 = vunpack.c.l.b16 %v1911
  %v1959 = vunpack.c.h.b16 %v1911
  %v1960 = vunpack.c.l.b16 %v1912
  %v1961 = vunpack.c.h.b16 %v1912
  %v1962 = vunpack.c.l.b16 %v1913
  %v1963 = vunpack.c.h.b16 %v1913
  %v1964 = vunpack.c.l.b16 %v1914
  %v1965 = vunpack.c.h.b16 %v1914
  %v1966 = vunpack.c.l.b16 %v1915
  %v1967 = vunpack.c.h.b16 %v1915
  %v1968 = vunpack.c.l.b16 %v1916
  %v1969 = vunpack.c.h.b16 %v1916
  %v1970 = vunpack.c.l.b16 %v1917
  %v1971 = vunpack.c.h.b16 %v1917
  %v1972 = vunpack.c.l.b16 %v1918
  %v1973 = vunpack.c.h.b16 %v1918
  %v1974 = vunpack.c.l.b16 %v1919
  %v1975 = vunpack.c.h.b16 %v1919
  %v1976 = vunpack.c.l.b16 %v1920
  %v1977 = vunpack.c.h.b16 %v1920
  %v1978 = vunpack.c.l.b16 %v1921
  %v1979 = vunpack.c.h.b16 %v1921
  %v1980 = vunpack.c.l.b16 %v1922
  %v1981 = vunpack.c.h.b16 %v1922
  %v1982 = vunpack.c.l.b16 %v1923
  %v1983 = vunpack.c.h.b16 %v1923
  %v1984 = vpack.c.b16 %v1956, %v1954
  %v1985 = vpack.c.b16 %v1957, %v1955
  %v1986 = vpack.c.b16 %v1960, %v1958
  %v1987 = vpack.c.b16 %v1961, %v1959
  %v1988 = vpack.c.b16 %v1964, %v1962
  %v1989 = vpack.c.b16 %v1965, %v1963
  %v1990 = vpack.c.b16 %v1968, %v1966
  %v1991 = vpack.c.b16 %v1969, %v1967
  %v1992 = vpack.c.b16 %v1972, %v1970
  %v1993 = vpack.c.b16 %v1973, %v1971
  %v1994 = vpack.c.b16 %v1976, %v1974
  %v1995 = vpack.c.b16 %v1977, %v1975
  %v1996 = vpack.c.b16 %v1980, %v1978
  %v1997 = vpack.c.b16 %v1981, %v1979
  %v1998 = vpack.c.b16 %v1982, %v1982
  %v1999 = vpack.c.b16 %v1983, %v1983
  %vm2008 = vcmask 916480
  %v2010 = vsel %vm2008, %v1985, 0
  %v2013 = vsel %vm2008, %v1987, 0
  %v2016 = vsel %vm2008, %v1989, 0
  %v2019 = vsel %vm2008, %v1991, 0
  %v2022 = vsel %vm2008, %v1993, 0
  %v2025 = vsel %vm2008, %v1995, 0
  %v2028 = vsel %vm2008, %v1997, 0
  %v2031 = vsel %vm2008, %v1999, 0
  %2033 = vmatprep.subr.bf16.mxu0 0
  %2034 = vmatpush1.bf16.msra.mxu0 %v1931
  %2035 = vmatprep.subr.bf16.mxu0 0
  %2036 = vmatpush1.bf16.msra.mxu0 %v1930
  %2037 = vmatprep.subr.bf16.mxu0 0
  %2038 = vmatpush1.bf16.msra.mxu0 %v1929
  %2039 = vmatprep.subr.bf16.mxu0 0
  %2040 = vmatpush1.bf16.msra.mxu0 %v1928
  %2041 = vmatprep.subr.bf16.mxu0 0
  %2042 = vmatpush1.bf16.msra.mxu0 %v1927
  %2043 = vmatprep.subr.bf16.mxu0 0
  %2044 = vmatpush1.bf16.msra.mxu0 %v1926
  %2045 = vmatprep.subr.bf16.mxu0 0
  %2046 = vmatpush1.bf16.msra.mxu0 %v1925
  %2047 = vmatprep.subr.bf16.mxu0 0
  %2048 = vmatpush1.bf16.msra.mxu0 %v1924
  %2049 = vmatprep.subr.bf16.mxu0 0
  %2050 = vmatpush2.bf16.msra.mxu0 0
  %2051 = vmatprep.subr.bf16.mxu0 0
  %2052 = vmatpush2.bf16.msra.mxu0 %v1938
  %2053 = vmatprep.subr.bf16.mxu0 0
  %2054 = vmatpush2.bf16.msra.mxu0 %v1937
  %2055 = vmatprep.subr.bf16.mxu0 0
  %2056 = vmatpush2.bf16.msra.mxu0 %v1936
  %2057 = vmatprep.subr.bf16.mxu0 0
  %2058 = vmatpush2.bf16.msra.mxu0 %v1935
  %2059 = vmatprep.subr.bf16.mxu0 0
  %2060 = vmatpush2.bf16.msra.mxu0 %v1934
  %2061 = vmatprep.subr.bf16.mxu0 0
  %2062 = vmatpush2.bf16.msra.mxu0 %v1933
  %2063 = vmatprep.subr.bf16.mxu0 0
  %2064 = vmatpush2.bf16.msra.mxu0 %v1932
  %2065 = vmatprep.mubr.bf16.mxu0 %v2010
  %2066 = vmatmul.mubr.bf16.gmra.mxu0 %v1984
  %v2067 = vpop.f32.mrf.mxu0
  %v2068 = vadd.f32 0.0, %v2067
  %v2069 = vpop.f32.mrf.mxu0
  %v2070 = vpop.f32.mrf.mxu0
  %v2071 = vadd.f32 0.0, %v2070
  %v2072 = vpop.f32.mrf.mxu0
  %2073 = vmatprep.mubr.bf16.mxu0 %v2013
  %2074 = vmatmul.mubr.bf16.gmra.mxu0 %v1986
  %v2075 = vpop.f32.mrf.mxu0
  %v2076 = vadd.f32 0.0, %v2075
  %v2077 = vpop.f32.mrf.mxu0
  %v2078 = vpop.f32.mrf.mxu0
  %v2079 = vadd.f32 0.0, %v2078
  %v2080 = vpop.f32.mrf.mxu0
  %2081 = vmatprep.mubr.bf16.mxu0 %v2016
  %2082 = vmatmul.mubr.bf16.gmra.mxu0 %v1988
  %v2083 = vpop.f32.mrf.mxu0
  %v2084 = vadd.f32 0.0, %v2083
  %v2085 = vpop.f32.mrf.mxu0
  %v2086 = vpop.f32.mrf.mxu0
  %v2087 = vadd.f32 0.0, %v2086
  %v2088 = vpop.f32.mrf.mxu0
  %2089 = vmatprep.mubr.bf16.mxu0 %v2019
  %2090 = vmatmul.mubr.bf16.gmra.mxu0 %v1990
  %v2091 = vpop.f32.mrf.mxu0
  %v2092 = vadd.f32 0.0, %v2091
  %v2093 = vpop.f32.mrf.mxu0
  %v2094 = vpop.f32.mrf.mxu0
  %v2095 = vadd.f32 0.0, %v2094
  %v2096 = vpop.f32.mrf.mxu0
  %2097 = vmatprep.mubr.bf16.mxu0 %v2022
  %2098 = vmatmul.mubr.bf16.gmra.mxu0 %v1992
  %v2099 = vpop.f32.mrf.mxu0
  %v2100 = vadd.f32 0.0, %v2099
  %v2101 = vpop.f32.mrf.mxu0
  %v2102 = vpop.f32.mrf.mxu0
  %v2103 = vadd.f32 0.0, %v2102
  %v2104 = vpop.f32.mrf.mxu0
  %2105 = vmatprep.mubr.bf16.mxu0 %v2025
  %2106 = vmatmul.mubr.bf16.gmra.mxu0 %v1994
  %v2107 = vpop.f32.mrf.mxu0
  %v2108 = vadd.f32 0.0, %v2107
  %v2109 = vpop.f32.mrf.mxu0
  %v2110 = vpop.f32.mrf.mxu0
  %v2111 = vadd.f32 0.0, %v2110
  %v2112 = vpop.f32.mrf.mxu0
  %2113 = vmatprep.mubr.bf16.mxu0 %v2028
  %2114 = vmatmul.mubr.bf16.gmra.mxu0 %v1996
  %v2115 = vpop.f32.mrf.mxu0
  %v2116 = vadd.f32 0.0, %v2115
  %v2117 = vpop.f32.mrf.mxu0
  %v2118 = vpop.f32.mrf.mxu0
  %v2119 = vadd.f32 0.0, %v2118
  %v2120 = vpop.f32.mrf.mxu0
  %2121 = vmatprep.mubr.bf16.mxu0 %v2031
  %2122 = vmatmul.mubr.bf16.gmra.mxu0 %v1998
  %v2123 = vpop.f32.mrf.mxu0
  %v2124 = vadd.f32 0.0, %v2123
  %v2125 = vpop.f32.mrf.mxu0
  %v2126 = vpop.f32.mrf.mxu0
  %v2127 = vpop.f32.mrf.mxu0
  %2128 = vdwg.mxu0
  %s2129 = scalar_lea.vmem %s3, 120
  %v2130 = vld [vmem:[%s2129] sm:$0xff]
  %v2131 = vld [vmem:[%s2129 + $0x8] sm:$0xff]
  %v2132 = vld [vmem:[%s2129 + $0x10] sm:$0xff]
  %v2133 = vld [vmem:[%s2129 + $0x18] sm:$0xff]
  %v2134 = vld [vmem:[%s2129 + $0x20] sm:$0xff]
  %v2135 = vld [vmem:[%s2129 + $0x28] sm:$0xff]
  %v2136 = vld [vmem:[%s2129 + $0x30] sm:$0xff]
  %v2137 = vld [vmem:[%s2129 + $0x38] sm:$0xff]
  %v2138 = vld [vmem:[%s2129 + $0x40] sm:$0xff]
  %v2139 = vld [vmem:[%s2129 + $0x48] sm:$0xff]
  %v2140 = vld [vmem:[%s2129 + $0x50] sm:$0xff]
  %v2141 = vld [vmem:[%s2129 + $0x58] sm:$0xff]
  %v2142 = vld [vmem:[%s2129 + $0x60] sm:$0xff]
  %v2143 = vld [vmem:[%s2129 + $0x68] sm:$0xff]
  %v2144 = vld [vmem:[%s2129 + $0x70] sm:$0xff]
  %v2160 = vunpack.c.l.b16 %v2130
  %v2161 = vunpack.c.h.b16 %v2130
  %v2162 = vunpack.c.l.b16 %v2131
  %v2163 = vunpack.c.h.b16 %v2131
  %v2164 = vunpack.c.l.b16 %v2132
  %v2165 = vunpack.c.h.b16 %v2132
  %v2166 = vunpack.c.l.b16 %v2133
  %v2167 = vunpack.c.h.b16 %v2133
  %v2168 = vunpack.c.l.b16 %v2134
  %v2169 = vunpack.c.h.b16 %v2134
  %v2170 = vunpack.c.l.b16 %v2135
  %v2171 = vunpack.c.h.b16 %v2135
  %v2172 = vunpack.c.l.b16 %v2136
  %v2173 = vunpack.c.h.b16 %v2136
  %v2174 = vunpack.c.l.b16 %v2137
  %v2175 = vunpack.c.h.b16 %v2137
  %v2176 = vunpack.c.l.b16 %v2138
  %v2177 = vunpack.c.h.b16 %v2138
  %v2178 = vunpack.c.l.b16 %v2139
  %v2179 = vunpack.c.h.b16 %v2139
  %v2180 = vunpack.c.l.b16 %v2140
  %v2181 = vunpack.c.h.b16 %v2140
  %v2182 = vunpack.c.l.b16 %v2141
  %v2183 = vunpack.c.h.b16 %v2141
  %v2184 = vunpack.c.l.b16 %v2142
  %v2185 = vunpack.c.h.b16 %v2142
  %v2186 = vunpack.c.l.b16 %v2143
  %v2187 = vunpack.c.h.b16 %v2143
  %v2188 = vunpack.c.l.b16 %v2144
  %v2189 = vunpack.c.h.b16 %v2144
  %v2190 = vpack.c.b16 %v2162, %v2160
  %v2191 = vpack.c.b16 %v2163, %v2161
  %v2192 = vpack.c.b16 %v2166, %v2164
  %v2193 = vpack.c.b16 %v2167, %v2165
  %v2194 = vpack.c.b16 %v2170, %v2168
  %v2195 = vpack.c.b16 %v2171, %v2169
  %v2196 = vpack.c.b16 %v2174, %v2172
  %v2197 = vpack.c.b16 %v2175, %v2173
  %v2198 = vpack.c.b16 %v2178, %v2176
  %v2199 = vpack.c.b16 %v2179, %v2177
  %v2200 = vpack.c.b16 %v2182, %v2180
  %v2201 = vpack.c.b16 %v2183, %v2181
  %v2202 = vpack.c.b16 %v2186, %v2184
  %v2203 = vpack.c.b16 %v2187, %v2185
  %v2204 = vpack.c.b16 %v2188, %v2188
  %v2205 = vpack.c.b16 %v2189, %v2189
  %v2215 = vsel %vm2008, %v2191, 0
  %v2218 = vsel %vm2008, %v2193, 0
  %v2221 = vsel %vm2008, %v2195, 0
  %v2224 = vsel %vm2008, %v2197, 0
  %v2227 = vsel %vm2008, %v2199, 0
  %v2230 = vsel %vm2008, %v2201, 0
  %v2233 = vsel %vm2008, %v2203, 0
  %v2236 = vsel %vm2008, %v2205, 0
  %2238 = vmatprep.subr.bf16.mxu0 0
  %2239 = vmatpush1.bf16.msra.mxu0 %v1931
  %2240 = vmatprep.subr.bf16.mxu0 0
  %2241 = vmatpush1.bf16.msra.mxu0 %v1930
  %2242 = vmatprep.subr.bf16.mxu0 0
  %2243 = vmatpush1.bf16.msra.mxu0 %v1929
  %2244 = vmatprep.subr.bf16.mxu0 0
  %2245 = vmatpush1.bf16.msra.mxu0 %v1928
  %2246 = vmatprep.subr.bf16.mxu0 0
  %2247 = vmatpush1.bf16.msra.mxu0 %v1927
  %2248 = vmatprep.subr.bf16.mxu0 0
  %2249 = vmatpush1.bf16.msra.mxu0 %v1926
  %2250 = vmatprep.subr.bf16.mxu0 0
  %2251 = vmatpush1.bf16.msra.mxu0 %v1925
  %2252 = vmatprep.subr.bf16.mxu0 0
  %2253 = vmatpush1.bf16.msra.mxu0 %v1924
  %2254 = vmatprep.subr.bf16.mxu0 0
  %2255 = vmatpush2.bf16.msra.mxu0 0
  %2256 = vmatprep.subr.bf16.mxu0 0
  %2257 = vmatpush2.bf16.msra.mxu0 %v1938
  %2258 = vmatprep.subr.bf16.mxu0 0
  %2259 = vmatpush2.bf16.msra.mxu0 %v1937
  %2260 = vmatprep.subr.bf16.mxu0 0
  %2261 = vmatpush2.bf16.msra.mxu0 %v1936
  %2262 = vmatprep.subr.bf16.mxu0 0
  %2263 = vmatpush2.bf16.msra.mxu0 %v1935
  %2264 = vmatprep.subr.bf16.mxu0 0
  %2265 = vmatpush2.bf16.msra.mxu0 %v1934
  %2266 = vmatprep.subr.bf16.mxu0 0
  %2267 = vmatpush2.bf16.msra.mxu0 %v1933
  %2268 = vmatprep.subr.bf16.mxu0 0
  %2269 = vmatpush2.bf16.msra.mxu0 %v1932
  %2270 = vmatprep.mubr.bf16.mxu0 %v2215
  %2271 = vmatmul.mubr.bf16.gmra.mxu0 %v2190
  %v2272 = vpop.f32.mrf.mxu0
  %v2273 = vadd.f32 0.0, %v2272
  %v2274 = vpop.f32.mrf.mxu0
  %v2275 = vpop.f32.mrf.mxu0
  %v2276 = vadd.f32 0.0, %v2275
  %v2277 = vpop.f32.mrf.mxu0
  %2278 = vmatprep.mubr.bf16.mxu0 %v2218
  %2279 = vmatmul.mubr.bf16.gmra.mxu0 %v2192
  %v2280 = vpop.f32.mrf.mxu0
  %v2281 = vadd.f32 0.0, %v2280
  %v2282 = vpop.f32.mrf.mxu0
  %v2283 = vpop.f32.mrf.mxu0
  %v2284 = vadd.f32 0.0, %v2283
  %v2285 = vpop.f32.mrf.mxu0
  %2286 = vmatprep.mubr.bf16.mxu0 %v2221
  %2287 = vmatmul.mubr.bf16.gmra.mxu0 %v2194
  %v2288 = vpop.f32.mrf.mxu0
  %v2289 = vadd.f32 0.0, %v2288
  %v2290 = vpop.f32.mrf.mxu0
  %v2291 = vpop.f32.mrf.mxu0
  %v2292 = vadd.f32 0.0, %v2291
  %v2293 = vpop.f32.mrf.mxu0
  %2294 = vmatprep.mubr.bf16.mxu0 %v2224
  %2295 = vmatmul.mubr.bf16.gmra.mxu0 %v2196
  %v2296 = vpop.f32.mrf.mxu0
  %v2297 = vadd.f32 0.0, %v2296
  %v2298 = vpop.f32.mrf.mxu0
  %v2299 = vpop.f32.mrf.mxu0
  %v2300 = vadd.f32 0.0, %v2299
  %v2301 = vpop.f32.mrf.mxu0
  %2302 = vmatprep.mubr.bf16.mxu0 %v2227
  %2303 = vmatmul.mubr.bf16.gmra.mxu0 %v2198
  %v2304 = vpop.f32.mrf.mxu0
  %v2305 = vadd.f32 0.0, %v2304
  %v2306 = vpop.f32.mrf.mxu0
  %v2307 = vpop.f32.mrf.mxu0
  %v2308 = vadd.f32 0.0, %v2307
  %v2309 = vpop.f32.mrf.mxu0
  %2310 = vmatprep.mubr.bf16.mxu0 %v2230
  %2311 = vmatmul.mubr.bf16.gmra.mxu0 %v2200
  %v2312 = vpop.f32.mrf.mxu0
  %v2313 = vadd.f32 0.0, %v2312
  %v2314 = vpop.f32.mrf.mxu0
  %v2315 = vpop.f32.mrf.mxu0
  %v2316 = vadd.f32 0.0, %v2315
  %v2317 = vpop.f32.mrf.mxu0
  %2318 = vmatprep.mubr.bf16.mxu0 %v2233
  %2319 = vmatmul.mubr.bf16.gmra.mxu0 %v2202
  %v2320 = vpop.f32.mrf.mxu0
  %v2321 = vadd.f32 0.0, %v2320
  %v2322 = vpop.f32.mrf.mxu0
  %v2323 = vpop.f32.mrf.mxu0
  %v2324 = vadd.f32 0.0, %v2323
  %v2325 = vpop.f32.mrf.mxu0
  %2326 = vmatprep.mubr.bf16.mxu0 %v2236
  %2327 = vmatmul.mubr.bf16.gmra.mxu0 %v2204
  %v2328 = vpop.f32.mrf.mxu0
  %v2329 = vadd.f32 0.0, %v2328
  %v2330 = vpop.f32.mrf.mxu0
  %v2331 = vpop.f32.mrf.mxu0
  %v2332 = vpop.f32.mrf.mxu0
  %2333 = vdwg.mxu0
  %v2334 = vmax.f32 %v2068, %v2273
  %v2335 = vmax.f32 %v2071, %v2276
  %v2336 = vmax.f32 %v2076, %v2281
  %v2337 = vmax.f32 %v2079, %v2284
  %v2338 = vmax.f32 %v2084, %v2289
  %v2339 = vmax.f32 %v2087, %v2292
  %v2340 = vmax.f32 %v2092, %v2297
  %v2341 = vmax.f32 %v2095, %v2300
  %v2342 = vmax.f32 %v2100, %v2305
  %v2343 = vmax.f32 %v2103, %v2308
  %v2344 = vmax.f32 %v2108, %v2313
  %v2345 = vmax.f32 %v2111, %v2316
  %v2346 = vmax.f32 %v2116, %v2321
  %v2347 = vmax.f32 %v2119, %v2324
  %v2348 = vmax.f32 %v2124, %v2329
  %v2349 = vld [vmem:[%s4] sm:$0xf]
  %v2350 = vld [vmem:[%s4 + $0x4] sm:$0xf]
  %v2351 = vld [vmem:[%s4 + $0x8] sm:$0xf]
  %v2352 = vpack.c.bf16 %v2335, %v2334
  %v2353 = vpack.c.bf16 %v2337, %v2336
  %v2354 = vpack.c.bf16 %v2339, %v2338
  %v2355 = vpack.c.bf16 %v2341, %v2340
  %v2356 = vpack.c.bf16 %v2343, %v2342
  %v2357 = vpack.c.bf16 %v2345, %v2344
  %v2358 = vpack.c.bf16 %v2347, %v2346
  %v2359 = vpack.c.bf16 %v2348, %v2348
  %v2363 = vunpack.c.l.b16 %v2349
  %v2364 = vunpack.c.l.b16 %v2350
  %v2365 = vunpack.c.l.b16 %v2351
  %v2366 = vpack.c.b16 %v2364, %v2363
  %v2367 = vpack.c.b16 %v2365, %v2365
  %vm2369 = vcmask 195584
  %v2371 = vsel %vm2369, %v2352, 0
  %v2374 = vsel %vm2369, %v2353, 0
  %v2377 = vsel %vm2369, %v2354, 0
  %v2380 = vsel %vm2369, %v2355, 0
  %v2383 = vsel %vm2369, %v2356, 0
  %v2386 = vsel %vm2369, %v2357, 0
  %v2389 = vsel %vm2369, %v2358, 0
  %v2392 = vsel %vm2369, %v2359, 0
  %vm2394 = vcmask 1043456
  %v2396 = vsel %vm2394, %v2367, 0
  %2398 = vmatprep.subr.bf16.mxu0 0
  %2399 = vmatpush1.bf16.msra.mxu0 0
  %2400 = vmatprep.subr.bf16.mxu0 0
  %2401 = vmatpush1.bf16.msra.mxu0 0
  %2402 = vmatprep.subr.bf16.mxu0 0
  %2403 = vmatpush1.bf16.msra.mxu0 0
  %2404 = vmatprep.subr.bf16.mxu0 0
  %2405 = vmatpush1.bf16.msra.mxu0 0
  %2406 = vmatprep.subr.bf16.mxu0 0
  %2407 = vmatpush1.bf16.msra.mxu0 0
  %2408 = vmatprep.subr.bf16.mxu0 0
  %2409 = vmatpush1.bf16.msra.mxu0 0
  %2410 = vmatprep.subr.bf16.mxu0 0
  %2411 = vmatpush1.bf16.msra.mxu0 %v2396
  %2412 = vmatprep.subr.bf16.mxu0 0
  %2413 = vmatpush1.bf16.msra.mxu0 %v2366
  %2414 = vmatprep.subr.bf16.mxu0 0
  %2415 = vmatpush2.bf16.msra.mxu0 0
  %2416 = vmatprep.subr.bf16.mxu0 0
  %2417 = vmatpush2.bf16.msra.mxu0 0
  %2418 = vmatprep.subr.bf16.mxu0 0
  %2419 = vmatpush2.bf16.msra.mxu0 0
  %2420 = vmatprep.subr.bf16.mxu0 0
  %2421 = vmatpush2.bf16.msra.mxu0 0
  %2422 = vmatprep.subr.bf16.mxu0 0
  %2423 = vmatpush2.bf16.msra.mxu0 0
  %2424 = vmatprep.subr.bf16.mxu0 0
  %2425 = vmatpush2.bf16.msra.mxu0 0
  %2426 = vmatprep.subr.bf16.mxu0 0
  %2427 = vmatpush2.bf16.msra.mxu0 0
  %2428 = vmatprep.subr.bf16.mxu0 0
  %2429 = vmatpush2.bf16.msra.mxu0 0
  %2430 = vmatprep.mubr.bf16.mxu0 0
  %2431 = vmatmul.mubr.bf16.gmra.mxu0 %v2371
  %v2432 = vpop.f32.mrf.mxu0
  %v2433 = vadd.f32 0.0, %v2432
  %v2434 = vpop.f32.mrf.mxu0
  %v2435 = vpop.f32.mrf.mxu0
  %v2436 = vadd.f32 0.0, %v2435
  %v2437 = vpop.f32.mrf.mxu0
  %2438 = vmatprep.mubr.bf16.mxu0 0
  %2439 = vmatmul.mubr.bf16.gmra.mxu0 %v2374
  %v2440 = vpop.f32.mrf.mxu0
  %v2441 = vadd.f32 0.0, %v2440
  %v2442 = vpop.f32.mrf.mxu0
  %v2443 = vpop.f32.mrf.mxu0
  %v2444 = vadd.f32 0.0, %v2443
  %v2445 = vpop.f32.mrf.mxu0
  %2446 = vmatprep.mubr.bf16.mxu0 0
  %2447 = vmatmul.mubr.bf16.gmra.mxu0 %v2377
  %v2448 = vpop.f32.mrf.mxu0
  %v2449 = vadd.f32 0.0, %v2448
  %v2450 = vpop.f32.mrf.mxu0
  %v2451 = vpop.f32.mrf.mxu0
  %v2452 = vadd.f32 0.0, %v2451
  %v2453 = vpop.f32.mrf.mxu0
  %2454 = vmatprep.mubr.bf16.mxu0 0
  %2455 = vmatmul.mubr.bf16.gmra.mxu0 %v2380
  %v2456 = vpop.f32.mrf.mxu0
  %v2457 = vadd.f32 0.0, %v2456
  %v2458 = vpop.f32.mrf.mxu0
  %v2459 = vpop.f32.mrf.mxu0
  %v2460 = vadd.f32 0.0, %v2459
  %v2461 = vpop.f32.mrf.mxu0
  %2462 = vmatprep.mubr.bf16.mxu0 0
  %2463 = vmatmul.mubr.bf16.gmra.mxu0 %v2383
  %v2464 = vpop.f32.mrf.mxu0
  %v2465 = vadd.f32 0.0, %v2464
  %v2466 = vpop.f32.mrf.mxu0
  %v2467 = vpop.f32.mrf.mxu0
  %v2468 = vadd.f32 0.0, %v2467
  %v2469 = vpop.f32.mrf.mxu0
  %2470 = vmatprep.mubr.bf16.mxu0 0
  %2471 = vmatmul.mubr.bf16.gmra.mxu0 %v2386
  %v2472 = vpop.f32.mrf.mxu0
  %v2473 = vadd.f32 0.0, %v2472
  %v2474 = vpop.f32.mrf.mxu0
  %v2475 = vpop.f32.mrf.mxu0
  %v2476 = vadd.f32 0.0, %v2475
  %v2477 = vpop.f32.mrf.mxu0
  %2478 = vmatprep.mubr.bf16.mxu0 0
  %2479 = vmatmul.mubr.bf16.gmra.mxu0 %v2389
  %v2480 = vpop.f32.mrf.mxu0
  %v2481 = vadd.f32 0.0, %v2480
  %v2482 = vpop.f32.mrf.mxu0
  %v2483 = vpop.f32.mrf.mxu0
  %v2484 = vadd.f32 0.0, %v2483
  %v2485 = vpop.f32.mrf.mxu0
  %2486 = vmatprep.mubr.bf16.mxu0 0
  %2487 = vmatmul.mubr.bf16.gmra.mxu0 %v2392
  %v2488 = vpop.f32.mrf.mxu0
  %v2489 = vadd.f32 0.0, %v2488
  %v2490 = vpop.f32.mrf.mxu0
  %v2491 = vpop.f32.mrf.mxu0
  %v2492 = vpop.f32.mrf.mxu0
  %2493 = vdwg.mxu0
  %s2494 = scalar_lea.vmem %s4, 12
  %v2495 = vld [vmem:[%s2494] sm:$0xf]
  %v2496 = vld [vmem:[%s2494 + $0x4] sm:$0xf]
  %v2497 = vld [vmem:[%s2494 + $0x8] sm:$0xf]
  %v2501 = vunpack.c.l.b16 %v2495
  %v2502 = vunpack.c.l.b16 %v2496
  %v2503 = vunpack.c.l.b16 %v2497
  %v2504 = vpack.c.b16 %v2502, %v2501
  %v2505 = vpack.c.b16 %v2503, %v2503
  %v2508 = vsel %vm2394, %v2505, 0
  %2510 = vmatprep.subr.bf16.mxu0 0
  %2511 = vmatpush1.bf16.msra.mxu0 0
  %2512 = vmatprep.subr.bf16.mxu0 0
  %2513 = vmatpush1.bf16.msra.mxu0 0
  %2514 = vmatprep.subr.bf16.mxu0 0
  %2515 = vmatpush1.bf16.msra.mxu0 0
  %2516 = vmatprep.subr.bf16.mxu0 0
  %2517 = vmatpush1.bf16.msra.mxu0 0
  %2518 = vmatprep.subr.bf16.mxu0 0
  %2519 = vmatpush1.bf16.msra.mxu0 0
  %2520 = vmatprep.subr.bf16.mxu0 0
  %2521 = vmatpush1.bf16.msra.mxu0 0
  %2522 = vmatprep.subr.bf16.mxu0 0
  %2523 = vmatpush1.bf16.msra.mxu0 %v2508
  %2524 = vmatprep.subr.bf16.mxu0 0
  %2525 = vmatpush1.bf16.msra.mxu0 %v2504
  %2526 = vmatprep.subr.bf16.mxu0 0
  %2527 = vmatpush2.bf16.msra.mxu0 0
  %2528 = vmatprep.subr.bf16.mxu0 0
  %2529 = vmatpush2.bf16.msra.mxu0 0
  %2530 = vmatprep.subr.bf16.mxu0 0
  %2531 = vmatpush2.bf16.msra.mxu0 0
  %2532 = vmatprep.subr.bf16.mxu0 0
  %2533 = vmatpush2.bf16.msra.mxu0 0
  %2534 = vmatprep.subr.bf16.mxu0 0
  %2535 = vmatpush2.bf16.msra.mxu0 0
  %2536 = vmatprep.subr.bf16.mxu0 0
  %2537 = vmatpush2.bf16.msra.mxu0 0
  %2538 = vmatprep.subr.bf16.mxu0 0
  %2539 = vmatpush2.bf16.msra.mxu0 0
  %2540 = vmatprep.subr.bf16.mxu0 0
  %2541 = vmatpush2.bf16.msra.mxu0 0
  %2542 = vmatprep.mubr.bf16.mxu0 0
  %2543 = vmatmul.mubr.bf16.gmra.mxu0 %v2371
  %v2544 = vpop.f32.mrf.mxu0
  %v2545 = vadd.f32 0.0, %v2544
  %v2546 = vpop.f32.mrf.mxu0
  %v2547 = vpop.f32.mrf.mxu0
  %v2548 = vadd.f32 0.0, %v2547
  %v2549 = vpop.f32.mrf.mxu0
  %2550 = vmatprep.mubr.bf16.mxu0 0
  %2551 = vmatmul.mubr.bf16.gmra.mxu0 %v2374
  %v2552 = vpop.f32.mrf.mxu0
  %v2553 = vadd.f32 0.0, %v2552
  %v2554 = vpop.f32.mrf.mxu0
  %v2555 = vpop.f32.mrf.mxu0
  %v2556 = vadd.f32 0.0, %v2555
  %v2557 = vpop.f32.mrf.mxu0
  %2558 = vmatprep.mubr.bf16.mxu0 0
  %2559 = vmatmul.mubr.bf16.gmra.mxu0 %v2377
  %v2560 = vpop.f32.mrf.mxu0
  %v2561 = vadd.f32 0.0, %v2560
  %v2562 = vpop.f32.mrf.mxu0
  %v2563 = vpop.f32.mrf.mxu0
  %v2564 = vadd.f32 0.0, %v2563
  %v2565 = vpop.f32.mrf.mxu0
  %2566 = vmatprep.mubr.bf16.mxu0 0
  %2567 = vmatmul.mubr.bf16.gmra.mxu0 %v2380
  %v2568 = vpop.f32.mrf.mxu0
  %v2569 = vadd.f32 0.0, %v2568
  %v2570 = vpop.f32.mrf.mxu0
  %v2571 = vpop.f32.mrf.mxu0
  %v2572 = vadd.f32 0.0, %v2571
  %v2573 = vpop.f32.mrf.mxu0
  %2574 = vmatprep.mubr.bf16.mxu0 0
  %2575 = vmatmul.mubr.bf16.gmra.mxu0 %v2383
  %v2576 = vpop.f32.mrf.mxu0
  %v2577 = vadd.f32 0.0, %v2576
  %v2578 = vpop.f32.mrf.mxu0
  %v2579 = vpop.f32.mrf.mxu0
  %v2580 = vadd.f32 0.0, %v2579
  %v2581 = vpop.f32.mrf.mxu0
  %2582 = vmatprep.mubr.bf16.mxu0 0
  %2583 = vmatmul.mubr.bf16.gmra.mxu0 %v2386
  %v2584 = vpop.f32.mrf.mxu0
  %v2585 = vadd.f32 0.0, %v2584
  %v2586 = vpop.f32.mrf.mxu0
  %v2587 = vpop.f32.mrf.mxu0
  %v2588 = vadd.f32 0.0, %v2587
  %v2589 = vpop.f32.mrf.mxu0
  %2590 = vmatprep.mubr.bf16.mxu0 0
  %2591 = vmatmul.mubr.bf16.gmra.mxu0 %v2389
  %v2592 = vpop.f32.mrf.mxu0
  %v2593 = vadd.f32 0.0, %v2592
  %v2594 = vpop.f32.mrf.mxu0
  %v2595 = vpop.f32.mrf.mxu0
  %v2596 = vadd.f32 0.0, %v2595
  %v2597 = vpop.f32.mrf.mxu0
  %2598 = vmatprep.mubr.bf16.mxu0 0
  %2599 = vmatmul.mubr.bf16.gmra.mxu0 %v2392
  %v2600 = vpop.f32.mrf.mxu0
  %v2601 = vadd.f32 0.0, %v2600
  %v2602 = vpop.f32.mrf.mxu0
  %v2603 = vpop.f32.mrf.mxu0
  %v2604 = vpop.f32.mrf.mxu0
  %2605 = vdwg.mxu0
  %v2606 = vmax.f32 %v2433, %v2545
  %v2607 = vmax.f32 %v2436, %v2548
  %v2608 = vmax.f32 %v2441, %v2553
  %v2609 = vmax.f32 %v2444, %v2556
  %v2610 = vmax.f32 %v2449, %v2561
  %v2611 = vmax.f32 %v2452, %v2564
  %v2612 = vmax.f32 %v2457, %v2569
  %v2613 = vmax.f32 %v2460, %v2572
  %v2614 = vmax.f32 %v2465, %v2577
  %v2615 = vmax.f32 %v2468, %v2580
  %v2616 = vmax.f32 %v2473, %v2585
  %v2617 = vmax.f32 %v2476, %v2588
  %v2618 = vmax.f32 %v2481, %v2593
  %v2619 = vmax.f32 %v2484, %v2596
  %v2620 = vmax.f32 %v2489, %v2601
  %v2621 = vmax.f32 %v2606, 0.0
  %v2622 = vmax.f32 %v2607, 0.0
  %v2623 = vmax.f32 %v2608, 0.0
  %v2624 = vmax.f32 %v2609, 0.0
  %v2625 = vmax.f32 %v2610, 0.0
  %v2626 = vmax.f32 %v2611, 0.0
  %v2627 = vmax.f32 %v2612, 0.0
  %v2628 = vmax.f32 %v2613, 0.0
  %v2629 = vmax.f32 %v2614, 0.0
  %v2630 = vmax.f32 %v2615, 0.0
  %v2631 = vmax.f32 %v2616, 0.0
  %v2632 = vmax.f32 %v2617, 0.0
  %v2633 = vmax.f32 %v2618, 0.0
  %v2634 = vmax.f32 %v2619, 0.0
  %v2635 = vmax.f32 %v2620, 0.0
  %v2636 = vld [vmem:[%s5] sm:$0xf]
  %v2637 = vld [vmem:[%s5 + $0x4] sm:$0xf]
  %v2638 = vld [vmem:[%s5 + $0x8] sm:$0xf]
  %v2639 = vld [vmem:[%s5 + $0xc] sm:$0xf]
  %v2640 = vld [vmem:[%s5 + $0x10] sm:$0xf]
  %v2641 = vld [vmem:[%s5 + $0x14] sm:$0xf]
  %v2642 = vld [vmem:[%s5 + $0x18] sm:$0xf]
  %v2643 = vld [vmem:[%s5 + $0x1c] sm:$0xf]
  %v2644 = vld [vmem:[%s5 + $0x20] sm:$0xf]
  %v2645 = vld [vmem:[%s5 + $0x24] sm:$0xf]
  %v2646 = vld [vmem:[%s5 + $0x28] sm:$0xf]
  %v2647 = vld [vmem:[%s5 + $0x2c] sm:$0xf]
  %v2648 = vld [vmem:[%s5 + $0x30] sm:$0xf]
  %v2649 = vld [vmem:[%s5 + $0x34] sm:$0xf]
  %v2650 = vld [vmem:[%s5 + $0x38] sm:$0xf]
  %v2651 = vld [vmem:[%s5 + $0x3c] sm:$0xf]
  %v2652 = vld [vmem:[%s5 + $0x40] sm:$0xf]
  %v2653 = vld [vmem:[%s5 + $0x44] sm:$0xf]
  %v2654 = vld [vmem:[%s5 + $0x48] sm:$0xf]
  %v2655 = vld [vmem:[%s5 + $0x4c] sm:$0xf]
  %v2656 = vpack.c.bf16 %v2622, %v2621
  %v2657 = vpack.c.bf16 %v2624, %v2623
  %v2658 = vpack.c.bf16 %v2626, %v2625
  %v2659 = vpack.c.bf16 %v2628, %v2627
  %v2660 = vpack.c.bf16 %v2630, %v2629
  %v2661 = vpack.c.bf16 %v2632, %v2631
  %v2662 = vpack.c.bf16 %v2634, %v2633
  %v2663 = vpack.c.bf16 %v2635, %v2635
  %s2664 = scalar_lea.vmem %s5, 80
  %v2665 = vld [vmem:[%s2664] sm:$0xf]
  %v2666 = vld [vmem:[%s2664 + $0x4] sm:$0xf]
  %v2667 = vld [vmem:[%s2664 + $0x8] sm:$0xf]
  %v2668 = vld [vmem:[%s2664 + $0xc] sm:$0xf]
  %v2669 = vld [vmem:[%s2664 + $0x10] sm:$0xf]
  %v2670 = vld [vmem:[%s2664 + $0x14] sm:$0xf]
  %v2671 = vld [vmem:[%s2664 + $0x18] sm:$0xf]
  %v2672 = vld [vmem:[%s2664 + $0x1c] sm:$0xf]
  %v2673 = vld [vmem:[%s2664 + $0x20] sm:$0xf]
  %v2674 = vld [vmem:[%s2664 + $0x24] sm:$0xf]
  %v2675 = vld [vmem:[%s2664 + $0x28] sm:$0xf]
  %v2676 = vld [vmem:[%s2664 + $0x2c] sm:$0xf]
  %v2677 = vld [vmem:[%s2664 + $0x30] sm:$0xf]
  %v2678 = vld [vmem:[%s2664 + $0x34] sm:$0xf]
  %v2679 = vld [vmem:[%s2664 + $0x38] sm:$0xf]
  %v2680 = vld [vmem:[%s2664 + $0x3c] sm:$0xf]
  %v2681 = vld [vmem:[%s2664 + $0x40] sm:$0xf]
  %v2682 = vld [vmem:[%s2664 + $0x44] sm:$0xf]
  %v2683 = vld [vmem:[%s2664 + $0x48] sm:$0xf]
  %v2684 = vld [vmem:[%s2664 + $0x4c] sm:$0xf]
  %v2705 = vunpack.c.l.b16 %v2665
  %v2706 = vunpack.c.l.b16 %v2666
  %v2707 = vunpack.c.l.b16 %v2667
  %v2708 = vunpack.c.l.b16 %v2668
  %v2709 = vunpack.c.l.b16 %v2669
  %v2710 = vunpack.c.l.b16 %v2670
  %v2711 = vunpack.c.l.b16 %v2671
  %v2712 = vunpack.c.l.b16 %v2672
  %v2713 = vunpack.c.l.b16 %v2673
  %v2714 = vunpack.c.l.b16 %v2674
  %v2715 = vunpack.c.l.b16 %v2675
  %v2716 = vunpack.c.l.b16 %v2676
  %v2717 = vunpack.c.l.b16 %v2677
  %v2718 = vunpack.c.l.b16 %v2678
  %v2719 = vunpack.c.l.b16 %v2679
  %v2720 = vunpack.c.l.b16 %v2680
  %v2721 = vunpack.c.l.b16 %v2681
  %v2722 = vunpack.c.l.b16 %v2682
  %v2723 = vunpack.c.l.b16 %v2683
  %v2724 = vunpack.c.l.b16 %v2684
  %v2725 = vpack.c.b16 %v2706, %v2705
  %v2726 = vpack.c.b16 %v2708, %v2707
  %v2727 = vpack.c.b16 %v2710, %v2709
  %v2728 = vpack.c.b16 %v2712, %v2711
  %v2729 = vpack.c.b16 %v2714, %v2713
  %v2730 = vpack.c.b16 %v2716, %v2715
  %v2731 = vpack.c.b16 %v2718, %v2717
  %v2732 = vpack.c.b16 %v2720, %v2719
  %v2733 = vpack.c.b16 %v2722, %v2721
  %v2734 = vpack.c.b16 %v2724, %v2723
  %2743 = vrot.lane.b32.xlu0 %v2656, 127
  %v2744 = vpop.permute.xlu0 %2743
  %2745 = vrot.lane.b32.xlu0 %v2657, 127
  %v2746 = vpop.permute.xlu0 %2745
  %2747 = vrot.lane.b32.xlu0 %v2658, 127
  %v2748 = vpop.permute.xlu0 %2747
  %2749 = vrot.lane.b32.xlu0 %v2659, 127
  %v2750 = vpop.permute.xlu0 %2749
  %2751 = vrot.lane.b32.xlu0 %v2660, 127
  %v2752 = vpop.permute.xlu0 %2751
  %2753 = vrot.lane.b32.xlu0 %v2661, 127
  %v2754 = vpop.permute.xlu0 %2753
  %2755 = vrot.lane.b32.xlu0 %v2662, 127
  %v2756 = vpop.permute.xlu0 %2755
  %2757 = vrot.lane.b32.xlu0 %v2663, 127
  %v2758 = vpop.permute.xlu0 %2757
  %vm2766 = vcmask 982016
  %v2768 = vsel %vm2766, %v2725, 0
  %v2771 = vsel %vm2766, %v2726, 0
  %v2774 = vsel %vm2766, %v2727, 0
  %v2777 = vsel %vm2766, %v2728, 0
  %v2780 = vsel %vm2766, %v2729, 0
  %v2783 = vsel %vm2766, %v2730, 0
  %v2786 = vsel %vm2766, %v2731, 0
  %v2789 = vsel %vm2766, %v2732, 0
  %v2792 = vsel %vm2766, %v2733, 0
  %v2795 = vsel %vm2766, %v2734, 0
  %v2798 = vsel %vm2394, %v2758, 0
  %2800 = vmatprep.subr.bf16.mxu0 0
  %2801 = vmatpush1.bf16.msra.mxu0 %v2798
  %2802 = vmatprep.subr.bf16.mxu0 0
  %2803 = vmatpush1.bf16.msra.mxu0 %v2756
  %2804 = vmatprep.subr.bf16.mxu0 0
  %2805 = vmatpush1.bf16.msra.mxu0 %v2754
  %2806 = vmatprep.subr.bf16.mxu0 0
  %2807 = vmatpush1.bf16.msra.mxu0 %v2752
  %2808 = vmatprep.subr.bf16.mxu0 0
  %2809 = vmatpush1.bf16.msra.mxu0 %v2750
  %2810 = vmatprep.subr.bf16.mxu0 0
  %2811 = vmatpush1.bf16.msra.mxu0 %v2748
  %2812 = vmatprep.subr.bf16.mxu0 0
  %2813 = vmatpush1.bf16.msra.mxu0 %v2746
  %2814 = vmatprep.subr.bf16.mxu0 0
  %2815 = vmatpush1.bf16.msra.mxu0 %v2744
  %2816 = vmatprep.subr.bf16.mxu0 0
  %2817 = vmatpush2.bf16.msra.mxu0 0
  %2818 = vmatprep.subr.bf16.mxu0 0
  %2819 = vmatpush2.bf16.msra.mxu0 0
  %2820 = vmatprep.subr.bf16.mxu0 0
  %2821 = vmatpush2.bf16.msra.mxu0 0
  %2822 = vmatprep.subr.bf16.mxu0 0
  %2823 = vmatpush2.bf16.msra.mxu0 0
  %2824 = vmatprep.subr.bf16.mxu0 0
  %2825 = vmatpush2.bf16.msra.mxu0 0
  %2826 = vmatprep.subr.bf16.mxu0 0
  %2827 = vmatpush2.bf16.msra.mxu0 0
  %2828 = vmatprep.subr.bf16.mxu0 0
  %2829 = vmatpush2.bf16.msra.mxu0 0
  %2830 = vmatprep.subr.bf16.mxu0 0
  %2831 = vmatpush2.bf16.msra.mxu0 0
  %2832 = vmatprep.mubr.bf16.mxu0 0
  %2833 = vmatmul.mubr.bf16.gmra.mxu0 %v2768
  %v2834 = vpop.f32.mrf.mxu0
  %v2835 = vadd.f32 0.0, %v2834
  %v2836 = vpop.f32.mrf.mxu0
  %v2837 = vpop.f32.mrf.mxu0
  %v2838 = vadd.f32 0.0, %v2837
  %v2839 = vpop.f32.mrf.mxu0
  %2840 = vmatprep.mubr.bf16.mxu0 0
  %2841 = vmatmul.mubr.bf16.gmra.mxu0 %v2771
  %v2842 = vpop.f32.mrf.mxu0
  %v2843 = vadd.f32 0.0, %v2842
  %v2844 = vpop.f32.mrf.mxu0
  %v2845 = vpop.f32.mrf.mxu0
  %v2846 = vadd.f32 0.0, %v2845
  %v2847 = vpop.f32.mrf.mxu0
  %2848 = vmatprep.mubr.bf16.mxu0 0
  %2849 = vmatmul.mubr.bf16.gmra.mxu0 %v2774
  %v2850 = vpop.f32.mrf.mxu0
  %v2851 = vadd.f32 0.0, %v2850
  %v2852 = vpop.f32.mrf.mxu0
  %v2853 = vpop.f32.mrf.mxu0
  %v2854 = vadd.f32 0.0, %v2853
  %v2855 = vpop.f32.mrf.mxu0
  %2856 = vmatprep.mubr.bf16.mxu0 0
  %2857 = vmatmul.mubr.bf16.gmra.mxu0 %v2777
  %v2858 = vpop.f32.mrf.mxu0
  %v2859 = vadd.f32 0.0, %v2858
  %v2860 = vpop.f32.mrf.mxu0
  %v2861 = vpop.f32.mrf.mxu0
  %v2862 = vadd.f32 0.0, %v2861
  %v2863 = vpop.f32.mrf.mxu0
  %2864 = vmatprep.mubr.bf16.mxu0 0
  %2865 = vmatmul.mubr.bf16.gmra.mxu0 %v2780
  %v2866 = vpop.f32.mrf.mxu0
  %v2867 = vadd.f32 0.0, %v2866
  %v2868 = vpop.f32.mrf.mxu0
  %v2869 = vpop.f32.mrf.mxu0
  %v2870 = vadd.f32 0.0, %v2869
  %v2871 = vpop.f32.mrf.mxu0
  %2872 = vmatprep.mubr.bf16.mxu0 0
  %2873 = vmatmul.mubr.bf16.gmra.mxu0 %v2783
  %v2874 = vpop.f32.mrf.mxu0
  %v2875 = vadd.f32 0.0, %v2874
  %v2876 = vpop.f32.mrf.mxu0
  %v2877 = vpop.f32.mrf.mxu0
  %v2878 = vadd.f32 0.0, %v2877
  %v2879 = vpop.f32.mrf.mxu0
  %2880 = vmatprep.mubr.bf16.mxu0 0
  %2881 = vmatmul.mubr.bf16.gmra.mxu0 %v2786
  %v2882 = vpop.f32.mrf.mxu0
  %v2883 = vadd.f32 0.0, %v2882
  %v2884 = vpop.f32.mrf.mxu0
  %v2885 = vpop.f32.mrf.mxu0
  %v2886 = vadd.f32 0.0, %v2885
  %v2887 = vpop.f32.mrf.mxu0
  %2888 = vmatprep.mubr.bf16.mxu0 0
  %2889 = vmatmul.mubr.bf16.gmra.mxu0 %v2789
  %v2890 = vpop.f32.mrf.mxu0
  %v2891 = vadd.f32 0.0, %v2890
  %v2892 = vpop.f32.mrf.mxu0
  %v2893 = vpop.f32.mrf.mxu0
  %v2894 = vadd.f32 0.0, %v2893
  %v2895 = vpop.f32.mrf.mxu0
  %2896 = vmatprep.mubr.bf16.mxu0 0
  %2897 = vmatmul.mubr.bf16.gmra.mxu0 %v2792
  %v2898 = vpop.f32.mrf.mxu0
  %v2899 = vadd.f32 0.0, %v2898
  %v2900 = vpop.f32.mrf.mxu0
  %v2901 = vpop.f32.mrf.mxu0
  %v2902 = vadd.f32 0.0, %v2901
  %v2903 = vpop.f32.mrf.mxu0
  %2904 = vmatprep.mubr.bf16.mxu0 0
  %2905 = vmatmul.mubr.bf16.gmra.mxu0 %v2795
  %v2906 = vpop.f32.mrf.mxu0
  %v2907 = vadd.f32 0.0, %v2906
  %v2908 = vpop.f32.mrf.mxu0
  %v2909 = vpop.f32.mrf.mxu0
  %v2910 = vadd.f32 0.0, %v2909
  %v2911 = vpop.f32.mrf.mxu0
  %2912 = vdwg.mxu0
  %v2933 = vunpack.c.l.b16 %v2636
  %v2934 = vunpack.c.l.b16 %v2637
  %v2935 = vunpack.c.l.b16 %v2638
  %v2936 = vunpack.c.l.b16 %v2639
  %v2937 = vunpack.c.l.b16 %v2640
  %v2938 = vunpack.c.l.b16 %v2641
  %v2939 = vunpack.c.l.b16 %v2642
  %v2940 = vunpack.c.l.b16 %v2643
  %v2941 = vunpack.c.l.b16 %v2644
  %v2942 = vunpack.c.l.b16 %v2645
  %v2943 = vunpack.c.l.b16 %v2646
  %v2944 = vunpack.c.l.b16 %v2647
  %v2945 = vunpack.c.l.b16 %v2648
  %v2946 = vunpack.c.l.b16 %v2649
  %v2947 = vunpack.c.l.b16 %v2650
  %v2948 = vunpack.c.l.b16 %v2651
  %v2949 = vunpack.c.l.b16 %v2652
  %v2950 = vunpack.c.l.b16 %v2653
  %v2951 = vunpack.c.l.b16 %v2654
  %v2952 = vunpack.c.l.b16 %v2655
  %v2953 = vpack.c.b16 %v2934, %v2933
  %v2954 = vpack.c.b16 %v2936, %v2935
  %v2955 = vpack.c.b16 %v2938, %v2937
  %v2956 = vpack.c.b16 %v2940, %v2939
  %v2957 = vpack.c.b16 %v2942, %v2941
  %v2958 = vpack.c.b16 %v2944, %v2943
  %v2959 = vpack.c.b16 %v2946, %v2945
  %v2960 = vpack.c.b16 %v2948, %v2947
  %v2961 = vpack.c.b16 %v2950, %v2949
  %v2962 = vpack.c.b16 %v2952, %v2951
  %v2964 = vsel %vm2766, %v2953, 0
  %v2967 = vsel %vm2766, %v2954, 0
  %v2970 = vsel %vm2766, %v2955, 0
  %v2973 = vsel %vm2766, %v2956, 0
  %v2976 = vsel %vm2766, %v2957, 0
  %v2979 = vsel %vm2766, %v2958, 0
  %v2982 = vsel %vm2766, %v2959, 0
  %v2985 = vsel %vm2766, %v2960, 0
  %v2988 = vsel %vm2766, %v2961, 0
  %v2991 = vsel %vm2766, %v2962, 0
  %v2994 = vsel %vm2394, %v2663, 0
  %2996 = vmatprep.subr.bf16.mxu0 0
  %2997 = vmatpush1.bf16.msra.mxu0 %v2994
  %2998 = vmatprep.subr.bf16.mxu0 0
  %2999 = vmatpush1.bf16.msra.mxu0 %v2662
  %3000 = vmatprep.subr.bf16.mxu0 0
  %3001 = vmatpush1.bf16.msra.mxu0 %v2661
  %3002 = vmatprep.subr.bf16.mxu0 0
  %3003 = vmatpush1.bf16.msra.mxu0 %v2660
  %3004 = vmatprep.subr.bf16.mxu0 0
  %3005 = vmatpush1.bf16.msra.mxu0 %v2659
  %3006 = vmatprep.subr.bf16.mxu0 0
  %3007 = vmatpush1.bf16.msra.mxu0 %v2658
  %3008 = vmatprep.subr.bf16.mxu0 0
  %3009 = vmatpush1.bf16.msra.mxu0 %v2657
  %3010 = vmatprep.subr.bf16.mxu0 0
  %3011 = vmatpush1.bf16.msra.mxu0 %v2656
  %3012 = vmatprep.subr.bf16.mxu0 0
  %3013 = vmatpush2.bf16.msra.mxu0 0
  %3014 = vmatprep.subr.bf16.mxu0 0
  %3015 = vmatpush2.bf16.msra.mxu0 0
  %3016 = vmatprep.subr.bf16.mxu0 0
  %3017 = vmatpush2.bf16.msra.mxu0 0
  %3018 = vmatprep.subr.bf16.mxu0 0
  %3019 = vmatpush2.bf16.msra.mxu0 0
  %3020 = vmatprep.subr.bf16.mxu0 0
  %3021 = vmatpush2.bf16.msra.mxu0 0
  %3022 = vmatprep.subr.bf16.mxu0 0
  %3023 = vmatpush2.bf16.msra.mxu0 0
  %3024 = vmatprep.subr.bf16.mxu0 0
  %3025 = vmatpush2.bf16.msra.mxu0 0
  %3026 = vmatprep.subr.bf16.mxu0 0
  %3027 = vmatpush2.bf16.msra.mxu0 0
  %3028 = vmatprep.mubr.bf16.mxu0 0
  %3029 = vmatmul.mubr.bf16.gmra.mxu0 %v2964
  %v3030 = vpop.f32.mrf.mxu0
  %v3031 = vadd.f32 %v2835, %v3030
  %v3032 = vpop.f32.mrf.mxu0
  %v3033 = vpop.f32.mrf.mxu0
  %v3034 = vadd.f32 %v2838, %v3033
  %v3035 = vpop.f32.mrf.mxu0
  %3036 = vmatprep.mubr.bf16.mxu0 0
  %3037 = vmatmul.mubr.bf16.gmra.mxu0 %v2967
  %v3038 = vpop.f32.mrf.mxu0
  %v3039 = vadd.f32 %v2843, %v3038
  %v3040 = vpop.f32.mrf.mxu0
  %v3041 = vpop.f32.mrf.mxu0
  %v3042 = vadd.f32 %v2846, %v3041
  %v3043 = vpop.f32.mrf.mxu0
  %3044 = vmatprep.mubr.bf16.mxu0 0
  %3045 = vmatmul.mubr.bf16.gmra.mxu0 %v2970
  %v3046 = vpop.f32.mrf.mxu0
  %v3047 = vadd.f32 %v2851, %v3046
  %v3048 = vpop.f32.mrf.mxu0
  %v3049 = vpop.f32.mrf.mxu0
  %v3050 = vadd.f32 %v2854, %v3049
  %v3051 = vpop.f32.mrf.mxu0
  %3052 = vmatprep.mubr.bf16.mxu0 0
  %3053 = vmatmul.mubr.bf16.gmra.mxu0 %v2973
  %v3054 = vpop.f32.mrf.mxu0
  %v3055 = vadd.f32 %v2859, %v3054
  %v3056 = vpop.f32.mrf.mxu0
  %v3057 = vpop.f32.mrf.mxu0
  %v3058 = vadd.f32 %v2862, %v3057
  %v3059 = vpop.f32.mrf.mxu0
  %3060 = vmatprep.mubr.bf16.mxu0 0
  %3061 = vmatmul.mubr.bf16.gmra.mxu0 %v2976
  %v3062 = vpop.f32.mrf.mxu0
  %v3063 = vadd.f32 %v2867, %v3062
  %v3064 = vpop.f32.mrf.mxu0
  %v3065 = vpop.f32.mrf.mxu0
  %v3066 = vadd.f32 %v2870, %v3065
  %v3067 = vpop.f32.mrf.mxu0
  %3068 = vmatprep.mubr.bf16.mxu0 0
  %3069 = vmatmul.mubr.bf16.gmra.mxu0 %v2979
  %v3070 = vpop.f32.mrf.mxu0
  %v3071 = vadd.f32 %v2875, %v3070
  %v3072 = vpop.f32.mrf.mxu0
  %v3073 = vpop.f32.mrf.mxu0
  %v3074 = vadd.f32 %v2878, %v3073
  %v3075 = vpop.f32.mrf.mxu0
  %3076 = vmatprep.mubr.bf16.mxu0 0
  %3077 = vmatmul.mubr.bf16.gmra.mxu0 %v2982
  %v3078 = vpop.f32.mrf.mxu0
  %v3079 = vadd.f32 %v2883, %v3078
  %v3080 = vpop.f32.mrf.mxu0
  %v3081 = vpop.f32.mrf.mxu0
  %v3082 = vadd.f32 %v2886, %v3081
  %v3083 = vpop.f32.mrf.mxu0
  %3084 = vmatprep.mubr.bf16.mxu0 0
  %3085 = vmatmul.mubr.bf16.gmra.mxu0 %v2985
  %v3086 = vpop.f32.mrf.mxu0
  %v3087 = vadd.f32 %v2891, %v3086
  %v3088 = vpop.f32.mrf.mxu0
  %v3089 = vpop.f32.mrf.mxu0
  %v3090 = vadd.f32 %v2894, %v3089
  %v3091 = vpop.f32.mrf.mxu0
  %3092 = vmatprep.mubr.bf16.mxu0 0
  %3093 = vmatmul.mubr.bf16.gmra.mxu0 %v2988
  %v3094 = vpop.f32.mrf.mxu0
  %v3095 = vadd.f32 %v2899, %v3094
  %v3096 = vpop.f32.mrf.mxu0
  %v3097 = vpop.f32.mrf.mxu0
  %v3098 = vadd.f32 %v2902, %v3097
  %v3099 = vpop.f32.mrf.mxu0
  %3100 = vmatprep.mubr.bf16.mxu0 0
  %3101 = vmatmul.mubr.bf16.gmra.mxu0 %v2991
  %v3102 = vpop.f32.mrf.mxu0
  %v3103 = vadd.f32 %v2907, %v3102
  %v3104 = vpop.f32.mrf.mxu0
  %v3105 = vpop.f32.mrf.mxu0
  %v3106 = vadd.f32 %v2910, %v3105
  %v3107 = vpop.f32.mrf.mxu0
  %3108 = vdwg.mxu0
  %s3109 = scalar_lea.vmem %s5, 160
  %v3110 = vld [vmem:[%s3109] sm:$0xf]
  %v3111 = vld [vmem:[%s3109 + $0x4] sm:$0xf]
  %v3112 = vld [vmem:[%s3109 + $0x8] sm:$0xf]
  %v3113 = vld [vmem:[%s3109 + $0xc] sm:$0xf]
  %v3114 = vld [vmem:[%s3109 + $0x10] sm:$0xf]
  %v3115 = vld [vmem:[%s3109 + $0x14] sm:$0xf]
  %v3116 = vld [vmem:[%s3109 + $0x18] sm:$0xf]
  %v3117 = vld [vmem:[%s3109 + $0x1c] sm:$0xf]
  %v3118 = vld [vmem:[%s3109 + $0x20] sm:$0xf]
  %v3119 = vld [vmem:[%s3109 + $0x24] sm:$0xf]
  %v3120 = vld [vmem:[%s3109 + $0x28] sm:$0xf]
  %v3121 = vld [vmem:[%s3109 + $0x2c] sm:$0xf]
  %v3122 = vld [vmem:[%s3109 + $0x30] sm:$0xf]
  %v3123 = vld [vmem:[%s3109 + $0x34] sm:$0xf]
  %v3124 = vld [vmem:[%s3109 + $0x38] sm:$0xf]
  %v3125 = vld [vmem:[%s3109 + $0x3c] sm:$0xf]
  %v3126 = vld [vmem:[%s3109 + $0x40] sm:$0xf]
  %v3127 = vld [vmem:[%s3109 + $0x44] sm:$0xf]
  %v3128 = vld [vmem:[%s3109 + $0x48] sm:$0xf]
  %v3129 = vld [vmem:[%s3109 + $0x4c] sm:$0xf]
  %v3150 = vunpack.c.l.b16 %v3110
  %v3151 = vunpack.c.l.b16 %v3111
  %v3152 = vunpack.c.l.b16 %v3112
  %v3153 = vunpack.c.l.b16 %v3113
  %v3154 = vunpack.c.l.b16 %v3114
  %v3155 = vunpack.c.l.b16 %v3115
  %v3156 = vunpack.c.l.b16 %v3116
  %v3157 = vunpack.c.l.b16 %v3117
  %v3158 = vunpack.c.l.b16 %v3118
  %v3159 = vunpack.c.l.b16 %v3119
  %v3160 = vunpack.c.l.b16 %v3120
  %v3161 = vunpack.c.l.b16 %v3121
  %v3162 = vunpack.c.l.b16 %v3122
  %v3163 = vunpack.c.l.b16 %v3123
  %v3164 = vunpack.c.l.b16 %v3124
  %v3165 = vunpack.c.l.b16 %v3125
  %v3166 = vunpack.c.l.b16 %v3126
  %v3167 = vunpack.c.l.b16 %v3127
  %v3168 = vunpack.c.l.b16 %v3128
  %v3169 = vunpack.c.l.b16 %v3129
  %v3170 = vpack.c.b16 %v3151, %v3150
  %v3171 = vpack.c.b16 %v3153, %v3152
  %v3172 = vpack.c.b16 %v3155, %v3154
  %v3173 = vpack.c.b16 %v3157, %v3156
  %v3174 = vpack.c.b16 %v3159, %v3158
  %v3175 = vpack.c.b16 %v3161, %v3160
  %v3176 = vpack.c.b16 %v3163, %v3162
  %v3177 = vpack.c.b16 %v3165, %v3164
  %v3178 = vpack.c.b16 %v3167, %v3166
  %v3179 = vpack.c.b16 %v3169, %v3168
  %3180 = vrot.lane.b32.xlu0 %v2656, 126
  %v3181 = vpop.permute.xlu0 %3180
  %3182 = vrot.lane.b32.xlu0 %v2657, 126
  %v3183 = vpop.permute.xlu0 %3182
  %3184 = vrot.lane.b32.xlu0 %v2658, 126
  %v3185 = vpop.permute.xlu0 %3184
  %3186 = vrot.lane.b32.xlu0 %v2659, 126
  %v3187 = vpop.permute.xlu0 %3186
  %3188 = vrot.lane.b32.xlu0 %v2660, 126
  %v3189 = vpop.permute.xlu0 %3188
  %3190 = vrot.lane.b32.xlu0 %v2661, 126
  %v3191 = vpop.permute.xlu0 %3190
  %3192 = vrot.lane.b32.xlu0 %v2662, 126
  %v3193 = vpop.permute.xlu0 %3192
  %3194 = vrot.lane.b32.xlu0 %v2663, 126
  %v3195 = vpop.permute.xlu0 %3194
  %v3204 = vsel %vm2766, %v3170, 0
  %v3207 = vsel %vm2766, %v3171, 0
  %v3210 = vsel %vm2766, %v3172, 0
  %v3213 = vsel %vm2766, %v3173, 0
  %v3216 = vsel %vm2766, %v3174, 0
  %v3219 = vsel %vm2766, %v3175, 0
  %v3222 = vsel %vm2766, %v3176, 0
  %v3225 = vsel %vm2766, %v3177, 0
  %v3228 = vsel %vm2766, %v3178, 0
  %v3231 = vsel %vm2766, %v3179, 0
  %v3234 = vsel %vm2394, %v3195, 0
  %3236 = vmatprep.subr.bf16.mxu0 0
  %3237 = vmatpush1.bf16.msra.mxu0 %v3234
  %3238 = vmatprep.subr.bf16.mxu0 0
  %3239 = vmatpush1.bf16.msra.mxu0 %v3193
  %3240 = vmatprep.subr.bf16.mxu0 0
  %3241 = vmatpush1.bf16.msra.mxu0 %v3191
  %3242 = vmatprep.subr.bf16.mxu0 0
  %3243 = vmatpush1.bf16.msra.mxu0 %v3189
  %3244 = vmatprep.subr.bf16.mxu0 0
  %3245 = vmatpush1.bf16.msra.mxu0 %v3187
  %3246 = vmatprep.subr.bf16.mxu0 0
  %3247 = vmatpush1.bf16.msra.mxu0 %v3185
  %3248 = vmatprep.subr.bf16.mxu0 0
  %3249 = vmatpush1.bf16.msra.mxu0 %v3183
  %3250 = vmatprep.subr.bf16.mxu0 0
  %3251 = vmatpush1.bf16.msra.mxu0 %v3181
  %3252 = vmatprep.subr.bf16.mxu0 0
  %3253 = vmatpush2.bf16.msra.mxu0 0
  %3254 = vmatprep.subr.bf16.mxu0 0
  %3255 = vmatpush2.bf16.msra.mxu0 0
  %3256 = vmatprep.subr.bf16.mxu0 0
  %3257 = vmatpush2.bf16.msra.mxu0 0
  %3258 = vmatprep.subr.bf16.mxu0 0
  %3259 = vmatpush2.bf16.msra.mxu0 0
  %3260 = vmatprep.subr.bf16.mxu0 0
  %3261 = vmatpush2.bf16.msra.mxu0 0
  %3262 = vmatprep.subr.bf16.mxu0 0
  %3263 = vmatpush2.bf16.msra.mxu0 0
  %3264 = vmatprep.subr.bf16.mxu0 0
  %3265 = vmatpush2.bf16.msra.mxu0 0
  %3266 = vmatprep.subr.bf16.mxu0 0
  %3267 = vmatpush2.bf16.msra.mxu0 0
  %3268 = vmatprep.mubr.bf16.mxu0 0
  %3269 = vmatmul.mubr.bf16.gmra.mxu0 %v3204
  %v3270 = vpop.f32.mrf.mxu0
  %v3271 = vadd.f32 0.0, %v3270
  %v3272 = vpop.f32.mrf.mxu0
  %v3273 = vpop.f32.mrf.mxu0
  %v3274 = vadd.f32 0.0, %v3273
  %v3275 = vpop.f32.mrf.mxu0
  %3276 = vmatprep.mubr.bf16.mxu0 0
  %3277 = vmatmul.mubr.bf16.gmra.mxu0 %v3207
  %v3278 = vpop.f32.mrf.mxu0
  %v3279 = vadd.f32 0.0, %v3278
  %v3280 = vpop.f32.mrf.mxu0
  %v3281 = vpop.f32.mrf.mxu0
  %v3282 = vadd.f32 0.0, %v3281
  %v3283 = vpop.f32.mrf.mxu0
  %3284 = vmatprep.mubr.bf16.mxu0 0
  %3285 = vmatmul.mubr.bf16.gmra.mxu0 %v3210
  %v3286 = vpop.f32.mrf.mxu0
  %v3287 = vadd.f32 0.0, %v3286
  %v3288 = vpop.f32.mrf.mxu0
  %v3289 = vpop.f32.mrf.mxu0
  %v3290 = vadd.f32 0.0, %v3289
  %v3291 = vpop.f32.mrf.mxu0
  %3292 = vmatprep.mubr.bf16.mxu0 0
  %3293 = vmatmul.mubr.bf16.gmra.mxu0 %v3213
  %v3294 = vpop.f32.mrf.mxu0
  %v3295 = vadd.f32 0.0, %v3294
  %v3296 = vpop.f32.mrf.mxu0
  %v3297 = vpop.f32.mrf.mxu0
  %v3298 = vadd.f32 0.0, %v3297
  %v3299 = vpop.f32.mrf.mxu0
  %3300 = vmatprep.mubr.bf16.mxu0 0
  %3301 = vmatmul.mubr.bf16.gmra.mxu0 %v3216
  %v3302 = vpop.f32.mrf.mxu0
  %v3303 = vadd.f32 0.0, %v3302
  %v3304 = vpop.f32.mrf.mxu0
  %v3305 = vpop.f32.mrf.mxu0
  %v3306 = vadd.f32 0.0, %v3305
  %v3307 = vpop.f32.mrf.mxu0
  %3308 = vmatprep.mubr.bf16.mxu0 0
  %3309 = vmatmul.mubr.bf16.gmra.mxu0 %v3219
  %v3310 = vpop.f32.mrf.mxu0
  %v3311 = vadd.f32 0.0, %v3310
  %v3312 = vpop.f32.mrf.mxu0
  %v3313 = vpop.f32.mrf.mxu0
  %v3314 = vadd.f32 0.0, %v3313
  %v3315 = vpop.f32.mrf.mxu0
  %3316 = vmatprep.mubr.bf16.mxu0 0
  %3317 = vmatmul.mubr.bf16.gmra.mxu0 %v3222
  %v3318 = vpop.f32.mrf.mxu0
  %v3319 = vadd.f32 0.0, %v3318
  %v3320 = vpop.f32.mrf.mxu0
  %v3321 = vpop.f32.mrf.mxu0
  %v3322 = vadd.f32 0.0, %v3321
  %v3323 = vpop.f32.mrf.mxu0
  %3324 = vmatprep.mubr.bf16.mxu0 0
  %3325 = vmatmul.mubr.bf16.gmra.mxu0 %v3225
  %v3326 = vpop.f32.mrf.mxu0
  %v3327 = vadd.f32 0.0, %v3326
  %v3328 = vpop.f32.mrf.mxu0
  %v3329 = vpop.f32.mrf.mxu0
  %v3330 = vadd.f32 0.0, %v3329
  %v3331 = vpop.f32.mrf.mxu0
  %3332 = vmatprep.mubr.bf16.mxu0 0
  %3333 = vmatmul.mubr.bf16.gmra.mxu0 %v3228
  %v3334 = vpop.f32.mrf.mxu0
  %v3335 = vadd.f32 0.0, %v3334
  %v3336 = vpop.f32.mrf.mxu0
  %v3337 = vpop.f32.mrf.mxu0
  %v3338 = vadd.f32 0.0, %v3337
  %v3339 = vpop.f32.mrf.mxu0
  %3340 = vmatprep.mubr.bf16.mxu0 0
  %3341 = vmatmul.mubr.bf16.gmra.mxu0 %v3231
  %v3342 = vpop.f32.mrf.mxu0
  %v3343 = vadd.f32 0.0, %v3342
  %v3344 = vpop.f32.mrf.mxu0
  %v3345 = vpop.f32.mrf.mxu0
  %v3346 = vadd.f32 0.0, %v3345
  %v3347 = vpop.f32.mrf.mxu0
  %3348 = vdwg.mxu0
  %v3349 = vadd.f32 %v3031, %v3271
  %v3350 = vadd.f32 %v3034, %v3274
  %v3351 = vadd.f32 %v3039, %v3279
  %v3352 = vadd.f32 %v3042, %v3282
  %v3353 = vadd.f32 %v3047, %v3287
  %v3354 = vadd.f32 %v3050, %v3290
  %v3355 = vadd.f32 %v3055, %v3295
  %v3356 = vadd.f32 %v3058, %v3298
  %v3357 = vadd.f32 %v3063, %v3303
  %v3358 = vadd.f32 %v3066, %v3306
  %v3359 = vadd.f32 %v3071, %v3311
  %v3360 = vadd.f32 %v3074, %v3314
  %v3361 = vadd.f32 %v3079, %v3319
  %v3362 = vadd.f32 %v3082, %v3322
  %v3363 = vadd.f32 %v3087, %v3327
  %v3364 = vadd.f32 %v3090, %v3330
  %v3365 = vadd.f32 %v3095, %v3335
  %v3366 = vadd.f32 %v3098, %v3338
  %v3367 = vadd.f32 %v3103, %v3343
  %v3368 = vadd.f32 %v3106, %v3346
  %s3369 = scalar_lea.vmem %s5, 240
  %v3370 = vld [vmem:[%s3369] sm:$0xf]
  %v3371 = vld [vmem:[%s3369 + $0x4] sm:$0xf]
  %v3372 = vld [vmem:[%s3369 + $0x8] sm:$0xf]
  %v3373 = vld [vmem:[%s3369 + $0xc] sm:$0xf]
  %v3374 = vld [vmem:[%s3369 + $0x10] sm:$0xf]
  %v3375 = vld [vmem:[%s3369 + $0x14] sm:$0xf]
  %v3376 = vld [vmem:[%s3369 + $0x18] sm:$0xf]
  %v3377 = vld [vmem:[%s3369 + $0x1c] sm:$0xf]
  %v3378 = vld [vmem:[%s3369 + $0x20] sm:$0xf]
  %v3379 = vld [vmem:[%s3369 + $0x24] sm:$0xf]
  %v3380 = vld [vmem:[%s3369 + $0x28] sm:$0xf]
  %v3381 = vld [vmem:[%s3369 + $0x2c] sm:$0xf]
  %v3382 = vld [vmem:[%s3369 + $0x30] sm:$0xf]
  %v3383 = vld [vmem:[%s3369 + $0x34] sm:$0xf]
  %v3384 = vld [vmem:[%s3369 + $0x38] sm:$0xf]
  %v3385 = vld [vmem:[%s3369 + $0x3c] sm:$0xf]
  %v3386 = vld [vmem:[%s3369 + $0x40] sm:$0xf]
  %v3387 = vld [vmem:[%s3369 + $0x44] sm:$0xf]
  %v3388 = vld [vmem:[%s3369 + $0x48] sm:$0xf]
  %v3389 = vld [vmem:[%s3369 + $0x4c] sm:$0xf]
  %v3410 = vunpack.c.l.b16 %v3370
  %v3411 = vunpack.c.l.b16 %v3371
  %v3412 = vunpack.c.l.b16 %v3372
  %v3413 = vunpack.c.l.b16 %v3373
  %v3414 = vunpack.c.l.b16 %v3374
  %v3415 = vunpack.c.l.b16 %v3375
  %v3416 = vunpack.c.l.b16 %v3376
  %v3417 = vunpack.c.l.b16 %v3377
  %v3418 = vunpack.c.l.b16 %v3378
  %v3419 = vunpack.c.l.b16 %v3379
  %v3420 = vunpack.c.l.b16 %v3380
  %v3421 = vunpack.c.l.b16 %v3381
  %v3422 = vunpack.c.l.b16 %v3382
  %v3423 = vunpack.c.l.b16 %v3383
  %v3424 = vunpack.c.l.b16 %v3384
  %v3425 = vunpack.c.l.b16 %v3385
  %v3426 = vunpack.c.l.b16 %v3386
  %v3427 = vunpack.c.l.b16 %v3387
  %v3428 = vunpack.c.l.b16 %v3388
  %v3429 = vunpack.c.l.b16 %v3389
  %v3430 = vpack.c.b16 %v3411, %v3410
  %v3431 = vpack.c.b16 %v3413, %v3412
  %v3432 = vpack.c.b16 %v3415, %v3414
  %v3433 = vpack.c.b16 %v3417, %v3416
  %v3434 = vpack.c.b16 %v3419, %v3418
  %v3435 = vpack.c.b16 %v3421, %v3420
  %v3436 = vpack.c.b16 %v3423, %v3422
  %v3437 = vpack.c.b16 %v3425, %v3424
  %v3438 = vpack.c.b16 %v3427, %v3426
  %v3439 = vpack.c.b16 %v3429, %v3428
  %3440 = vrot.lane.b32.xlu0 %v2656, 125
  %v3441 = vpop.permute.xlu0 %3440
  %3442 = vrot.lane.b32.xlu0 %v2657, 125
  %v3443 = vpop.permute.xlu0 %3442
  %3444 = vrot.lane.b32.xlu0 %v2658, 125
  %v3445 = vpop.permute.xlu0 %3444
  %3446 = vrot.lane.b32.xlu0 %v2659, 125
  %v3447 = vpop.permute.xlu0 %3446
  %3448 = vrot.lane.b32.xlu0 %v2660, 125
  %v3449 = vpop.permute.xlu0 %3448
  %3450 = vrot.lane.b32.xlu0 %v2661, 125
  %v3451 = vpop.permute.xlu0 %3450
  %3452 = vrot.lane.b32.xlu0 %v2662, 125
  %v3453 = vpop.permute.xlu0 %3452
  %3454 = vrot.lane.b32.xlu0 %v2663, 125
  %v3455 = vpop.permute.xlu0 %3454
  %v3464 = vsel %vm2766, %v3430, 0
  %v3467 = vsel %vm2766, %v3431, 0
  %v3470 = vsel %vm2766, %v3432, 0
  %v3473 = vsel %vm2766, %v3433, 0
  %v3476 = vsel %vm2766, %v3434, 0
  %v3479 = vsel %vm2766, %v3435, 0
  %v3482 = vsel %vm2766, %v3436, 0
  %v3485 = vsel %vm2766, %v3437, 0
  %v3488 = vsel %vm2766, %v3438, 0
  %v3491 = vsel %vm2766, %v3439, 0
  %v3494 = vsel %vm2394, %v3455, 0
  %3496 = vmatprep.subr.bf16.mxu0 0
  %3497 = vmatpush1.bf16.msra.mxu0 %v3494
  %3498 = vmatprep.subr.bf16.mxu0 0
  %3499 = vmatpush1.bf16.msra.mxu0 %v3453
  %3500 = vmatprep.subr.bf16.mxu0 0
  %3501 = vmatpush1.bf16.msra.mxu0 %v3451
  %3502 = vmatprep.subr.bf16.mxu0 0
  %3503 = vmatpush1.bf16.msra.mxu0 %v3449
  %3504 = vmatprep.subr.bf16.mxu0 0
  %3505 = vmatpush1.bf16.msra.mxu0 %v3447
  %3506 = vmatprep.subr.bf16.mxu0 0
  %3507 = vmatpush1.bf16.msra.mxu0 %v3445
  %3508 = vmatprep.subr.bf16.mxu0 0
  %3509 = vmatpush1.bf16.msra.mxu0 %v3443
  %3510 = vmatprep.subr.bf16.mxu0 0
  %3511 = vmatpush1.bf16.msra.mxu0 %v3441
  %3512 = vmatprep.subr.bf16.mxu0 0
  %3513 = vmatpush2.bf16.msra.mxu0 0
  %3514 = vmatprep.subr.bf16.mxu0 0
  %3515 = vmatpush2.bf16.msra.mxu0 0
  %3516 = vmatprep.subr.bf16.mxu0 0
  %3517 = vmatpush2.bf16.msra.mxu0 0
  %3518 = vmatprep.subr.bf16.mxu0 0
  %3519 = vmatpush2.bf16.msra.mxu0 0
  %3520 = vmatprep.subr.bf16.mxu0 0
  %3521 = vmatpush2.bf16.msra.mxu0 0
  %3522 = vmatprep.subr.bf16.mxu0 0
  %3523 = vmatpush2.bf16.msra.mxu0 0
  %3524 = vmatprep.subr.bf16.mxu0 0
  %3525 = vmatpush2.bf16.msra.mxu0 0
  %3526 = vmatprep.subr.bf16.mxu0 0
  %3527 = vmatpush2.bf16.msra.mxu0 0
  %3528 = vmatprep.mubr.bf16.mxu0 0
  %3529 = vmatmul.mubr.bf16.gmra.mxu0 %v3464
  %v3530 = vpop.f32.mrf.mxu0
  %v3531 = vadd.f32 0.0, %v3530
  %v3532 = vpop.f32.mrf.mxu0
  %v3533 = vpop.f32.mrf.mxu0
  %v3534 = vadd.f32 0.0, %v3533
  %v3535 = vpop.f32.mrf.mxu0
  %3536 = vmatprep.mubr.bf16.mxu0 0
  %3537 = vmatmul.mubr.bf16.gmra.mxu0 %v3467
  %v3538 = vpop.f32.mrf.mxu0
  %v3539 = vadd.f32 0.0, %v3538
  %v3540 = vpop.f32.mrf.mxu0
  %v3541 = vpop.f32.mrf.mxu0
  %v3542 = vadd.f32 0.0, %v3541
  %v3543 = vpop.f32.mrf.mxu0
  %3544 = vmatprep.mubr.bf16.mxu0 0
  %3545 = vmatmul.mubr.bf16.gmra.mxu0 %v3470
  %v3546 = vpop.f32.mrf.mxu0
  %v3547 = vadd.f32 0.0, %v3546
  %v3548 = vpop.f32.mrf.mxu0
  %v3549 = vpop.f32.mrf.mxu0
  %v3550 = vadd.f32 0.0, %v3549
  %v3551 = vpop.f32.mrf.mxu0
  %3552 = vmatprep.mubr.bf16.mxu0 0
  %3553 = vmatmul.mubr.bf16.gmra.mxu0 %v3473
  %v3554 = vpop.f32.mrf.mxu0
  %v3555 = vadd.f32 0.0, %v3554
  %v3556 = vpop.f32.mrf.mxu0
  %v3557 = vpop.f32.mrf.mxu0
  %v3558 = vadd.f32 0.0, %v3557
  %v3559 = vpop.f32.mrf.mxu0
  %3560 = vmatprep.mubr.bf16.mxu0 0
  %3561 = vmatmul.mubr.bf16.gmra.mxu0 %v3476
  %v3562 = vpop.f32.mrf.mxu0
  %v3563 = vadd.f32 0.0, %v3562
  %v3564 = vpop.f32.mrf.mxu0
  %v3565 = vpop.f32.mrf.mxu0
  %v3566 = vadd.f32 0.0, %v3565
  %v3567 = vpop.f32.mrf.mxu0
  %3568 = vmatprep.mubr.bf16.mxu0 0
  %3569 = vmatmul.mubr.bf16.gmra.mxu0 %v3479
  %v3570 = vpop.f32.mrf.mxu0
  %v3571 = vadd.f32 0.0, %v3570
  %v3572 = vpop.f32.mrf.mxu0
  %v3573 = vpop.f32.mrf.mxu0
  %v3574 = vadd.f32 0.0, %v3573
  %v3575 = vpop.f32.mrf.mxu0
  %3576 = vmatprep.mubr.bf16.mxu0 0
  %3577 = vmatmul.mubr.bf16.gmra.mxu0 %v3482
  %v3578 = vpop.f32.mrf.mxu0
  %v3579 = vadd.f32 0.0, %v3578
  %v3580 = vpop.f32.mrf.mxu0
  %v3581 = vpop.f32.mrf.mxu0
  %v3582 = vadd.f32 0.0, %v3581
  %v3583 = vpop.f32.mrf.mxu0
  %3584 = vmatprep.mubr.bf16.mxu0 0
  %3585 = vmatmul.mubr.bf16.gmra.mxu0 %v3485
  %v3586 = vpop.f32.mrf.mxu0
  %v3587 = vadd.f32 0.0, %v3586
  %v3588 = vpop.f32.mrf.mxu0
  %v3589 = vpop.f32.mrf.mxu0
  %v3590 = vadd.f32 0.0, %v3589
  %v3591 = vpop.f32.mrf.mxu0
  %3592 = vmatprep.mubr.bf16.mxu0 0
  %3593 = vmatmul.mubr.bf16.gmra.mxu0 %v3488
  %v3594 = vpop.f32.mrf.mxu0
  %v3595 = vadd.f32 0.0, %v3594
  %v3596 = vpop.f32.mrf.mxu0
  %v3597 = vpop.f32.mrf.mxu0
  %v3598 = vadd.f32 0.0, %v3597
  %v3599 = vpop.f32.mrf.mxu0
  %3600 = vmatprep.mubr.bf16.mxu0 0
  %3601 = vmatmul.mubr.bf16.gmra.mxu0 %v3491
  %v3602 = vpop.f32.mrf.mxu0
  %v3603 = vadd.f32 0.0, %v3602
  %v3604 = vpop.f32.mrf.mxu0
  %v3605 = vpop.f32.mrf.mxu0
  %v3606 = vadd.f32 0.0, %v3605
  %v3607 = vpop.f32.mrf.mxu0
  %3608 = vdwg.mxu0
  %v3609 = vadd.f32 %v3349, %v3531
  %v3610 = vadd.f32 %v3350, %v3534
  %v3611 = vadd.f32 %v3351, %v3539
  %v3612 = vadd.f32 %v3352, %v3542
  %v3613 = vadd.f32 %v3353, %v3547
  %v3614 = vadd.f32 %v3354, %v3550
  %v3615 = vadd.f32 %v3355, %v3555
  %v3616 = vadd.f32 %v3356, %v3558
  %v3617 = vadd.f32 %v3357, %v3563
  %v3618 = vadd.f32 %v3358, %v3566
  %v3619 = vadd.f32 %v3359, %v3571
  %v3620 = vadd.f32 %v3360, %v3574
  %v3621 = vadd.f32 %v3361, %v3579
  %v3622 = vadd.f32 %v3362, %v3582
  %v3623 = vadd.f32 %v3363, %v3587
  %v3624 = vadd.f32 %v3364, %v3590
  %v3625 = vadd.f32 %v3365, %v3595
  %v3626 = vadd.f32 %v3366, %v3598
  %v3627 = vadd.f32 %v3367, %v3603
  %v3628 = vadd.f32 %v3368, %v3606
  %s3629 = scalar_lea.vmem %s5, 320
  %v3630 = vld [vmem:[%s3629] sm:$0xf]
  %v3631 = vld [vmem:[%s3629 + $0x4] sm:$0xf]
  %v3632 = vld [vmem:[%s3629 + $0x8] sm:$0xf]
  %v3633 = vld [vmem:[%s3629 + $0xc] sm:$0xf]
  %v3634 = vld [vmem:[%s3629 + $0x10] sm:$0xf]
  %v3635 = vld [vmem:[%s3629 + $0x14] sm:$0xf]
  %v3636 = vld [vmem:[%s3629 + $0x18] sm:$0xf]
  %v3637 = vld [vmem:[%s3629 + $0x1c] sm:$0xf]
  %v3638 = vld [vmem:[%s3629 + $0x20] sm:$0xf]
  %v3639 = vld [vmem:[%s3629 + $0x24] sm:$0xf]
  %v3640 = vld [vmem:[%s3629 + $0x28] sm:$0xf]
  %v3641 = vld [vmem:[%s3629 + $0x2c] sm:$0xf]
  %v3642 = vld [vmem:[%s3629 + $0x30] sm:$0xf]
  %v3643 = vld [vmem:[%s3629 + $0x34] sm:$0xf]
  %v3644 = vld [vmem:[%s3629 + $0x38] sm:$0xf]
  %v3645 = vld [vmem:[%s3629 + $0x3c] sm:$0xf]
  %v3646 = vld [vmem:[%s3629 + $0x40] sm:$0xf]
  %v3647 = vld [vmem:[%s3629 + $0x44] sm:$0xf]
  %v3648 = vld [vmem:[%s3629 + $0x48] sm:$0xf]
  %v3649 = vld [vmem:[%s3629 + $0x4c] sm:$0xf]
  %v3670 = vunpack.c.l.b16 %v3630
  %v3671 = vunpack.c.l.b16 %v3631
  %v3672 = vunpack.c.l.b16 %v3632
  %v3673 = vunpack.c.l.b16 %v3633
  %v3674 = vunpack.c.l.b16 %v3634
  %v3675 = vunpack.c.l.b16 %v3635
  %v3676 = vunpack.c.l.b16 %v3636
  %v3677 = vunpack.c.l.b16 %v3637
  %v3678 = vunpack.c.l.b16 %v3638
  %v3679 = vunpack.c.l.b16 %v3639
  %v3680 = vunpack.c.l.b16 %v3640
  %v3681 = vunpack.c.l.b16 %v3641
  %v3682 = vunpack.c.l.b16 %v3642
  %v3683 = vunpack.c.l.b16 %v3643
  %v3684 = vunpack.c.l.b16 %v3644
  %v3685 = vunpack.c.l.b16 %v3645
  %v3686 = vunpack.c.l.b16 %v3646
  %v3687 = vunpack.c.l.b16 %v3647
  %v3688 = vunpack.c.l.b16 %v3648
  %v3689 = vunpack.c.l.b16 %v3649
  %v3690 = vpack.c.b16 %v3671, %v3670
  %v3691 = vpack.c.b16 %v3673, %v3672
  %v3692 = vpack.c.b16 %v3675, %v3674
  %v3693 = vpack.c.b16 %v3677, %v3676
  %v3694 = vpack.c.b16 %v3679, %v3678
  %v3695 = vpack.c.b16 %v3681, %v3680
  %v3696 = vpack.c.b16 %v3683, %v3682
  %v3697 = vpack.c.b16 %v3685, %v3684
  %v3698 = vpack.c.b16 %v3687, %v3686
  %v3699 = vpack.c.b16 %v3689, %v3688
  %3700 = vrot.lane.b32.xlu0 %v2656, 124
  %v3701 = vpop.permute.xlu0 %3700
  %3702 = vrot.lane.b32.xlu0 %v2657, 124
  %v3703 = vpop.permute.xlu0 %3702
  %3704 = vrot.lane.b32.xlu0 %v2658, 124
  %v3705 = vpop.permute.xlu0 %3704
  %3706 = vrot.lane.b32.xlu0 %v2659, 124
  %v3707 = vpop.permute.xlu0 %3706
  %3708 = vrot.lane.b32.xlu0 %v2660, 124
  %v3709 = vpop.permute.xlu0 %3708
  %3710 = vrot.lane.b32.xlu0 %v2661, 124
  %v3711 = vpop.permute.xlu0 %3710
  %3712 = vrot.lane.b32.xlu0 %v2662, 124
  %v3713 = vpop.permute.xlu0 %3712
  %3714 = vrot.lane.b32.xlu0 %v2663, 124
  %v3715 = vpop.permute.xlu0 %3714
  %v3724 = vsel %vm2766, %v3690, 0
  %v3727 = vsel %vm2766, %v3691, 0
  %v3730 = vsel %vm2766, %v3692, 0
  %v3733 = vsel %vm2766, %v3693, 0
  %v3736 = vsel %vm2766, %v3694, 0
  %v3739 = vsel %vm2766, %v3695, 0
  %v3742 = vsel %vm2766, %v3696, 0
  %v3745 = vsel %vm2766, %v3697, 0
  %v3748 = vsel %vm2766, %v3698, 0
  %v3751 = vsel %vm2766, %v3699, 0
  %v3754 = vsel %vm2394, %v3715, 0
  %3756 = vmatprep.subr.bf16.mxu0 0
  %3757 = vmatpush1.bf16.msra.mxu0 %v3754
  %3758 = vmatprep.subr.bf16.mxu0 0
  %3759 = vmatpush1.bf16.msra.mxu0 %v3713
  %3760 = vmatprep.subr.bf16.mxu0 0
  %3761 = vmatpush1.bf16.msra.mxu0 %v3711
  %3762 = vmatprep.subr.bf16.mxu0 0
  %3763 = vmatpush1.bf16.msra.mxu0 %v3709
  %3764 = vmatprep.subr.bf16.mxu0 0
  %3765 = vmatpush1.bf16.msra.mxu0 %v3707
  %3766 = vmatprep.subr.bf16.mxu0 0
  %3767 = vmatpush1.bf16.msra.mxu0 %v3705
  %3768 = vmatprep.subr.bf16.mxu0 0
  %3769 = vmatpush1.bf16.msra.mxu0 %v3703
  %3770 = vmatprep.subr.bf16.mxu0 0
  %3771 = vmatpush1.bf16.msra.mxu0 %v3701
  %3772 = vmatprep.subr.bf16.mxu0 0
  %3773 = vmatpush2.bf16.msra.mxu0 0
  %3774 = vmatprep.subr.bf16.mxu0 0
  %3775 = vmatpush2.bf16.msra.mxu0 0
  %3776 = vmatprep.subr.bf16.mxu0 0
  %3777 = vmatpush2.bf16.msra.mxu0 0
  %3778 = vmatprep.subr.bf16.mxu0 0
  %3779 = vmatpush2.bf16.msra.mxu0 0
  %3780 = vmatprep.subr.bf16.mxu0 0
  %3781 = vmatpush2.bf16.msra.mxu0 0
  %3782 = vmatprep.subr.bf16.mxu0 0
  %3783 = vmatpush2.bf16.msra.mxu0 0
  %3784 = vmatprep.subr.bf16.mxu0 0
  %3785 = vmatpush2.bf16.msra.mxu0 0
  %3786 = vmatprep.subr.bf16.mxu0 0
  %3787 = vmatpush2.bf16.msra.mxu0 0
  %3788 = vmatprep.mubr.bf16.mxu0 0
  %3789 = vmatmul.mubr.bf16.gmra.mxu0 %v3724
  %v3790 = vpop.f32.mrf.mxu0
  %v3791 = vadd.f32 0.0, %v3790
  %v3792 = vpop.f32.mrf.mxu0
  %v3793 = vpop.f32.mrf.mxu0
  %v3794 = vadd.f32 0.0, %v3793
  %v3795 = vpop.f32.mrf.mxu0
  %3796 = vmatprep.mubr.bf16.mxu0 0
  %3797 = vmatmul.mubr.bf16.gmra.mxu0 %v3727
  %v3798 = vpop.f32.mrf.mxu0
  %v3799 = vadd.f32 0.0, %v3798
  %v3800 = vpop.f32.mrf.mxu0
  %v3801 = vpop.f32.mrf.mxu0
  %v3802 = vadd.f32 0.0, %v3801
  %v3803 = vpop.f32.mrf.mxu0
  %3804 = vmatprep.mubr.bf16.mxu0 0
  %3805 = vmatmul.mubr.bf16.gmra.mxu0 %v3730
  %v3806 = vpop.f32.mrf.mxu0
  %v3807 = vadd.f32 0.0, %v3806
  %v3808 = vpop.f32.mrf.mxu0
  %v3809 = vpop.f32.mrf.mxu0
  %v3810 = vadd.f32 0.0, %v3809
  %v3811 = vpop.f32.mrf.mxu0
  %3812 = vmatprep.mubr.bf16.mxu0 0
  %3813 = vmatmul.mubr.bf16.gmra.mxu0 %v3733
  %v3814 = vpop.f32.mrf.mxu0
  %v3815 = vadd.f32 0.0, %v3814
  %v3816 = vpop.f32.mrf.mxu0
  %v3817 = vpop.f32.mrf.mxu0
  %v3818 = vadd.f32 0.0, %v3817
  %v3819 = vpop.f32.mrf.mxu0
  %3820 = vmatprep.mubr.bf16.mxu0 0
  %3821 = vmatmul.mubr.bf16.gmra.mxu0 %v3736
  %v3822 = vpop.f32.mrf.mxu0
  %v3823 = vadd.f32 0.0, %v3822
  %v3824 = vpop.f32.mrf.mxu0
  %v3825 = vpop.f32.mrf.mxu0
  %v3826 = vadd.f32 0.0, %v3825
  %v3827 = vpop.f32.mrf.mxu0
  %3828 = vmatprep.mubr.bf16.mxu0 0
  %3829 = vmatmul.mubr.bf16.gmra.mxu0 %v3739
  %v3830 = vpop.f32.mrf.mxu0
  %v3831 = vadd.f32 0.0, %v3830
  %v3832 = vpop.f32.mrf.mxu0
  %v3833 = vpop.f32.mrf.mxu0
  %v3834 = vadd.f32 0.0, %v3833
  %v3835 = vpop.f32.mrf.mxu0
  %3836 = vmatprep.mubr.bf16.mxu0 0
  %3837 = vmatmul.mubr.bf16.gmra.mxu0 %v3742
  %v3838 = vpop.f32.mrf.mxu0
  %v3839 = vadd.f32 0.0, %v3838
  %v3840 = vpop.f32.mrf.mxu0
  %v3841 = vpop.f32.mrf.mxu0
  %v3842 = vadd.f32 0.0, %v3841
  %v3843 = vpop.f32.mrf.mxu0
  %3844 = vmatprep.mubr.bf16.mxu0 0
  %3845 = vmatmul.mubr.bf16.gmra.mxu0 %v3745
  %v3846 = vpop.f32.mrf.mxu0
  %v3847 = vadd.f32 0.0, %v3846
  %v3848 = vpop.f32.mrf.mxu0
  %v3849 = vpop.f32.mrf.mxu0
  %v3850 = vadd.f32 0.0, %v3849
  %v3851 = vpop.f32.mrf.mxu0
  %3852 = vmatprep.mubr.bf16.mxu0 0
  %3853 = vmatmul.mubr.bf16.gmra.mxu0 %v3748
  %v3854 = vpop.f32.mrf.mxu0
  %v3855 = vadd.f32 0.0, %v3854
  %v3856 = vpop.f32.mrf.mxu0
  %v3857 = vpop.f32.mrf.mxu0
  %v3858 = vadd.f32 0.0, %v3857
  %v3859 = vpop.f32.mrf.mxu0
  %3860 = vmatprep.mubr.bf16.mxu0 0
  %3861 = vmatmul.mubr.bf16.gmra.mxu0 %v3751
  %v3862 = vpop.f32.mrf.mxu0
  %v3863 = vadd.f32 0.0, %v3862
  %v3864 = vpop.f32.mrf.mxu0
  %v3865 = vpop.f32.mrf.mxu0
  %v3866 = vadd.f32 0.0, %v3865
  %v3867 = vpop.f32.mrf.mxu0
  %3868 = vdwg.mxu0
  %v3869 = vadd.f32 %v3609, %v3791
  %v3870 = vadd.f32 %v3610, %v3794
  %v3871 = vadd.f32 %v3611, %v3799
  %v3872 = vadd.f32 %v3612, %v3802
  %v3873 = vadd.f32 %v3613, %v3807
  %v3874 = vadd.f32 %v3614, %v3810
  %v3875 = vadd.f32 %v3615, %v3815
  %v3876 = vadd.f32 %v3616, %v3818
  %v3877 = vadd.f32 %v3617, %v3823
  %v3878 = vadd.f32 %v3618, %v3826
  %v3879 = vadd.f32 %v3619, %v3831
  %v3880 = vadd.f32 %v3620, %v3834
  %v3881 = vadd.f32 %v3621, %v3839
  %v3882 = vadd.f32 %v3622, %v3842
  %v3883 = vadd.f32 %v3623, %v3847
  %v3884 = vadd.f32 %v3624, %v3850
  %v3885 = vadd.f32 %v3625, %v3855
  %v3886 = vadd.f32 %v3626, %v3858
  %v3887 = vadd.f32 %v3627, %v3863
  %v3888 = vadd.f32 %v3628, %v3866
  %v3889 = vld [vmem:[%s6] sm:$0xff]
  %v3890 = vld [vmem:[%s6 + $0x8] sm:$0xff]
  %v3891 = vld [vmem:[%s6 + $0x10] sm:$0xff]
  %v3892 = vld [vmem:[%s6 + $0x18] sm:$0xff]
  %v3893 = vld [vmem:[%s6 + $0x20] sm:$0xff]
  %v3894 = vld [vmem:[%s6 + $0x28] sm:$0xff]
  %v3895 = vld [vmem:[%s6 + $0x30] sm:$0xff]
  %v3896 = vld [vmem:[%s6 + $0x38] sm:$0xff]
  %v3897 = vld [vmem:[%s6 + $0x40] sm:$0xff]
  %v3898 = vld [vmem:[%s6 + $0x48] sm:$0xff]
  %v3899 = vld [vmem:[%s6 + $0x50] sm:$0xff]
  %v3900 = vld [vmem:[%s6 + $0x58] sm:$0xff]
  %v3901 = vld [vmem:[%s6 + $0x60] sm:$0xff]
  %v3902 = vld [vmem:[%s6 + $0x68] sm:$0xff]
  %v3903 = vld [vmem:[%s6 + $0x70] sm:$0xff]
  %v3904 = vld [vmem:[%s6 + $0x78] sm:$0xff]
  %v3905 = vld [vmem:[%s6 + $0x80] sm:$0xff]
  %v3906 = vld [vmem:[%s6 + $0x88] sm:$0xff]
  %v3907 = vld [vmem:[%s6 + $0x90] sm:$0xff]
  %v3908 = vld [vmem:[%s6 + $0x98] sm:$0xff]
  %3910 = vset.pattern.permute.xlu0 0
  %3911 = vperm.xlu0 %3910, %v3889
  %v3912 = vpop.permute.xlu0 %3911
  %3915 = vset.pattern.permute.xlu0 0
  %3916 = vperm.xlu0 %3915, %v3890
  %v3917 = vpop.permute.xlu0 %3916
  %3920 = vset.pattern.permute.xlu0 0
  %3921 = vperm.xlu0 %3920, %v3891
  %v3922 = vpop.permute.xlu0 %3921
  %3925 = vset.pattern.permute.xlu0 0
  %3926 = vperm.xlu0 %3925, %v3892
  %v3927 = vpop.permute.xlu0 %3926
  %3930 = vset.pattern.permute.xlu0 0
  %3931 = vperm.xlu0 %3930, %v3893
  %v3932 = vpop.permute.xlu0 %3931
  %3935 = vset.pattern.permute.xlu0 0
  %3936 = vperm.xlu0 %3935, %v3894
  %v3937 = vpop.permute.xlu0 %3936
  %3940 = vset.pattern.permute.xlu0 0
  %3941 = vperm.xlu0 %3940, %v3895
  %v3942 = vpop.permute.xlu0 %3941
  %3945 = vset.pattern.permute.xlu0 0
  %3946 = vperm.xlu0 %3945, %v3896
  %v3947 = vpop.permute.xlu0 %3946
  %3950 = vset.pattern.permute.xlu0 0
  %3951 = vperm.xlu0 %3950, %v3897
  %v3952 = vpop.permute.xlu0 %3951
  %3955 = vset.pattern.permute.xlu0 0
  %3956 = vperm.xlu0 %3955, %v3898
  %v3957 = vpop.permute.xlu0 %3956
  %3960 = vset.pattern.permute.xlu0 0
  %3961 = vperm.xlu0 %3960, %v3899
  %v3962 = vpop.permute.xlu0 %3961
  %3965 = vset.pattern.permute.xlu0 0
  %3966 = vperm.xlu0 %3965, %v3900
  %v3967 = vpop.permute.xlu0 %3966
  %3970 = vset.pattern.permute.xlu0 0
  %3971 = vperm.xlu0 %3970, %v3901
  %v3972 = vpop.permute.xlu0 %3971
  %3975 = vset.pattern.permute.xlu0 0
  %3976 = vperm.xlu0 %3975, %v3902
  %v3977 = vpop.permute.xlu0 %3976
  %3980 = vset.pattern.permute.xlu0 0
  %3981 = vperm.xlu0 %3980, %v3903
  %v3982 = vpop.permute.xlu0 %3981
  %3985 = vset.pattern.permute.xlu0 0
  %3986 = vperm.xlu0 %3985, %v3904
  %v3987 = vpop.permute.xlu0 %3986
  %3990 = vset.pattern.permute.xlu0 0
  %3991 = vperm.xlu0 %3990, %v3905
  %v3992 = vpop.permute.xlu0 %3991
  %3995 = vset.pattern.permute.xlu0 0
  %3996 = vperm.xlu0 %3995, %v3906
  %v3997 = vpop.permute.xlu0 %3996
  %4000 = vset.pattern.permute.xlu0 0
  %4001 = vperm.xlu0 %4000, %v3907
  %v4002 = vpop.permute.xlu0 %4001
  %4005 = vset.pattern.permute.xlu0 0
  %4006 = vperm.xlu0 %4005, %v3908
  %v4007 = vpop.permute.xlu0 %4006
  %v4009 = vadd.f32 %v3869, %v3912
  %v4010 = vadd.f32 %v3870, %v3917
  %v4011 = vadd.f32 %v3871, %v3922
  %v4012 = vadd.f32 %v3872, %v3927
  %v4013 = vadd.f32 %v3873, %v3932
  %v4014 = vadd.f32 %v3874, %v3937
  %v4015 = vadd.f32 %v3875, %v3942
  %v4016 = vadd.f32 %v3876, %v3947
  %v4017 = vadd.f32 %v3877, %v3952
  %v4018 = vadd.f32 %v3878, %v3957
  %v4019 = vadd.f32 %v3879, %v3962
  %v4020 = vadd.f32 %v3880, %v3967
  %v4021 = vadd.f32 %v3881, %v3972
  %v4022 = vadd.f32 %v3882, %v3977
  %v4023 = vadd.f32 %v3883, %v3982
  %v4024 = vadd.f32 %v3884, %v3987
  %v4025 = vadd.f32 %v3885, %v3992
  %v4026 = vadd.f32 %v3886, %v3997
  %v4027 = vadd.f32 %v3887, %v4002
  %v4028 = vadd.f32 %v3888, %v4007
  %v4029 = vld [vmem:[%s7] sm:$0xff]
  %v4030 = vld [vmem:[%s7 + $0x8] sm:$0xff]
  %v4031 = vld [vmem:[%s7 + $0x10] sm:$0xff]
  %v4032 = vld [vmem:[%s7 + $0x18] sm:$0xff]
  %v4033 = vld [vmem:[%s7 + $0x20] sm:$0xff]
  %v4034 = vld [vmem:[%s7 + $0x28] sm:$0xff]
  %v4035 = vld [vmem:[%s7 + $0x30] sm:$0xff]
  %v4036 = vld [vmem:[%s7 + $0x38] sm:$0xff]
  %v4037 = vld [vmem:[%s7 + $0x40] sm:$0xff]
  %v4038 = vld [vmem:[%s7 + $0x48] sm:$0xff]
  %v4039 = vpack.c.bf16 %v4010, %v4009
  %v4040 = vpack.c.bf16 %v4012, %v4011
  %v4041 = vpack.c.bf16 %v4014, %v4013
  %v4042 = vpack.c.bf16 %v4016, %v4015
  %v4043 = vpack.c.bf16 %v4018, %v4017
  %v4044 = vpack.c.bf16 %v4020, %v4019
  %v4045 = vpack.c.bf16 %v4022, %v4021
  %v4046 = vpack.c.bf16 %v4024, %v4023
  %v4047 = vpack.c.bf16 %v4026, %v4025
  %v4048 = vpack.c.bf16 %v4028, %v4027
  %v4059 = vunpack.c.l.b16 %v4029
  %v4060 = vunpack.c.h.b16 %v4029
  %v4061 = vunpack.c.l.b16 %v4030
  %v4062 = vunpack.c.h.b16 %v4030
  %v4063 = vunpack.c.l.b16 %v4031
  %v4064 = vunpack.c.h.b16 %v4031
  %v4065 = vunpack.c.l.b16 %v4032
  %v4066 = vunpack.c.h.b16 %v4032
  %v4067 = vunpack.c.l.b16 %v4033
  %v4068 = vunpack.c.h.b16 %v4033
  %v4069 = vunpack.c.l.b16 %v4034
  %v4070 = vunpack.c.h.b16 %v4034
  %v4071 = vunpack.c.l.b16 %v4035
  %v4072 = vunpack.c.h.b16 %v4035
  %v4073 = vunpack.c.l.b16 %v4036
  %v4074 = vunpack.c.h.b16 %v4036
  %v4075 = vunpack.c.l.b16 %v4037
  %v4076 = vunpack.c.h.b16 %v4037
  %v4077 = vunpack.c.l.b16 %v4038
  %v4078 = vunpack.c.h.b16 %v4038
  %v4079 = vpack.c.b16 %v4061, %v4059
  %v4080 = vpack.c.b16 %v4062, %v4060
  %v4081 = vpack.c.b16 %v4065, %v4063
  %v4082 = vpack.c.b16 %v4066, %v4064
  %v4083 = vpack.c.b16 %v4069, %v4067
  %v4084 = vpack.c.b16 %v4070, %v4068
  %v4085 = vpack.c.b16 %v4073, %v4071
  %v4086 = vpack.c.b16 %v4074, %v4072
  %v4087 = vpack.c.b16 %v4077, %v4075
  %v4088 = vpack.c.b16 %v4078, %v4076
  %vm4094 = vcmask 261120
  %v4096 = vsel %vm4094, %v4080, 0
  %v4099 = vsel %vm4094, %v4082, 0
  %v4102 = vsel %vm4094, %v4084, 0
  %v4105 = vsel %vm4094, %v4086, 0
  %v4108 = vsel %vm4094, %v4088, 0
  %4110 = vmatprep.subr.bf16.mxu0 0
  %4111 = vmatpush1.bf16.msra.mxu0 %v4046
  %4112 = vmatprep.subr.bf16.mxu0 0
  %4113 = vmatpush1.bf16.msra.mxu0 %v4045
  %4114 = vmatprep.subr.bf16.mxu0 0
  %4115 = vmatpush1.bf16.msra.mxu0 %v4044
  %4116 = vmatprep.subr.bf16.mxu0 0
  %4117 = vmatpush1.bf16.msra.mxu0 %v4043
  %4118 = vmatprep.subr.bf16.mxu0 0
  %4119 = vmatpush1.bf16.msra.mxu0 %v4042
  %4120 = vmatprep.subr.bf16.mxu0 0
  %4121 = vmatpush1.bf16.msra.mxu0 %v4041
  %4122 = vmatprep.subr.bf16.mxu0 0
  %4123 = vmatpush1.bf16.msra.mxu0 %v4040
  %4124 = vmatprep.subr.bf16.mxu0 0
  %4125 = vmatpush1.bf16.msra.mxu0 %v4039
  %4126 = vmatprep.subr.bf16.mxu0 0
  %4127 = vmatpush2.bf16.msra.mxu0 0
  %4128 = vmatprep.subr.bf16.mxu0 0
  %4129 = vmatpush2.bf16.msra.mxu0 0
  %4130 = vmatprep.subr.bf16.mxu0 0
  %4131 = vmatpush2.bf16.msra.mxu0 0
  %4132 = vmatprep.subr.bf16.mxu0 0
  %4133 = vmatpush2.bf16.msra.mxu0 0
  %4134 = vmatprep.subr.bf16.mxu0 0
  %4135 = vmatpush2.bf16.msra.mxu0 0
  %4136 = vmatprep.subr.bf16.mxu0 0
  %4137 = vmatpush2.bf16.msra.mxu0 0
  %4138 = vmatprep.subr.bf16.mxu0 0
  %4139 = vmatpush2.bf16.msra.mxu0 %v4048
  %4140 = vmatprep.subr.bf16.mxu0 0
  %4141 = vmatpush2.bf16.msra.mxu0 %v4047
  %4142 = vmatprep.mubr.bf16.mxu0 %v4096
  %4143 = vmatmul.mubr.bf16.gmra.mxu0 %v4079
  %v4144 = vpop.f32.mrf.mxu0
  %v4145 = vadd.f32 0.0, %v4144
  %v4146 = vpop.f32.mrf.mxu0
  %v4147 = vpop.f32.mrf.mxu0
  %v4148 = vadd.f32 0.0, %v4147
  %v4149 = vpop.f32.mrf.mxu0
  %4150 = vmatprep.mubr.bf16.mxu0 %v4099
  %4151 = vmatmul.mubr.bf16.gmra.mxu0 %v4081
  %v4152 = vpop.f32.mrf.mxu0
  %v4153 = vadd.f32 0.0, %v4152
  %v4154 = vpop.f32.mrf.mxu0
  %v4155 = vpop.f32.mrf.mxu0
  %v4156 = vadd.f32 0.0, %v4155
  %v4157 = vpop.f32.mrf.mxu0
  %4158 = vmatprep.mubr.bf16.mxu0 %v4102
  %4159 = vmatmul.mubr.bf16.gmra.mxu0 %v4083
  %v4160 = vpop.f32.mrf.mxu0
  %v4161 = vadd.f32 0.0, %v4160
  %v4162 = vpop.f32.mrf.mxu0
  %v4163 = vpop.f32.mrf.mxu0
  %v4164 = vadd.f32 0.0, %v4163
  %v4165 = vpop.f32.mrf.mxu0
  %4166 = vmatprep.mubr.bf16.mxu0 %v4105
  %4167 = vmatmul.mubr.bf16.gmra.mxu0 %v4085
  %v4168 = vpop.f32.mrf.mxu0
  %v4169 = vadd.f32 0.0, %v4168
  %v4170 = vpop.f32.mrf.mxu0
  %v4171 = vpop.f32.mrf.mxu0
  %v4172 = vadd.f32 0.0, %v4171
  %v4173 = vpop.f32.mrf.mxu0
  %4174 = vmatprep.mubr.bf16.mxu0 %v4108
  %4175 = vmatmul.mubr.bf16.gmra.mxu0 %v4087
  %v4176 = vpop.f32.mrf.mxu0
  %v4177 = vadd.f32 0.0, %v4176
  %v4178 = vpop.f32.mrf.mxu0
  %v4179 = vpop.f32.mrf.mxu0
  %v4180 = vadd.f32 0.0, %v4179
  %v4181 = vpop.f32.mrf.mxu0
  %4182 = vdwg.mxu0
  %s4183 = scalar_lea.vmem %s7, 80
  %v4184 = vld [vmem:[%s4183] sm:$0xff]
  %v4185 = vld [vmem:[%s4183 + $0x8] sm:$0xff]
  %v4186 = vld [vmem:[%s4183 + $0x10] sm:$0xff]
  %v4187 = vld [vmem:[%s4183 + $0x18] sm:$0xff]
  %v4188 = vld [vmem:[%s4183 + $0x20] sm:$0xff]
  %v4189 = vld [vmem:[%s4183 + $0x28] sm:$0xff]
  %v4190 = vld [vmem:[%s4183 + $0x30] sm:$0xff]
  %v4191 = vld [vmem:[%s4183 + $0x38] sm:$0xff]
  %v4192 = vld [vmem:[%s4183 + $0x40] sm:$0xff]
  %v4193 = vld [vmem:[%s4183 + $0x48] sm:$0xff]
  %v4204 = vunpack.c.l.b16 %v4184
  %v4205 = vunpack.c.h.b16 %v4184
  %v4206 = vunpack.c.l.b16 %v4185
  %v4207 = vunpack.c.h.b16 %v4185
  %v4208 = vunpack.c.l.b16 %v4186
  %v4209 = vunpack.c.h.b16 %v4186
  %v4210 = vunpack.c.l.b16 %v4187
  %v4211 = vunpack.c.h.b16 %v4187
  %v4212 = vunpack.c.l.b16 %v4188
  %v4213 = vunpack.c.h.b16 %v4188
  %v4214 = vunpack.c.l.b16 %v4189
  %v4215 = vunpack.c.h.b16 %v4189
  %v4216 = vunpack.c.l.b16 %v4190
  %v4217 = vunpack.c.h.b16 %v4190
  %v4218 = vunpack.c.l.b16 %v4191
  %v4219 = vunpack.c.h.b16 %v4191
  %v4220 = vunpack.c.l.b16 %v4192
  %v4221 = vunpack.c.h.b16 %v4192
  %v4222 = vunpack.c.l.b16 %v4193
  %v4223 = vunpack.c.h.b16 %v4193
  %v4224 = vpack.c.b16 %v4206, %v4204
  %v4225 = vpack.c.b16 %v4207, %v4205
  %v4226 = vpack.c.b16 %v4210, %v4208
  %v4227 = vpack.c.b16 %v4211, %v4209
  %v4228 = vpack.c.b16 %v4214, %v4212
  %v4229 = vpack.c.b16 %v4215, %v4213
  %v4230 = vpack.c.b16 %v4218, %v4216
  %v4231 = vpack.c.b16 %v4219, %v4217
  %v4232 = vpack.c.b16 %v4222, %v4220
  %v4233 = vpack.c.b16 %v4223, %v4221
  %v4240 = vsel %vm4094, %v4225, 0
  %v4243 = vsel %vm4094, %v4227, 0
  %v4246 = vsel %vm4094, %v4229, 0
  %v4249 = vsel %vm4094, %v4231, 0
  %v4252 = vsel %vm4094, %v4233, 0
  %4254 = vmatprep.subr.bf16.mxu0 0
  %4255 = vmatpush1.bf16.msra.mxu0 %v4046
  %4256 = vmatprep.subr.bf16.mxu0 0
  %4257 = vmatpush1.bf16.msra.mxu0 %v4045
  %4258 = vmatprep.subr.bf16.mxu0 0
  %4259 = vmatpush1.bf16.msra.mxu0 %v4044
  %4260 = vmatprep.subr.bf16.mxu0 0
  %4261 = vmatpush1.bf16.msra.mxu0 %v4043
  %4262 = vmatprep.subr.bf16.mxu0 0
  %4263 = vmatpush1.bf16.msra.mxu0 %v4042
  %4264 = vmatprep.subr.bf16.mxu0 0
  %4265 = vmatpush1.bf16.msra.mxu0 %v4041
  %4266 = vmatprep.subr.bf16.mxu0 0
  %4267 = vmatpush1.bf16.msra.mxu0 %v4040
  %4268 = vmatprep.subr.bf16.mxu0 0
  %4269 = vmatpush1.bf16.msra.mxu0 %v4039
  %4270 = vmatprep.subr.bf16.mxu0 0
  %4271 = vmatpush2.bf16.msra.mxu0 0
  %4272 = vmatprep.subr.bf16.mxu0 0
  %4273 = vmatpush2.bf16.msra.mxu0 0
  %4274 = vmatprep.subr.bf16.mxu0 0
  %4275 = vmatpush2.bf16.msra.mxu0 0
  %4276 = vmatprep.subr.bf16.mxu0 0
  %4277 = vmatpush2.bf16.msra.mxu0 0
  %4278 = vmatprep.subr.bf16.mxu0 0
  %4279 = vmatpush2.bf16.msra.mxu0 0
  %4280 = vmatprep.subr.bf16.mxu0 0
  %4281 = vmatpush2.bf16.msra.mxu0 0
  %4282 = vmatprep.subr.bf16.mxu0 0
  %4283 = vmatpush2.bf16.msra.mxu0 %v4048
  %4284 = vmatprep.subr.bf16.mxu0 0
  %4285 = vmatpush2.bf16.msra.mxu0 %v4047
  %4286 = vmatprep.mubr.bf16.mxu0 %v4240
  %4287 = vmatmul.mubr.bf16.gmra.mxu0 %v4224
  %v4288 = vpop.f32.mrf.mxu0
  %v4289 = vadd.f32 0.0, %v4288
  %v4290 = vpop.f32.mrf.mxu0
  %v4291 = vpop.f32.mrf.mxu0
  %v4292 = vadd.f32 0.0, %v4291
  %v4293 = vpop.f32.mrf.mxu0
  %4294 = vmatprep.mubr.bf16.mxu0 %v4243
  %4295 = vmatmul.mubr.bf16.gmra.mxu0 %v4226
  %v4296 = vpop.f32.mrf.mxu0
  %v4297 = vadd.f32 0.0, %v4296
  %v4298 = vpop.f32.mrf.mxu0
  %v4299 = vpop.f32.mrf.mxu0
  %v4300 = vadd.f32 0.0, %v4299
  %v4301 = vpop.f32.mrf.mxu0
  %4302 = vmatprep.mubr.bf16.mxu0 %v4246
  %4303 = vmatmul.mubr.bf16.gmra.mxu0 %v4228
  %v4304 = vpop.f32.mrf.mxu0
  %v4305 = vadd.f32 0.0, %v4304
  %v4306 = vpop.f32.mrf.mxu0
  %v4307 = vpop.f32.mrf.mxu0
  %v4308 = vadd.f32 0.0, %v4307
  %v4309 = vpop.f32.mrf.mxu0
  %4310 = vmatprep.mubr.bf16.mxu0 %v4249
  %4311 = vmatmul.mubr.bf16.gmra.mxu0 %v4230
  %v4312 = vpop.f32.mrf.mxu0
  %v4313 = vadd.f32 0.0, %v4312
  %v4314 = vpop.f32.mrf.mxu0
  %v4315 = vpop.f32.mrf.mxu0
  %v4316 = vadd.f32 0.0, %v4315
  %v4317 = vpop.f32.mrf.mxu0
  %4318 = vmatprep.mubr.bf16.mxu0 %v4252
  %4319 = vmatmul.mubr.bf16.gmra.mxu0 %v4232
  %v4320 = vpop.f32.mrf.mxu0
  %v4321 = vadd.f32 0.0, %v4320
  %v4322 = vpop.f32.mrf.mxu0
  %v4323 = vpop.f32.mrf.mxu0
  %v4324 = vadd.f32 0.0, %v4323
  %v4325 = vpop.f32.mrf.mxu0
  %4326 = vdwg.mxu0
  %v4327 = vmax.f32 %v4145, %v4289
  %v4328 = vmax.f32 %v4148, %v4292
  %v4329 = vmax.f32 %v4153, %v4297
  %v4330 = vmax.f32 %v4156, %v4300
  %v4331 = vmax.f32 %v4161, %v4305
  %v4332 = vmax.f32 %v4164, %v4308
  %v4333 = vmax.f32 %v4169, %v4313
  %v4334 = vmax.f32 %v4172, %v4316
  %v4335 = vmax.f32 %v4177, %v4321
  %v4336 = vmax.f32 %v4180, %v4324
  %v4337 = vld [vmem:[%s8] sm:$0xf]
  %v4338 = vpack.c.bf16 %v4328, %v4327
  %v4339 = vpack.c.bf16 %v4330, %v4329
  %v4340 = vpack.c.bf16 %v4332, %v4331
  %v4341 = vpack.c.bf16 %v4334, %v4333
  %v4342 = vpack.c.bf16 %v4336, %v4335
  %vm4343 = vcmask 64512
  %v4345 = vsel %vm4343, %v4338, 0
  %v4348 = vsel %vm4343, %v4339, 0
  %v4351 = vsel %vm4343, %v4340, 0
  %v4354 = vsel %vm4343, %v4341, 0
  %v4357 = vsel %vm4343, %v4342, 0
  %v4360 = vsel %vm2394, %v4337, 0
  %4362 = vmatprep.subr.bf16.mxu0 0
  %4363 = vmatpush1.bf16.msra.mxu0 0
  %4364 = vmatprep.subr.bf16.mxu0 0
  %4365 = vmatpush1.bf16.msra.mxu0 0
  %4366 = vmatprep.subr.bf16.mxu0 0
  %4367 = vmatpush1.bf16.msra.mxu0 0
  %4368 = vmatprep.subr.bf16.mxu0 0
  %4369 = vmatpush1.bf16.msra.mxu0 0
  %4370 = vmatprep.subr.bf16.mxu0 0
  %4371 = vmatpush1.bf16.msra.mxu0 0
  %4372 = vmatprep.subr.bf16.mxu0 0
  %4373 = vmatpush1.bf16.msra.mxu0 0
  %4374 = vmatprep.subr.bf16.mxu0 0
  %4375 = vmatpush1.bf16.msra.mxu0 0
  %4376 = vmatprep.subr.bf16.mxu0 0
  %4377 = vmatpush1.bf16.msra.mxu0 %v4360
  %4378 = vmatprep.subr.bf16.mxu0 0
  %4379 = vmatpush2.bf16.msra.mxu0 0
  %4380 = vmatprep.subr.bf16.mxu0 0
  %4381 = vmatpush2.bf16.msra.mxu0 0
  %4382 = vmatprep.subr.bf16.mxu0 0
  %4383 = vmatpush2.bf16.msra.mxu0 0
  %4384 = vmatprep.subr.bf16.mxu0 0
  %4385 = vmatpush2.bf16.msra.mxu0 0
  %4386 = vmatprep.subr.bf16.mxu0 0
  %4387 = vmatpush2.bf16.msra.mxu0 0
  %4388 = vmatprep.subr.bf16.mxu0 0
  %4389 = vmatpush2.bf16.msra.mxu0 0
  %4390 = vmatprep.subr.bf16.mxu0 0
  %4391 = vmatpush2.bf16.msra.mxu0 0
  %4392 = vmatprep.subr.bf16.mxu0 0
  %4393 = vmatpush2.bf16.msra.mxu0 0
  %4394 = vmatprep.mubr.bf16.mxu0 0
  %4395 = vmatmul.mubr.bf16.gmra.mxu0 %v4345
  %v4396 = vpop.f32.mrf.mxu0
  %v4397 = vadd.f32 0.0, %v4396
  %v4398 = vpop.f32.mrf.mxu0
  %v4399 = vpop.f32.mrf.mxu0
  %v4400 = vadd.f32 0.0, %v4399
  %v4401 = vpop.f32.mrf.mxu0
  %4402 = vmatprep.mubr.bf16.mxu0 0
  %4403 = vmatmul.mubr.bf16.gmra.mxu0 %v4348
  %v4404 = vpop.f32.mrf.mxu0
  %v4405 = vadd.f32 0.0, %v4404
  %v4406 = vpop.f32.mrf.mxu0
  %v4407 = vpop.f32.mrf.mxu0
  %v4408 = vadd.f32 0.0, %v4407
  %v4409 = vpop.f32.mrf.mxu0
  %4410 = vmatprep.mubr.bf16.mxu0 0
  %4411 = vmatmul.mubr.bf16.gmra.mxu0 %v4351
  %v4412 = vpop.f32.mrf.mxu0
  %v4413 = vadd.f32 0.0, %v4412
  %v4414 = vpop.f32.mrf.mxu0
  %v4415 = vpop.f32.mrf.mxu0
  %v4416 = vadd.f32 0.0, %v4415
  %v4417 = vpop.f32.mrf.mxu0
  %4418 = vmatprep.mubr.bf16.mxu0 0
  %4419 = vmatmul.mubr.bf16.gmra.mxu0 %v4354
  %v4420 = vpop.f32.mrf.mxu0
  %v4421 = vadd.f32 0.0, %v4420
  %v4422 = vpop.f32.mrf.mxu0
  %v4423 = vpop.f32.mrf.mxu0
  %v4424 = vadd.f32 0.0, %v4423
  %v4425 = vpop.f32.mrf.mxu0
  %4426 = vmatprep.mubr.bf16.mxu0 0
  %4427 = vmatmul.mubr.bf16.gmra.mxu0 %v4357
  %v4428 = vpop.f32.mrf.mxu0
  %v4429 = vadd.f32 0.0, %v4428
  %v4430 = vpop.f32.mrf.mxu0
  %v4431 = vpop.f32.mrf.mxu0
  %v4432 = vadd.f32 0.0, %v4431
  %v4433 = vpop.f32.mrf.mxu0
  %4434 = vdwg.mxu0
  %s4435 = scalar_lea.vmem %s8, 4
  %v4436 = vld [vmem:[%s4435] sm:$0xf]
  %v4438 = vsel %vm2394, %v4436, 0
  %4440 = vmatprep.subr.bf16.mxu0 0
  %4441 = vmatpush1.bf16.msra.mxu0 0
  %4442 = vmatprep.subr.bf16.mxu0 0
  %4443 = vmatpush1.bf16.msra.mxu0 0
  %4444 = vmatprep.subr.bf16.mxu0 0
  %4445 = vmatpush1.bf16.msra.mxu0 0
  %4446 = vmatprep.subr.bf16.mxu0 0
  %4447 = vmatpush1.bf16.msra.mxu0 0
  %4448 = vmatprep.subr.bf16.mxu0 0
  %4449 = vmatpush1.bf16.msra.mxu0 0
  %4450 = vmatprep.subr.bf16.mxu0 0
  %4451 = vmatpush1.bf16.msra.mxu0 0
  %4452 = vmatprep.subr.bf16.mxu0 0
  %4453 = vmatpush1.bf16.msra.mxu0 0
  %4454 = vmatprep.subr.bf16.mxu0 0
  %4455 = vmatpush1.bf16.msra.mxu0 %v4438
  %4456 = vmatprep.subr.bf16.mxu0 0
  %4457 = vmatpush2.bf16.msra.mxu0 0
  %4458 = vmatprep.subr.bf16.mxu0 0
  %4459 = vmatpush2.bf16.msra.mxu0 0
  %4460 = vmatprep.subr.bf16.mxu0 0
  %4461 = vmatpush2.bf16.msra.mxu0 0
  %4462 = vmatprep.subr.bf16.mxu0 0
  %4463 = vmatpush2.bf16.msra.mxu0 0
  %4464 = vmatprep.subr.bf16.mxu0 0
  %4465 = vmatpush2.bf16.msra.mxu0 0
  %4466 = vmatprep.subr.bf16.mxu0 0
  %4467 = vmatpush2.bf16.msra.mxu0 0
  %4468 = vmatprep.subr.bf16.mxu0 0
  %4469 = vmatpush2.bf16.msra.mxu0 0
  %4470 = vmatprep.subr.bf16.mxu0 0
  %4471 = vmatpush2.bf16.msra.mxu0 0
  %4472 = vmatprep.mubr.bf16.mxu0 0
  %4473 = vmatmul.mubr.bf16.gmra.mxu0 %v4345
  %v4474 = vpop.f32.mrf.mxu0
  %v4475 = vadd.f32 0.0, %v4474
  %v4476 = vpop.f32.mrf.mxu0
  %v4477 = vpop.f32.mrf.mxu0
  %v4478 = vadd.f32 0.0, %v4477
  %v4479 = vpop.f32.mrf.mxu0
  %4480 = vmatprep.mubr.bf16.mxu0 0
  %4481 = vmatmul.mubr.bf16.gmra.mxu0 %v4348
  %v4482 = vpop.f32.mrf.mxu0
  %v4483 = vadd.f32 0.0, %v4482
  %v4484 = vpop.f32.mrf.mxu0
  %v4485 = vpop.f32.mrf.mxu0
  %v4486 = vadd.f32 0.0, %v4485
  %v4487 = vpop.f32.mrf.mxu0
  %4488 = vmatprep.mubr.bf16.mxu0 0
  %4489 = vmatmul.mubr.bf16.gmra.mxu0 %v4351
  %v4490 = vpop.f32.mrf.mxu0
  %v4491 = vadd.f32 0.0, %v4490
  %v4492 = vpop.f32.mrf.mxu0
  %v4493 = vpop.f32.mrf.mxu0
  %v4494 = vadd.f32 0.0, %v4493
  %v4495 = vpop.f32.mrf.mxu0
  %4496 = vmatprep.mubr.bf16.mxu0 0
  %4497 = vmatmul.mubr.bf16.gmra.mxu0 %v4354
  %v4498 = vpop.f32.mrf.mxu0
  %v4499 = vadd.f32 0.0, %v4498
  %v4500 = vpop.f32.mrf.mxu0
  %v4501 = vpop.f32.mrf.mxu0
  %v4502 = vadd.f32 0.0, %v4501
  %v4503 = vpop.f32.mrf.mxu0
  %4504 = vmatprep.mubr.bf16.mxu0 0
  %4505 = vmatmul.mubr.bf16.gmra.mxu0 %v4357
  %v4506 = vpop.f32.mrf.mxu0
  %v4507 = vadd.f32 0.0, %v4506
  %v4508 = vpop.f32.mrf.mxu0
  %v4509 = vpop.f32.mrf.mxu0
  %v4510 = vadd.f32 0.0, %v4509
  %v4511 = vpop.f32.mrf.mxu0
  %4512 = vdwg.mxu0
  %v4513 = vmax.f32 %v4397, %v4475
  %v4514 = vmax.f32 %v4400, %v4478
  %v4515 = vmax.f32 %v4405, %v4483
  %v4516 = vmax.f32 %v4408, %v4486
  %v4517 = vmax.f32 %v4413, %v4491
  %v4518 = vmax.f32 %v4416, %v4494
  %v4519 = vmax.f32 %v4421, %v4499
  %v4520 = vmax.f32 %v4424, %v4502
  %v4521 = vmax.f32 %v4429, %v4507
  %v4522 = vmax.f32 %v4432, %v4510
  %v4523 = vmax.f32 %v4513, 0.0
  %v4524 = vmax.f32 %v4514, 0.0
  %v4525 = vmax.f32 %v4515, 0.0
  %v4526 = vmax.f32 %v4516, 0.0
  %v4527 = vmax.f32 %v4517, 0.0
  %v4528 = vmax.f32 %v4518, 0.0
  %v4529 = vmax.f32 %v4519, 0.0
  %v4530 = vmax.f32 %v4520, 0.0
  %v4531 = vmax.f32 %v4521, 0.0
  %v4532 = vmax.f32 %v4522, 0.0
  %v4533 = vld [vmem:[%s9] sm:$0xf]
  %v4534 = vld [vmem:[%s9 + $0x4] sm:$0xf]
  %v4535 = vld [vmem:[%s9 + $0x8] sm:$0xf]
  %v4536 = vld [vmem:[%s9 + $0xc] sm:$0xf]
  %v4537 = vld [vmem:[%s9 + $0x10] sm:$0xf]
  %v4538 = vld [vmem:[%s9 + $0x14] sm:$0xf]
  %v4539 = vld [vmem:[%s9 + $0x18] sm:$0x1]
  %v4540 = vpack.c.bf16 %v4524, %v4523
  %v4541 = vpack.c.bf16 %v4526, %v4525
  %v4542 = vpack.c.bf16 %v4528, %v4527
  %v4543 = vpack.c.bf16 %v4530, %v4529
  %v4544 = vpack.c.bf16 %v4532, %v4531
  %s4545 = scalar_lea.vmem %s9, 28
  %v4546 = vld [vmem:[%s4545] sm:$0xf]
  %v4547 = vld [vmem:[%s4545 + $0x4] sm:$0xf]
  %v4548 = vld [vmem:[%s4545 + $0x8] sm:$0xf]
  %v4549 = vld [vmem:[%s4545 + $0xc] sm:$0xf]
  %v4550 = vld [vmem:[%s4545 + $0x10] sm:$0xf]
  %v4551 = vld [vmem:[%s4545 + $0x14] sm:$0xf]
  %v4552 = vld [vmem:[%s4545 + $0x18] sm:$0x1]
  %v4560 = vunpack.c.l.b16 %v4546
  %v4561 = vunpack.c.l.b16 %v4547
  %v4562 = vunpack.c.l.b16 %v4548
  %v4563 = vunpack.c.l.b16 %v4549
  %v4564 = vunpack.c.l.b16 %v4550
  %v4565 = vunpack.c.l.b16 %v4551
  %v4566 = vunpack.c.l.b16 %v4552
  %v4567 = vpack.c.b16 %v4561, %v4560
  %v4568 = vpack.c.b16 %v4563, %v4562
  %v4569 = vpack.c.b16 %v4565, %v4564
  %v4570 = vpack.c.b16 %v4566, %v4566
  %4576 = vrot.lane.b32.xlu0 %v4540, 127
  %v4577 = vpop.permute.xlu0 %4576
  %4578 = vrot.lane.b32.xlu0 %v4541, 127
  %v4579 = vpop.permute.xlu0 %4578
  %4580 = vrot.lane.b32.xlu0 %v4542, 127
  %v4581 = vpop.permute.xlu0 %4580
  %4582 = vrot.lane.b32.xlu0 %v4543, 127
  %v4583 = vpop.permute.xlu0 %4582
  %4584 = vrot.lane.b32.xlu0 %v4544, 127
  %v4585 = vpop.permute.xlu0 %4584
  %vm4591 = vcmask 654336
  %v4593 = vsel %vm4591, %v4567, 0
  %v4596 = vsel %vm4591, %v4568, 0
  %v4599 = vsel %vm4591, %v4569, 0
  %v4602 = vsel %vm4591, %v4570, 0
  %4604 = vmatprep.subr.bf16.mxu0 0
  %4605 = vmatpush1.bf16.msra.mxu0 0
  %4606 = vmatprep.subr.bf16.mxu0 0
  %4607 = vmatpush1.bf16.msra.mxu0 0
  %4608 = vmatprep.subr.bf16.mxu0 0
  %4609 = vmatpush1.bf16.msra.mxu0 0
  %4610 = vmatprep.subr.bf16.mxu0 0
  %4611 = vmatpush1.bf16.msra.mxu0 %v4585
  %4612 = vmatprep.subr.bf16.mxu0 0
  %4613 = vmatpush1.bf16.msra.mxu0 %v4583
  %4614 = vmatprep.subr.bf16.mxu0 0
  %4615 = vmatpush1.bf16.msra.mxu0 %v4581
  %4616 = vmatprep.subr.bf16.mxu0 0
  %4617 = vmatpush1.bf16.msra.mxu0 %v4579
  %4618 = vmatprep.subr.bf16.mxu0 0
  %4619 = vmatpush1.bf16.msra.mxu0 %v4577
  %4620 = vmatprep.subr.bf16.mxu0 0
  %4621 = vmatpush2.bf16.msra.mxu0 0
  %4622 = vmatprep.subr.bf16.mxu0 0
  %4623 = vmatpush2.bf16.msra.mxu0 0
  %4624 = vmatprep.subr.bf16.mxu0 0
  %4625 = vmatpush2.bf16.msra.mxu0 0
  %4626 = vmatprep.subr.bf16.mxu0 0
  %4627 = vmatpush2.bf16.msra.mxu0 0
  %4628 = vmatprep.subr.bf16.mxu0 0
  %4629 = vmatpush2.bf16.msra.mxu0 0
  %4630 = vmatprep.subr.bf16.mxu0 0
  %4631 = vmatpush2.bf16.msra.mxu0 0
  %4632 = vmatprep.subr.bf16.mxu0 0
  %4633 = vmatpush2.bf16.msra.mxu0 0
  %4634 = vmatprep.subr.bf16.mxu0 0
  %4635 = vmatpush2.bf16.msra.mxu0 0
  %4636 = vmatprep.mubr.bf16.mxu0 0
  %4637 = vmatmul.mubr.bf16.gmra.mxu0 %v4593
  %v4638 = vpop.f32.mrf.mxu0
  %v4639 = vadd.f32 0.0, %v4638
  %v4640 = vpop.f32.mrf.mxu0
  %v4641 = vpop.f32.mrf.mxu0
  %v4642 = vadd.f32 0.0, %v4641
  %v4643 = vpop.f32.mrf.mxu0
  %4644 = vmatprep.mubr.bf16.mxu0 0
  %4645 = vmatmul.mubr.bf16.gmra.mxu0 %v4596
  %v4646 = vpop.f32.mrf.mxu0
  %v4647 = vadd.f32 0.0, %v4646
  %v4648 = vpop.f32.mrf.mxu0
  %v4649 = vpop.f32.mrf.mxu0
  %v4650 = vadd.f32 0.0, %v4649
  %v4651 = vpop.f32.mrf.mxu0
  %4652 = vmatprep.mubr.bf16.mxu0 0
  %4653 = vmatmul.mubr.bf16.gmra.mxu0 %v4599
  %v4654 = vpop.f32.mrf.mxu0
  %v4655 = vadd.f32 0.0, %v4654
  %v4656 = vpop.f32.mrf.mxu0
  %v4657 = vpop.f32.mrf.mxu0
  %v4658 = vadd.f32 0.0, %v4657
  %v4659 = vpop.f32.mrf.mxu0
  %4660 = vmatprep.mubr.bf16.mxu0 0
  %4661 = vmatmul.mubr.bf16.gmra.mxu0 %v4602
  %v4662 = vpop.f32.mrf.mxu0
  %v4663 = vadd.f32 0.0, %v4662
  %v4664 = vpop.f32.mrf.mxu0
  %v4665 = vpop.f32.mrf.mxu0
  %v4666 = vpop.f32.mrf.mxu0
  %4667 = vdwg.mxu0
  %v4675 = vunpack.c.l.b16 %v4533
  %v4676 = vunpack.c.l.b16 %v4534
  %v4677 = vunpack.c.l.b16 %v4535
  %v4678 = vunpack.c.l.b16 %v4536
  %v4679 = vunpack.c.l.b16 %v4537
  %v4680 = vunpack.c.l.b16 %v4538
  %v4681 = vunpack.c.l.b16 %v4539
  %v4682 = vpack.c.b16 %v4676, %v4675
  %v4683 = vpack.c.b16 %v4678, %v4677
  %v4684 = vpack.c.b16 %v4680, %v4679
  %v4685 = vpack.c.b16 %v4681, %v4681
  %v4687 = vsel %vm4591, %v4682, 0
  %v4690 = vsel %vm4591, %v4683, 0
  %v4693 = vsel %vm4591, %v4684, 0
  %v4696 = vsel %vm4591, %v4685, 0
  %4698 = vmatprep.subr.bf16.mxu0 0
  %4699 = vmatpush1.bf16.msra.mxu0 0
  %4700 = vmatprep.subr.bf16.mxu0 0
  %4701 = vmatpush1.bf16.msra.mxu0 0
  %4702 = vmatprep.subr.bf16.mxu0 0
  %4703 = vmatpush1.bf16.msra.mxu0 0
  %4704 = vmatprep.subr.bf16.mxu0 0
  %4705 = vmatpush1.bf16.msra.mxu0 %v4544
  %4706 = vmatprep.subr.bf16.mxu0 0
  %4707 = vmatpush1.bf16.msra.mxu0 %v4543
  %4708 = vmatprep.subr.bf16.mxu0 0
  %4709 = vmatpush1.bf16.msra.mxu0 %v4542
  %4710 = vmatprep.subr.bf16.mxu0 0
  %4711 = vmatpush1.bf16.msra.mxu0 %v4541
  %4712 = vmatprep.subr.bf16.mxu0 0
  %4713 = vmatpush1.bf16.msra.mxu0 %v4540
  %4714 = vmatprep.subr.bf16.mxu0 0
  %4715 = vmatpush2.bf16.msra.mxu0 0
  %4716 = vmatprep.subr.bf16.mxu0 0
  %4717 = vmatpush2.bf16.msra.mxu0 0
  %4718 = vmatprep.subr.bf16.mxu0 0
  %4719 = vmatpush2.bf16.msra.mxu0 0
  %4720 = vmatprep.subr.bf16.mxu0 0
  %4721 = vmatpush2.bf16.msra.mxu0 0
  %4722 = vmatprep.subr.bf16.mxu0 0
  %4723 = vmatpush2.bf16.msra.mxu0 0
  %4724 = vmatprep.subr.bf16.mxu0 0
  %4725 = vmatpush2.bf16.msra.mxu0 0
  %4726 = vmatprep.subr.bf16.mxu0 0
  %4727 = vmatpush2.bf16.msra.mxu0 0
  %4728 = vmatprep.subr.bf16.mxu0 0
  %4729 = vmatpush2.bf16.msra.mxu0 0
  %4730 = vmatprep.mubr.bf16.mxu0 0
  %4731 = vmatmul.mubr.bf16.gmra.mxu0 %v4687
  %v4732 = vpop.f32.mrf.mxu0
  %v4733 = vadd.f32 %v4639, %v4732
  %v4734 = vpop.f32.mrf.mxu0
  %v4735 = vpop.f32.mrf.mxu0
  %v4736 = vadd.f32 %v4642, %v4735
  %v4737 = vpop.f32.mrf.mxu0
  %4738 = vmatprep.mubr.bf16.mxu0 0
  %4739 = vmatmul.mubr.bf16.gmra.mxu0 %v4690
  %v4740 = vpop.f32.mrf.mxu0
  %v4741 = vadd.f32 %v4647, %v4740
  %v4742 = vpop.f32.mrf.mxu0
  %v4743 = vpop.f32.mrf.mxu0
  %v4744 = vadd.f32 %v4650, %v4743
  %v4745 = vpop.f32.mrf.mxu0
  %4746 = vmatprep.mubr.bf16.mxu0 0
  %4747 = vmatmul.mubr.bf16.gmra.mxu0 %v4693
  %v4748 = vpop.f32.mrf.mxu0
  %v4749 = vadd.f32 %v4655, %v4748
  %v4750 = vpop.f32.mrf.mxu0
  %v4751 = vpop.f32.mrf.mxu0
  %v4752 = vadd.f32 %v4658, %v4751
  %v4753 = vpop.f32.mrf.mxu0
  %4754 = vmatprep.mubr.bf16.mxu0 0
  %4755 = vmatmul.mubr.bf16.gmra.mxu0 %v4696
  %v4756 = vpop.f32.mrf.mxu0
  %v4757 = vadd.f32 %v4663, %v4756
  %v4758 = vpop.f32.mrf.mxu0
  %v4759 = vpop.f32.mrf.mxu0
  %v4760 = vpop.f32.mrf.mxu0
  %4761 = vdwg.mxu0
  %s4762 = scalar_lea.vmem %s9, 56
  %v4763 = vld [vmem:[%s4762] sm:$0xf]
  %v4764 = vld [vmem:[%s4762 + $0x4] sm:$0xf]
  %v4765 = vld [vmem:[%s4762 + $0x8] sm:$0xf]
  %v4766 = vld [vmem:[%s4762 + $0xc] sm:$0xf]
  %v4767 = vld [vmem:[%s4762 + $0x10] sm:$0xf]
  %v4768 = vld [vmem:[%s4762 + $0x14] sm:$0xf]
  %v4769 = vld [vmem:[%s4762 + $0x18] sm:$0x1]
  %v4777 = vunpack.c.l.b16 %v4763
  %v4778 = vunpack.c.l.b16 %v4764
  %v4779 = vunpack.c.l.b16 %v4765
  %v4780 = vunpack.c.l.b16 %v4766
  %v4781 = vunpack.c.l.b16 %v4767
  %v4782 = vunpack.c.l.b16 %v4768
  %v4783 = vunpack.c.l.b16 %v4769
  %v4784 = vpack.c.b16 %v4778, %v4777
  %v4785 = vpack.c.b16 %v4780, %v4779
  %v4786 = vpack.c.b16 %v4782, %v4781
  %v4787 = vpack.c.b16 %v4783, %v4783
  %4788 = vrot.lane.b32.xlu0 %v4540, 126
  %v4789 = vpop.permute.xlu0 %4788
  %4790 = vrot.lane.b32.xlu0 %v4541, 126
  %v4791 = vpop.permute.xlu0 %4790
  %4792 = vrot.lane.b32.xlu0 %v4542, 126
  %v4793 = vpop.permute.xlu0 %4792
  %4794 = vrot.lane.b32.xlu0 %v4543, 126
  %v4795 = vpop.permute.xlu0 %4794
  %4796 = vrot.lane.b32.xlu0 %v4544, 126
  %v4797 = vpop.permute.xlu0 %4796
  %v4804 = vsel %vm4591, %v4784, 0
  %v4807 = vsel %vm4591, %v4785, 0
  %v4810 = vsel %vm4591, %v4786, 0
  %v4813 = vsel %vm4591, %v4787, 0
  %4815 = vmatprep.subr.bf16.mxu0 0
  %4816 = vmatpush1.bf16.msra.mxu0 0
  %4817 = vmatprep.subr.bf16.mxu0 0
  %4818 = vmatpush1.bf16.msra.mxu0 0
  %4819 = vmatprep.subr.bf16.mxu0 0
  %4820 = vmatpush1.bf16.msra.mxu0 0
  %4821 = vmatprep.subr.bf16.mxu0 0
  %4822 = vmatpush1.bf16.msra.mxu0 %v4797
  %4823 = vmatprep.subr.bf16.mxu0 0
  %4824 = vmatpush1.bf16.msra.mxu0 %v4795
  %4825 = vmatprep.subr.bf16.mxu0 0
  %4826 = vmatpush1.bf16.msra.mxu0 %v4793
  %4827 = vmatprep.subr.bf16.mxu0 0
  %4828 = vmatpush1.bf16.msra.mxu0 %v4791
  %4829 = vmatprep.subr.bf16.mxu0 0
  %4830 = vmatpush1.bf16.msra.mxu0 %v4789
  %4831 = vmatprep.subr.bf16.mxu0 0
  %4832 = vmatpush2.bf16.msra.mxu0 0
  %4833 = vmatprep.subr.bf16.mxu0 0
  %4834 = vmatpush2.bf16.msra.mxu0 0
  %4835 = vmatprep.subr.bf16.mxu0 0
  %4836 = vmatpush2.bf16.msra.mxu0 0
  %4837 = vmatprep.subr.bf16.mxu0 0
  %4838 = vmatpush2.bf16.msra.mxu0 0
  %4839 = vmatprep.subr.bf16.mxu0 0
  %4840 = vmatpush2.bf16.msra.mxu0 0
  %4841 = vmatprep.subr.bf16.mxu0 0
  %4842 = vmatpush2.bf16.msra.mxu0 0
  %4843 = vmatprep.subr.bf16.mxu0 0
  %4844 = vmatpush2.bf16.msra.mxu0 0
  %4845 = vmatprep.subr.bf16.mxu0 0
  %4846 = vmatpush2.bf16.msra.mxu0 0
  %4847 = vmatprep.mubr.bf16.mxu0 0
  %4848 = vmatmul.mubr.bf16.gmra.mxu0 %v4804
  %v4849 = vpop.f32.mrf.mxu0
  %v4850 = vadd.f32 0.0, %v4849
  %v4851 = vpop.f32.mrf.mxu0
  %v4852 = vpop.f32.mrf.mxu0
  %v4853 = vadd.f32 0.0, %v4852
  %v4854 = vpop.f32.mrf.mxu0
  %4855 = vmatprep.mubr.bf16.mxu0 0
  %4856 = vmatmul.mubr.bf16.gmra.mxu0 %v4807
  %v4857 = vpop.f32.mrf.mxu0
  %v4858 = vadd.f32 0.0, %v4857
  %v4859 = vpop.f32.mrf.mxu0
  %v4860 = vpop.f32.mrf.mxu0
  %v4861 = vadd.f32 0.0, %v4860
  %v4862 = vpop.f32.mrf.mxu0
  %4863 = vmatprep.mubr.bf16.mxu0 0
  %4864 = vmatmul.mubr.bf16.gmra.mxu0 %v4810
  %v4865 = vpop.f32.mrf.mxu0
  %v4866 = vadd.f32 0.0, %v4865
  %v4867 = vpop.f32.mrf.mxu0
  %v4868 = vpop.f32.mrf.mxu0
  %v4869 = vadd.f32 0.0, %v4868
  %v4870 = vpop.f32.mrf.mxu0
  %4871 = vmatprep.mubr.bf16.mxu0 0
  %4872 = vmatmul.mubr.bf16.gmra.mxu0 %v4813
  %v4873 = vpop.f32.mrf.mxu0
  %v4874 = vadd.f32 0.0, %v4873
  %v4875 = vpop.f32.mrf.mxu0
  %v4876 = vpop.f32.mrf.mxu0
  %v4877 = vpop.f32.mrf.mxu0
  %4878 = vdwg.mxu0
  %v4879 = vadd.f32 %v4733, %v4850
  %v4880 = vadd.f32 %v4736, %v4853
  %v4881 = vadd.f32 %v4741, %v4858
  %v4882 = vadd.f32 %v4744, %v4861
  %v4883 = vadd.f32 %v4749, %v4866
  %v4884 = vadd.f32 %v4752, %v4869
  %v4885 = vadd.f32 %v4757, %v4874
  %s4886 = scalar_lea.vmem %s9, 84
  %v4887 = vld [vmem:[%s4886] sm:$0xf]
  %v4888 = vld [vmem:[%s4886 + $0x4] sm:$0xf]
  %v4889 = vld [vmem:[%s4886 + $0x8] sm:$0xf]
  %v4890 = vld [vmem:[%s4886 + $0xc] sm:$0xf]
  %v4891 = vld [vmem:[%s4886 + $0x10] sm:$0xf]
  %v4892 = vld [vmem:[%s4886 + $0x14] sm:$0xf]
  %v4893 = vld [vmem:[%s4886 + $0x18] sm:$0x1]
  %v4901 = vunpack.c.l.b16 %v4887
  %v4902 = vunpack.c.l.b16 %v4888
  %v4903 = vunpack.c.l.b16 %v4889
  %v4904 = vunpack.c.l.b16 %v4890
  %v4905 = vunpack.c.l.b16 %v4891
  %v4906 = vunpack.c.l.b16 %v4892
  %v4907 = vunpack.c.l.b16 %v4893
  %v4908 = vpack.c.b16 %v4902, %v4901
  %v4909 = vpack.c.b16 %v4904, %v4903
  %v4910 = vpack.c.b16 %v4906, %v4905
  %v4911 = vpack.c.b16 %v4907, %v4907
  %4912 = vrot.lane.b32.xlu0 %v4540, 125
  %v4913 = vpop.permute.xlu0 %4912
  %4914 = vrot.lane.b32.xlu0 %v4541, 125
  %v4915 = vpop.permute.xlu0 %4914
  %4916 = vrot.lane.b32.xlu0 %v4542, 125
  %v4917 = vpop.permute.xlu0 %4916
  %4918 = vrot.lane.b32.xlu0 %v4543, 125
  %v4919 = vpop.permute.xlu0 %4918
  %4920 = vrot.lane.b32.xlu0 %v4544, 125
  %v4921 = vpop.permute.xlu0 %4920
  %v4928 = vsel %vm4591, %v4908, 0
  %v4931 = vsel %vm4591, %v4909, 0
  %v4934 = vsel %vm4591, %v4910, 0
  %v4937 = vsel %vm4591, %v4911, 0
  %4939 = vmatprep.subr.bf16.mxu0 0
  %4940 = vmatpush1.bf16.msra.mxu0 0
  %4941 = vmatprep.subr.bf16.mxu0 0
  %4942 = vmatpush1.bf16.msra.mxu0 0
  %4943 = vmatprep.subr.bf16.mxu0 0
  %4944 = vmatpush1.bf16.msra.mxu0 0
  %4945 = vmatprep.subr.bf16.mxu0 0
  %4946 = vmatpush1.bf16.msra.mxu0 %v4921
  %4947 = vmatprep.subr.bf16.mxu0 0
  %4948 = vmatpush1.bf16.msra.mxu0 %v4919
  %4949 = vmatprep.subr.bf16.mxu0 0
  %4950 = vmatpush1.bf16.msra.mxu0 %v4917
  %4951 = vmatprep.subr.bf16.mxu0 0
  %4952 = vmatpush1.bf16.msra.mxu0 %v4915
  %4953 = vmatprep.subr.bf16.mxu0 0
  %4954 = vmatpush1.bf16.msra.mxu0 %v4913
  %4955 = vmatprep.subr.bf16.mxu0 0
  %4956 = vmatpush2.bf16.msra.mxu0 0
  %4957 = vmatprep.subr.bf16.mxu0 0
  %4958 = vmatpush2.bf16.msra.mxu0 0
  %4959 = vmatprep.subr.bf16.mxu0 0
  %4960 = vmatpush2.bf16.msra.mxu0 0
  %4961 = vmatprep.subr.bf16.mxu0 0
  %4962 = vmatpush2.bf16.msra.mxu0 0
  %4963 = vmatprep.subr.bf16.mxu0 0
  %4964 = vmatpush2.bf16.msra.mxu0 0
  %4965 = vmatprep.subr.bf16.mxu0 0
  %4966 = vmatpush2.bf16.msra.mxu0 0
  %4967 = vmatprep.subr.bf16.mxu0 0
  %4968 = vmatpush2.bf16.msra.mxu0 0
  %4969 = vmatprep.subr.bf16.mxu0 0
  %4970 = vmatpush2.bf16.msra.mxu0 0
  %4971 = vmatprep.mubr.bf16.mxu0 0
  %4972 = vmatmul.mubr.bf16.gmra.mxu0 %v4928
  %v4973 = vpop.f32.mrf.mxu0
  %v4974 = vadd.f32 0.0, %v4973
  %v4975 = vpop.f32.mrf.mxu0
  %v4976 = vpop.f32.mrf.mxu0
  %v4977 = vadd.f32 0.0, %v4976
  %v4978 = vpop.f32.mrf.mxu0
  %4979 = vmatprep.mubr.bf16.mxu0 0
  %4980 = vmatmul.mubr.bf16.gmra.mxu0 %v4931
  %v4981 = vpop.f32.mrf.mxu0
  %v4982 = vadd.f32 0.0, %v4981
  %v4983 = vpop.f32.mrf.mxu0
  %v4984 = vpop.f32.mrf.mxu0
  %v4985 = vadd.f32 0.0, %v4984
  %v4986 = vpop.f32.mrf.mxu0
  %4987 = vmatprep.mubr.bf16.mxu0 0
  %4988 = vmatmul.mubr.bf16.gmra.mxu0 %v4934
  %v4989 = vpop.f32.mrf.mxu0
  %v4990 = vadd.f32 0.0, %v4989
  %v4991 = vpop.f32.mrf.mxu0
  %v4992 = vpop.f32.mrf.mxu0
  %v4993 = vadd.f32 0.0, %v4992
  %v4994 = vpop.f32.mrf.mxu0
  %4995 = vmatprep.mubr.bf16.mxu0 0
  %4996 = vmatmul.mubr.bf16.gmra.mxu0 %v4937
  %v4997 = vpop.f32.mrf.mxu0
  %v4998 = vadd.f32 0.0, %v4997
  %v4999 = vpop.f32.mrf.mxu0
  %v5000 = vpop.f32.mrf.mxu0
  %v5001 = vpop.f32.mrf.mxu0
  %5002 = vdwg.mxu0
  %v5003 = vadd.f32 %v4879, %v4974
  %v5004 = vadd.f32 %v4880, %v4977
  %v5005 = vadd.f32 %v4881, %v4982
  %v5006 = vadd.f32 %v4882, %v4985
  %v5007 = vadd.f32 %v4883, %v4990
  %v5008 = vadd.f32 %v4884, %v4993
  %v5009 = vadd.f32 %v4885, %v4998
  %v5010 = vld [vmem:[%s10] sm:$0xff]
  %v5011 = vld [vmem:[%s10 + $0x8] sm:$0xff]
  %v5012 = vld [vmem:[%s10 + $0x10] sm:$0xff]
  %v5013 = vld [vmem:[%s10 + $0x18] sm:$0xff]
  %v5014 = vld [vmem:[%s10 + $0x20] sm:$0xff]
  %v5015 = vld [vmem:[%s10 + $0x28] sm:$0xff]
  %v5016 = vld [vmem:[%s10 + $0x30] sm:$0x3]
  %v5017 = vadd.f32 %v5003, %v5010
  %v5018 = vadd.f32 %v5004, %v5011
  %v5019 = vadd.f32 %v5005, %v5012
  %v5020 = vadd.f32 %v5006, %v5013
  %v5021 = vadd.f32 %v5007, %v5014
  %v5022 = vadd.f32 %v5008, %v5015
  %v5023 = vadd.f32 %v5009, %v5016
  %v5024 = vmax.f32 %v5017, 0.0
  %v5025 = vmax.f32 %v5018, 0.0
  %v5026 = vmax.f32 %v5019, 0.0
  %v5027 = vmax.f32 %v5020, 0.0
  %v5028 = vmax.f32 %v5021, 0.0
  %v5029 = vmax.f32 %v5022, 0.0
  %v5030 = vmax.f32 %v5023, 0.0
  %v5031 = vld [vmem:[%s11] sm:$0xf]
  %v5032 = vld [vmem:[%s11 + $0x4] sm:$0x1]
  %v5033 = vpack.c.bf16 %v5025, %v5024
  %v5034 = vpack.c.bf16 %v5027, %v5026
  %v5035 = vpack.c.bf16 %v5029, %v5028
  %v5036 = vpack.c.bf16 %v5030, %v5030
  %v5037 = vld [vmem:[%s12] sm:$0xff]
  %v5038 = vld [vmem:[%s12 + $0x8] sm:$0x3]
  %v5041 = vunpack.c.l.b16 %v5031
  %v5042 = vunpack.c.l.b16 %v5032
  %v5043 = vpack.c.b16 %v5042, %v5041
  %vm5044 = vcmask 408576
  %v5046 = vsel %vm5044, %v5043, 0
  %vm5048 = vcmask 1040384
  %v5050 = vsel %vm5048, %v5036, 0
  %5052 = vmatprep.subr.bf16.mxu0 0
  %5053 = vmatpush1.bf16.msra.mxu0 0
  %5054 = vmatprep.subr.bf16.mxu0 0
  %5055 = vmatpush1.bf16.msra.mxu0 0
  %5056 = vmatprep.subr.bf16.mxu0 0
  %5057 = vmatpush1.bf16.msra.mxu0 0
  %5058 = vmatprep.subr.bf16.mxu0 0
  %5059 = vmatpush1.bf16.msra.mxu0 0
  %5060 = vmatprep.subr.bf16.mxu0 0
  %5061 = vmatpush1.bf16.msra.mxu0 %v5050
  %5062 = vmatprep.subr.bf16.mxu0 0
  %5063 = vmatpush1.bf16.msra.mxu0 %v5035
  %5064 = vmatprep.subr.bf16.mxu0 0
  %5065 = vmatpush1.bf16.msra.mxu0 %v5034
  %5066 = vmatprep.subr.bf16.mxu0 0
  %5067 = vmatpush1.bf16.msra.mxu0 %v5033
  %5068 = vmatprep.subr.bf16.mxu0 0
  %5069 = vmatpush2.bf16.msra.mxu0 0
  %5070 = vmatprep.subr.bf16.mxu0 0
  %5071 = vmatpush2.bf16.msra.mxu0 0
  %5072 = vmatprep.subr.bf16.mxu0 0
  %5073 = vmatpush2.bf16.msra.mxu0 0
  %5074 = vmatprep.subr.bf16.mxu0 0
  %5075 = vmatpush2.bf16.msra.mxu0 0
  %5076 = vmatprep.subr.bf16.mxu0 0
  %5077 = vmatpush2.bf16.msra.mxu0 0
  %5078 = vmatprep.subr.bf16.mxu0 0
  %5079 = vmatpush2.bf16.msra.mxu0 0
  %5080 = vmatprep.subr.bf16.mxu0 0
  %5081 = vmatpush2.bf16.msra.mxu0 0
  %5082 = vmatprep.subr.bf16.mxu0 0
  %5083 = vmatpush2.bf16.msra.mxu0 0
  %5084 = vmatprep.mubr.bf16.mxu0 0
  %5085 = vmatmul.mubr.bf16.gmra.mxu0 %v5046
  %v5086 = vpop.f32.mrf.mxu0
  %v5087 = vadd.f32 %v5037, %v5086
  %v5088 = vpop.f32.mrf.mxu0
  %v5089 = vpop.f32.mrf.mxu0
  %v5090 = vadd.f32 %v5038, %v5089
  %v5091 = vpop.f32.mrf.mxu0
  %5092 = vdwg.mxu0
  %vm5093 = vcmask 7168
  %v5094 = vsel %vm5093, %v5087, -inf
  %vm5095 = vcmask 1024
  %v5096 = vsel %vm5095, %v5090, -inf
  %v5097 = vmax.f32 %v5094, %v5096
  %v5098 = vrot.slane %v5097, 4
  %v5099 = vmax.f32 %v5097, %v5098
  %v5100 = vrot.slane %v5099, 2
  %v5101 = vmax.f32 %v5099, %v5100
  %v5102 = vrot.slane %v5101, 1
  %v5103 = vmax.f32 %v5101, %v5102
  %v5104 = vsub.f32 %v5087, %v5103
  %v5105 = vsub.f32 %v5090, %v5103
  %v5106 = vmul.f32 %v5104, 1.442695
  %v5107 = vpow.pop %v5106
  %v5108 = vmul.f32 %v5105, 1.442695
  %v5109 = vpow.pop %v5108
  %v5110 = vsel %vm5093, %v5107, 0.0
  %v5111 = vsel %vm5095, %v5109, 0.0
  %v5112 = vadd.f32 %v5110, %v5111
  %v5113 = vrot.slane %v5112, 4
  %v5114 = vadd.f32 %v5112, %v5113
  %v5115 = vrot.slane %v5114, 2
  %v5116 = vadd.f32 %v5114, %v5115
  %v5117 = vrot.slane %v5116, 1
  %v5118 = vadd.f32 %v5116, %v5117
  %v5119 = vlog2.pop %v5118
  %v5120 = vmul.f32 %v5119, 0.6931472
  %v5121 = vsub.f32 %v5104, %v5120
  %v5122 = vsub.f32 %v5105, %v5120
  %5123 = vst.msk [vmem:[%s13] sm:$0xff] %vm5093, %v5121
  %5124 = vst.msk [vmem:[%s13 + $0x8] sm:$0x3] %vm5095, %v5122
  %s5125 = scalar_lea.vmem %s0, 32
  %v5126 = vld [vmem:[%s5125] sm:$0xff]
  %v5127 = vld [vmem:[%s5125 + $0x8] sm:$0xff]
  %v5128 = vld [vmem:[%s5125 + $0x10] sm:$0xff]
  %v5129 = vld [vmem:[%s5125 + $0x18] sm:$0xf]
  %v5130 = vld [vmem:[%s1] sm:$0xf]
  %v5131 = vld [vmem:[%s1 + $0x4] sm:$0xf]
  %v5132 = vld [vmem:[%s1 + $0x8] sm:$0xf]
  %v5133 = vld [vmem:[%s1 + $0xc] sm:$0xf]
  %v5134 = vld [vmem:[%s1 + $0x10] sm:$0xf]
  %v5135 = vld [vmem:[%s1 + $0x14] sm:$0xf]
  %v5136 = vld [vmem:[%s1 + $0x18] sm:$0xf]
  %v5137 = vld [vmem:[%s1 + $0x1c] sm:$0xf]
  %v5138 = vld [vmem:[%s1 + $0x20] sm:$0xf]
  %v5139 = vld [vmem:[%s1 + $0x24] sm:$0xf]
  %v5140 = vld [vmem:[%s1 + $0x28] sm:$0xf]
  %v5141 = vld [vmem:[%s1 + $0x2c] sm:$0xf]
  %v5142 = vld [vmem:[%s1 + $0x30] sm:$0xf]
  %v5143 = vld [vmem:[%s1 + $0x34] sm:$0xf]
  %v5144 = vld [vmem:[%s1 + $0x38] sm:$0xf]
  %v5145 = vld [vmem:[%s1 + $0x3c] sm:$0xf]
  %v5146 = vld [vmem:[%s1 + $0x40] sm:$0xf]
  %v5147 = vld [vmem:[%s1 + $0x44] sm:$0xf]
  %v5148 = vld [vmem:[%s1 + $0x48] sm:$0xf]
  %v5149 = vld [vmem:[%s1 + $0x4c] sm:$0xf]
  %v5150 = vld [vmem:[%s1 + $0x50] sm:$0xf]
  %v5151 = vld [vmem:[%s1 + $0x54] sm:$0xf]
  %v5152 = vld [vmem:[%s1 + $0x58] sm:$0xf]
  %v5153 = vld [vmem:[%s1 + $0x5c] sm:$0xf]
  %v5154 = vld [vmem:[%s1 + $0x60] sm:$0xf]
  %v5155 = vld [vmem:[%s1 + $0x64] sm:$0xf]
  %v5156 = vld [vmem:[%s1 + $0x68] sm:$0xf]
  %v5157 = vld [vmem:[%s1 + $0x6c] sm:$0xf]
  %v5158 = vld [vmem:[%s1 + $0x70] sm:$0xf]
  %v5159 = vld [vmem:[%s1 + $0x74] sm:$0xf]
  %v5160 = vpack.c.bf16 %v5127, %v5126
  %v5161 = vpack.c.bf16 %v5129, %v5128
  %v5162 = vld [vmem:[%s81] sm:$0xf]
  %v5163 = vld [vmem:[%s81 + $0x4] sm:$0xf]
  %v5164 = vld [vmem:[%s81 + $0x8] sm:$0xf]
  %v5165 = vld [vmem:[%s81 + $0xc] sm:$0xf]
  %v5166 = vld [vmem:[%s81 + $0x10] sm:$0xf]
  %v5167 = vld [vmem:[%s81 + $0x14] sm:$0xf]
  %v5168 = vld [vmem:[%s81 + $0x18] sm:$0xf]
  %v5169 = vld [vmem:[%s81 + $0x1c] sm:$0xf]
  %v5170 = vld [vmem:[%s81 + $0x20] sm:$0xf]
  %v5171 = vld [vmem:[%s81 + $0x24] sm:$0xf]
  %v5172 = vld [vmem:[%s81 + $0x28] sm:$0xf]
  %v5173 = vld [vmem:[%s81 + $0x2c] sm:$0xf]
  %v5174 = vld [vmem:[%s81 + $0x30] sm:$0xf]
  %v5175 = vld [vmem:[%s81 + $0x34] sm:$0xf]
  %v5176 = vld [vmem:[%s81 + $0x38] sm:$0xf]
  %v5177 = vld [vmem:[%s81 + $0x3c] sm:$0xf]
  %v5178 = vld [vmem:[%s81 + $0x40] sm:$0xf]
  %v5179 = vld [vmem:[%s81 + $0x44] sm:$0xf]
  %v5180 = vld [vmem:[%s81 + $0x48] sm:$0xf]
  %v5181 = vld [vmem:[%s81 + $0x4c] sm:$0xf]
  %v5182 = vld [vmem:[%s81 + $0x50] sm:$0xf]
  %v5183 = vld [vmem:[%s81 + $0x54] sm:$0xf]
  %v5184 = vld [vmem:[%s81 + $0x58] sm:$0xf]
  %v5185 = vld [vmem:[%s81 + $0x5c] sm:$0xf]
  %v5186 = vld [vmem:[%s81 + $0x60] sm:$0xf]
  %v5187 = vld [vmem:[%s81 + $0x64] sm:$0xf]
  %v5188 = vld [vmem:[%s81 + $0x68] sm:$0xf]
  %v5189 = vld [vmem:[%s81 + $0x6c] sm:$0xf]
  %v5190 = vld [vmem:[%s81 + $0x70] sm:$0xf]
  %v5191 = vld [vmem:[%s81 + $0x74] sm:$0xf]
  %v5222 = vunpack.c.l.b16 %v5162
  %v5223 = vunpack.c.l.b16 %v5163
  %v5224 = vunpack.c.l.b16 %v5164
  %v5225 = vunpack.c.l.b16 %v5165
  %v5226 = vunpack.c.l.b16 %v5166
  %v5227 = vunpack.c.l.b16 %v5167
  %v5228 = vunpack.c.l.b16 %v5168
  %v5229 = vunpack.c.l.b16 %v5169
  %v5230 = vunpack.c.l.b16 %v5170
  %v5231 = vunpack.c.l.b16 %v5171
  %v5232 = vunpack.c.l.b16 %v5172
  %v5233 = vunpack.c.l.b16 %v5173
  %v5234 = vunpack.c.l.b16 %v5174
  %v5235 = vunpack.c.l.b16 %v5175
  %v5236 = vunpack.c.l.b16 %v5176
  %v5237 = vunpack.c.l.b16 %v5177
  %v5238 = vunpack.c.l.b16 %v5178
  %v5239 = vunpack.c.l.b16 %v5179
  %v5240 = vunpack.c.l.b16 %v5180
  %v5241 = vunpack.c.l.b16 %v5181
  %v5242 = vunpack.c.l.b16 %v5182
  %v5243 = vunpack.c.l.b16 %v5183
  %v5244 = vunpack.c.l.b16 %v5184
  %v5245 = vunpack.c.l.b16 %v5185
  %v5246 = vunpack.c.l.b16 %v5186
  %v5247 = vunpack.c.l.b16 %v5187
  %v5248 = vunpack.c.l.b16 %v5188
  %v5249 = vunpack.c.l.b16 %v5189
  %v5250 = vunpack.c.l.b16 %v5190
  %v5251 = vunpack.c.l.b16 %v5191
  %v5252 = vpack.c.b16 %v5223, %v5222
  %v5253 = vpack.c.b16 %v5225, %v5224
  %v5254 = vpack.c.b16 %v5227, %v5226
  %v5255 = vpack.c.b16 %v5229, %v5228
  %v5256 = vpack.c.b16 %v5231, %v5230
  %v5257 = vpack.c.b16 %v5233, %v5232
  %v5258 = vpack.c.b16 %v5235, %v5234
  %v5259 = vpack.c.b16 %v5237, %v5236
  %v5260 = vpack.c.b16 %v5239, %v5238
  %v5261 = vpack.c.b16 %v5241, %v5240
  %v5262 = vpack.c.b16 %v5243, %v5242
  %v5263 = vpack.c.b16 %v5245, %v5244
  %v5264 = vpack.c.b16 %v5247, %v5246
  %v5265 = vpack.c.b16 %v5249, %v5248
  %v5266 = vpack.c.b16 %v5251, %v5250
  %5269 = vrot.lane.b32.xlu0 %v5160, 127
  %v5270 = vpop.permute.xlu0 %5269
  %5271 = vrot.lane.b32.xlu0 %v5161, 127
  %v5272 = vpop.permute.xlu0 %5271
  %v5275 = vsel %vm194, %v5252, 0
  %v5278 = vsel %vm194, %v5253, 0
  %v5281 = vsel %vm194, %v5254, 0
  %v5284 = vsel %vm194, %v5255, 0
  %v5287 = vsel %vm194, %v5256, 0
  %v5290 = vsel %vm194, %v5257, 0
  %v5293 = vsel %vm194, %v5258, 0
  %v5296 = vsel %vm194, %v5259, 0
  %v5299 = vsel %vm194, %v5260, 0
  %v5302 = vsel %vm194, %v5261, 0
  %v5305 = vsel %vm194, %v5262, 0
  %v5308 = vsel %vm194, %v5263, 0
  %v5311 = vsel %vm194, %v5264, 0
  %v5314 = vsel %vm194, %v5265, 0
  %v5317 = vsel %vm194, %v5266, 0
  %v5320 = vsel %vm240, %v5272, 0
  %5322 = vmatprep.subr.bf16.mxu0 0
  %5323 = vmatpush1.bf16.msra.mxu0 0
  %5324 = vmatprep.subr.bf16.mxu0 0
  %5325 = vmatpush1.bf16.msra.mxu0 0
  %5326 = vmatprep.subr.bf16.mxu0 0
  %5327 = vmatpush1.bf16.msra.mxu0 0
  %5328 = vmatprep.subr.bf16.mxu0 0
  %5329 = vmatpush1.bf16.msra.mxu0 0
  %5330 = vmatprep.subr.bf16.mxu0 0
  %5331 = vmatpush1.bf16.msra.mxu0 0
  %5332 = vmatprep.subr.bf16.mxu0 0
  %5333 = vmatpush1.bf16.msra.mxu0 0
  %5334 = vmatprep.subr.bf16.mxu0 0
  %5335 = vmatpush1.bf16.msra.mxu0 %v5320
  %5336 = vmatprep.subr.bf16.mxu0 0
  %5337 = vmatpush1.bf16.msra.mxu0 %v5270
  %5338 = vmatprep.subr.bf16.mxu0 0
  %5339 = vmatpush2.bf16.msra.mxu0 0
  %5340 = vmatprep.subr.bf16.mxu0 0
  %5341 = vmatpush2.bf16.msra.mxu0 0
  %5342 = vmatprep.subr.bf16.mxu0 0
  %5343 = vmatpush2.bf16.msra.mxu0 0
  %5344 = vmatprep.subr.bf16.mxu0 0
  %5345 = vmatpush2.bf16.msra.mxu0 0
  %5346 = vmatprep.subr.bf16.mxu0 0
  %5347 = vmatpush2.bf16.msra.mxu0 0
  %5348 = vmatprep.subr.bf16.mxu0 0
  %5349 = vmatpush2.bf16.msra.mxu0 0
  %5350 = vmatprep.subr.bf16.mxu0 0
  %5351 = vmatpush2.bf16.msra.mxu0 0
  %5352 = vmatprep.subr.bf16.mxu0 0
  %5353 = vmatpush2.bf16.msra.mxu0 0
  %5354 = vmatprep.mubr.bf16.mxu0 0
  %5355 = vmatmul.mubr.bf16.gmra.mxu0 %v5275
  %v5356 = vpop.f32.mrf.mxu0
  %v5357 = vadd.f32 0.0, %v5356
  %v5358 = vpop.f32.mrf.mxu0
  %v5359 = vpop.f32.mrf.mxu0
  %v5360 = vadd.f32 0.0, %v5359
  %v5361 = vpop.f32.mrf.mxu0
  %5362 = vmatprep.mubr.bf16.mxu0 0
  %5363 = vmatmul.mubr.bf16.gmra.mxu0 %v5278
  %v5364 = vpop.f32.mrf.mxu0
  %v5365 = vadd.f32 0.0, %v5364
  %v5366 = vpop.f32.mrf.mxu0
  %v5367 = vpop.f32.mrf.mxu0
  %v5368 = vadd.f32 0.0, %v5367
  %v5369 = vpop.f32.mrf.mxu0
  %5370 = vmatprep.mubr.bf16.mxu0 0
  %5371 = vmatmul.mubr.bf16.gmra.mxu0 %v5281
  %v5372 = vpop.f32.mrf.mxu0
  %v5373 = vadd.f32 0.0, %v5372
  %v5374 = vpop.f32.mrf.mxu0
  %v5375 = vpop.f32.mrf.mxu0
  %v5376 = vadd.f32 0.0, %v5375
  %v5377 = vpop.f32.mrf.mxu0
  %5378 = vmatprep.mubr.bf16.mxu0 0
  %5379 = vmatmul.mubr.bf16.gmra.mxu0 %v5284
  %v5380 = vpop.f32.mrf.mxu0
  %v5381 = vadd.f32 0.0, %v5380
  %v5382 = vpop.f32.mrf.mxu0
  %v5383 = vpop.f32.mrf.mxu0
  %v5384 = vadd.f32 0.0, %v5383
  %v5385 = vpop.f32.mrf.mxu0
  %5386 = vmatprep.mubr.bf16.mxu0 0
  %5387 = vmatmul.mubr.bf16.gmra.mxu0 %v5287
  %v5388 = vpop.f32.mrf.mxu0
  %v5389 = vadd.f32 0.0, %v5388
  %v5390 = vpop.f32.mrf.mxu0
  %v5391 = vpop.f32.mrf.mxu0
  %v5392 = vadd.f32 0.0, %v5391
  %v5393 = vpop.f32.mrf.mxu0
  %5394 = vmatprep.mubr.bf16.mxu0 0
  %5395 = vmatmul.mubr.bf16.gmra.mxu0 %v5290
  %v5396 = vpop.f32.mrf.mxu0
  %v5397 = vadd.f32 0.0, %v5396
  %v5398 = vpop.f32.mrf.mxu0
  %v5399 = vpop.f32.mrf.mxu0
  %v5400 = vadd.f32 0.0, %v5399
  %v5401 = vpop.f32.mrf.mxu0
  %5402 = vmatprep.mubr.bf16.mxu0 0
  %5403 = vmatmul.mubr.bf16.gmra.mxu0 %v5293
  %v5404 = vpop.f32.mrf.mxu0
  %v5405 = vadd.f32 0.0, %v5404
  %v5406 = vpop.f32.mrf.mxu0
  %v5407 = vpop.f32.mrf.mxu0
  %v5408 = vadd.f32 0.0, %v5407
  %v5409 = vpop.f32.mrf.mxu0
  %5410 = vmatprep.mubr.bf16.mxu0 0
  %5411 = vmatmul.mubr.bf16.gmra.mxu0 %v5296
  %v5412 = vpop.f32.mrf.mxu0
  %v5413 = vadd.f32 0.0, %v5412
  %v5414 = vpop.f32.mrf.mxu0
  %v5415 = vpop.f32.mrf.mxu0
  %v5416 = vadd.f32 0.0, %v5415
  %v5417 = vpop.f32.mrf.mxu0
  %5418 = vmatprep.mubr.bf16.mxu0 0
  %5419 = vmatmul.mubr.bf16.gmra.mxu0 %v5299
  %v5420 = vpop.f32.mrf.mxu0
  %v5421 = vadd.f32 0.0, %v5420
  %v5422 = vpop.f32.mrf.mxu0
  %v5423 = vpop.f32.mrf.mxu0
  %v5424 = vadd.f32 0.0, %v5423
  %v5425 = vpop.f32.mrf.mxu0
  %5426 = vmatprep.mubr.bf16.mxu0 0
  %5427 = vmatmul.mubr.bf16.gmra.mxu0 %v5302
  %v5428 = vpop.f32.mrf.mxu0
  %v5429 = vadd.f32 0.0, %v5428
  %v5430 = vpop.f32.mrf.mxu0
  %v5431 = vpop.f32.mrf.mxu0
  %v5432 = vadd.f32 0.0, %v5431
  %v5433 = vpop.f32.mrf.mxu0
  %5434 = vmatprep.mubr.bf16.mxu0 0
  %5435 = vmatmul.mubr.bf16.gmra.mxu0 %v5305
  %v5436 = vpop.f32.mrf.mxu0
  %v5437 = vadd.f32 0.0, %v5436
  %v5438 = vpop.f32.mrf.mxu0
  %v5439 = vpop.f32.mrf.mxu0
  %v5440 = vadd.f32 0.0, %v5439
  %v5441 = vpop.f32.mrf.mxu0
  %5442 = vmatprep.mubr.bf16.mxu0 0
  %5443 = vmatmul.mubr.bf16.gmra.mxu0 %v5308
  %v5444 = vpop.f32.mrf.mxu0
  %v5445 = vadd.f32 0.0, %v5444
  %v5446 = vpop.f32.mrf.mxu0
  %v5447 = vpop.f32.mrf.mxu0
  %v5448 = vadd.f32 0.0, %v5447
  %v5449 = vpop.f32.mrf.mxu0
  %5450 = vmatprep.mubr.bf16.mxu0 0
  %5451 = vmatmul.mubr.bf16.gmra.mxu0 %v5311
  %v5452 = vpop.f32.mrf.mxu0
  %v5453 = vadd.f32 0.0, %v5452
  %v5454 = vpop.f32.mrf.mxu0
  %v5455 = vpop.f32.mrf.mxu0
  %v5456 = vadd.f32 0.0, %v5455
  %v5457 = vpop.f32.mrf.mxu0
  %5458 = vmatprep.mubr.bf16.mxu0 0
  %5459 = vmatmul.mubr.bf16.gmra.mxu0 %v5314
  %v5460 = vpop.f32.mrf.mxu0
  %v5461 = vadd.f32 0.0, %v5460
  %v5462 = vpop.f32.mrf.mxu0
  %v5463 = vpop.f32.mrf.mxu0
  %v5464 = vadd.f32 0.0, %v5463
  %v5465 = vpop.f32.mrf.mxu0
  %5466 = vmatprep.mubr.bf16.mxu0 0
  %5467 = vmatmul.mubr.bf16.gmra.mxu0 %v5317
  %v5468 = vpop.f32.mrf.mxu0
  %v5469 = vadd.f32 0.0, %v5468
  %v5470 = vpop.f32.mrf.mxu0
  %v5471 = vpop.f32.mrf.mxu0
  %v5472 = vadd.f32 0.0, %v5471
  %v5473 = vpop.f32.mrf.mxu0
  %5474 = vdwg.mxu0
  %v5505 = vunpack.c.l.b16 %v5130
  %v5506 = vunpack.c.l.b16 %v5131
  %v5507 = vunpack.c.l.b16 %v5132
  %v5508 = vunpack.c.l.b16 %v5133
  %v5509 = vunpack.c.l.b16 %v5134
  %v5510 = vunpack.c.l.b16 %v5135
  %v5511 = vunpack.c.l.b16 %v5136
  %v5512 = vunpack.c.l.b16 %v5137
  %v5513 = vunpack.c.l.b16 %v5138
  %v5514 = vunpack.c.l.b16 %v5139
  %v5515 = vunpack.c.l.b16 %v5140
  %v5516 = vunpack.c.l.b16 %v5141
  %v5517 = vunpack.c.l.b16 %v5142
  %v5518 = vunpack.c.l.b16 %v5143
  %v5519 = vunpack.c.l.b16 %v5144
  %v5520 = vunpack.c.l.b16 %v5145
  %v5521 = vunpack.c.l.b16 %v5146
  %v5522 = vunpack.c.l.b16 %v5147
  %v5523 = vunpack.c.l.b16 %v5148
  %v5524 = vunpack.c.l.b16 %v5149
  %v5525 = vunpack.c.l.b16 %v5150
  %v5526 = vunpack.c.l.b16 %v5151
  %v5527 = vunpack.c.l.b16 %v5152
  %v5528 = vunpack.c.l.b16 %v5153
  %v5529 = vunpack.c.l.b16 %v5154
  %v5530 = vunpack.c.l.b16 %v5155
  %v5531 = vunpack.c.l.b16 %v5156
  %v5532 = vunpack.c.l.b16 %v5157
  %v5533 = vunpack.c.l.b16 %v5158
  %v5534 = vunpack.c.l.b16 %v5159
  %v5535 = vpack.c.b16 %v5506, %v5505
  %v5536 = vpack.c.b16 %v5508, %v5507
  %v5537 = vpack.c.b16 %v5510, %v5509
  %v5538 = vpack.c.b16 %v5512, %v5511
  %v5539 = vpack.c.b16 %v5514, %v5513
  %v5540 = vpack.c.b16 %v5516, %v5515
  %v5541 = vpack.c.b16 %v5518, %v5517
  %v5542 = vpack.c.b16 %v5520, %v5519
  %v5543 = vpack.c.b16 %v5522, %v5521
  %v5544 = vpack.c.b16 %v5524, %v5523
  %v5545 = vpack.c.b16 %v5526, %v5525
  %v5546 = vpack.c.b16 %v5528, %v5527
  %v5547 = vpack.c.b16 %v5530, %v5529
  %v5548 = vpack.c.b16 %v5532, %v5531
  %v5549 = vpack.c.b16 %v5534, %v5533
  %v5551 = vsel %vm194, %v5535, 0
  %v5554 = vsel %vm194, %v5536, 0
  %v5557 = vsel %vm194, %v5537, 0
  %v5560 = vsel %vm194, %v5538, 0
  %v5563 = vsel %vm194, %v5539, 0
  %v5566 = vsel %vm194, %v5540, 0
  %v5569 = vsel %vm194, %v5541, 0
  %v5572 = vsel %vm194, %v5542, 0
  %v5575 = vsel %vm194, %v5543, 0
  %v5578 = vsel %vm194, %v5544, 0
  %v5581 = vsel %vm194, %v5545, 0
  %v5584 = vsel %vm194, %v5546, 0
  %v5587 = vsel %vm194, %v5547, 0
  %v5590 = vsel %vm194, %v5548, 0
  %v5593 = vsel %vm194, %v5549, 0
  %v5596 = vsel %vm240, %v5161, 0
  %5598 = vmatprep.subr.bf16.mxu0 0
  %5599 = vmatpush1.bf16.msra.mxu0 0
  %5600 = vmatprep.subr.bf16.mxu0 0
  %5601 = vmatpush1.bf16.msra.mxu0 0
  %5602 = vmatprep.subr.bf16.mxu0 0
  %5603 = vmatpush1.bf16.msra.mxu0 0
  %5604 = vmatprep.subr.bf16.mxu0 0
  %5605 = vmatpush1.bf16.msra.mxu0 0
  %5606 = vmatprep.subr.bf16.mxu0 0
  %5607 = vmatpush1.bf16.msra.mxu0 0
  %5608 = vmatprep.subr.bf16.mxu0 0
  %5609 = vmatpush1.bf16.msra.mxu0 0
  %5610 = vmatprep.subr.bf16.mxu0 0
  %5611 = vmatpush1.bf16.msra.mxu0 %v5596
  %5612 = vmatprep.subr.bf16.mxu0 0
  %5613 = vmatpush1.bf16.msra.mxu0 %v5160
  %5614 = vmatprep.subr.bf16.mxu0 0
  %5615 = vmatpush2.bf16.msra.mxu0 0
  %5616 = vmatprep.subr.bf16.mxu0 0
  %5617 = vmatpush2.bf16.msra.mxu0 0
  %5618 = vmatprep.subr.bf16.mxu0 0
  %5619 = vmatpush2.bf16.msra.mxu0 0
  %5620 = vmatprep.subr.bf16.mxu0 0
  %5621 = vmatpush2.bf16.msra.mxu0 0
  %5622 = vmatprep.subr.bf16.mxu0 0
  %5623 = vmatpush2.bf16.msra.mxu0 0
  %5624 = vmatprep.subr.bf16.mxu0 0
  %5625 = vmatpush2.bf16.msra.mxu0 0
  %5626 = vmatprep.subr.bf16.mxu0 0
  %5627 = vmatpush2.bf16.msra.mxu0 0
  %5628 = vmatprep.subr.bf16.mxu0 0
  %5629 = vmatpush2.bf16.msra.mxu0 0
  %5630 = vmatprep.mubr.bf16.mxu0 0
  %5631 = vmatmul.mubr.bf16.gmra.mxu0 %v5551
  %v5632 = vpop.f32.mrf.mxu0
  %v5633 = vadd.f32 %v5357, %v5632
  %v5634 = vpop.f32.mrf.mxu0
  %v5635 = vpop.f32.mrf.mxu0
  %v5636 = vadd.f32 %v5360, %v5635
  %v5637 = vpop.f32.mrf.mxu0
  %5638 = vmatprep.mubr.bf16.mxu0 0
  %5639 = vmatmul.mubr.bf16.gmra.mxu0 %v5554
  %v5640 = vpop.f32.mrf.mxu0
  %v5641 = vadd.f32 %v5365, %v5640
  %v5642 = vpop.f32.mrf.mxu0
  %v5643 = vpop.f32.mrf.mxu0
  %v5644 = vadd.f32 %v5368, %v5643
  %v5645 = vpop.f32.mrf.mxu0
  %5646 = vmatprep.mubr.bf16.mxu0 0
  %5647 = vmatmul.mubr.bf16.gmra.mxu0 %v5557
  %v5648 = vpop.f32.mrf.mxu0
  %v5649 = vadd.f32 %v5373, %v5648
  %v5650 = vpop.f32.mrf.mxu0
  %v5651 = vpop.f32.mrf.mxu0
  %v5652 = vadd.f32 %v5376, %v5651
  %v5653 = vpop.f32.mrf.mxu0
  %5654 = vmatprep.mubr.bf16.mxu0 0
  %5655 = vmatmul.mubr.bf16.gmra.mxu0 %v5560
  %v5656 = vpop.f32.mrf.mxu0
  %v5657 = vadd.f32 %v5381, %v5656
  %v5658 = vpop.f32.mrf.mxu0
  %v5659 = vpop.f32.mrf.mxu0
  %v5660 = vadd.f32 %v5384, %v5659
  %v5661 = vpop.f32.mrf.mxu0
  %5662 = vmatprep.mubr.bf16.mxu0 0
  %5663 = vmatmul.mubr.bf16.gmra.mxu0 %v5563
  %v5664 = vpop.f32.mrf.mxu0
  %v5665 = vadd.f32 %v5389, %v5664
  %v5666 = vpop.f32.mrf.mxu0
  %v5667 = vpop.f32.mrf.mxu0
  %v5668 = vadd.f32 %v5392, %v5667
  %v5669 = vpop.f32.mrf.mxu0
  %5670 = vmatprep.mubr.bf16.mxu0 0
  %5671 = vmatmul.mubr.bf16.gmra.mxu0 %v5566
  %v5672 = vpop.f32.mrf.mxu0
  %v5673 = vadd.f32 %v5397, %v5672
  %v5674 = vpop.f32.mrf.mxu0
  %v5675 = vpop.f32.mrf.mxu0
  %v5676 = vadd.f32 %v5400, %v5675
  %v5677 = vpop.f32.mrf.mxu0
  %5678 = vmatprep.mubr.bf16.mxu0 0
  %5679 = vmatmul.mubr.bf16.gmra.mxu0 %v5569
  %v5680 = vpop.f32.mrf.mxu0
  %v5681 = vadd.f32 %v5405, %v5680
  %v5682 = vpop.f32.mrf.mxu0
  %v5683 = vpop.f32.mrf.mxu0
  %v5684 = vadd.f32 %v5408, %v5683
  %v5685 = vpop.f32.mrf.mxu0
  %5686 = vmatprep.mubr.bf16.mxu0 0
  %5687 = vmatmul.mubr.bf16.gmra.mxu0 %v5572
  %v5688 = vpop.f32.mrf.mxu0
  %v5689 = vadd.f32 %v5413, %v5688
  %v5690 = vpop.f32.mrf.mxu0
  %v5691 = vpop.f32.mrf.mxu0
  %v5692 = vadd.f32 %v5416, %v5691
  %v5693 = vpop.f32.mrf.mxu0
  %5694 = vmatprep.mubr.bf16.mxu0 0
  %5695 = vmatmul.mubr.bf16.gmra.mxu0 %v5575
  %v5696 = vpop.f32.mrf.mxu0
  %v5697 = vadd.f32 %v5421, %v5696
  %v5698 = vpop.f32.mrf.mxu0
  %v5699 = vpop.f32.mrf.mxu0
  %v5700 = vadd.f32 %v5424, %v5699
  %v5701 = vpop.f32.mrf.mxu0
  %5702 = vmatprep.mubr.bf16.mxu0 0
  %5703 = vmatmul.mubr.bf16.gmra.mxu0 %v5578
  %v5704 = vpop.f32.mrf.mxu0
  %v5705 = vadd.f32 %v5429, %v5704
  %v5706 = vpop.f32.mrf.mxu0
  %v5707 = vpop.f32.mrf.mxu0
  %v5708 = vadd.f32 %v5432, %v5707
  %v5709 = vpop.f32.mrf.mxu0
  %5710 = vmatprep.mubr.bf16.mxu0 0
  %5711 = vmatmul.mubr.bf16.gmra.mxu0 %v5581
  %v5712 = vpop.f32.mrf.mxu0
  %v5713 = vadd.f32 %v5437, %v5712
  %v5714 = vpop.f32.mrf.mxu0
  %v5715 = vpop.f32.mrf.mxu0
  %v5716 = vadd.f32 %v5440, %v5715
  %v5717 = vpop.f32.mrf.mxu0
  %5718 = vmatprep.mubr.bf16.mxu0 0
  %5719 = vmatmul.mubr.bf16.gmra.mxu0 %v5584
  %v5720 = vpop.f32.mrf.mxu0
  %v5721 = vadd.f32 %v5445, %v5720
  %v5722 = vpop.f32.mrf.mxu0
  %v5723 = vpop.f32.mrf.mxu0
  %v5724 = vadd.f32 %v5448, %v5723
  %v5725 = vpop.f32.mrf.mxu0
  %5726 = vmatprep.mubr.bf16.mxu0 0
  %5727 = vmatmul.mubr.bf16.gmra.mxu0 %v5587
  %v5728 = vpop.f32.mrf.mxu0
  %v5729 = vadd.f32 %v5453, %v5728
  %v5730 = vpop.f32.mrf.mxu0
  %v5731 = vpop.f32.mrf.mxu0
  %v5732 = vadd.f32 %v5456, %v5731
  %v5733 = vpop.f32.mrf.mxu0
  %5734 = vmatprep.mubr.bf16.mxu0 0
  %5735 = vmatmul.mubr.bf16.gmra.mxu0 %v5590
  %v5736 = vpop.f32.mrf.mxu0
  %v5737 = vadd.f32 %v5461, %v5736
  %v5738 = vpop.f32.mrf.mxu0
  %v5739 = vpop.f32.mrf.mxu0
  %v5740 = vadd.f32 %v5464, %v5739
  %v5741 = vpop.f32.mrf.mxu0
  %5742 = vmatprep.mubr.bf16.mxu0 0
  %5743 = vmatmul.mubr.bf16.gmra.mxu0 %v5593
  %v5744 = vpop.f32.mrf.mxu0
  %v5745 = vadd.f32 %v5469, %v5744
  %v5746 = vpop.f32.mrf.mxu0
  %v5747 = vpop.f32.mrf.mxu0
  %v5748 = vadd.f32 %v5472, %v5747
  %v5749 = vpop.f32.mrf.mxu0
  %5750 = vdwg.mxu0
  %v5751 = vld [vmem:[%s673] sm:$0xf]
  %v5752 = vld [vmem:[%s673 + $0x4] sm:$0xf]
  %v5753 = vld [vmem:[%s673 + $0x8] sm:$0xf]
  %v5754 = vld [vmem:[%s673 + $0xc] sm:$0xf]
  %v5755 = vld [vmem:[%s673 + $0x10] sm:$0xf]
  %v5756 = vld [vmem:[%s673 + $0x14] sm:$0xf]
  %v5757 = vld [vmem:[%s673 + $0x18] sm:$0xf]
  %v5758 = vld [vmem:[%s673 + $0x1c] sm:$0xf]
  %v5759 = vld [vmem:[%s673 + $0x20] sm:$0xf]
  %v5760 = vld [vmem:[%s673 + $0x24] sm:$0xf]
  %v5761 = vld [vmem:[%s673 + $0x28] sm:$0xf]
  %v5762 = vld [vmem:[%s673 + $0x2c] sm:$0xf]
  %v5763 = vld [vmem:[%s673 + $0x30] sm:$0xf]
  %v5764 = vld [vmem:[%s673 + $0x34] sm:$0xf]
  %v5765 = vld [vmem:[%s673 + $0x38] sm:$0xf]
  %v5766 = vld [vmem:[%s673 + $0x3c] sm:$0xf]
  %v5767 = vld [vmem:[%s673 + $0x40] sm:$0xf]
  %v5768 = vld [vmem:[%s673 + $0x44] sm:$0xf]
  %v5769 = vld [vmem:[%s673 + $0x48] sm:$0xf]
  %v5770 = vld [vmem:[%s673 + $0x4c] sm:$0xf]
  %v5771 = vld [vmem:[%s673 + $0x50] sm:$0xf]
  %v5772 = vld [vmem:[%s673 + $0x54] sm:$0xf]
  %v5773 = vld [vmem:[%s673 + $0x58] sm:$0xf]
  %v5774 = vld [vmem:[%s673 + $0x5c] sm:$0xf]
  %v5775 = vld [vmem:[%s673 + $0x60] sm:$0xf]
  %v5776 = vld [vmem:[%s673 + $0x64] sm:$0xf]
  %v5777 = vld [vmem:[%s673 + $0x68] sm:$0xf]
  %v5778 = vld [vmem:[%s673 + $0x6c] sm:$0xf]
  %v5779 = vld [vmem:[%s673 + $0x70] sm:$0xf]
  %v5780 = vld [vmem:[%s673 + $0x74] sm:$0xf]
  %v5811 = vunpack.c.l.b16 %v5751
  %v5812 = vunpack.c.l.b16 %v5752
  %v5813 = vunpack.c.l.b16 %v5753
  %v5814 = vunpack.c.l.b16 %v5754
  %v5815 = vunpack.c.l.b16 %v5755
  %v5816 = vunpack.c.l.b16 %v5756
  %v5817 = vunpack.c.l.b16 %v5757
  %v5818 = vunpack.c.l.b16 %v5758
  %v5819 = vunpack.c.l.b16 %v5759
  %v5820 = vunpack.c.l.b16 %v5760
  %v5821 = vunpack.c.l.b16 %v5761
  %v5822 = vunpack.c.l.b16 %v5762
  %v5823 = vunpack.c.l.b16 %v5763
  %v5824 = vunpack.c.l.b16 %v5764
  %v5825 = vunpack.c.l.b16 %v5765
  %v5826 = vunpack.c.l.b16 %v5766
  %v5827 = vunpack.c.l.b16 %v5767
  %v5828 = vunpack.c.l.b16 %v5768
  %v5829 = vunpack.c.l.b16 %v5769
  %v5830 = vunpack.c.l.b16 %v5770
  %v5831 = vunpack.c.l.b16 %v5771
  %v5832 = vunpack.c.l.b16 %v5772
  %v5833 = vunpack.c.l.b16 %v5773
  %v5834 = vunpack.c.l.b16 %v5774
  %v5835 = vunpack.c.l.b16 %v5775
  %v5836 = vunpack.c.l.b16 %v5776
  %v5837 = vunpack.c.l.b16 %v5777
  %v5838 = vunpack.c.l.b16 %v5778
  %v5839 = vunpack.c.l.b16 %v5779
  %v5840 = vunpack.c.l.b16 %v5780
  %v5841 = vpack.c.b16 %v5812, %v5811
  %v5842 = vpack.c.b16 %v5814, %v5813
  %v5843 = vpack.c.b16 %v5816, %v5815
  %v5844 = vpack.c.b16 %v5818, %v5817
  %v5845 = vpack.c.b16 %v5820, %v5819
  %v5846 = vpack.c.b16 %v5822, %v5821
  %v5847 = vpack.c.b16 %v5824, %v5823
  %v5848 = vpack.c.b16 %v5826, %v5825
  %v5849 = vpack.c.b16 %v5828, %v5827
  %v5850 = vpack.c.b16 %v5830, %v5829
  %v5851 = vpack.c.b16 %v5832, %v5831
  %v5852 = vpack.c.b16 %v5834, %v5833
  %v5853 = vpack.c.b16 %v5836, %v5835
  %v5854 = vpack.c.b16 %v5838, %v5837
  %v5855 = vpack.c.b16 %v5840, %v5839
  %5856 = vrot.lane.b32.xlu0 %v5160, 126
  %v5857 = vpop.permute.xlu0 %5856
  %5858 = vrot.lane.b32.xlu0 %v5161, 126
  %v5859 = vpop.permute.xlu0 %5858
  %v5862 = vsel %vm194, %v5841, 0
  %v5865 = vsel %vm194, %v5842, 0
  %v5868 = vsel %vm194, %v5843, 0
  %v5871 = vsel %vm194, %v5844, 0
  %v5874 = vsel %vm194, %v5845, 0
  %v5877 = vsel %vm194, %v5846, 0
  %v5880 = vsel %vm194, %v5847, 0
  %v5883 = vsel %vm194, %v5848, 0
  %v5886 = vsel %vm194, %v5849, 0
  %v5889 = vsel %vm194, %v5850, 0
  %v5892 = vsel %vm194, %v5851, 0
  %v5895 = vsel %vm194, %v5852, 0
  %v5898 = vsel %vm194, %v5853, 0
  %v5901 = vsel %vm194, %v5854, 0
  %v5904 = vsel %vm194, %v5855, 0
  %v5907 = vsel %vm240, %v5859, 0
  %5909 = vmatprep.subr.bf16.mxu0 0
  %5910 = vmatpush1.bf16.msra.mxu0 0
  %5911 = vmatprep.subr.bf16.mxu0 0
  %5912 = vmatpush1.bf16.msra.mxu0 0
  %5913 = vmatprep.subr.bf16.mxu0 0
  %5914 = vmatpush1.bf16.msra.mxu0 0
  %5915 = vmatprep.subr.bf16.mxu0 0
  %5916 = vmatpush1.bf16.msra.mxu0 0
  %5917 = vmatprep.subr.bf16.mxu0 0
  %5918 = vmatpush1.bf16.msra.mxu0 0
  %5919 = vmatprep.subr.bf16.mxu0 0
  %5920 = vmatpush1.bf16.msra.mxu0 0
  %5921 = vmatprep.subr.bf16.mxu0 0
  %5922 = vmatpush1.bf16.msra.mxu0 %v5907
  %5923 = vmatprep.subr.bf16.mxu0 0
  %5924 = vmatpush1.bf16.msra.mxu0 %v5857
  %5925 = vmatprep.subr.bf16.mxu0 0
  %5926 = vmatpush2.bf16.msra.mxu0 0
  %5927 = vmatprep.subr.bf16.mxu0 0
  %5928 = vmatpush2.bf16.msra.mxu0 0
  %5929 = vmatprep.subr.bf16.mxu0 0
  %5930 = vmatpush2.bf16.msra.mxu0 0
  %5931 = vmatprep.subr.bf16.mxu0 0
  %5932 = vmatpush2.bf16.msra.mxu0 0
  %5933 = vmatprep.subr.bf16.mxu0 0
  %5934 = vmatpush2.bf16.msra.mxu0 0
  %5935 = vmatprep.subr.bf16.mxu0 0
  %5936 = vmatpush2.bf16.msra.mxu0 0
  %5937 = vmatprep.subr.bf16.mxu0 0
  %5938 = vmatpush2.bf16.msra.mxu0 0
  %5939 = vmatprep.subr.bf16.mxu0 0
  %5940 = vmatpush2.bf16.msra.mxu0 0
  %5941 = vmatprep.mubr.bf16.mxu0 0
  %5942 = vmatmul.mubr.bf16.gmra.mxu0 %v5862
  %v5943 = vpop.f32.mrf.mxu0
  %v5944 = vadd.f32 0.0, %v5943
  %v5945 = vpop.f32.mrf.mxu0
  %v5946 = vpop.f32.mrf.mxu0
  %v5947 = vadd.f32 0.0, %v5946
  %v5948 = vpop.f32.mrf.mxu0
  %5949 = vmatprep.mubr.bf16.mxu0 0
  %5950 = vmatmul.mubr.bf16.gmra.mxu0 %v5865
  %v5951 = vpop.f32.mrf.mxu0
  %v5952 = vadd.f32 0.0, %v5951
  %v5953 = vpop.f32.mrf.mxu0
  %v5954 = vpop.f32.mrf.mxu0
  %v5955 = vadd.f32 0.0, %v5954
  %v5956 = vpop.f32.mrf.mxu0
  %5957 = vmatprep.mubr.bf16.mxu0 0
  %5958 = vmatmul.mubr.bf16.gmra.mxu0 %v5868
  %v5959 = vpop.f32.mrf.mxu0
  %v5960 = vadd.f32 0.0, %v5959
  %v5961 = vpop.f32.mrf.mxu0
  %v5962 = vpop.f32.mrf.mxu0
  %v5963 = vadd.f32 0.0, %v5962
  %v5964 = vpop.f32.mrf.mxu0
  %5965 = vmatprep.mubr.bf16.mxu0 0
  %5966 = vmatmul.mubr.bf16.gmra.mxu0 %v5871
  %v5967 = vpop.f32.mrf.mxu0
  %v5968 = vadd.f32 0.0, %v5967
  %v5969 = vpop.f32.mrf.mxu0
  %v5970 = vpop.f32.mrf.mxu0
  %v5971 = vadd.f32 0.0, %v5970
  %v5972 = vpop.f32.mrf.mxu0
  %5973 = vmatprep.mubr.bf16.mxu0 0
  %5974 = vmatmul.mubr.bf16.gmra.mxu0 %v5874
  %v5975 = vpop.f32.mrf.mxu0
  %v5976 = vadd.f32 0.0, %v5975
  %v5977 = vpop.f32.mrf.mxu0
  %v5978 = vpop.f32.mrf.mxu0
  %v5979 = vadd.f32 0.0, %v5978
  %v5980 = vpop.f32.mrf.mxu0
  %5981 = vmatprep.mubr.bf16.mxu0 0
  %5982 = vmatmul.mubr.bf16.gmra.mxu0 %v5877
  %v5983 = vpop.f32.mrf.mxu0
  %v5984 = vadd.f32 0.0, %v5983
  %v5985 = vpop.f32.mrf.mxu0
  %v5986 = vpop.f32.mrf.mxu0
  %v5987 = vadd.f32 0.0, %v5986
  %v5988 = vpop.f32.mrf.mxu0
  %5989 = vmatprep.mubr.bf16.mxu0 0
  %5990 = vmatmul.mubr.bf16.gmra.mxu0 %v5880
  %v5991 = vpop.f32.mrf.mxu0
  %v5992 = vadd.f32 0.0, %v5991
  %v5993 = vpop.f32.mrf.mxu0
  %v5994 = vpop.f32.mrf.mxu0
  %v5995 = vadd.f32 0.0, %v5994
  %v5996 = vpop.f32.mrf.mxu0
  %5997 = vmatprep.mubr.bf16.mxu0 0
  %5998 = vmatmul.mubr.bf16.gmra.mxu0 %v5883
  %v5999 = vpop.f32.mrf.mxu0
  %v6000 = vadd.f32 0.0, %v5999
  %v6001 = vpop.f32.mrf.mxu0
  %v6002 = vpop.f32.mrf.mxu0
  %v6003 = vadd.f32 0.0, %v6002
  %v6004 = vpop.f32.mrf.mxu0
  %6005 = vmatprep.mubr.bf16.mxu0 0
  %6006 = vmatmul.mubr.bf16.gmra.mxu0 %v5886
  %v6007 = vpop.f32.mrf.mxu0
  %v6008 = vadd.f32 0.0, %v6007
  %v6009 = vpop.f32.mrf.mxu0
  %v6010 = vpop.f32.mrf.mxu0
  %v6011 = vadd.f32 0.0, %v6010
  %v6012 = vpop.f32.mrf.mxu0
  %6013 = vmatprep.mubr.bf16.mxu0 0
  %6014 = vmatmul.mubr.bf16.gmra.mxu0 %v5889
  %v6015 = vpop.f32.mrf.mxu0
  %v6016 = vadd.f32 0.0, %v6015
  %v6017 = vpop.f32.mrf.mxu0
  %v6018 = vpop.f32.mrf.mxu0
  %v6019 = vadd.f32 0.0, %v6018
  %v6020 = vpop.f32.mrf.mxu0
  %6021 = vmatprep.mubr.bf16.mxu0 0
  %6022 = vmatmul.mubr.bf16.gmra.mxu0 %v5892
  %v6023 = vpop.f32.mrf.mxu0
  %v6024 = vadd.f32 0.0, %v6023
  %v6025 = vpop.f32.mrf.mxu0
  %v6026 = vpop.f32.mrf.mxu0
  %v6027 = vadd.f32 0.0, %v6026
  %v6028 = vpop.f32.mrf.mxu0
  %6029 = vmatprep.mubr.bf16.mxu0 0
  %6030 = vmatmul.mubr.bf16.gmra.mxu0 %v5895
  %v6031 = vpop.f32.mrf.mxu0
  %v6032 = vadd.f32 0.0, %v6031
  %v6033 = vpop.f32.mrf.mxu0
  %v6034 = vpop.f32.mrf.mxu0
  %v6035 = vadd.f32 0.0, %v6034
  %v6036 = vpop.f32.mrf.mxu0
  %6037 = vmatprep.mubr.bf16.mxu0 0
  %6038 = vmatmul.mubr.bf16.gmra.mxu0 %v5898
  %v6039 = vpop.f32.mrf.mxu0
  %v6040 = vadd.f32 0.0, %v6039
  %v6041 = vpop.f32.mrf.mxu0
  %v6042 = vpop.f32.mrf.mxu0
  %v6043 = vadd.f32 0.0, %v6042
  %v6044 = vpop.f32.mrf.mxu0
  %6045 = vmatprep.mubr.bf16.mxu0 0
  %6046 = vmatmul.mubr.bf16.gmra.mxu0 %v5901
  %v6047 = vpop.f32.mrf.mxu0
  %v6048 = vadd.f32 0.0, %v6047
  %v6049 = vpop.f32.mrf.mxu0
  %v6050 = vpop.f32.mrf.mxu0
  %v6051 = vadd.f32 0.0, %v6050
  %v6052 = vpop.f32.mrf.mxu0
  %6053 = vmatprep.mubr.bf16.mxu0 0
  %6054 = vmatmul.mubr.bf16.gmra.mxu0 %v5904
  %v6055 = vpop.f32.mrf.mxu0
  %v6056 = vadd.f32 0.0, %v6055
  %v6057 = vpop.f32.mrf.mxu0
  %v6058 = vpop.f32.mrf.mxu0
  %v6059 = vadd.f32 0.0, %v6058
  %v6060 = vpop.f32.mrf.mxu0
  %6061 = vdwg.mxu0
  %v6062 = vadd.f32 %v5633, %v5944
  %v6063 = vadd.f32 %v5636, %v5947
  %v6064 = vadd.f32 %v5641, %v5952
  %v6065 = vadd.f32 %v5644, %v5955
  %v6066 = vadd.f32 %v5649, %v5960
  %v6067 = vadd.f32 %v5652, %v5963
  %v6068 = vadd.f32 %v5657, %v5968
  %v6069 = vadd.f32 %v5660, %v5971
  %v6070 = vadd.f32 %v5665, %v5976
  %v6071 = vadd.f32 %v5668, %v5979
  %v6072 = vadd.f32 %v5673, %v5984
  %v6073 = vadd.f32 %v5676, %v5987
  %v6074 = vadd.f32 %v5681, %v5992
  %v6075 = vadd.f32 %v5684, %v5995
  %v6076 = vadd.f32 %v5689, %v6000
  %v6077 = vadd.f32 %v5692, %v6003
  %v6078 = vadd.f32 %v5697, %v6008
  %v6079 = vadd.f32 %v5700, %v6011
  %v6080 = vadd.f32 %v5705, %v6016
  %v6081 = vadd.f32 %v5708, %v6019
  %v6082 = vadd.f32 %v5713, %v6024
  %v6083 = vadd.f32 %v5716, %v6027
  %v6084 = vadd.f32 %v5721, %v6032
  %v6085 = vadd.f32 %v5724, %v6035
  %v6086 = vadd.f32 %v5729, %v6040
  %v6087 = vadd.f32 %v5732, %v6043
  %v6088 = vadd.f32 %v5737, %v6048
  %v6089 = vadd.f32 %v5740, %v6051
  %v6090 = vadd.f32 %v5745, %v6056
  %v6091 = vadd.f32 %v5748, %v6059
  %v6092 = vld [vmem:[%s1015] sm:$0xf]
  %v6093 = vld [vmem:[%s1015 + $0x4] sm:$0xf]
  %v6094 = vld [vmem:[%s1015 + $0x8] sm:$0xf]
  %v6095 = vld [vmem:[%s1015 + $0xc] sm:$0xf]
  %v6096 = vld [vmem:[%s1015 + $0x10] sm:$0xf]
  %v6097 = vld [vmem:[%s1015 + $0x14] sm:$0xf]
  %v6098 = vld [vmem:[%s1015 + $0x18] sm:$0xf]
  %v6099 = vld [vmem:[%s1015 + $0x1c] sm:$0xf]
  %v6100 = vld [vmem:[%s1015 + $0x20] sm:$0xf]
  %v6101 = vld [vmem:[%s1015 + $0x24] sm:$0xf]
  %v6102 = vld [vmem:[%s1015 + $0x28] sm:$0xf]
  %v6103 = vld [vmem:[%s1015 + $0x2c] sm:$0xf]
  %v6104 = vld [vmem:[%s1015 + $0x30] sm:$0xf]
  %v6105 = vld [vmem:[%s1015 + $0x34] sm:$0xf]
  %v6106 = vld [vmem:[%s1015 + $0x38] sm:$0xf]
  %v6107 = vld [vmem:[%s1015 + $0x3c] sm:$0xf]
  %v6108 = vld [vmem:[%s1015 + $0x40] sm:$0xf]
  %v6109 = vld [vmem:[%s1015 + $0x44] sm:$0xf]
  %v6110 = vld [vmem:[%s1015 + $0x48] sm:$0xf]
  %v6111 = vld [vmem:[%s1015 + $0x4c] sm:$0xf]
  %v6112 = vld [vmem:[%s1015 + $0x50] sm:$0xf]
  %v6113 = vld [vmem:[%s1015 + $0x54] sm:$0xf]
  %v6114 = vld [vmem:[%s1015 + $0x58] sm:$0xf]
  %v6115 = vld [vmem:[%s1015 + $0x5c] sm:$0xf]
  %v6116 = vld [vmem:[%s1015 + $0x60] sm:$0xf]
  %v6117 = vld [vmem:[%s1015 + $0x64] sm:$0xf]
  %v6118 = vld [vmem:[%s1015 + $0x68] sm:$0xf]
  %v6119 = vld [vmem:[%s1015 + $0x6c] sm:$0xf]
  %v6120 = vld [vmem:[%s1015 + $0x70] sm:$0xf]
  %v6121 = vld [vmem:[%s1015 + $0x74] sm:$0xf]
  %v6152 = vunpack.c.l.b16 %v6092
  %v6153 = vunpack.c.l.b16 %v6093
  %v6154 = vunpack.c.l.b16 %v6094
  %v6155 = vunpack.c.l.b16 %v6095
  %v6156 = vunpack.c.l.b16 %v6096
  %v6157 = vunpack.c.l.b16 %v6097
  %v6158 = vunpack.c.l.b16 %v6098
  %v6159 = vunpack.c.l.b16 %v6099
  %v6160 = vunpack.c.l.b16 %v6100
  %v6161 = vunpack.c.l.b16 %v6101
  %v6162 = vunpack.c.l.b16 %v6102
  %v6163 = vunpack.c.l.b16 %v6103
  %v6164 = vunpack.c.l.b16 %v6104
  %v6165 = vunpack.c.l.b16 %v6105
  %v6166 = vunpack.c.l.b16 %v6106
  %v6167 = vunpack.c.l.b16 %v6107
  %v6168 = vunpack.c.l.b16 %v6108
  %v6169 = vunpack.c.l.b16 %v6109
  %v6170 = vunpack.c.l.b16 %v6110
  %v6171 = vunpack.c.l.b16 %v6111
  %v6172 = vunpack.c.l.b16 %v6112
  %v6173 = vunpack.c.l.b16 %v6113
  %v6174 = vunpack.c.l.b16 %v6114
  %v6175 = vunpack.c.l.b16 %v6115
  %v6176 = vunpack.c.l.b16 %v6116
  %v6177 = vunpack.c.l.b16 %v6117
  %v6178 = vunpack.c.l.b16 %v6118
  %v6179 = vunpack.c.l.b16 %v6119
  %v6180 = vunpack.c.l.b16 %v6120
  %v6181 = vunpack.c.l.b16 %v6121
  %v6182 = vpack.c.b16 %v6153, %v6152
  %v6183 = vpack.c.b16 %v6155, %v6154
  %v6184 = vpack.c.b16 %v6157, %v6156
  %v6185 = vpack.c.b16 %v6159, %v6158
  %v6186 = vpack.c.b16 %v6161, %v6160
  %v6187 = vpack.c.b16 %v6163, %v6162
  %v6188 = vpack.c.b16 %v6165, %v6164
  %v6189 = vpack.c.b16 %v6167, %v6166
  %v6190 = vpack.c.b16 %v6169, %v6168
  %v6191 = vpack.c.b16 %v6171, %v6170
  %v6192 = vpack.c.b16 %v6173, %v6172
  %v6193 = vpack.c.b16 %v6175, %v6174
  %v6194 = vpack.c.b16 %v6177, %v6176
  %v6195 = vpack.c.b16 %v6179, %v6178
  %v6196 = vpack.c.b16 %v6181, %v6180
  %6197 = vrot.lane.b32.xlu0 %v5160, 125
  %v6198 = vpop.permute.xlu0 %6197
  %6199 = vrot.lane.b32.xlu0 %v5161, 125
  %v6200 = vpop.permute.xlu0 %6199
  %v6203 = vsel %vm194, %v6182, 0
  %v6206 = vsel %vm194, %v6183, 0
  %v6209 = vsel %vm194, %v6184, 0
  %v6212 = vsel %vm194, %v6185, 0
  %v6215 = vsel %vm194, %v6186, 0
  %v6218 = vsel %vm194, %v6187, 0
  %v6221 = vsel %vm194, %v6188, 0
  %v6224 = vsel %vm194, %v6189, 0
  %v6227 = vsel %vm194, %v6190, 0
  %v6230 = vsel %vm194, %v6191, 0
  %v6233 = vsel %vm194, %v6192, 0
  %v6236 = vsel %vm194, %v6193, 0
  %v6239 = vsel %vm194, %v6194, 0
  %v6242 = vsel %vm194, %v6195, 0
  %v6245 = vsel %vm194, %v6196, 0
  %v6248 = vsel %vm240, %v6200, 0
  %6250 = vmatprep.subr.bf16.mxu0 0
  %6251 = vmatpush1.bf16.msra.mxu0 0
  %6252 = vmatprep.subr.bf16.mxu0 0
  %6253 = vmatpush1.bf16.msra.mxu0 0
  %6254 = vmatprep.subr.bf16.mxu0 0
  %6255 = vmatpush1.bf16.msra.mxu0 0
  %6256 = vmatprep.subr.bf16.mxu0 0
  %6257 = vmatpush1.bf16.msra.mxu0 0
  %6258 = vmatprep.subr.bf16.mxu0 0
  %6259 = vmatpush1.bf16.msra.mxu0 0
  %6260 = vmatprep.subr.bf16.mxu0 0
  %6261 = vmatpush1.bf16.msra.mxu0 0
  %6262 = vmatprep.subr.bf16.mxu0 0
  %6263 = vmatpush1.bf16.msra.mxu0 %v6248
  %6264 = vmatprep.subr.bf16.mxu0 0
  %6265 = vmatpush1.bf16.msra.mxu0 %v6198
  %6266 = vmatprep.subr.bf16.mxu0 0
  %6267 = vmatpush2.bf16.msra.mxu0 0
  %6268 = vmatprep.subr.bf16.mxu0 0
  %6269 = vmatpush2.bf16.msra.mxu0 0
  %6270 = vmatprep.subr.bf16.mxu0 0
  %6271 = vmatpush2.bf16.msra.mxu0 0
  %6272 = vmatprep.subr.bf16.mxu0 0
  %6273 = vmatpush2.bf16.msra.mxu0 0
  %6274 = vmatprep.subr.bf16.mxu0 0
  %6275 = vmatpush2.bf16.msra.mxu0 0
  %6276 = vmatprep.subr.bf16.mxu0 0
  %6277 = vmatpush2.bf16.msra.mxu0 0
  %6278 = vmatprep.subr.bf16.mxu0 0
  %6279 = vmatpush2.bf16.msra.mxu0 0
  %6280 = vmatprep.subr.bf16.mxu0 0
  %6281 = vmatpush2.bf16.msra.mxu0 0
  %6282 = vmatprep.mubr.bf16.mxu0 0
  %6283 = vmatmul.mubr.bf16.gmra.mxu0 %v6203
  %v6284 = vpop.f32.mrf.mxu0
  %v6285 = vadd.f32 0.0, %v6284
  %v6286 = vpop.f32.mrf.mxu0
  %v6287 = vpop.f32.mrf.mxu0
  %v6288 = vadd.f32 0.0, %v6287
  %v6289 = vpop.f32.mrf.mxu0
  %6290 = vmatprep.mubr.bf16.mxu0 0
  %6291 = vmatmul.mubr.bf16.gmra.mxu0 %v6206
  %v6292 = vpop.f32.mrf.mxu0
  %v6293 = vadd.f32 0.0, %v6292
  %v6294 = vpop.f32.mrf.mxu0
  %v6295 = vpop.f32.mrf.mxu0
  %v6296 = vadd.f32 0.0, %v6295
  %v6297 = vpop.f32.mrf.mxu0
  %6298 = vmatprep.mubr.bf16.mxu0 0
  %6299 = vmatmul.mubr.bf16.gmra.mxu0 %v6209
  %v6300 = vpop.f32.mrf.mxu0
  %v6301 = vadd.f32 0.0, %v6300
  %v6302 = vpop.f32.mrf.mxu0
  %v6303 = vpop.f32.mrf.mxu0
  %v6304 = vadd.f32 0.0, %v6303
  %v6305 = vpop.f32.mrf.mxu0
  %6306 = vmatprep.mubr.bf16.mxu0 0
  %6307 = vmatmul.mubr.bf16.gmra.mxu0 %v6212
  %v6308 = vpop.f32.mrf.mxu0
  %v6309 = vadd.f32 0.0, %v6308
  %v6310 = vpop.f32.mrf.mxu0
  %v6311 = vpop.f32.mrf.mxu0
  %v6312 = vadd.f32 0.0, %v6311
  %v6313 = vpop.f32.mrf.mxu0
  %6314 = vmatprep.mubr.bf16.mxu0 0
  %6315 = vmatmul.mubr.bf16.gmra.mxu0 %v6215
  %v6316 = vpop.f32.mrf.mxu0
  %v6317 = vadd.f32 0.0, %v6316
  %v6318 = vpop.f32.mrf.mxu0
  %v6319 = vpop.f32.mrf.mxu0
  %v6320 = vadd.f32 0.0, %v6319
  %v6321 = vpop.f32.mrf.mxu0
  %6322 = vmatprep.mubr.bf16.mxu0 0
  %6323 = vmatmul.mubr.bf16.gmra.mxu0 %v6218
  %v6324 = vpop.f32.mrf.mxu0
  %v6325 = vadd.f32 0.0, %v6324
  %v6326 = vpop.f32.mrf.mxu0
  %v6327 = vpop.f32.mrf.mxu0
  %v6328 = vadd.f32 0.0, %v6327
  %v6329 = vpop.f32.mrf.mxu0
  %6330 = vmatprep.mubr.bf16.mxu0 0
  %6331 = vmatmul.mubr.bf16.gmra.mxu0 %v6221
  %v6332 = vpop.f32.mrf.mxu0
  %v6333 = vadd.f32 0.0, %v6332
  %v6334 = vpop.f32.mrf.mxu0
  %v6335 = vpop.f32.mrf.mxu0
  %v6336 = vadd.f32 0.0, %v6335
  %v6337 = vpop.f32.mrf.mxu0
  %6338 = vmatprep.mubr.bf16.mxu0 0
  %6339 = vmatmul.mubr.bf16.gmra.mxu0 %v6224
  %v6340 = vpop.f32.mrf.mxu0
  %v6341 = vadd.f32 0.0, %v6340
  %v6342 = vpop.f32.mrf.mxu0
  %v6343 = vpop.f32.mrf.mxu0
  %v6344 = vadd.f32 0.0, %v6343
  %v6345 = vpop.f32.mrf.mxu0
  %6346 = vmatprep.mubr.bf16.mxu0 0
  %6347 = vmatmul.mubr.bf16.gmra.mxu0 %v6227
  %v6348 = vpop.f32.mrf.mxu0
  %v6349 = vadd.f32 0.0, %v6348
  %v6350 = vpop.f32.mrf.mxu0
  %v6351 = vpop.f32.mrf.mxu0
  %v6352 = vadd.f32 0.0, %v6351
  %v6353 = vpop.f32.mrf.mxu0
  %6354 = vmatprep.mubr.bf16.mxu0 0
  %6355 = vmatmul.mubr.bf16.gmra.mxu0 %v6230
  %v6356 = vpop.f32.mrf.mxu0
  %v6357 = vadd.f32 0.0, %v6356
  %v6358 = vpop.f32.mrf.mxu0
  %v6359 = vpop.f32.mrf.mxu0
  %v6360 = vadd.f32 0.0, %v6359
  %v6361 = vpop.f32.mrf.mxu0
  %6362 = vmatprep.mubr.bf16.mxu0 0
  %6363 = vmatmul.mubr.bf16.gmra.mxu0 %v6233
  %v6364 = vpop.f32.mrf.mxu0
  %v6365 = vadd.f32 0.0, %v6364
  %v6366 = vpop.f32.mrf.mxu0
  %v6367 = vpop.f32.mrf.mxu0
  %v6368 = vadd.f32 0.0, %v6367
  %v6369 = vpop.f32.mrf.mxu0
  %6370 = vmatprep.mubr.bf16.mxu0 0
  %6371 = vmatmul.mubr.bf16.gmra.mxu0 %v6236
  %v6372 = vpop.f32.mrf.mxu0
  %v6373 = vadd.f32 0.0, %v6372
  %v6374 = vpop.f32.mrf.mxu0
  %v6375 = vpop.f32.mrf.mxu0
  %v6376 = vadd.f32 0.0, %v6375
  %v6377 = vpop.f32.mrf.mxu0
  %6378 = vmatprep.mubr.bf16.mxu0 0
  %6379 = vmatmul.mubr.bf16.gmra.mxu0 %v6239
  %v6380 = vpop.f32.mrf.mxu0
  %v6381 = vadd.f32 0.0, %v6380
  %v6382 = vpop.f32.mrf.mxu0
  %v6383 = vpop.f32.mrf.mxu0
  %v6384 = vadd.f32 0.0, %v6383
  %v6385 = vpop.f32.mrf.mxu0
  %6386 = vmatprep.mubr.bf16.mxu0 0
  %6387 = vmatmul.mubr.bf16.gmra.mxu0 %v6242
  %v6388 = vpop.f32.mrf.mxu0
  %v6389 = vadd.f32 0.0, %v6388
  %v6390 = vpop.f32.mrf.mxu0
  %v6391 = vpop.f32.mrf.mxu0
  %v6392 = vadd.f32 0.0, %v6391
  %v6393 = vpop.f32.mrf.mxu0
  %6394 = vmatprep.mubr.bf16.mxu0 0
  %6395 = vmatmul.mubr.bf16.gmra.mxu0 %v6245
  %v6396 = vpop.f32.mrf.mxu0
  %v6397 = vadd.f32 0.0, %v6396
  %v6398 = vpop.f32.mrf.mxu0
  %v6399 = vpop.f32.mrf.mxu0
  %v6400 = vadd.f32 0.0, %v6399
  %v6401 = vpop.f32.mrf.mxu0
  %6402 = vdwg.mxu0
  %v6403 = vadd.f32 %v6062, %v6285
  %v6404 = vadd.f32 %v6063, %v6288
  %v6405 = vadd.f32 %v6064, %v6293
  %v6406 = vadd.f32 %v6065, %v6296
  %v6407 = vadd.f32 %v6066, %v6301
  %v6408 = vadd.f32 %v6067, %v6304
  %v6409 = vadd.f32 %v6068, %v6309
  %v6410 = vadd.f32 %v6069, %v6312
  %v6411 = vadd.f32 %v6070, %v6317
  %v6412 = vadd.f32 %v6071, %v6320
  %v6413 = vadd.f32 %v6072, %v6325
  %v6414 = vadd.f32 %v6073, %v6328
  %v6415 = vadd.f32 %v6074, %v6333
  %v6416 = vadd.f32 %v6075, %v6336
  %v6417 = vadd.f32 %v6076, %v6341
  %v6418 = vadd.f32 %v6077, %v6344
  %v6419 = vadd.f32 %v6078, %v6349
  %v6420 = vadd.f32 %v6079, %v6352
  %v6421 = vadd.f32 %v6080, %v6357
  %v6422 = vadd.f32 %v6081, %v6360
  %v6423 = vadd.f32 %v6082, %v6365
  %v6424 = vadd.f32 %v6083, %v6368
  %v6425 = vadd.f32 %v6084, %v6373
  %v6426 = vadd.f32 %v6085, %v6376
  %v6427 = vadd.f32 %v6086, %v6381
  %v6428 = vadd.f32 %v6087, %v6384
  %v6429 = vadd.f32 %v6088, %v6389
  %v6430 = vadd.f32 %v6089, %v6392
  %v6431 = vadd.f32 %v6090, %v6397
  %v6432 = vadd.f32 %v6091, %v6400
  %v6433 = vld [vmem:[%s1357] sm:$0xf]
  %v6434 = vld [vmem:[%s1357 + $0x4] sm:$0xf]
  %v6435 = vld [vmem:[%s1357 + $0x8] sm:$0xf]
  %v6436 = vld [vmem:[%s1357 + $0xc] sm:$0xf]
  %v6437 = vld [vmem:[%s1357 + $0x10] sm:$0xf]
  %v6438 = vld [vmem:[%s1357 + $0x14] sm:$0xf]
  %v6439 = vld [vmem:[%s1357 + $0x18] sm:$0xf]
  %v6440 = vld [vmem:[%s1357 + $0x1c] sm:$0xf]
  %v6441 = vld [vmem:[%s1357 + $0x20] sm:$0xf]
  %v6442 = vld [vmem:[%s1357 + $0x24] sm:$0xf]
  %v6443 = vld [vmem:[%s1357 + $0x28] sm:$0xf]
  %v6444 = vld [vmem:[%s1357 + $0x2c] sm:$0xf]
  %v6445 = vld [vmem:[%s1357 + $0x30] sm:$0xf]
  %v6446 = vld [vmem:[%s1357 + $0x34] sm:$0xf]
  %v6447 = vld [vmem:[%s1357 + $0x38] sm:$0xf]
  %v6448 = vld [vmem:[%s1357 + $0x3c] sm:$0xf]
  %v6449 = vld [vmem:[%s1357 + $0x40] sm:$0xf]
  %v6450 = vld [vmem:[%s1357 + $0x44] sm:$0xf]
  %v6451 = vld [vmem:[%s1357 + $0x48] sm:$0xf]
  %v6452 = vld [vmem:[%s1357 + $0x4c] sm:$0xf]
  %v6453 = vld [vmem:[%s1357 + $0x50] sm:$0xf]
  %v6454 = vld [vmem:[%s1357 + $0x54] sm:$0xf]
  %v6455 = vld [vmem:[%s1357 + $0x58] sm:$0xf]
  %v6456 = vld [vmem:[%s1357 + $0x5c] sm:$0xf]
  %v6457 = vld [vmem:[%s1357 + $0x60] sm:$0xf]
  %v6458 = vld [vmem:[%s1357 + $0x64] sm:$0xf]
  %v6459 = vld [vmem:[%s1357 + $0x68] sm:$0xf]
  %v6460 = vld [vmem:[%s1357 + $0x6c] sm:$0xf]
  %v6461 = vld [vmem:[%s1357 + $0x70] sm:$0xf]
  %v6462 = vld [vmem:[%s1357 + $0x74] sm:$0xf]
  %v6493 = vunpack.c.l.b16 %v6433
  %v6494 = vunpack.c.l.b16 %v6434
  %v6495 = vunpack.c.l.b16 %v6435
  %v6496 = vunpack.c.l.b16 %v6436
  %v6497 = vunpack.c.l.b16 %v6437
  %v6498 = vunpack.c.l.b16 %v6438
  %v6499 = vunpack.c.l.b16 %v6439
  %v6500 = vunpack.c.l.b16 %v6440
  %v6501 = vunpack.c.l.b16 %v6441
  %v6502 = vunpack.c.l.b16 %v6442
  %v6503 = vunpack.c.l.b16 %v6443
  %v6504 = vunpack.c.l.b16 %v6444
  %v6505 = vunpack.c.l.b16 %v6445
  %v6506 = vunpack.c.l.b16 %v6446
  %v6507 = vunpack.c.l.b16 %v6447
  %v6508 = vunpack.c.l.b16 %v6448
  %v6509 = vunpack.c.l.b16 %v6449
  %v6510 = vunpack.c.l.b16 %v6450
  %v6511 = vunpack.c.l.b16 %v6451
  %v6512 = vunpack.c.l.b16 %v6452
  %v6513 = vunpack.c.l.b16 %v6453
  %v6514 = vunpack.c.l.b16 %v6454
  %v6515 = vunpack.c.l.b16 %v6455
  %v6516 = vunpack.c.l.b16 %v6456
  %v6517 = vunpack.c.l.b16 %v6457
  %v6518 = vunpack.c.l.b16 %v6458
  %v6519 = vunpack.c.l.b16 %v6459
  %v6520 = vunpack.c.l.b16 %v6460
  %v6521 = vunpack.c.l.b16 %v6461
  %v6522 = vunpack.c.l.b16 %v6462
  %v6523 = vpack.c.b16 %v6494, %v6493
  %v6524 = vpack.c.b16 %v6496, %v6495
  %v6525 = vpack.c.b16 %v6498, %v6497
  %v6526 = vpack.c.b16 %v6500, %v6499
  %v6527 = vpack.c.b16 %v6502, %v6501
  %v6528 = vpack.c.b16 %v6504, %v6503
  %v6529 = vpack.c.b16 %v6506, %v6505
  %v6530 = vpack.c.b16 %v6508, %v6507
  %v6531 = vpack.c.b16 %v6510, %v6509
  %v6532 = vpack.c.b16 %v6512, %v6511
  %v6533 = vpack.c.b16 %v6514, %v6513
  %v6534 = vpack.c.b16 %v6516, %v6515
  %v6535 = vpack.c.b16 %v6518, %v6517
  %v6536 = vpack.c.b16 %v6520, %v6519
  %v6537 = vpack.c.b16 %v6522, %v6521
  %6538 = vrot.lane.b32.xlu0 %v5160, 124
  %v6539 = vpop.permute.xlu0 %6538
  %6540 = vrot.lane.b32.xlu0 %v5161, 124
  %v6541 = vpop.permute.xlu0 %6540
  %v6544 = vsel %vm194, %v6523, 0
  %v6547 = vsel %vm194, %v6524, 0
  %v6550 = vsel %vm194, %v6525, 0
  %v6553 = vsel %vm194, %v6526, 0
  %v6556 = vsel %vm194, %v6527, 0
  %v6559 = vsel %vm194, %v6528, 0
  %v6562 = vsel %vm194, %v6529, 0
  %v6565 = vsel %vm194, %v6530, 0
  %v6568 = vsel %vm194, %v6531, 0
  %v6571 = vsel %vm194, %v6532, 0
  %v6574 = vsel %vm194, %v6533, 0
  %v6577 = vsel %vm194, %v6534, 0
  %v6580 = vsel %vm194, %v6535, 0
  %v6583 = vsel %vm194, %v6536, 0
  %v6586 = vsel %vm194, %v6537, 0
  %v6589 = vsel %vm240, %v6541, 0
  %6591 = vmatprep.subr.bf16.mxu0 0
  %6592 = vmatpush1.bf16.msra.mxu0 0
  %6593 = vmatprep.subr.bf16.mxu0 0
  %6594 = vmatpush1.bf16.msra.mxu0 0
  %6595 = vmatprep.subr.bf16.mxu0 0
  %6596 = vmatpush1.bf16.msra.mxu0 0
  %6597 = vmatprep.subr.bf16.mxu0 0
  %6598 = vmatpush1.bf16.msra.mxu0 0
  %6599 = vmatprep.subr.bf16.mxu0 0
  %6600 = vmatpush1.bf16.msra.mxu0 0
  %6601 = vmatprep.subr.bf16.mxu0 0
  %6602 = vmatpush1.bf16.msra.mxu0 0
  %6603 = vmatprep.subr.bf16.mxu0 0
  %6604 = vmatpush1.bf16.msra.mxu0 %v6589
  %6605 = vmatprep.subr.bf16.mxu0 0
  %6606 = vmatpush1.bf16.msra.mxu0 %v6539
  %6607 = vmatprep.subr.bf16.mxu0 0
  %6608 = vmatpush2.bf16.msra.mxu0 0
  %6609 = vmatprep.subr.bf16.mxu0 0
  %6610 = vmatpush2.bf16.msra.mxu0 0
  %6611 = vmatprep.subr.bf16.mxu0 0
  %6612 = vmatpush2.bf16.msra.mxu0 0
  %6613 = vmatprep.subr.bf16.mxu0 0
  %6614 = vmatpush2.bf16.msra.mxu0 0
  %6615 = vmatprep.subr.bf16.mxu0 0
  %6616 = vmatpush2.bf16.msra.mxu0 0
  %6617 = vmatprep.subr.bf16.mxu0 0
  %6618 = vmatpush2.bf16.msra.mxu0 0
  %6619 = vmatprep.subr.bf16.mxu0 0
  %6620 = vmatpush2.bf16.msra.mxu0 0
  %6621 = vmatprep.subr.bf16.mxu0 0
  %6622 = vmatpush2.bf16.msra.mxu0 0
  %6623 = vmatprep.mubr.bf16.mxu0 0
  %6624 = vmatmul.mubr.bf16.gmra.mxu0 %v6544
  %v6625 = vpop.f32.mrf.mxu0
  %v6626 = vadd.f32 0.0, %v6625
  %v6627 = vpop.f32.mrf.mxu0
  %v6628 = vpop.f32.mrf.mxu0
  %v6629 = vadd.f32 0.0, %v6628
  %v6630 = vpop.f32.mrf.mxu0
  %6631 = vmatprep.mubr.bf16.mxu0 0
  %6632 = vmatmul.mubr.bf16.gmra.mxu0 %v6547
  %v6633 = vpop.f32.mrf.mxu0
  %v6634 = vadd.f32 0.0, %v6633
  %v6635 = vpop.f32.mrf.mxu0
  %v6636 = vpop.f32.mrf.mxu0
  %v6637 = vadd.f32 0.0, %v6636
  %v6638 = vpop.f32.mrf.mxu0
  %6639 = vmatprep.mubr.bf16.mxu0 0
  %6640 = vmatmul.mubr.bf16.gmra.mxu0 %v6550
  %v6641 = vpop.f32.mrf.mxu0
  %v6642 = vadd.f32 0.0, %v6641
  %v6643 = vpop.f32.mrf.mxu0
  %v6644 = vpop.f32.mrf.mxu0
  %v6645 = vadd.f32 0.0, %v6644
  %v6646 = vpop.f32.mrf.mxu0
  %6647 = vmatprep.mubr.bf16.mxu0 0
  %6648 = vmatmul.mubr.bf16.gmra.mxu0 %v6553
  %v6649 = vpop.f32.mrf.mxu0
  %v6650 = vadd.f32 0.0, %v6649
  %v6651 = vpop.f32.mrf.mxu0
  %v6652 = vpop.f32.mrf.mxu0
  %v6653 = vadd.f32 0.0, %v6652
  %v6654 = vpop.f32.mrf.mxu0
  %6655 = vmatprep.mubr.bf16.mxu0 0
  %6656 = vmatmul.mubr.bf16.gmra.mxu0 %v6556
  %v6657 = vpop.f32.mrf.mxu0
  %v6658 = vadd.f32 0.0, %v6657
  %v6659 = vpop.f32.mrf.mxu0
  %v6660 = vpop.f32.mrf.mxu0
  %v6661 = vadd.f32 0.0, %v6660
  %v6662 = vpop.f32.mrf.mxu0
  %6663 = vmatprep.mubr.bf16.mxu0 0
  %6664 = vmatmul.mubr.bf16.gmra.mxu0 %v6559
  %v6665 = vpop.f32.mrf.mxu0
  %v6666 = vadd.f32 0.0, %v6665
  %v6667 = vpop.f32.mrf.mxu0
  %v6668 = vpop.f32.mrf.mxu0
  %v6669 = vadd.f32 0.0, %v6668
  %v6670 = vpop.f32.mrf.mxu0
  %6671 = vmatprep.mubr.bf16.mxu0 0
  %6672 = vmatmul.mubr.bf16.gmra.mxu0 %v6562
  %v6673 = vpop.f32.mrf.mxu0
  %v6674 = vadd.f32 0.0, %v6673
  %v6675 = vpop.f32.mrf.mxu0
  %v6676 = vpop.f32.mrf.mxu0
  %v6677 = vadd.f32 0.0, %v6676
  %v6678 = vpop.f32.mrf.mxu0
  %6679 = vmatprep.mubr.bf16.mxu0 0
  %6680 = vmatmul.mubr.bf16.gmra.mxu0 %v6565
  %v6681 = vpop.f32.mrf.mxu0
  %v6682 = vadd.f32 0.0, %v6681
  %v6683 = vpop.f32.mrf.mxu0
  %v6684 = vpop.f32.mrf.mxu0
  %v6685 = vadd.f32 0.0, %v6684
  %v6686 = vpop.f32.mrf.mxu0
  %6687 = vmatprep.mubr.bf16.mxu0 0
  %6688 = vmatmul.mubr.bf16.gmra.mxu0 %v6568
  %v6689 = vpop.f32.mrf.mxu0
  %v6690 = vadd.f32 0.0, %v6689
  %v6691 = vpop.f32.mrf.mxu0
  %v6692 = vpop.f32.mrf.mxu0
  %v6693 = vadd.f32 0.0, %v6692
  %v6694 = vpop.f32.mrf.mxu0
  %6695 = vmatprep.mubr.bf16.mxu0 0
  %6696 = vmatmul.mubr.bf16.gmra.mxu0 %v6571
  %v6697 = vpop.f32.mrf.mxu0
  %v6698 = vadd.f32 0.0, %v6697
  %v6699 = vpop.f32.mrf.mxu0
  %v6700 = vpop.f32.mrf.mxu0
  %v6701 = vadd.f32 0.0, %v6700
  %v6702 = vpop.f32.mrf.mxu0
  %6703 = vmatprep.mubr.bf16.mxu0 0
  %6704 = vmatmul.mubr.bf16.gmra.mxu0 %v6574
  %v6705 = vpop.f32.mrf.mxu0
  %v6706 = vadd.f32 0.0, %v6705
  %v6707 = vpop.f32.mrf.mxu0
  %v6708 = vpop.f32.mrf.mxu0
  %v6709 = vadd.f32 0.0, %v6708
  %v6710 = vpop.f32.mrf.mxu0
  %6711 = vmatprep.mubr.bf16.mxu0 0
  %6712 = vmatmul.mubr.bf16.gmra.mxu0 %v6577
  %v6713 = vpop.f32.mrf.mxu0
  %v6714 = vadd.f32 0.0, %v6713
  %v6715 = vpop.f32.mrf.mxu0
  %v6716 = vpop.f32.mrf.mxu0
  %v6717 = vadd.f32 0.0, %v6716
  %v6718 = vpop.f32.mrf.mxu0
  %6719 = vmatprep.mubr.bf16.mxu0 0
  %6720 = vmatmul.mubr.bf16.gmra.mxu0 %v6580
  %v6721 = vpop.f32.mrf.mxu0
  %v6722 = vadd.f32 0.0, %v6721
  %v6723 = vpop.f32.mrf.mxu0
  %v6724 = vpop.f32.mrf.mxu0
  %v6725 = vadd.f32 0.0, %v6724
  %v6726 = vpop.f32.mrf.mxu0
  %6727 = vmatprep.mubr.bf16.mxu0 0
  %6728 = vmatmul.mubr.bf16.gmra.mxu0 %v6583
  %v6729 = vpop.f32.mrf.mxu0
  %v6730 = vadd.f32 0.0, %v6729
  %v6731 = vpop.f32.mrf.mxu0
  %v6732 = vpop.f32.mrf.mxu0
  %v6733 = vadd.f32 0.0, %v6732
  %v6734 = vpop.f32.mrf.mxu0
  %6735 = vmatprep.mubr.bf16.mxu0 0
  %6736 = vmatmul.mubr.bf16.gmra.mxu0 %v6586
  %v6737 = vpop.f32.mrf.mxu0
  %v6738 = vadd.f32 0.0, %v6737
  %v6739 = vpop.f32.mrf.mxu0
  %v6740 = vpop.f32.mrf.mxu0
  %v6741 = vadd.f32 0.0, %v6740
  %v6742 = vpop.f32.mrf.mxu0
  %6743 = vdwg.mxu0
  %v6744 = vadd.f32 %v6403, %v6626
  %v6745 = vadd.f32 %v6404, %v6629
  %v6746 = vadd.f32 %v6405, %v6634
  %v6747 = vadd.f32 %v6406, %v6637
  %v6748 = vadd.f32 %v6407, %v6642
  %v6749 = vadd.f32 %v6408, %v6645
  %v6750 = vadd.f32 %v6409, %v6650
  %v6751 = vadd.f32 %v6410, %v6653
  %v6752 = vadd.f32 %v6411, %v6658
  %v6753 = vadd.f32 %v6412, %v6661
  %v6754 = vadd.f32 %v6413, %v6666
  %v6755 = vadd.f32 %v6414, %v6669
  %v6756 = vadd.f32 %v6415, %v6674
  %v6757 = vadd.f32 %v6416, %v6677
  %v6758 = vadd.f32 %v6417, %v6682
  %v6759 = vadd.f32 %v6418, %v6685
  %v6760 = vadd.f32 %v6419, %v6690
  %v6761 = vadd.f32 %v6420, %v6693
  %v6762 = vadd.f32 %v6421, %v6698
  %v6763 = vadd.f32 %v6422, %v6701
  %v6764 = vadd.f32 %v6423, %v6706
  %v6765 = vadd.f32 %v6424, %v6709
  %v6766 = vadd.f32 %v6425, %v6714
  %v6767 = vadd.f32 %v6426, %v6717
  %v6768 = vadd.f32 %v6427, %v6722
  %v6769 = vadd.f32 %v6428, %v6725
  %v6770 = vadd.f32 %v6429, %v6730
  %v6771 = vadd.f32 %v6430, %v6733
  %v6772 = vadd.f32 %v6431, %v6738
  %v6773 = vadd.f32 %v6432, %v6741
  %v6774 = vld [vmem:[%s2] sm:$0xff]
  %v6775 = vld [vmem:[%s2 + $0x8] sm:$0xff]
  %v6776 = vld [vmem:[%s2 + $0x10] sm:$0xff]
  %v6777 = vld [vmem:[%s2 + $0x18] sm:$0xff]
  %v6778 = vld [vmem:[%s2 + $0x20] sm:$0xff]
  %v6779 = vld [vmem:[%s2 + $0x28] sm:$0xff]
  %v6780 = vld [vmem:[%s2 + $0x30] sm:$0xff]
  %v6781 = vld [vmem:[%s2 + $0x38] sm:$0xff]
  %v6782 = vld [vmem:[%s2 + $0x40] sm:$0xff]
  %v6783 = vld [vmem:[%s2 + $0x48] sm:$0xff]
  %v6784 = vld [vmem:[%s2 + $0x50] sm:$0xff]
  %v6785 = vld [vmem:[%s2 + $0x58] sm:$0xff]
  %v6786 = vld [vmem:[%s2 + $0x60] sm:$0xff]
  %v6787 = vld [vmem:[%s2 + $0x68] sm:$0xff]
  %v6788 = vld [vmem:[%s2 + $0x70] sm:$0xff]
  %v6789 = vld [vmem:[%s2 + $0x78] sm:$0xff]
  %v6790 = vld [vmem:[%s2 + $0x80] sm:$0xff]
  %v6791 = vld [vmem:[%s2 + $0x88] sm:$0xff]
  %v6792 = vld [vmem:[%s2 + $0x90] sm:$0xff]
  %v6793 = vld [vmem:[%s2 + $0x98] sm:$0xff]
  %v6794 = vld [vmem:[%s2 + $0xa0] sm:$0xff]
  %v6795 = vld [vmem:[%s2 + $0xa8] sm:$0xff]
  %v6796 = vld [vmem:[%s2 + $0xb0] sm:$0xff]
  %v6797 = vld [vmem:[%s2 + $0xb8] sm:$0xff]
  %v6798 = vld [vmem:[%s2 + $0xc0] sm:$0xff]
  %v6799 = vld [vmem:[%s2 + $0xc8] sm:$0xff]
  %v6800 = vld [vmem:[%s2 + $0xd0] sm:$0xff]
  %v6801 = vld [vmem:[%s2 + $0xd8] sm:$0xff]
  %v6802 = vld [vmem:[%s2 + $0xe0] sm:$0xff]
  %v6803 = vld [vmem:[%s2 + $0xe8] sm:$0xff]
  %6805 = vset.pattern.permute.xlu0 0
  %6806 = vperm.xlu0 %6805, %v6774
  %v6807 = vpop.permute.xlu0 %6806
  %6810 = vset.pattern.permute.xlu0 0
  %6811 = vperm.xlu0 %6810, %v6775
  %v6812 = vpop.permute.xlu0 %6811
  %6815 = vset.pattern.permute.xlu0 0
  %6816 = vperm.xlu0 %6815, %v6776
  %v6817 = vpop.permute.xlu0 %6816
  %6820 = vset.pattern.permute.xlu0 0
  %6821 = vperm.xlu0 %6820, %v6777
  %v6822 = vpop.permute.xlu0 %6821
  %6825 = vset.pattern.permute.xlu0 0
  %6826 = vperm.xlu0 %6825, %v6778
  %v6827 = vpop.permute.xlu0 %6826
  %6830 = vset.pattern.permute.xlu0 0
  %6831 = vperm.xlu0 %6830, %v6779
  %v6832 = vpop.permute.xlu0 %6831
  %6835 = vset.pattern.permute.xlu0 0
  %6836 = vperm.xlu0 %6835, %v6780
  %v6837 = vpop.permute.xlu0 %6836
  %6840 = vset.pattern.permute.xlu0 0
  %6841 = vperm.xlu0 %6840, %v6781
  %v6842 = vpop.permute.xlu0 %6841
  %6845 = vset.pattern.permute.xlu0 0
  %6846 = vperm.xlu0 %6845, %v6782
  %v6847 = vpop.permute.xlu0 %6846
  %6850 = vset.pattern.permute.xlu0 0
  %6851 = vperm.xlu0 %6850, %v6783
  %v6852 = vpop.permute.xlu0 %6851
  %6855 = vset.pattern.permute.xlu0 0
  %6856 = vperm.xlu0 %6855, %v6784
  %v6857 = vpop.permute.xlu0 %6856
  %6860 = vset.pattern.permute.xlu0 0
  %6861 = vperm.xlu0 %6860, %v6785
  %v6862 = vpop.permute.xlu0 %6861
  %6865 = vset.pattern.permute.xlu0 0
  %6866 = vperm.xlu0 %6865, %v6786
  %v6867 = vpop.permute.xlu0 %6866
  %6870 = vset.pattern.permute.xlu0 0
  %6871 = vperm.xlu0 %6870, %v6787
  %v6872 = vpop.permute.xlu0 %6871
  %6875 = vset.pattern.permute.xlu0 0
  %6876 = vperm.xlu0 %6875, %v6788
  %v6877 = vpop.permute.xlu0 %6876
  %6880 = vset.pattern.permute.xlu0 0
  %6881 = vperm.xlu0 %6880, %v6789
  %v6882 = vpop.permute.xlu0 %6881
  %6885 = vset.pattern.permute.xlu0 0
  %6886 = vperm.xlu0 %6885, %v6790
  %v6887 = vpop.permute.xlu0 %6886
  %6890 = vset.pattern.permute.xlu0 0
  %6891 = vperm.xlu0 %6890, %v6791
  %v6892 = vpop.permute.xlu0 %6891
  %6895 = vset.pattern.permute.xlu0 0
  %6896 = vperm.xlu0 %6895, %v6792
  %v6897 = vpop.permute.xlu0 %6896
  %6900 = vset.pattern.permute.xlu0 0
  %6901 = vperm.xlu0 %6900, %v6793
  %v6902 = vpop.permute.xlu0 %6901
  %6905 = vset.pattern.permute.xlu0 0
  %6906 = vperm.xlu0 %6905, %v6794
  %v6907 = vpop.permute.xlu0 %6906
  %6910 = vset.pattern.permute.xlu0 0
  %6911 = vperm.xlu0 %6910, %v6795
  %v6912 = vpop.permute.xlu0 %6911
  %6915 = vset.pattern.permute.xlu0 0
  %6916 = vperm.xlu0 %6915, %v6796
  %v6917 = vpop.permute.xlu0 %6916
  %6920 = vset.pattern.permute.xlu0 0
  %6921 = vperm.xlu0 %6920, %v6797
  %v6922 = vpop.permute.xlu0 %6921
  %6925 = vset.pattern.permute.xlu0 0
  %6926 = vperm.xlu0 %6925, %v6798
  %v6927 = vpop.permute.xlu0 %6926
  %6930 = vset.pattern.permute.xlu0 0
  %6931 = vperm.xlu0 %6930, %v6799
  %v6932 = vpop.permute.xlu0 %6931
  %6935 = vset.pattern.permute.xlu0 0
  %6936 = vperm.xlu0 %6935, %v6800
  %v6937 = vpop.permute.xlu0 %6936
  %6940 = vset.pattern.permute.xlu0 0
  %6941 = vperm.xlu0 %6940, %v6801
  %v6942 = vpop.permute.xlu0 %6941
  %6945 = vset.pattern.permute.xlu0 0
  %6946 = vperm.xlu0 %6945, %v6802
  %v6947 = vpop.permute.xlu0 %6946
  %6950 = vset.pattern.permute.xlu0 0
  %6951 = vperm.xlu0 %6950, %v6803
  %v6952 = vpop.permute.xlu0 %6951
  %v6954 = vadd.f32 %v6744, %v6807
  %v6955 = vadd.f32 %v6745, %v6812
  %v6956 = vadd.f32 %v6746, %v6817
  %v6957 = vadd.f32 %v6747, %v6822
  %v6958 = vadd.f32 %v6748, %v6827
  %v6959 = vadd.f32 %v6749, %v6832
  %v6960 = vadd.f32 %v6750, %v6837
  %v6961 = vadd.f32 %v6751, %v6842
  %v6962 = vadd.f32 %v6752, %v6847
  %v6963 = vadd.f32 %v6753, %v6852
  %v6964 = vadd.f32 %v6754, %v6857
  %v6965 = vadd.f32 %v6755, %v6862
  %v6966 = vadd.f32 %v6756, %v6867
  %v6967 = vadd.f32 %v6757, %v6872
  %v6968 = vadd.f32 %v6758, %v6877
  %v6969 = vadd.f32 %v6759, %v6882
  %v6970 = vadd.f32 %v6760, %v6887
  %v6971 = vadd.f32 %v6761, %v6892
  %v6972 = vadd.f32 %v6762, %v6897
  %v6973 = vadd.f32 %v6763, %v6902
  %v6974 = vadd.f32 %v6764, %v6907
  %v6975 = vadd.f32 %v6765, %v6912
  %v6976 = vadd.f32 %v6766, %v6917
  %v6977 = vadd.f32 %v6767, %v6922
  %v6978 = vadd.f32 %v6768, %v6927
  %v6979 = vadd.f32 %v6769, %v6932
  %v6980 = vadd.f32 %v6770, %v6937
  %v6981 = vadd.f32 %v6771, %v6942
  %v6982 = vadd.f32 %v6772, %v6947
  %v6983 = vadd.f32 %v6773, %v6952
  %v6984 = vld [vmem:[%s3] sm:$0xff]
  %v6985 = vld [vmem:[%s3 + $0x8] sm:$0xff]
  %v6986 = vld [vmem:[%s3 + $0x10] sm:$0xff]
  %v6987 = vld [vmem:[%s3 + $0x18] sm:$0xff]
  %v6988 = vld [vmem:[%s3 + $0x20] sm:$0xff]
  %v6989 = vld [vmem:[%s3 + $0x28] sm:$0xff]
  %v6990 = vld [vmem:[%s3 + $0x30] sm:$0xff]
  %v6991 = vld [vmem:[%s3 + $0x38] sm:$0xff]
  %v6992 = vld [vmem:[%s3 + $0x40] sm:$0xff]
  %v6993 = vld [vmem:[%s3 + $0x48] sm:$0xff]
  %v6994 = vld [vmem:[%s3 + $0x50] sm:$0xff]
  %v6995 = vld [vmem:[%s3 + $0x58] sm:$0xff]
  %v6996 = vld [vmem:[%s3 + $0x60] sm:$0xff]
  %v6997 = vld [vmem:[%s3 + $0x68] sm:$0xff]
  %v6998 = vld [vmem:[%s3 + $0x70] sm:$0xff]
  %v6999 = vpack.c.bf16 %v6955, %v6954
  %v7000 = vpack.c.bf16 %v6957, %v6956
  %v7001 = vpack.c.bf16 %v6959, %v6958
  %v7002 = vpack.c.bf16 %v6961, %v6960
  %v7003 = vpack.c.bf16 %v6963, %v6962
  %v7004 = vpack.c.bf16 %v6965, %v6964
  %v7005 = vpack.c.bf16 %v6967, %v6966
  %v7006 = vpack.c.bf16 %v6969, %v6968
  %v7007 = vpack.c.bf16 %v6971, %v6970
  %v7008 = vpack.c.bf16 %v6973, %v6972
  %v7009 = vpack.c.bf16 %v6975, %v6974
  %v7010 = vpack.c.bf16 %v6977, %v6976
  %v7011 = vpack.c.bf16 %v6979, %v6978
  %v7012 = vpack.c.bf16 %v6981, %v6980
  %v7013 = vpack.c.bf16 %v6983, %v6982
  %v7029 = vunpack.c.l.b16 %v6984
  %v7030 = vunpack.c.h.b16 %v6984
  %v7031 = vunpack.c.l.b16 %v6985
  %v7032 = vunpack.c.h.b16 %v6985
  %v7033 = vunpack.c.l.b16 %v6986
  %v7034 = vunpack.c.h.b16 %v6986
  %v7035 = vunpack.c.l.b16 %v6987
  %v7036 = vunpack.c.h.b16 %v6987
  %v7037 = vunpack.c.l.b16 %v6988
  %v7038 = vunpack.c.h.b16 %v6988
  %v7039 = vunpack.c.l.b16 %v6989
  %v7040 = vunpack.c.h.b16 %v6989
  %v7041 = vunpack.c.l.b16 %v6990
  %v7042 = vunpack.c.h.b16 %v6990
  %v7043 = vunpack.c.l.b16 %v6991
  %v7044 = vunpack.c.h.b16 %v6991
  %v7045 = vunpack.c.l.b16 %v6992
  %v7046 = vunpack.c.h.b16 %v6992
  %v7047 = vunpack.c.l.b16 %v6993
  %v7048 = vunpack.c.h.b16 %v6993
  %v7049 = vunpack.c.l.b16 %v6994
  %v7050 = vunpack.c.h.b16 %v6994
  %v7051 = vunpack.c.l.b16 %v6995
  %v7052 = vunpack.c.h.b16 %v6995
  %v7053 = vunpack.c.l.b16 %v6996
  %v7054 = vunpack.c.h.b16 %v6996
  %v7055 = vunpack.c.l.b16 %v6997
  %v7056 = vunpack.c.h.b16 %v6997
  %v7057 = vunpack.c.l.b16 %v6998
  %v7058 = vunpack.c.h.b16 %v6998
  %v7059 = vpack.c.b16 %v7031, %v7029
  %v7060 = vpack.c.b16 %v7032, %v7030
  %v7061 = vpack.c.b16 %v7035, %v7033
  %v7062 = vpack.c.b16 %v7036, %v7034
  %v7063 = vpack.c.b16 %v7039, %v7037
  %v7064 = vpack.c.b16 %v7040, %v7038
  %v7065 = vpack.c.b16 %v7043, %v7041
  %v7066 = vpack.c.b16 %v7044, %v7042
  %v7067 = vpack.c.b16 %v7047, %v7045
  %v7068 = vpack.c.b16 %v7048, %v7046
  %v7069 = vpack.c.b16 %v7051, %v7049
  %v7070 = vpack.c.b16 %v7052, %v7050
  %v7071 = vpack.c.b16 %v7055, %v7053
  %v7072 = vpack.c.b16 %v7056, %v7054
  %v7073 = vpack.c.b16 %v7057, %v7057
  %v7074 = vpack.c.b16 %v7058, %v7058
  %v7084 = vsel %vm2008, %v7060, 0
  %v7087 = vsel %vm2008, %v7062, 0
  %v7090 = vsel %vm2008, %v7064, 0
  %v7093 = vsel %vm2008, %v7066, 0
  %v7096 = vsel %vm2008, %v7068, 0
  %v7099 = vsel %vm2008, %v7070, 0
  %v7102 = vsel %vm2008, %v7072, 0
  %v7105 = vsel %vm2008, %v7074, 0
  %7107 = vmatprep.subr.bf16.mxu0 0
  %7108 = vmatpush1.bf16.msra.mxu0 %v7006
  %7109 = vmatprep.subr.bf16.mxu0 0
  %7110 = vmatpush1.bf16.msra.mxu0 %v7005
  %7111 = vmatprep.subr.bf16.mxu0 0
  %7112 = vmatpush1.bf16.msra.mxu0 %v7004
  %7113 = vmatprep.subr.bf16.mxu0 0
  %7114 = vmatpush1.bf16.msra.mxu0 %v7003
  %7115 = vmatprep.subr.bf16.mxu0 0
  %7116 = vmatpush1.bf16.msra.mxu0 %v7002
  %7117 = vmatprep.subr.bf16.mxu0 0
  %7118 = vmatpush1.bf16.msra.mxu0 %v7001
  %7119 = vmatprep.subr.bf16.mxu0 0
  %7120 = vmatpush1.bf16.msra.mxu0 %v7000
  %7121 = vmatprep.subr.bf16.mxu0 0
  %7122 = vmatpush1.bf16.msra.mxu0 %v6999
  %7123 = vmatprep.subr.bf16.mxu0 0
  %7124 = vmatpush2.bf16.msra.mxu0 0
  %7125 = vmatprep.subr.bf16.mxu0 0
  %7126 = vmatpush2.bf16.msra.mxu0 %v7013
  %7127 = vmatprep.subr.bf16.mxu0 0
  %7128 = vmatpush2.bf16.msra.mxu0 %v7012
  %7129 = vmatprep.subr.bf16.mxu0 0
  %7130 = vmatpush2.bf16.msra.mxu0 %v7011
  %7131 = vmatprep.subr.bf16.mxu0 0
  %7132 = vmatpush2.bf16.msra.mxu0 %v7010
  %7133 = vmatprep.subr.bf16.mxu0 0
  %7134 = vmatpush2.bf16.msra.mxu0 %v7009
  %7135 = vmatprep.subr.bf16.mxu0 0
  %7136 = vmatpush2.bf16.msra.mxu0 %v7008
  %7137 = vmatprep.subr.bf16.mxu0 0
  %7138 = vmatpush2.bf16.msra.mxu0 %v7007
  %7139 = vmatprep.mubr.bf16.mxu0 %v7084
  %7140 = vmatmul.mubr.bf16.gmra.mxu0 %v7059
  %v7141 = vpop.f32.mrf.mxu0
  %v7142 = vadd.f32 0.0, %v7141
  %v7143 = vpop.f32.mrf.mxu0
  %v7144 = vpop.f32.mrf.mxu0
  %v7145 = vadd.f32 0.0, %v7144
  %v7146 = vpop.f32.mrf.mxu0
  %7147 = vmatprep.mubr.bf16.mxu0 %v7087
  %7148 = vmatmul.mubr.bf16.gmra.mxu0 %v7061
  %v7149 = vpop.f32.mrf.mxu0
  %v7150 = vadd.f32 0.0, %v7149
  %v7151 = vpop.f32.mrf.mxu0
  %v7152 = vpop.f32.mrf.mxu0
  %v7153 = vadd.f32 0.0, %v7152
  %v7154 = vpop.f32.mrf.mxu0
  %7155 = vmatprep.mubr.bf16.mxu0 %v7090
  %7156 = vmatmul.mubr.bf16.gmra.mxu0 %v7063
  %v7157 = vpop.f32.mrf.mxu0
  %v7158 = vadd.f32 0.0, %v7157
  %v7159 = vpop.f32.mrf.mxu0
  %v7160 = vpop.f32.mrf.mxu0
  %v7161 = vadd.f32 0.0, %v7160
  %v7162 = vpop.f32.mrf.mxu0
  %7163 = vmatprep.mubr.bf16.mxu0 %v7093
  %7164 = vmatmul.mubr.bf16.gmra.mxu0 %v7065
  %v7165 = vpop.f32.mrf.mxu0
  %v7166 = vadd.f32 0.0, %v7165
  %v7167 = vpop.f32.mrf.mxu0
  %v7168 = vpop.f32.mrf.mxu0
  %v7169 = vadd.f32 0.0, %v7168
  %v7170 = vpop.f32.mrf.mxu0
  %7171 = vmatprep.mubr.bf16.mxu0 %v7096
  %7172 = vmatmul.mubr.bf16.gmra.mxu0 %v7067
  %v7173 = vpop.f32.mrf.mxu0
  %v7174 = vadd.f32 0.0, %v7173
  %v7175 = vpop.f32.mrf.mxu0
  %v7176 = vpop.f32.mrf.mxu0
  %v7177 = vadd.f32 0.0, %v7176
  %v7178 = vpop.f32.mrf.mxu0
  %7179 = vmatprep.mubr.bf16.mxu0 %v7099
  %7180 = vmatmul.mubr.bf16.gmra.mxu0 %v7069
  %v7181 = vpop.f32.mrf.mxu0
  %v7182 = vadd.f32 0.0, %v7181
  %v7183 = vpop.f32.mrf.mxu0
  %v7184 = vpop.f32.mrf.mxu0
  %v7185 = vadd.f32 0.0, %v7184
  %v7186 = vpop.f32.mrf.mxu0
  %7187 = vmatprep.mubr.bf16.mxu0 %v7102
  %7188 = vmatmul.mubr.bf16.gmra.mxu0 %v7071
  %v7189 = vpop.f32.mrf.mxu0
  %v7190 = vadd.f32 0.0, %v7189
  %v7191 = vpop.f32.mrf.mxu0
  %v7192 = vpop.f32.mrf.mxu0
  %v7193 = vadd.f32 0.0, %v7192
  %v7194 = vpop.f32.mrf.mxu0
  %7195 = vmatprep.mubr.bf16.mxu0 %v7105
  %7196 = vmatmul.mubr.bf16.gmra.mxu0 %v7073
  %v7197 = vpop.f32.mrf.mxu0
  %v7198 = vadd.f32 0.0, %v7197
  %v7199 = vpop.f32.mrf.mxu0
  %v7200 = vpop.f32.mrf.mxu0
  %v7201 = vpop.f32.mrf.mxu0
  %7202 = vdwg.mxu0
  %v7203 = vld [vmem:[%s2129] sm:$0xff]
  %v7204 = vld [vmem:[%s2129 + $0x8] sm:$0xff]
  %v7205 = vld [vmem:[%s2129 + $0x10] sm:$0xff]
  %v7206 = vld [vmem:[%s2129 + $0x18] sm:$0xff]
  %v7207 = vld [vmem:[%s2129 + $0x20] sm:$0xff]
  %v7208 = vld [vmem:[%s2129 + $0x28] sm:$0xff]
  %v7209 = vld [vmem:[%s2129 + $0x30] sm:$0xff]
  %v7210 = vld [vmem:[%s2129 + $0x38] sm:$0xff]
  %v7211 = vld [vmem:[%s2129 + $0x40] sm:$0xff]
  %v7212 = vld [vmem:[%s2129 + $0x48] sm:$0xff]
  %v7213 = vld [vmem:[%s2129 + $0x50] sm:$0xff]
  %v7214 = vld [vmem:[%s2129 + $0x58] sm:$0xff]
  %v7215 = vld [vmem:[%s2129 + $0x60] sm:$0xff]
  %v7216 = vld [vmem:[%s2129 + $0x68] sm:$0xff]
  %v7217 = vld [vmem:[%s2129 + $0x70] sm:$0xff]
  %v7233 = vunpack.c.l.b16 %v7203
  %v7234 = vunpack.c.h.b16 %v7203
  %v7235 = vunpack.c.l.b16 %v7204
  %v7236 = vunpack.c.h.b16 %v7204
  %v7237 = vunpack.c.l.b16 %v7205
  %v7238 = vunpack.c.h.b16 %v7205
  %v7239 = vunpack.c.l.b16 %v7206
  %v7240 = vunpack.c.h.b16 %v7206
  %v7241 = vunpack.c.l.b16 %v7207
  %v7242 = vunpack.c.h.b16 %v7207
  %v7243 = vunpack.c.l.b16 %v7208
  %v7244 = vunpack.c.h.b16 %v7208
  %v7245 = vunpack.c.l.b16 %v7209
  %v7246 = vunpack.c.h.b16 %v7209
  %v7247 = vunpack.c.l.b16 %v7210
  %v7248 = vunpack.c.h.b16 %v7210
  %v7249 = vunpack.c.l.b16 %v7211
  %v7250 = vunpack.c.h.b16 %v7211
  %v7251 = vunpack.c.l.b16 %v7212
  %v7252 = vunpack.c.h.b16 %v7212
  %v7253 = vunpack.c.l.b16 %v7213
  %v7254 = vunpack.c.h.b16 %v7213
  %v7255 = vunpack.c.l.b16 %v7214
  %v7256 = vunpack.c.h.b16 %v7214
  %v7257 = vunpack.c.l.b16 %v7215
  %v7258 = vunpack.c.h.b16 %v7215
  %v7259 = vunpack.c.l.b16 %v7216
  %v7260 = vunpack.c.h.b16 %v7216
  %v7261 = vunpack.c.l.b16 %v7217
  %v7262 = vunpack.c.h.b16 %v7217
  %v7263 = vpack.c.b16 %v7235, %v7233
  %v7264 = vpack.c.b16 %v7236, %v7234
  %v7265 = vpack.c.b16 %v7239, %v7237
  %v7266 = vpack.c.b16 %v7240, %v7238
  %v7267 = vpack.c.b16 %v7243, %v7241
  %v7268 = vpack.c.b16 %v7244, %v7242
  %v7269 = vpack.c.b16 %v7247, %v7245
  %v7270 = vpack.c.b16 %v7248, %v7246
  %v7271 = vpack.c.b16 %v7251, %v7249
  %v7272 = vpack.c.b16 %v7252, %v7250
  %v7273 = vpack.c.b16 %v7255, %v7253
  %v7274 = vpack.c.b16 %v7256, %v7254
  %v7275 = vpack.c.b16 %v7259, %v7257
  %v7276 = vpack.c.b16 %v7260, %v7258
  %v7277 = vpack.c.b16 %v7261, %v7261
  %v7278 = vpack.c.b16 %v7262, %v7262
  %v7288 = vsel %vm2008, %v7264, 0
  %v7291 = vsel %vm2008, %v7266, 0
  %v7294 = vsel %vm2008, %v7268, 0
  %v7297 = vsel %vm2008, %v7270, 0
  %v7300 = vsel %vm2008, %v7272, 0
  %v7303 = vsel %vm2008, %v7274, 0
  %v7306 = vsel %vm2008, %v7276, 0
  %v7309 = vsel %vm2008, %v7278, 0
  %7311 = vmatprep.subr.bf16.mxu0 0
  %7312 = vmatpush1.bf16.msra.mxu0 %v7006
  %7313 = vmatprep.subr.bf16.mxu0 0
  %7314 = vmatpush1.bf16.msra.mxu0 %v7005
  %7315 = vmatprep.subr.bf16.mxu0 0
  %7316 = vmatpush1.bf16.msra.mxu0 %v7004
  %7317 = vmatprep.subr.bf16.mxu0 0
  %7318 = vmatpush1.bf16.msra.mxu0 %v7003
  %7319 = vmatprep.subr.bf16.mxu0 0
  %7320 = vmatpush1.bf16.msra.mxu0 %v7002
  %7321 = vmatprep.subr.bf16.mxu0 0
  %7322 = vmatpush1.bf16.msra.mxu0 %v7001
  %7323 = vmatprep.subr.bf16.mxu0 0
  %7324 = vmatpush1.bf16.msra.mxu0 %v7000
  %7325 = vmatprep.subr.bf16.mxu0 0
  %7326 = vmatpush1.bf16.msra.mxu0 %v6999
  %7327 = vmatprep.subr.bf16.mxu0 0
  %7328 = vmatpush2.bf16.msra.mxu0 0
  %7329 = vmatprep.subr.bf16.mxu0 0
  %7330 = vmatpush2.bf16.msra.mxu0 %v7013
  %7331 = vmatprep.subr.bf16.mxu0 0
  %7332 = vmatpush2.bf16.msra.mxu0 %v7012
  %7333 = vmatprep.subr.bf16.mxu0 0
  %7334 = vmatpush2.bf16.msra.mxu0 %v7011
  %7335 = vmatprep.subr.bf16.mxu0 0
  %7336 = vmatpush2.bf16.msra.mxu0 %v7010
  %7337 = vmatprep.subr.bf16.mxu0 0
  %7338 = vmatpush2.bf16.msra.mxu0 %v7009
  %7339 = vmatprep.subr.bf16.mxu0 0
  %7340 = vmatpush2.bf16.msra.mxu0 %v7008
  %7341 = vmatprep.subr.bf16.mxu0 0
  %7342 = vmatpush2.bf16.msra.mxu0 %v7007
  %7343 = vmatprep.mubr.bf16.mxu0 %v7288
  %7344 = vmatmul.mubr.bf16.gmra.mxu0 %v7263
  %v7345 = vpop.f32.mrf.mxu0
  %v7346 = vadd.f32 0.0, %v7345
  %v7347 = vpop.f32.mrf.mxu0
  %v7348 = vpop.f32.mrf.mxu0
  %v7349 = vadd.f32 0.0, %v7348
  %v7350 = vpop.f32.mrf.mxu0
  %7351 = vmatprep.mubr.bf16.mxu0 %v7291
  %7352 = vmatmul.mubr.bf16.gmra.mxu0 %v7265
  %v7353 = vpop.f32.mrf.mxu0
  %v7354 = vadd.f32 0.0, %v7353
  %v7355 = vpop.f32.mrf.mxu0
  %v7356 = vpop.f32.mrf.mxu0
  %v7357 = vadd.f32 0.0, %v7356
  %v7358 = vpop.f32.mrf.mxu0
  %7359 = vmatprep.mubr.bf16.mxu0 %v7294
  %7360 = vmatmul.mubr.bf16.gmra.mxu0 %v7267
  %v7361 = vpop.f32.mrf.mxu0
  %v7362 = vadd.f32 0.0, %v7361
  %v7363 = vpop.f32.mrf.mxu0
  %v7364 = vpop.f32.mrf.mxu0
  %v7365 = vadd.f32 0.0, %v7364
  %v7366 = vpop.f32.mrf.mxu0
  %7367 = vmatprep.mubr.bf16.mxu0 %v7297
  %7368 = vmatmul.mubr.bf16.gmra.mxu0 %v7269
  %v7369 = vpop.f32.mrf.mxu0
  %v7370 = vadd.f32 0.0, %v7369
  %v7371 = vpop.f32.mrf.mxu0
  %v7372 = vpop.f32.mrf.mxu0
  %v7373 = vadd.f32 0.0, %v7372
  %v7374 = vpop.f32.mrf.mxu0
  %7375 = vmatprep.mubr.bf16.mxu0 %v7300
  %7376 = vmatmul.mubr.bf16.gmra.mxu0 %v7271
  %v7377 = vpop.f32.mrf.mxu0
  %v7378 = vadd.f32 0.0, %v7377
  %v7379 = vpop.f32.mrf.mxu0
  %v7380 = vpop.f32.mrf.mxu0
  %v7381 = vadd.f32 0.0, %v7380
  %v7382 = vpop.f32.mrf.mxu0
  %7383 = vmatprep.mubr.bf16.mxu0 %v7303
  %7384 = vmatmul.mubr.bf16.gmra.mxu0 %v7273
  %v7385 = vpop.f32.mrf.mxu0
  %v7386 = vadd.f32 0.0, %v7385
  %v7387 = vpop.f32.mrf.mxu0
  %v7388 = vpop.f32.mrf.mxu0
  %v7389 = vadd.f32 0.0, %v7388
  %v7390 = vpop.f32.mrf.mxu0
  %7391 = vmatprep.mubr.bf16.mxu0 %v7306
  %7392 = vmatmul.mubr.bf16.gmra.mxu0 %v7275
  %v7393 = vpop.f32.mrf.mxu0
  %v7394 = vadd.f32 0.0, %v7393
  %v7395 = vpop.f32.mrf.mxu0
  %v7396 = vpop.f32.mrf.mxu0
  %v7397 = vadd.f32 0.0, %v7396
  %v7398 = vpop.f32.mrf.mxu0
  %7399 = vmatprep.mubr.bf16.mxu0 %v7309
  %7400 = vmatmul.mubr.bf16.gmra.mxu0 %v7277
  %v7401 = vpop.f32.mrf.mxu0
  %v7402 = vadd.f32 0.0, %v7401
  %v7403 = vpop.f32.mrf.mxu0
  %v7404 = vpop.f32.mrf.mxu0
  %v7405 = vpop.f32.mrf.mxu0
  %7406 = vdwg.mxu0
  %v7407 = vmax.f32 %v7142, %v7346
  %v7408 = vmax.f32 %v7145, %v7349
  %v7409 = vmax.f32 %v7150, %v7354
  %v7410 = vmax.f32 %v7153, %v7357
  %v7411 = vmax.f32 %v7158, %v7362
  %v7412 = vmax.f32 %v7161, %v7365
  %v7413 = vmax.f32 %v7166, %v7370
  %v7414 = vmax.f32 %v7169, %v7373
  %v7415 = vmax.f32 %v7174, %v7378
  %v7416 = vmax.f32 %v7177, %v7381
  %v7417 = vmax.f32 %v7182, %v7386
  %v7418 = vmax.f32 %v7185, %v7389
  %v7419 = vmax.f32 %v7190, %v7394
  %v7420 = vmax.f32 %v7193, %v7397
  %v7421 = vmax.f32 %v7198, %v7402
  %v7422 = vld [vmem:[%s4] sm:$0xf]
  %v7423 = vld [vmem:[%s4 + $0x4] sm:$0xf]
  %v7424 = vld [vmem:[%s4 + $0x8] sm:$0xf]
  %v7425 = vpack.c.bf16 %v7408, %v7407
  %v7426 = vpack.c.bf16 %v7410, %v7409
  %v7427 = vpack.c.bf16 %v7412, %v7411
  %v7428 = vpack.c.bf16 %v7414, %v7413
  %v7429 = vpack.c.bf16 %v7416, %v7415
  %v7430 = vpack.c.bf16 %v7418, %v7417
  %v7431 = vpack.c.bf16 %v7420, %v7419
  %v7432 = vpack.c.bf16 %v7421, %v7421
  %v7436 = vunpack.c.l.b16 %v7422
  %v7437 = vunpack.c.l.b16 %v7423
  %v7438 = vunpack.c.l.b16 %v7424
  %v7439 = vpack.c.b16 %v7437, %v7436
  %v7440 = vpack.c.b16 %v7438, %v7438
  %v7443 = vsel %vm2369, %v7425, 0
  %v7446 = vsel %vm2369, %v7426, 0
  %v7449 = vsel %vm2369, %v7427, 0
  %v7452 = vsel %vm2369, %v7428, 0
  %v7455 = vsel %vm2369, %v7429, 0
  %v7458 = vsel %vm2369, %v7430, 0
  %v7461 = vsel %vm2369, %v7431, 0
  %v7464 = vsel %vm2369, %v7432, 0
  %v7467 = vsel %vm2394, %v7440, 0
  %7469 = vmatprep.subr.bf16.mxu0 0
  %7470 = vmatpush1.bf16.msra.mxu0 0
  %7471 = vmatprep.subr.bf16.mxu0 0
  %7472 = vmatpush1.bf16.msra.mxu0 0
  %7473 = vmatprep.subr.bf16.mxu0 0
  %7474 = vmatpush1.bf16.msra.mxu0 0
  %7475 = vmatprep.subr.bf16.mxu0 0
  %7476 = vmatpush1.bf16.msra.mxu0 0
  %7477 = vmatprep.subr.bf16.mxu0 0
  %7478 = vmatpush1.bf16.msra.mxu0 0
  %7479 = vmatprep.subr.bf16.mxu0 0
  %7480 = vmatpush1.bf16.msra.mxu0 0
  %7481 = vmatprep.subr.bf16.mxu0 0
  %7482 = vmatpush1.bf16.msra.mxu0 %v7467
  %7483 = vmatprep.subr.bf16.mxu0 0
  %7484 = vmatpush1.bf16.msra.mxu0 %v7439
  %7485 = vmatprep.subr.bf16.mxu0 0
  %7486 = vmatpush2.bf16.msra.mxu0 0
  %7487 = vmatprep.subr.bf16.mxu0 0
  %7488 = vmatpush2.bf16.msra.mxu0 0
  %7489 = vmatprep.subr.bf16.mxu0 0
  %7490 = vmatpush2.bf16.msra.mxu0 0
  %7491 = vmatprep.subr.bf16.mxu0 0
  %7492 = vmatpush2.bf16.msra.mxu0 0
  %7493 = vmatprep.subr.bf16.mxu0 0
  %7494 = vmatpush2.bf16.msra.mxu0 0
  %7495 = vmatprep.subr.bf16.mxu0 0
  %7496 = vmatpush2.bf16.msra.mxu0 0
  %7497 = vmatprep.subr.bf16.mxu0 0
  %7498 = vmatpush2.bf16.msra.mxu0 0
  %7499 = vmatprep.subr.bf16.mxu0 0
  %7500 = vmatpush2.bf16.msra.mxu0 0
  %7501 = vmatprep.mubr.bf16.mxu0 0
  %7502 = vmatmul.mubr.bf16.gmra.mxu0 %v7443
  %v7503 = vpop.f32.mrf.mxu0
  %v7504 = vadd.f32 0.0, %v7503
  %v7505 = vpop.f32.mrf.mxu0
  %v7506 = vpop.f32.mrf.mxu0
  %v7507 = vadd.f32 0.0, %v7506
  %v7508 = vpop.f32.mrf.mxu0
  %7509 = vmatprep.mubr.bf16.mxu0 0
  %7510 = vmatmul.mubr.bf16.gmra.mxu0 %v7446
  %v7511 = vpop.f32.mrf.mxu0
  %v7512 = vadd.f32 0.0, %v7511
  %v7513 = vpop.f32.mrf.mxu0
  %v7514 = vpop.f32.mrf.mxu0
  %v7515 = vadd.f32 0.0, %v7514
  %v7516 = vpop.f32.mrf.mxu0
  %7517 = vmatprep.mubr.bf16.mxu0 0
  %7518 = vmatmul.mubr.bf16.gmra.mxu0 %v7449
  %v7519 = vpop.f32.mrf.mxu0
  %v7520 = vadd.f32 0.0, %v7519
  %v7521 = vpop.f32.mrf.mxu0
  %v7522 = vpop.f32.mrf.mxu0
  %v7523 = vadd.f32 0.0, %v7522
  %v7524 = vpop.f32.mrf.mxu0
  %7525 = vmatprep.mubr.bf16.mxu0 0
  %7526 = vmatmul.mubr.bf16.gmra.mxu0 %v7452
  %v7527 = vpop.f32.mrf.mxu0
  %v7528 = vadd.f32 0.0, %v7527
  %v7529 = vpop.f32.mrf.mxu0
  %v7530 = vpop.f32.mrf.mxu0
  %v7531 = vadd.f32 0.0, %v7530
  %v7532 = vpop.f32.mrf.mxu0
  %7533 = vmatprep.mubr.bf16.mxu0 0
  %7534 = vmatmul.mubr.bf16.gmra.mxu0 %v7455
  %v7535 = vpop.f32.mrf.mxu0
  %v7536 = vadd.f32 0.0, %v7535
  %v7537 = vpop.f32.mrf.mxu0
  %v7538 = vpop.f32.mrf.mxu0
  %v7539 = vadd.f32 0.0, %v7538
  %v7540 = vpop.f32.mrf.mxu0
  %7541 = vmatprep.mubr.bf16.mxu0 0
  %7542 = vmatmul.mubr.bf16.gmra.mxu0 %v7458
  %v7543 = vpop.f32.mrf.mxu0
  %v7544 = vadd.f32 0.0, %v7543
  %v7545 = vpop.f32.mrf.mxu0
  %v7546 = vpop.f32.mrf.mxu0
  %v7547 = vadd.f32 0.0, %v7546
  %v7548 = vpop.f32.mrf.mxu0
  %7549 = vmatprep.mubr.bf16.mxu0 0
  %7550 = vmatmul.mubr.bf16.gmra.mxu0 %v7461
  %v7551 = vpop.f32.mrf.mxu0
  %v7552 = vadd.f32 0.0, %v7551
  %v7553 = vpop.f32.mrf.mxu0
  %v7554 = vpop.f32.mrf.mxu0
  %v7555 = vadd.f32 0.0, %v7554
  %v7556 = vpop.f32.mrf.mxu0
  %7557 = vmatprep.mubr.bf16.mxu0 0
  %7558 = vmatmul.mubr.bf16.gmra.mxu0 %v7464
  %v7559 = vpop.f32.mrf.mxu0
  %v7560 = vadd.f32 0.0, %v7559
  %v7561 = vpop.f32.mrf.mxu0
  %v7562 = vpop.f32.mrf.mxu0
  %v7563 = vpop.f32.mrf.mxu0
  %7564 = vdwg.mxu0
  %v7565 = vld [vmem:[%s2494] sm:$0xf]
  %v7566 = vld [vmem:[%s2494 + $0x4] sm:$0xf]
  %v7567 = vld [vmem:[%s2494 + $0x8] sm:$0xf]
  %v7571 = vunpack.c.l.b16 %v7565
  %v7572 = vunpack.c.l.b16 %v7566
  %v7573 = vunpack.c.l.b16 %v7567
  %v7574 = vpack.c.b16 %v7572, %v7571
  %v7575 = vpack.c.b16 %v7573, %v7573
  %v7578 = vsel %vm2394, %v7575, 0
  %7580 = vmatprep.subr.bf16.mxu0 0
  %7581 = vmatpush1.bf16.msra.mxu0 0
  %7582 = vmatprep.subr.bf16.mxu0 0
  %7583 = vmatpush1.bf16.msra.mxu0 0
  %7584 = vmatprep.subr.bf16.mxu0 0
  %7585 = vmatpush1.bf16.msra.mxu0 0
  %7586 = vmatprep.subr.bf16.mxu0 0
  %7587 = vmatpush1.bf16.msra.mxu0 0
  %7588 = vmatprep.subr.bf16.mxu0 0
  %7589 = vmatpush1.bf16.msra.mxu0 0
  %7590 = vmatprep.subr.bf16.mxu0 0
  %7591 = vmatpush1.bf16.msra.mxu0 0
  %7592 = vmatprep.subr.bf16.mxu0 0
  %7593 = vmatpush1.bf16.msra.mxu0 %v7578
  %7594 = vmatprep.subr.bf16.mxu0 0
  %7595 = vmatpush1.bf16.msra.mxu0 %v7574
  %7596 = vmatprep.subr.bf16.mxu0 0
  %7597 = vmatpush2.bf16.msra.mxu0 0
  %7598 = vmatprep.subr.bf16.mxu0 0
  %7599 = vmatpush2.bf16.msra.mxu0 0
  %7600 = vmatprep.subr.bf16.mxu0 0
  %7601 = vmatpush2.bf16.msra.mxu0 0
  %7602 = vmatprep.subr.bf16.mxu0 0
  %7603 = vmatpush2.bf16.msra.mxu0 0
  %7604 = vmatprep.subr.bf16.mxu0 0
  %7605 = vmatpush2.bf16.msra.mxu0 0
  %7606 = vmatprep.subr.bf16.mxu0 0
  %7607 = vmatpush2.bf16.msra.mxu0 0
  %7608 = vmatprep.subr.bf16.mxu0 0
  %7609 = vmatpush2.bf16.msra.mxu0 0
  %7610 = vmatprep.subr.bf16.mxu0 0
  %7611 = vmatpush2.bf16.msra.mxu0 0
  %7612 = vmatprep.mubr.bf16.mxu0 0
  %7613 = vmatmul.mubr.bf16.gmra.mxu0 %v7443
  %v7614 = vpop.f32.mrf.mxu0
  %v7615 = vadd.f32 0.0, %v7614
  %v7616 = vpop.f32.mrf.mxu0
  %v7617 = vpop.f32.mrf.mxu0
  %v7618 = vadd.f32 0.0, %v7617
  %v7619 = vpop.f32.mrf.mxu0
  %7620 = vmatprep.mubr.bf16.mxu0 0
  %7621 = vmatmul.mubr.bf16.gmra.mxu0 %v7446
  %v7622 = vpop.f32.mrf.mxu0
  %v7623 = vadd.f32 0.0, %v7622
  %v7624 = vpop.f32.mrf.mxu0
  %v7625 = vpop.f32.mrf.mxu0
  %v7626 = vadd.f32 0.0, %v7625
  %v7627 = vpop.f32.mrf.mxu0
  %7628 = vmatprep.mubr.bf16.mxu0 0
  %7629 = vmatmul.mubr.bf16.gmra.mxu0 %v7449
  %v7630 = vpop.f32.mrf.mxu0
  %v7631 = vadd.f32 0.0, %v7630
  %v7632 = vpop.f32.mrf.mxu0
  %v7633 = vpop.f32.mrf.mxu0
  %v7634 = vadd.f32 0.0, %v7633
  %v7635 = vpop.f32.mrf.mxu0
  %7636 = vmatprep.mubr.bf16.mxu0 0
  %7637 = vmatmul.mubr.bf16.gmra.mxu0 %v7452
  %v7638 = vpop.f32.mrf.mxu0
  %v7639 = vadd.f32 0.0, %v7638
  %v7640 = vpop.f32.mrf.mxu0
  %v7641 = vpop.f32.mrf.mxu0
  %v7642 = vadd.f32 0.0, %v7641
  %v7643 = vpop.f32.mrf.mxu0
  %7644 = vmatprep.mubr.bf16.mxu0 0
  %7645 = vmatmul.mubr.bf16.gmra.mxu0 %v7455
  %v7646 = vpop.f32.mrf.mxu0
  %v7647 = vadd.f32 0.0, %v7646
  %v7648 = vpop.f32.mrf.mxu0
  %v7649 = vpop.f32.mrf.mxu0
  %v7650 = vadd.f32 0.0, %v7649
  %v7651 = vpop.f32.mrf.mxu0
  %7652 = vmatprep.mubr.bf16.mxu0 0
  %7653 = vmatmul.mubr.bf16.gmra.mxu0 %v7458
  %v7654 = vpop.f32.mrf.mxu0
  %v7655 = vadd.f32 0.0, %v7654
  %v7656 = vpop.f32.mrf.mxu0
  %v7657 = vpop.f32.mrf.mxu0
  %v7658 = vadd.f32 0.0, %v7657
  %v7659 = vpop.f32.mrf.mxu0
  %7660 = vmatprep.mubr.bf16.mxu0 0
  %7661 = vmatmul.mubr.bf16.gmra.mxu0 %v7461
  %v7662 = vpop.f32.mrf.mxu0
  %v7663 = vadd.f32 0.0, %v7662
  %v7664 = vpop.f32.mrf.mxu0
  %v7665 = vpop.f32.mrf.mxu0
  %v7666 = vadd.f32 0.0, %v7665
  %v7667 = vpop.f32.mrf.mxu0
  %7668 = vmatprep.mubr.bf16.mxu0 0
  %7669 = vmatmul.mubr.bf16.gmra.mxu0 %v7464
  %v7670 = vpop.f32.mrf.mxu0
  %v7671 = vadd.f32 0.0, %v7670
  %v7672 = vpop.f32.mrf.mxu0
  %v7673 = vpop.f32.mrf.mxu0
  %v7674 = vpop.f32.mrf.mxu0
  %7675 = vdwg.mxu0
  %v7676 = vmax.f32 %v7504, %v7615
  %v7677 = vmax.f32 %v7507, %v7618
  %v7678 = vmax.f32 %v7512, %v7623
  %v7679 = vmax.f32 %v7515, %v7626
  %v7680 = vmax.f32 %v7520, %v7631
  %v7681 = vmax.f32 %v7523, %v7634
  %v7682 = vmax.f32 %v7528, %v7639
  %v7683 = vmax.f32 %v7531, %v7642
  %v7684 = vmax.f32 %v7536, %v7647
  %v7685 = vmax.f32 %v7539, %v7650
  %v7686 = vmax.f32 %v7544, %v7655
  %v7687 = vmax.f32 %v7547, %v7658
  %v7688 = vmax.f32 %v7552, %v7663
  %v7689 = vmax.f32 %v7555, %v7666
  %v7690 = vmax.f32 %v7560, %v7671
  %v7691 = vmax.f32 %v7676, 0.0
  %v7692 = vmax.f32 %v7677, 0.0
  %v7693 = vmax.f32 %v7678, 0.0
  %v7694 = vmax.f32 %v7679, 0.0
  %v7695 = vmax.f32 %v7680, 0.0
  %v7696 = vmax.f32 %v7681, 0.0
  %v7697 = vmax.f32 %v7682, 0.0
  %v7698 = vmax.f32 %v7683, 0.0
  %v7699 = vmax.f32 %v7684, 0.0
  %v7700 = vmax.f32 %v7685, 0.0
  %v7701 = vmax.f32 %v7686, 0.0
  %v7702 = vmax.f32 %v7687, 0.0
  %v7703 = vmax.f32 %v7688, 0.0
  %v7704 = vmax.f32 %v7689, 0.0
  %v7705 = vmax.f32 %v7690, 0.0
  %v7706 = vld [vmem:[%s5] sm:$0xf]
  %v7707 = vld [vmem:[%s5 + $0x4] sm:$0xf]
  %v7708 = vld [vmem:[%s5 + $0x8] sm:$0xf]
  %v7709 = vld [vmem:[%s5 + $0xc] sm:$0xf]
  %v7710 = vld [vmem:[%s5 + $0x10] sm:$0xf]
  %v7711 = vld [vmem:[%s5 + $0x14] sm:$0xf]
  %v7712 = vld [vmem:[%s5 + $0x18] sm:$0xf]
  %v7713 = vld [vmem:[%s5 + $0x1c] sm:$0xf]
  %v7714 = vld [vmem:[%s5 + $0x20] sm:$0xf]
  %v7715 = vld [vmem:[%s5 + $0x24] sm:$0xf]
  %v7716 = vld [vmem:[%s5 + $0x28] sm:$0xf]
  %v7717 = vld [vmem:[%s5 + $0x2c] sm:$0xf]
  %v7718 = vld [vmem:[%s5 + $0x30] sm:$0xf]
  %v7719 = vld [vmem:[%s5 + $0x34] sm:$0xf]
  %v7720 = vld [vmem:[%s5 + $0x38] sm:$0xf]
  %v7721 = vld [vmem:[%s5 + $0x3c] sm:$0xf]
  %v7722 = vld [vmem:[%s5 + $0x40] sm:$0xf]
  %v7723 = vld [vmem:[%s5 + $0x44] sm:$0xf]
  %v7724 = vld [vmem:[%s5 + $0x48] sm:$0xf]
  %v7725 = vld [vmem:[%s5 + $0x4c] sm:$0xf]
  %v7726 = vpack.c.bf16 %v7692, %v7691
  %v7727 = vpack.c.bf16 %v7694, %v7693
  %v7728 = vpack.c.bf16 %v7696, %v7695
  %v7729 = vpack.c.bf16 %v7698, %v7697
  %v7730 = vpack.c.bf16 %v7700, %v7699
  %v7731 = vpack.c.bf16 %v7702, %v7701
  %v7732 = vpack.c.bf16 %v7704, %v7703
  %v7733 = vpack.c.bf16 %v7705, %v7705
  %v7734 = vld [vmem:[%s2664] sm:$0xf]
  %v7735 = vld [vmem:[%s2664 + $0x4] sm:$0xf]
  %v7736 = vld [vmem:[%s2664 + $0x8] sm:$0xf]
  %v7737 = vld [vmem:[%s2664 + $0xc] sm:$0xf]
  %v7738 = vld [vmem:[%s2664 + $0x10] sm:$0xf]
  %v7739 = vld [vmem:[%s2664 + $0x14] sm:$0xf]
  %v7740 = vld [vmem:[%s2664 + $0x18] sm:$0xf]
  %v7741 = vld [vmem:[%s2664 + $0x1c] sm:$0xf]
  %v7742 = vld [vmem:[%s2664 + $0x20] sm:$0xf]
  %v7743 = vld [vmem:[%s2664 + $0x24] sm:$0xf]
  %v7744 = vld [vmem:[%s2664 + $0x28] sm:$0xf]
  %v7745 = vld [vmem:[%s2664 + $0x2c] sm:$0xf]
  %v7746 = vld [vmem:[%s2664 + $0x30] sm:$0xf]
  %v7747 = vld [vmem:[%s2664 + $0x34] sm:$0xf]
  %v7748 = vld [vmem:[%s2664 + $0x38] sm:$0xf]
  %v7749 = vld [vmem:[%s2664 + $0x3c] sm:$0xf]
  %v7750 = vld [vmem:[%s2664 + $0x40] sm:$0xf]
  %v7751 = vld [vmem:[%s2664 + $0x44] sm:$0xf]
  %v7752 = vld [vmem:[%s2664 + $0x48] sm:$0xf]
  %v7753 = vld [vmem:[%s2664 + $0x4c] sm:$0xf]
  %v7774 = vunpack.c.l.b16 %v7734
  %v7775 = vunpack.c.l.b16 %v7735
  %v7776 = vunpack.c.l.b16 %v7736
  %v7777 = vunpack.c.l.b16 %v7737
  %v7778 = vunpack.c.l.b16 %v7738
  %v7779 = vunpack.c.l.b16 %v7739
  %v7780 = vunpack.c.l.b16 %v7740
  %v7781 = vunpack.c.l.b16 %v7741
  %v7782 = vunpack.c.l.b16 %v7742
  %v7783 = vunpack.c.l.b16 %v7743
  %v7784 = vunpack.c.l.b16 %v7744
  %v7785 = vunpack.c.l.b16 %v7745
  %v7786 = vunpack.c.l.b16 %v7746
  %v7787 = vunpack.c.l.b16 %v7747
  %v7788 = vunpack.c.l.b16 %v7748
  %v7789 = vunpack.c.l.b16 %v7749
  %v7790 = vunpack.c.l.b16 %v7750
  %v7791 = vunpack.c.l.b16 %v7751
  %v7792 = vunpack.c.l.b16 %v7752
  %v7793 = vunpack.c.l.b16 %v7753
  %v7794 = vpack.c.b16 %v7775, %v7774
  %v7795 = vpack.c.b16 %v7777, %v7776
  %v7796 = vpack.c.b16 %v7779, %v7778
  %v7797 = vpack.c.b16 %v7781, %v7780
  %v7798 = vpack.c.b16 %v7783, %v7782
  %v7799 = vpack.c.b16 %v7785, %v7784
  %v7800 = vpack.c.b16 %v7787, %v7786
  %v7801 = vpack.c.b16 %v7789, %v7788
  %v7802 = vpack.c.b16 %v7791, %v7790
  %v7803 = vpack.c.b16 %v7793, %v7792
  %7812 = vrot.lane.b32.xlu0 %v7726, 127
  %v7813 = vpop.permute.xlu0 %7812
  %7814 = vrot.lane.b32.xlu0 %v7727, 127
  %v7815 = vpop.permute.xlu0 %7814
  %7816 = vrot.lane.b32.xlu0 %v7728, 127
  %v7817 = vpop.permute.xlu0 %7816
  %7818 = vrot.lane.b32.xlu0 %v7729, 127
  %v7819 = vpop.permute.xlu0 %7818
  %7820 = vrot.lane.b32.xlu0 %v7730, 127
  %v7821 = vpop.permute.xlu0 %7820
  %7822 = vrot.lane.b32.xlu0 %v7731, 127
  %v7823 = vpop.permute.xlu0 %7822
  %7824 = vrot.lane.b32.xlu0 %v7732, 127
  %v7825 = vpop.permute.xlu0 %7824
  %7826 = vrot.lane.b32.xlu0 %v7733, 127
  %v7827 = vpop.permute.xlu0 %7826
  %v7836 = vsel %vm2766, %v7794, 0
  %v7839 = vsel %vm2766, %v7795, 0
  %v7842 = vsel %vm2766, %v7796, 0
  %v7845 = vsel %vm2766, %v7797, 0
  %v7848 = vsel %vm2766, %v7798, 0
  %v7851 = vsel %vm2766, %v7799, 0
  %v7854 = vsel %vm2766, %v7800, 0
  %v7857 = vsel %vm2766, %v7801, 0
  %v7860 = vsel %vm2766, %v7802, 0
  %v7863 = vsel %vm2766, %v7803, 0
  %v7866 = vsel %vm2394, %v7827, 0
  %7868 = vmatprep.subr.bf16.mxu0 0
  %7869 = vmatpush1.bf16.msra.mxu0 %v7866
  %7870 = vmatprep.subr.bf16.mxu0 0
  %7871 = vmatpush1.bf16.msra.mxu0 %v7825
  %7872 = vmatprep.subr.bf16.mxu0 0
  %7873 = vmatpush1.bf16.msra.mxu0 %v7823
  %7874 = vmatprep.subr.bf16.mxu0 0
  %7875 = vmatpush1.bf16.msra.mxu0 %v7821
  %7876 = vmatprep.subr.bf16.mxu0 0
  %7877 = vmatpush1.bf16.msra.mxu0 %v7819
  %7878 = vmatprep.subr.bf16.mxu0 0
  %7879 = vmatpush1.bf16.msra.mxu0 %v7817
  %7880 = vmatprep.subr.bf16.mxu0 0
  %7881 = vmatpush1.bf16.msra.mxu0 %v7815
  %7882 = vmatprep.subr.bf16.mxu0 0
  %7883 = vmatpush1.bf16.msra.mxu0 %v7813
  %7884 = vmatprep.subr.bf16.mxu0 0
  %7885 = vmatpush2.bf16.msra.mxu0 0
  %7886 = vmatprep.subr.bf16.mxu0 0
  %7887 = vmatpush2.bf16.msra.mxu0 0
  %7888 = vmatprep.subr.bf16.mxu0 0
  %7889 = vmatpush2.bf16.msra.mxu0 0
  %7890 = vmatprep.subr.bf16.mxu0 0
  %7891 = vmatpush2.bf16.msra.mxu0 0
  %7892 = vmatprep.subr.bf16.mxu0 0
  %7893 = vmatpush2.bf16.msra.mxu0 0
  %7894 = vmatprep.subr.bf16.mxu0 0
  %7895 = vmatpush2.bf16.msra.mxu0 0
  %7896 = vmatprep.subr.bf16.mxu0 0
  %7897 = vmatpush2.bf16.msra.mxu0 0
  %7898 = vmatprep.subr.bf16.mxu0 0
  %7899 = vmatpush2.bf16.msra.mxu0 0
  %7900 = vmatprep.mubr.bf16.mxu0 0
  %7901 = vmatmul.mubr.bf16.gmra.mxu0 %v7836
  %v7902 = vpop.f32.mrf.mxu0
  %v7903 = vadd.f32 0.0, %v7902
  %v7904 = vpop.f32.mrf.mxu0
  %v7905 = vpop.f32.mrf.mxu0
  %v7906 = vadd.f32 0.0, %v7905
  %v7907 = vpop.f32.mrf.mxu0
  %7908 = vmatprep.mubr.bf16.mxu0 0
  %7909 = vmatmul.mubr.bf16.gmra.mxu0 %v7839
  %v7910 = vpop.f32.mrf.mxu0
  %v7911 = vadd.f32 0.0, %v7910
  %v7912 = vpop.f32.mrf.mxu0
  %v7913 = vpop.f32.mrf.mxu0
  %v7914 = vadd.f32 0.0, %v7913
  %v7915 = vpop.f32.mrf.mxu0
  %7916 = vmatprep.mubr.bf16.mxu0 0
  %7917 = vmatmul.mubr.bf16.gmra.mxu0 %v7842
  %v7918 = vpop.f32.mrf.mxu0
  %v7919 = vadd.f32 0.0, %v7918
  %v7920 = vpop.f32.mrf.mxu0
  %v7921 = vpop.f32.mrf.mxu0
  %v7922 = vadd.f32 0.0, %v7921
  %v7923 = vpop.f32.mrf.mxu0
  %7924 = vmatprep.mubr.bf16.mxu0 0
  %7925 = vmatmul.mubr.bf16.gmra.mxu0 %v7845
  %v7926 = vpop.f32.mrf.mxu0
  %v7927 = vadd.f32 0.0, %v7926
  %v7928 = vpop.f32.mrf.mxu0
  %v7929 = vpop.f32.mrf.mxu0
  %v7930 = vadd.f32 0.0, %v7929
  %v7931 = vpop.f32.mrf.mxu0
  %7932 = vmatprep.mubr.bf16.mxu0 0
  %7933 = vmatmul.mubr.bf16.gmra.mxu0 %v7848
  %v7934 = vpop.f32.mrf.mxu0
  %v7935 = vadd.f32 0.0, %v7934
  %v7936 = vpop.f32.mrf.mxu0
  %v7937 = vpop.f32.mrf.mxu0
  %v7938 = vadd.f32 0.0, %v7937
  %v7939 = vpop.f32.mrf.mxu0
  %7940 = vmatprep.mubr.bf16.mxu0 0
  %7941 = vmatmul.mubr.bf16.gmra.mxu0 %v7851
  %v7942 = vpop.f32.mrf.mxu0
  %v7943 = vadd.f32 0.0, %v7942
  %v7944 = vpop.f32.mrf.mxu0
  %v7945 = vpop.f32.mrf.mxu0
  %v7946 = vadd.f32 0.0, %v7945
  %v7947 = vpop.f32.mrf.mxu0
  %7948 = vmatprep.mubr.bf16.mxu0 0
  %7949 = vmatmul.mubr.bf16.gmra.mxu0 %v7854
  %v7950 = vpop.f32.mrf.mxu0
  %v7951 = vadd.f32 0.0, %v7950
  %v7952 = vpop.f32.mrf.mxu0
  %v7953 = vpop.f32.mrf.mxu0
  %v7954 = vadd.f32 0.0, %v7953
  %v7955 = vpop.f32.mrf.mxu0
  %7956 = vmatprep.mubr.bf16.mxu0 0
  %7957 = vmatmul.mubr.bf16.gmra.mxu0 %v7857
  %v7958 = vpop.f32.mrf.mxu0
  %v7959 = vadd.f32 0.0, %v7958
  %v7960 = vpop.f32.mrf.mxu0
  %v7961 = vpop.f32.mrf.mxu0
  %v7962 = vadd.f32 0.0, %v7961
  %v7963 = vpop.f32.mrf.mxu0
  %7964 = vmatprep.mubr.bf16.mxu0 0
  %7965 = vmatmul.mubr.bf16.gmra.mxu0 %v7860
  %v7966 = vpop.f32.mrf.mxu0
  %v7967 = vadd.f32 0.0, %v7966
  %v7968 = vpop.f32.mrf.mxu0
  %v7969 = vpop.f32.mrf.mxu0
  %v7970 = vadd.f32 0.0, %v7969
  %v7971 = vpop.f32.mrf.mxu0
  %7972 = vmatprep.mubr.bf16.mxu0 0
  %7973 = vmatmul.mubr.bf16.gmra.mxu0 %v7863
  %v7974 = vpop.f32.mrf.mxu0
  %v7975 = vadd.f32 0.0, %v7974
  %v7976 = vpop.f32.mrf.mxu0
  %v7977 = vpop.f32.mrf.mxu0
  %v7978 = vadd.f32 0.0, %v7977
  %v7979 = vpop.f32.mrf.mxu0
  %7980 = vdwg.mxu0
  %v8001 = vunpack.c.l.b16 %v7706
  %v8002 = vunpack.c.l.b16 %v7707
  %v8003 = vunpack.c.l.b16 %v7708
  %v8004 = vunpack.c.l.b16 %v7709
  %v8005 = vunpack.c.l.b16 %v7710
  %v8006 = vunpack.c.l.b16 %v7711
  %v8007 = vunpack.c.l.b16 %v7712
  %v8008 = vunpack.c.l.b16 %v7713
  %v8009 = vunpack.c.l.b16 %v7714
  %v8010 = vunpack.c.l.b16 %v7715
  %v8011 = vunpack.c.l.b16 %v7716
  %v8012 = vunpack.c.l.b16 %v7717
  %v8013 = vunpack.c.l.b16 %v7718
  %v8014 = vunpack.c.l.b16 %v7719
  %v8015 = vunpack.c.l.b16 %v7720
  %v8016 = vunpack.c.l.b16 %v7721
  %v8017 = vunpack.c.l.b16 %v7722
  %v8018 = vunpack.c.l.b16 %v7723
  %v8019 = vunpack.c.l.b16 %v7724
  %v8020 = vunpack.c.l.b16 %v7725
  %v8021 = vpack.c.b16 %v8002, %v8001
  %v8022 = vpack.c.b16 %v8004, %v8003
  %v8023 = vpack.c.b16 %v8006, %v8005
  %v8024 = vpack.c.b16 %v8008, %v8007
  %v8025 = vpack.c.b16 %v8010, %v8009
  %v8026 = vpack.c.b16 %v8012, %v8011
  %v8027 = vpack.c.b16 %v8014, %v8013
  %v8028 = vpack.c.b16 %v8016, %v8015
  %v8029 = vpack.c.b16 %v8018, %v8017
  %v8030 = vpack.c.b16 %v8020, %v8019
  %v8032 = vsel %vm2766, %v8021, 0
  %v8035 = vsel %vm2766, %v8022, 0
  %v8038 = vsel %vm2766, %v8023, 0
  %v8041 = vsel %vm2766, %v8024, 0
  %v8044 = vsel %vm2766, %v8025, 0
  %v8047 = vsel %vm2766, %v8026, 0
  %v8050 = vsel %vm2766, %v8027, 0
  %v8053 = vsel %vm2766, %v8028, 0
  %v8056 = vsel %vm2766, %v8029, 0
  %v8059 = vsel %vm2766, %v8030, 0
  %v8062 = vsel %vm2394, %v7733, 0
  %8064 = vmatprep.subr.bf16.mxu0 0
  %8065 = vmatpush1.bf16.msra.mxu0 %v8062
  %8066 = vmatprep.subr.bf16.mxu0 0
  %8067 = vmatpush1.bf16.msra.mxu0 %v7732
  %8068 = vmatprep.subr.bf16.mxu0 0
  %8069 = vmatpush1.bf16.msra.mxu0 %v7731
  %8070 = vmatprep.subr.bf16.mxu0 0
  %8071 = vmatpush1.bf16.msra.mxu0 %v7730
  %8072 = vmatprep.subr.bf16.mxu0 0
  %8073 = vmatpush1.bf16.msra.mxu0 %v7729
  %8074 = vmatprep.subr.bf16.mxu0 0
  %8075 = vmatpush1.bf16.msra.mxu0 %v7728
  %8076 = vmatprep.subr.bf16.mxu0 0
  %8077 = vmatpush1.bf16.msra.mxu0 %v7727
  %8078 = vmatprep.subr.bf16.mxu0 0
  %8079 = vmatpush1.bf16.msra.mxu0 %v7726
  %8080 = vmatprep.subr.bf16.mxu0 0
  %8081 = vmatpush2.bf16.msra.mxu0 0
  %8082 = vmatprep.subr.bf16.mxu0 0
  %8083 = vmatpush2.bf16.msra.mxu0 0
  %8084 = vmatprep.subr.bf16.mxu0 0
  %8085 = vmatpush2.bf16.msra.mxu0 0
  %8086 = vmatprep.subr.bf16.mxu0 0
  %8087 = vmatpush2.bf16.msra.mxu0 0
  %8088 = vmatprep.subr.bf16.mxu0 0
  %8089 = vmatpush2.bf16.msra.mxu0 0
  %8090 = vmatprep.subr.bf16.mxu0 0
  %8091 = vmatpush2.bf16.msra.mxu0 0
  %8092 = vmatprep.subr.bf16.mxu0 0
  %8093 = vmatpush2.bf16.msra.mxu0 0
  %8094 = vmatprep.subr.bf16.mxu0 0
  %8095 = vmatpush2.bf16.msra.mxu0 0
  %8096 = vmatprep.mubr.bf16.mxu0 0
  %8097 = vmatmul.mubr.bf16.gmra.mxu0 %v8032
  %v8098 = vpop.f32.mrf.mxu0
  %v8099 = vadd.f32 %v7903, %v8098
  %v8100 = vpop.f32.mrf.mxu0
  %v8101 = vpop.f32.mrf.mxu0
  %v8102 = vadd.f32 %v7906, %v8101
  %v8103 = vpop.f32.mrf.mxu0
  %8104 = vmatprep.mubr.bf16.mxu0 0
  %8105 = vmatmul.mubr.bf16.gmra.mxu0 %v8035
  %v8106 = vpop.f32.mrf.mxu0
  %v8107 = vadd.f32 %v7911, %v8106
  %v8108 = vpop.f32.mrf.mxu0
  %v8109 = vpop.f32.mrf.mxu0
  %v8110 = vadd.f32 %v7914, %v8109
  %v8111 = vpop.f32.mrf.mxu0
  %8112 = vmatprep.mubr.bf16.mxu0 0
  %8113 = vmatmul.mubr.bf16.gmra.mxu0 %v8038
  %v8114 = vpop.f32.mrf.mxu0
  %v8115 = vadd.f32 %v7919, %v8114
  %v8116 = vpop.f32.mrf.mxu0
  %v8117 = vpop.f32.mrf.mxu0
  %v8118 = vadd.f32 %v7922, %v8117
  %v8119 = vpop.f32.mrf.mxu0
  %8120 = vmatprep.mubr.bf16.mxu0 0
  %8121 = vmatmul.mubr.bf16.gmra.mxu0 %v8041
  %v8122 = vpop.f32.mrf.mxu0
  %v8123 = vadd.f32 %v7927, %v8122
  %v8124 = vpop.f32.mrf.mxu0
  %v8125 = vpop.f32.mrf.mxu0
  %v8126 = vadd.f32 %v7930, %v8125
  %v8127 = vpop.f32.mrf.mxu0
  %8128 = vmatprep.mubr.bf16.mxu0 0
  %8129 = vmatmul.mubr.bf16.gmra.mxu0 %v8044
  %v8130 = vpop.f32.mrf.mxu0
  %v8131 = vadd.f32 %v7935, %v8130
  %v8132 = vpop.f32.mrf.mxu0
  %v8133 = vpop.f32.mrf.mxu0
  %v8134 = vadd.f32 %v7938, %v8133
  %v8135 = vpop.f32.mrf.mxu0
  %8136 = vmatprep.mubr.bf16.mxu0 0
  %8137 = vmatmul.mubr.bf16.gmra.mxu0 %v8047
  %v8138 = vpop.f32.mrf.mxu0
  %v8139 = vadd.f32 %v7943, %v8138
  %v8140 = vpop.f32.mrf.mxu0
  %v8141 = vpop.f32.mrf.mxu0
  %v8142 = vadd.f32 %v7946, %v8141
  %v8143 = vpop.f32.mrf.mxu0
  %8144 = vmatprep.mubr.bf16.mxu0 0
  %8145 = vmatmul.mubr.bf16.gmra.mxu0 %v8050
  %v8146 = vpop.f32.mrf.mxu0
  %v8147 = vadd.f32 %v7951, %v8146
  %v8148 = vpop.f32.mrf.mxu0
  %v8149 = vpop.f32.mrf.mxu0
  %v8150 = vadd.f32 %v7954, %v8149
  %v8151 = vpop.f32.mrf.mxu0
  %8152 = vmatprep.mubr.bf16.mxu0 0
  %8153 = vmatmul.mubr.bf16.gmra.mxu0 %v8053
  %v8154 = vpop.f32.mrf.mxu0
  %v8155 = vadd.f32 %v7959, %v8154
  %v8156 = vpop.f32.mrf.mxu0
  %v8157 = vpop.f32.mrf.mxu0
  %v8158 = vadd.f32 %v7962, %v8157
  %v8159 = vpop.f32.mrf.mxu0
  %8160 = vmatprep.mubr.bf16.mxu0 0
  %8161 = vmatmul.mubr.bf16.gmra.mxu0 %v8056
  %v8162 = vpop.f32.mrf.mxu0
  %v8163 = vadd.f32 %v7967, %v8162
  %v8164 = vpop.f32.mrf.mxu0
  %v8165 = vpop.f32.mrf.mxu0
  %v8166 = vadd.f32 %v7970, %v8165
  %v8167 = vpop.f32.mrf.mxu0
  %8168 = vmatprep.mubr.bf16.mxu0 0
  %8169 = vmatmul.mubr.bf16.gmra.mxu0 %v8059
  %v8170 = vpop.f32.mrf.mxu0
  %v8171 = vadd.f32 %v7975, %v8170
  %v8172 = vpop.f32.mrf.mxu0
  %v8173 = vpop.f32.mrf.mxu0
  %v8174 = vadd.f32 %v7978, %v8173
  %v8175 = vpop.f32.mrf.mxu0
  %8176 = vdwg.mxu0
  %v8177 = vld [vmem:[%s3109] sm:$0xf]
  %v8178 = vld [vmem:[%s3109 + $0x4] sm:$0xf]
  %v8179 = vld [vmem:[%s3109 + $0x8] sm:$0xf]
  %v8180 = vld [vmem:[%s3109 + $0xc] sm:$0xf]
  %v8181 = vld [vmem:[%s3109 + $0x10] sm:$0xf]
  %v8182 = vld [vmem:[%s3109 + $0x14] sm:$0xf]
  %v8183 = vld [vmem:[%s3109 + $0x18] sm:$0xf]
  %v8184 = vld [vmem:[%s3109 + $0x1c] sm:$0xf]
  %v8185 = vld [vmem:[%s3109 + $0x20] sm:$0xf]
  %v8186 = vld [vmem:[%s3109 + $0x24] sm:$0xf]
  %v8187 = vld [vmem:[%s3109 + $0x28] sm:$0xf]
  %v8188 = vld [vmem:[%s3109 + $0x2c] sm:$0xf]
  %v8189 = vld [vmem:[%s3109 + $0x30] sm:$0xf]
  %v8190 = vld [vmem:[%s3109 + $0x34] sm:$0xf]
  %v8191 = vld [vmem:[%s3109 + $0x38] sm:$0xf]
  %v8192 = vld [vmem:[%s3109 + $0x3c] sm:$0xf]
  %v8193 = vld [vmem:[%s3109 + $0x40] sm:$0xf]
  %v8194 = vld [vmem:[%s3109 + $0x44] sm:$0xf]
  %v8195 = vld [vmem:[%s3109 + $0x48] sm:$0xf]
  %v8196 = vld [vmem:[%s3109 + $0x4c] sm:$0xf]
  %v8217 = vunpack.c.l.b16 %v8177
  %v8218 = vunpack.c.l.b16 %v8178
  %v8219 = vunpack.c.l.b16 %v8179
  %v8220 = vunpack.c.l.b16 %v8180
  %v8221 = vunpack.c.l.b16 %v8181
  %v8222 = vunpack.c.l.b16 %v8182
  %v8223 = vunpack.c.l.b16 %v8183
  %v8224 = vunpack.c.l.b16 %v8184
  %v8225 = vunpack.c.l.b16 %v8185
  %v8226 = vunpack.c.l.b16 %v8186
  %v8227 = vunpack.c.l.b16 %v8187
  %v8228 = vunpack.c.l.b16 %v8188
  %v8229 = vunpack.c.l.b16 %v8189
  %v8230 = vunpack.c.l.b16 %v8190
  %v8231 = vunpack.c.l.b16 %v8191
  %v8232 = vunpack.c.l.b16 %v8192
  %v8233 = vunpack.c.l.b16 %v8193
  %v8234 = vunpack.c.l.b16 %v8194
  %v8235 = vunpack.c.l.b16 %v8195
  %v8236 = vunpack.c.l.b16 %v8196
  %v8237 = vpack.c.b16 %v8218, %v8217
  %v8238 = vpack.c.b16 %v8220, %v8219
  %v8239 = vpack.c.b16 %v8222, %v8221
  %v8240 = vpack.c.b16 %v8224, %v8223
  %v8241 = vpack.c.b16 %v8226, %v8225
  %v8242 = vpack.c.b16 %v8228, %v8227
  %v8243 = vpack.c.b16 %v8230, %v8229
  %v8244 = vpack.c.b16 %v8232, %v8231
  %v8245 = vpack.c.b16 %v8234, %v8233
  %v8246 = vpack.c.b16 %v8236, %v8235
  %8247 = vrot.lane.b32.xlu0 %v7726, 126
  %v8248 = vpop.permute.xlu0 %8247
  %8249 = vrot.lane.b32.xlu0 %v7727, 126
  %v8250 = vpop.permute.xlu0 %8249
  %8251 = vrot.lane.b32.xlu0 %v7728, 126
  %v8252 = vpop.permute.xlu0 %8251
  %8253 = vrot.lane.b32.xlu0 %v7729, 126
  %v8254 = vpop.permute.xlu0 %8253
  %8255 = vrot.lane.b32.xlu0 %v7730, 126
  %v8256 = vpop.permute.xlu0 %8255
  %8257 = vrot.lane.b32.xlu0 %v7731, 126
  %v8258 = vpop.permute.xlu0 %8257
  %8259 = vrot.lane.b32.xlu0 %v7732, 126
  %v8260 = vpop.permute.xlu0 %8259
  %8261 = vrot.lane.b32.xlu0 %v7733, 126
  %v8262 = vpop.permute.xlu0 %8261
  %v8271 = vsel %vm2766, %v8237, 0
  %v8274 = vsel %vm2766, %v8238, 0
  %v8277 = vsel %vm2766, %v8239, 0
  %v8280 = vsel %vm2766, %v8240, 0
  %v8283 = vsel %vm2766, %v8241, 0
  %v8286 = vsel %vm2766, %v8242, 0
  %v8289 = vsel %vm2766, %v8243, 0
  %v8292 = vsel %vm2766, %v8244, 0
  %v8295 = vsel %vm2766, %v8245, 0
  %v8298 = vsel %vm2766, %v8246, 0
  %v8301 = vsel %vm2394, %v8262, 0
  %8303 = vmatprep.subr.bf16.mxu0 0
  %8304 = vmatpush1.bf16.msra.mxu0 %v8301
  %8305 = vmatprep.subr.bf16.mxu0 0
  %8306 = vmatpush1.bf16.msra.mxu0 %v8260
  %8307 = vmatprep.subr.bf16.mxu0 0
  %8308 = vmatpush1.bf16.msra.mxu0 %v8258
  %8309 = vmatprep.subr.bf16.mxu0 0
  %8310 = vmatpush1.bf16.msra.mxu0 %v8256
  %8311 = vmatprep.subr.bf16.mxu0 0
  %8312 = vmatpush1.bf16.msra.mxu0 %v8254
  %8313 = vmatprep.subr.bf16.mxu0 0
  %8314 = vmatpush1.bf16.msra.mxu0 %v8252
  %8315 = vmatprep.subr.bf16.mxu0 0
  %8316 = vmatpush1.bf16.msra.mxu0 %v8250
  %8317 = vmatprep.subr.bf16.mxu0 0
  %8318 = vmatpush1.bf16.msra.mxu0 %v8248
  %8319 = vmatprep.subr.bf16.mxu0 0
  %8320 = vmatpush2.bf16.msra.mxu0 0
  %8321 = vmatprep.subr.bf16.mxu0 0
  %8322 = vmatpush2.bf16.msra.mxu0 0
  %8323 = vmatprep.subr.bf16.mxu0 0
  %8324 = vmatpush2.bf16.msra.mxu0 0
  %8325 = vmatprep.subr.bf16.mxu0 0
  %8326 = vmatpush2.bf16.msra.mxu0 0
  %8327 = vmatprep.subr.bf16.mxu0 0
  %8328 = vmatpush2.bf16.msra.mxu0 0
  %8329 = vmatprep.subr.bf16.mxu0 0
  %8330 = vmatpush2.bf16.msra.mxu0 0
  %8331 = vmatprep.subr.bf16.mxu0 0
  %8332 = vmatpush2.bf16.msra.mxu0 0
  %8333 = vmatprep.subr.bf16.mxu0 0
  %8334 = vmatpush2.bf16.msra.mxu0 0
  %8335 = vmatprep.mubr.bf16.mxu0 0
  %8336 = vmatmul.mubr.bf16.gmra.mxu0 %v8271
  %v8337 = vpop.f32.mrf.mxu0
  %v8338 = vadd.f32 0.0, %v8337
  %v8339 = vpop.f32.mrf.mxu0
  %v8340 = vpop.f32.mrf.mxu0
  %v8341 = vadd.f32 0.0, %v8340
  %v8342 = vpop.f32.mrf.mxu0
  %8343 = vmatprep.mubr.bf16.mxu0 0
  %8344 = vmatmul.mubr.bf16.gmra.mxu0 %v8274
  %v8345 = vpop.f32.mrf.mxu0
  %v8346 = vadd.f32 0.0, %v8345
  %v8347 = vpop.f32.mrf.mxu0
  %v8348 = vpop.f32.mrf.mxu0
  %v8349 = vadd.f32 0.0, %v8348
  %v8350 = vpop.f32.mrf.mxu0
  %8351 = vmatprep.mubr.bf16.mxu0 0
  %8352 = vmatmul.mubr.bf16.gmra.mxu0 %v8277
  %v8353 = vpop.f32.mrf.mxu0
  %v8354 = vadd.f32 0.0, %v8353
  %v8355 = vpop.f32.mrf.mxu0
  %v8356 = vpop.f32.mrf.mxu0
  %v8357 = vadd.f32 0.0, %v8356
  %v8358 = vpop.f32.mrf.mxu0
  %8359 = vmatprep.mubr.bf16.mxu0 0
  %8360 = vmatmul.mubr.bf16.gmra.mxu0 %v8280
  %v8361 = vpop.f32.mrf.mxu0
  %v8362 = vadd.f32 0.0, %v8361
  %v8363 = vpop.f32.mrf.mxu0
  %v8364 = vpop.f32.mrf.mxu0
  %v8365 = vadd.f32 0.0, %v8364
  %v8366 = vpop.f32.mrf.mxu0
  %8367 = vmatprep.mubr.bf16.mxu0 0
  %8368 = vmatmul.mubr.bf16.gmra.mxu0 %v8283
  %v8369 = vpop.f32.mrf.mxu0
  %v8370 = vadd.f32 0.0, %v8369
  %v8371 = vpop.f32.mrf.mxu0
  %v8372 = vpop.f32.mrf.mxu0
  %v8373 = vadd.f32 0.0, %v8372
  %v8374 = vpop.f32.mrf.mxu0
  %8375 = vmatprep.mubr.bf16.mxu0 0
  %8376 = vmatmul.mubr.bf16.gmra.mxu0 %v8286
  %v8377 = vpop.f32.mrf.mxu0
  %v8378 = vadd.f32 0.0, %v8377
  %v8379 = vpop.f32.mrf.mxu0
  %v8380 = vpop.f32.mrf.mxu0
  %v8381 = vadd.f32 0.0, %v8380
  %v8382 = vpop.f32.mrf.mxu0
  %8383 = vmatprep.mubr.bf16.mxu0 0
  %8384 = vmatmul.mubr.bf16.gmra.mxu0 %v8289
  %v8385 = vpop.f32.mrf.mxu0
  %v8386 = vadd.f32 0.0, %v8385
  %v8387 = vpop.f32.mrf.mxu0
  %v8388 = vpop.f32.mrf.mxu0
  %v8389 = vadd.f32 0.0, %v8388
  %v8390 = vpop.f32.mrf.mxu0
  %8391 = vmatprep.mubr.bf16.mxu0 0
  %8392 = vmatmul.mubr.bf16.gmra.mxu0 %v8292
  %v8393 = vpop.f32.mrf.mxu0
  %v8394 = vadd.f32 0.0, %v8393
  %v8395 = vpop.f32.mrf.mxu0
  %v8396 = vpop.f32.mrf.mxu0
  %v8397 = vadd.f32 0.0, %v8396
  %v8398 = vpop.f32.mrf.mxu0
  %8399 = vmatprep.mubr.bf16.mxu0 0
  %8400 = vmatmul.mubr.bf16.gmra.mxu0 %v8295
  %v8401 = vpop.f32.mrf.mxu0
  %v8402 = vadd.f32 0.0, %v8401
  %v8403 = vpop.f32.mrf.mxu0
  %v8404 = vpop.f32.mrf.mxu0
  %v8405 = vadd.f32 0.0, %v8404
  %v8406 = vpop.f32.mrf.mxu0
  %8407 = vmatprep.mubr.bf16.mxu0 0
  %8408 = vmatmul.mubr.bf16.gmra.mxu0 %v8298
  %v8409 = vpop.f32.mrf.mxu0
  %v8410 = vadd.f32 0.0, %v8409
  %v8411 = vpop.f32.mrf.mxu0
  %v8412 = vpop.f32.mrf.mxu0
  %v8413 = vadd.f32 0.0, %v8412
  %v8414 = vpop.f32.mrf.mxu0
  %8415 = vdwg.mxu0
  %v8416 = vadd.f32 %v8099, %v8338
  %v8417 = vadd.f32 %v8102, %v8341
  %v8418 = vadd.f32 %v8107, %v8346
  %v8419 = vadd.f32 %v8110, %v8349
  %v8420 = vadd.f32 %v8115, %v8354
  %v8421 = vadd.f32 %v8118, %v8357
  %v8422 = vadd.f32 %v8123, %v8362
  %v8423 = vadd.f32 %v8126, %v8365
  %v8424 = vadd.f32 %v8131, %v8370
  %v8425 = vadd.f32 %v8134, %v8373
  %v8426 = vadd.f32 %v8139, %v8378
  %v8427 = vadd.f32 %v8142, %v8381
  %v8428 = vadd.f32 %v8147, %v8386
  %v8429 = vadd.f32 %v8150, %v8389
  %v8430 = vadd.f32 %v8155, %v8394
  %v8431 = vadd.f32 %v8158, %v8397
  %v8432 = vadd.f32 %v8163, %v8402
  %v8433 = vadd.f32 %v8166, %v8405
  %v8434 = vadd.f32 %v8171, %v8410
  %v8435 = vadd.f32 %v8174, %v8413
  %v8436 = vld [vmem:[%s3369] sm:$0xf]
  %v8437 = vld [vmem:[%s3369 + $0x4] sm:$0xf]
  %v8438 = vld [vmem:[%s3369 + $0x8] sm:$0xf]
  %v8439 = vld [vmem:[%s3369 + $0xc] sm:$0xf]
  %v8440 = vld [vmem:[%s3369 + $0x10] sm:$0xf]
  %v8441 = vld [vmem:[%s3369 + $0x14] sm:$0xf]
  %v8442 = vld [vmem:[%s3369 + $0x18] sm:$0xf]
  %v8443 = vld [vmem:[%s3369 + $0x1c] sm:$0xf]
  %v8444 = vld [vmem:[%s3369 + $0x20] sm:$0xf]
  %v8445 = vld [vmem:[%s3369 + $0x24] sm:$0xf]
  %v8446 = vld [vmem:[%s3369 + $0x28] sm:$0xf]
  %v8447 = vld [vmem:[%s3369 + $0x2c] sm:$0xf]
  %v8448 = vld [vmem:[%s3369 + $0x30] sm:$0xf]
  %v8449 = vld [vmem:[%s3369 + $0x34] sm:$0xf]
  %v8450 = vld [vmem:[%s3369 + $0x38] sm:$0xf]
  %v8451 = vld [vmem:[%s3369 + $0x3c] sm:$0xf]
  %v8452 = vld [vmem:[%s3369 + $0x40] sm:$0xf]
  %v8453 = vld [vmem:[%s3369 + $0x44] sm:$0xf]
  %v8454 = vld [vmem:[%s3369 + $0x48] sm:$0xf]
  %v8455 = vld [vmem:[%s3369 + $0x4c] sm:$0xf]
  %v8476 = vunpack.c.l.b16 %v8436
  %v8477 = vunpack.c.l.b16 %v8437
  %v8478 = vunpack.c.l.b16 %v8438
  %v8479 = vunpack.c.l.b16 %v8439
  %v8480 = vunpack.c.l.b16 %v8440
  %v8481 = vunpack.c.l.b16 %v8441
  %v8482 = vunpack.c.l.b16 %v8442
  %v8483 = vunpack.c.l.b16 %v8443
  %v8484 = vunpack.c.l.b16 %v8444
  %v8485 = vunpack.c.l.b16 %v8445
  %v8486 = vunpack.c.l.b16 %v8446
  %v8487 = vunpack.c.l.b16 %v8447
  %v8488 = vunpack.c.l.b16 %v8448
  %v8489 = vunpack.c.l.b16 %v8449
  %v8490 = vunpack.c.l.b16 %v8450
  %v8491 = vunpack.c.l.b16 %v8451
  %v8492 = vunpack.c.l.b16 %v8452
  %v8493 = vunpack.c.l.b16 %v8453
  %v8494 = vunpack.c.l.b16 %v8454
  %v8495 = vunpack.c.l.b16 %v8455
  %v8496 = vpack.c.b16 %v8477, %v8476
  %v8497 = vpack.c.b16 %v8479, %v8478
  %v8498 = vpack.c.b16 %v8481, %v8480
  %v8499 = vpack.c.b16 %v8483, %v8482
  %v8500 = vpack.c.b16 %v8485, %v8484
  %v8501 = vpack.c.b16 %v8487, %v8486
  %v8502 = vpack.c.b16 %v8489, %v8488
  %v8503 = vpack.c.b16 %v8491, %v8490
  %v8504 = vpack.c.b16 %v8493, %v8492
  %v8505 = vpack.c.b16 %v8495, %v8494
  %8506 = vrot.lane.b32.xlu0 %v7726, 125
  %v8507 = vpop.permute.xlu0 %8506
  %8508 = vrot.lane.b32.xlu0 %v7727, 125
  %v8509 = vpop.permute.xlu0 %8508
  %8510 = vrot.lane.b32.xlu0 %v7728, 125
  %v8511 = vpop.permute.xlu0 %8510
  %8512 = vrot.lane.b32.xlu0 %v7729, 125
  %v8513 = vpop.permute.xlu0 %8512
  %8514 = vrot.lane.b32.xlu0 %v7730, 125
  %v8515 = vpop.permute.xlu0 %8514
  %8516 = vrot.lane.b32.xlu0 %v7731, 125
  %v8517 = vpop.permute.xlu0 %8516
  %8518 = vrot.lane.b32.xlu0 %v7732, 125
  %v8519 = vpop.permute.xlu0 %8518
  %8520 = vrot.lane.b32.xlu0 %v7733, 125
  %v8521 = vpop.permute.xlu0 %8520
  %v8530 = vsel %vm2766, %v8496, 0
  %v8533 = vsel %vm2766, %v8497, 0
  %v8536 = vsel %vm2766, %v8498, 0
  %v8539 = vsel %vm2766, %v8499, 0
  %v8542 = vsel %vm2766, %v8500, 0
  %v8545 = vsel %vm2766, %v8501, 0
  %v8548 = vsel %vm2766, %v8502, 0
  %v8551 = vsel %vm2766, %v8503, 0
  %v8554 = vsel %vm2766, %v8504, 0
  %v8557 = vsel %vm2766, %v8505, 0
  %v8560 = vsel %vm2394, %v8521, 0
  %8562 = vmatprep.subr.bf16.mxu0 0
  %8563 = vmatpush1.bf16.msra.mxu0 %v8560
  %8564 = vmatprep.subr.bf16.mxu0 0
  %8565 = vmatpush1.bf16.msra.mxu0 %v8519
  %8566 = vmatprep.subr.bf16.mxu0 0
  %8567 = vmatpush1.bf16.msra.mxu0 %v8517
  %8568 = vmatprep.subr.bf16.mxu0 0
  %8569 = vmatpush1.bf16.msra.mxu0 %v8515
  %8570 = vmatprep.subr.bf16.mxu0 0
  %8571 = vmatpush1.bf16.msra.mxu0 %v8513
  %8572 = vmatprep.subr.bf16.mxu0 0
  %8573 = vmatpush1.bf16.msra.mxu0 %v8511
  %8574 = vmatprep.subr.bf16.mxu0 0
  %8575 = vmatpush1.bf16.msra.mxu0 %v8509
  %8576 = vmatprep.subr.bf16.mxu0 0
  %8577 = vmatpush1.bf16.msra.mxu0 %v8507
  %8578 = vmatprep.subr.bf16.mxu0 0
  %8579 = vmatpush2.bf16.msra.mxu0 0
  %8580 = vmatprep.subr.bf16.mxu0 0
  %8581 = vmatpush2.bf16.msra.mxu0 0
  %8582 = vmatprep.subr.bf16.mxu0 0
  %8583 = vmatpush2.bf16.msra.mxu0 0
  %8584 = vmatprep.subr.bf16.mxu0 0
  %8585 = vmatpush2.bf16.msra.mxu0 0
  %8586 = vmatprep.subr.bf16.mxu0 0
  %8587 = vmatpush2.bf16.msra.mxu0 0
  %8588 = vmatprep.subr.bf16.mxu0 0
  %8589 = vmatpush2.bf16.msra.mxu0 0
  %8590 = vmatprep.subr.bf16.mxu0 0
  %8591 = vmatpush2.bf16.msra.mxu0 0
  %8592 = vmatprep.subr.bf16.mxu0 0
  %8593 = vmatpush2.bf16.msra.mxu0 0
  %8594 = vmatprep.mubr.bf16.mxu0 0
  %8595 = vmatmul.mubr.bf16.gmra.mxu0 %v8530
  %v8596 = vpop.f32.mrf.mxu0
  %v8597 = vadd.f32 0.0, %v8596
  %v8598 = vpop.f32.mrf.mxu0
  %v8599 = vpop.f32.mrf.mxu0
  %v8600 = vadd.f32 0.0, %v8599
  %v8601 = vpop.f32.mrf.mxu0
  %8602 = vmatprep.mubr.bf16.mxu0 0
  %8603 = vmatmul.mubr.bf16.gmra.mxu0 %v8533
  %v8604 = vpop.f32.mrf.mxu0
  %v8605 = vadd.f32 0.0, %v8604
  %v8606 = vpop.f32.mrf.mxu0
  %v8607 = vpop.f32.mrf.mxu0
  %v8608 = vadd.f32 0.0, %v8607
  %v8609 = vpop.f32.mrf.mxu0
  %8610 = vmatprep.mubr.bf16.mxu0 0
  %8611 = vmatmul.mubr.bf16.gmra.mxu0 %v8536
  %v8612 = vpop.f32.mrf.mxu0
  %v8613 = vadd.f32 0.0, %v8612
  %v8614 = vpop.f32.mrf.mxu0
  %v8615 = vpop.f32.mrf.mxu0
  %v8616 = vadd.f32 0.0, %v8615
  %v8617 = vpop.f32.mrf.mxu0
  %8618 = vmatprep.mubr.bf16.mxu0 0
  %8619 = vmatmul.mubr.bf16.gmra.mxu0 %v8539
  %v8620 = vpop.f32.mrf.mxu0
  %v8621 = vadd.f32 0.0, %v8620
  %v8622 = vpop.f32.mrf.mxu0
  %v8623 = vpop.f32.mrf.mxu0
  %v8624 = vadd.f32 0.0, %v8623
  %v8625 = vpop.f32.mrf.mxu0
  %8626 = vmatprep.mubr.bf16.mxu0 0
  %8627 = vmatmul.mubr.bf16.gmra.mxu0 %v8542
  %v8628 = vpop.f32.mrf.mxu0
  %v8629 = vadd.f32 0.0, %v8628
  %v8630 = vpop.f32.mrf.mxu0
  %v8631 = vpop.f32.mrf.mxu0
  %v8632 = vadd.f32 0.0, %v8631
  %v8633 = vpop.f32.mrf.mxu0
  %8634 = vmatprep.mubr.bf16.mxu0 0
  %8635 = vmatmul.mubr.bf16.gmra.mxu0 %v8545
  %v8636 = vpop.f32.mrf.mxu0
  %v8637 = vadd.f32 0.0, %v8636
  %v8638 = vpop.f32.mrf.mxu0
  %v8639 = vpop.f32.mrf.mxu0
  %v8640 = vadd.f32 0.0, %v8639
  %v8641 = vpop.f32.mrf.mxu0
  %8642 = vmatprep.mubr.bf16.mxu0 0
  %8643 = vmatmul.mubr.bf16.gmra.mxu0 %v8548
  %v8644 = vpop.f32.mrf.mxu0
  %v8645 = vadd.f32 0.0, %v8644
  %v8646 = vpop.f32.mrf.mxu0
  %v8647 = vpop.f32.mrf.mxu0
  %v8648 = vadd.f32 0.0, %v8647
  %v8649 = vpop.f32.mrf.mxu0
  %8650 = vmatprep.mubr.bf16.mxu0 0
  %8651 = vmatmul.mubr.bf16.gmra.mxu0 %v8551
  %v8652 = vpop.f32.mrf.mxu0
  %v8653 = vadd.f32 0.0, %v8652
  %v8654 = vpop.f32.mrf.mxu0
  %v8655 = vpop.f32.mrf.mxu0
  %v8656 = vadd.f32 0.0, %v8655
  %v8657 = vpop.f32.mrf.mxu0
  %8658 = vmatprep.mubr.bf16.mxu0 0
  %8659 = vmatmul.mubr.bf16.gmra.mxu0 %v8554
  %v8660 = vpop.f32.mrf.mxu0
  %v8661 = vadd.f32 0.0, %v8660
  %v8662 = vpop.f32.mrf.mxu0
  %v8663 = vpop.f32.mrf.mxu0
  %v8664 = vadd.f32 0.0, %v8663
  %v8665 = vpop.f32.mrf.mxu0
  %8666 = vmatprep.mubr.bf16.mxu0 0
  %8667 = vmatmul.mubr.bf16.gmra.mxu0 %v8557
  %v8668 = vpop.f32.mrf.mxu0
  %v8669 = vadd.f32 0.0, %v8668
  %v8670 = vpop.f32.mrf.mxu0
  %v8671 = vpop.f32.mrf.mxu0
  %v8672 = vadd.f32 0.0, %v8671
  %v8673 = vpop.f32.mrf.mxu0
  %8674 = vdwg.mxu0
  %v8675 = vadd.f32 %v8416, %v8597
  %v8676 = vadd.f32 %v8417, %v8600
  %v8677 = vadd.f32 %v8418, %v8605
  %v8678 = vadd.f32 %v8419, %v8608
  %v8679 = vadd.f32 %v8420, %v8613
  %v8680 = vadd.f32 %v8421, %v8616
  %v8681 = vadd.f32 %v8422, %v8621
  %v8682 = vadd.f32 %v8423, %v8624
  %v8683 = vadd.f32 %v8424, %v8629
  %v8684 = vadd.f32 %v8425, %v8632
  %v8685 = vadd.f32 %v8426, %v8637
  %v8686 = vadd.f32 %v8427, %v8640
  %v8687 = vadd.f32 %v8428, %v8645
  %v8688 = vadd.f32 %v8429, %v8648
  %v8689 = vadd.f32 %v8430, %v8653
  %v8690 = vadd.f32 %v8431, %v8656
  %v8691 = vadd.f32 %v8432, %v8661
  %v8692 = vadd.f32 %v8433, %v8664
  %v8693 = vadd.f32 %v8434, %v8669
  %v8694 = vadd.f32 %v8435, %v8672
  %v8695 = vld [vmem:[%s3629] sm:$0xf]
  %v8696 = vld [vmem:[%s3629 + $0x4] sm:$0xf]
  %v8697 = vld [vmem:[%s3629 + $0x8] sm:$0xf]
  %v8698 = vld [vmem:[%s3629 + $0xc] sm:$0xf]
  %v8699 = vld [vmem:[%s3629 + $0x10] sm:$0xf]
  %v8700 = vld [vmem:[%s3629 + $0x14] sm:$0xf]
  %v8701 = vld [vmem:[%s3629 + $0x18] sm:$0xf]
  %v8702 = vld [vmem:[%s3629 + $0x1c] sm:$0xf]
  %v8703 = vld [vmem:[%s3629 + $0x20] sm:$0xf]
  %v8704 = vld [vmem:[%s3629 + $0x24] sm:$0xf]
  %v8705 = vld [vmem:[%s3629 + $0x28] sm:$0xf]
  %v8706 = vld [vmem:[%s3629 + $0x2c] sm:$0xf]
  %v8707 = vld [vmem:[%s3629 + $0x30] sm:$0xf]
  %v8708 = vld [vmem:[%s3629 + $0x34] sm:$0xf]
  %v8709 = vld [vmem:[%s3629 + $0x38] sm:$0xf]
  %v8710 = vld [vmem:[%s3629 + $0x3c] sm:$0xf]
  %v8711 = vld [vmem:[%s3629 + $0x40] sm:$0xf]
  %v8712 = vld [vmem:[%s3629 + $0x44] sm:$0xf]
  %v8713 = vld [vmem:[%s3629 + $0x48] sm:$0xf]
  %v8714 = vld [vmem:[%s3629 + $0x4c] sm:$0xf]
  %v8735 = vunpack.c.l.b16 %v8695
  %v8736 = vunpack.c.l.b16 %v8696
  %v8737 = vunpack.c.l.b16 %v8697
  %v8738 = vunpack.c.l.b16 %v8698
  %v8739 = vunpack.c.l.b16 %v8699
  %v8740 = vunpack.c.l.b16 %v8700
  %v8741 = vunpack.c.l.b16 %v8701
  %v8742 = vunpack.c.l.b16 %v8702
  %v8743 = vunpack.c.l.b16 %v8703
  %v8744 = vunpack.c.l.b16 %v8704
  %v8745 = vunpack.c.l.b16 %v8705
  %v8746 = vunpack.c.l.b16 %v8706
  %v8747 = vunpack.c.l.b16 %v8707
  %v8748 = vunpack.c.l.b16 %v8708
  %v8749 = vunpack.c.l.b16 %v8709
  %v8750 = vunpack.c.l.b16 %v8710
  %v8751 = vunpack.c.l.b16 %v8711
  %v8752 = vunpack.c.l.b16 %v8712
  %v8753 = vunpack.c.l.b16 %v8713
  %v8754 = vunpack.c.l.b16 %v8714
  %v8755 = vpack.c.b16 %v8736, %v8735
  %v8756 = vpack.c.b16 %v8738, %v8737
  %v8757 = vpack.c.b16 %v8740, %v8739
  %v8758 = vpack.c.b16 %v8742, %v8741
  %v8759 = vpack.c.b16 %v8744, %v8743
  %v8760 = vpack.c.b16 %v8746, %v8745
  %v8761 = vpack.c.b16 %v8748, %v8747
  %v8762 = vpack.c.b16 %v8750, %v8749
  %v8763 = vpack.c.b16 %v8752, %v8751
  %v8764 = vpack.c.b16 %v8754, %v8753
  %8765 = vrot.lane.b32.xlu0 %v7726, 124
  %v8766 = vpop.permute.xlu0 %8765
  %8767 = vrot.lane.b32.xlu0 %v7727, 124
  %v8768 = vpop.permute.xlu0 %8767
  %8769 = vrot.lane.b32.xlu0 %v7728, 124
  %v8770 = vpop.permute.xlu0 %8769
  %8771 = vrot.lane.b32.xlu0 %v7729, 124
  %v8772 = vpop.permute.xlu0 %8771
  %8773 = vrot.lane.b32.xlu0 %v7730, 124
  %v8774 = vpop.permute.xlu0 %8773
  %8775 = vrot.lane.b32.xlu0 %v7731, 124
  %v8776 = vpop.permute.xlu0 %8775
  %8777 = vrot.lane.b32.xlu0 %v7732, 124
  %v8778 = vpop.permute.xlu0 %8777
  %8779 = vrot.lane.b32.xlu0 %v7733, 124
  %v8780 = vpop.permute.xlu0 %8779
  %v8789 = vsel %vm2766, %v8755, 0
  %v8792 = vsel %vm2766, %v8756, 0
  %v8795 = vsel %vm2766, %v8757, 0
  %v8798 = vsel %vm2766, %v8758, 0
  %v8801 = vsel %vm2766, %v8759, 0
  %v8804 = vsel %vm2766, %v8760, 0
  %v8807 = vsel %vm2766, %v8761, 0
  %v8810 = vsel %vm2766, %v8762, 0
  %v8813 = vsel %vm2766, %v8763, 0
  %v8816 = vsel %vm2766, %v8764, 0
  %v8819 = vsel %vm2394, %v8780, 0
  %8821 = vmatprep.subr.bf16.mxu0 0
  %8822 = vmatpush1.bf16.msra.mxu0 %v8819
  %8823 = vmatprep.subr.bf16.mxu0 0
  %8824 = vmatpush1.bf16.msra.mxu0 %v8778
  %8825 = vmatprep.subr.bf16.mxu0 0
  %8826 = vmatpush1.bf16.msra.mxu0 %v8776
  %8827 = vmatprep.subr.bf16.mxu0 0
  %8828 = vmatpush1.bf16.msra.mxu0 %v8774
  %8829 = vmatprep.subr.bf16.mxu0 0
  %8830 = vmatpush1.bf16.msra.mxu0 %v8772
  %8831 = vmatprep.subr.bf16.mxu0 0
  %8832 = vmatpush1.bf16.msra.mxu0 %v8770
  %8833 = vmatprep.subr.bf16.mxu0 0
  %8834 = vmatpush1.bf16.msra.mxu0 %v8768
  %8835 = vmatprep.subr.bf16.mxu0 0
  %8836 = vmatpush1.bf16.msra.mxu0 %v8766
  %8837 = vmatprep.subr.bf16.mxu0 0
  %8838 = vmatpush2.bf16.msra.mxu0 0
  %8839 = vmatprep.subr.bf16.mxu0 0
  %8840 = vmatpush2.bf16.msra.mxu0 0
  %8841 = vmatprep.subr.bf16.mxu0 0
  %8842 = vmatpush2.bf16.msra.mxu0 0
  %8843 = vmatprep.subr.bf16.mxu0 0
  %8844 = vmatpush2.bf16.msra.mxu0 0
  %8845 = vmatprep.subr.bf16.mxu0 0
  %8846 = vmatpush2.bf16.msra.mxu0 0
  %8847 = vmatprep.subr.bf16.mxu0 0
  %8848 = vmatpush2.bf16.msra.mxu0 0
  %8849 = vmatprep.subr.bf16.mxu0 0
  %8850 = vmatpush2.bf16.msra.mxu0 0
  %8851 = vmatprep.subr.bf16.mxu0 0
  %8852 = vmatpush2.bf16.msra.mxu0 0
  %8853 = vmatprep.mubr.bf16.mxu0 0
  %8854 = vmatmul.mubr.bf16.gmra.mxu0 %v8789
  %v8855 = vpop.f32.mrf.mxu0
  %v8856 = vadd.f32 0.0, %v8855
  %v8857 = vpop.f32.mrf.mxu0
  %v8858 = vpop.f32.mrf.mxu0
  %v8859 = vadd.f32 0.0, %v8858
  %v8860 = vpop.f32.mrf.mxu0
  %8861 = vmatprep.mubr.bf16.mxu0 0
  %8862 = vmatmul.mubr.bf16.gmra.mxu0 %v8792
  %v8863 = vpop.f32.mrf.mxu0
  %v8864 = vadd.f32 0.0, %v8863
  %v8865 = vpop.f32.mrf.mxu0
  %v8866 = vpop.f32.mrf.mxu0
  %v8867 = vadd.f32 0.0, %v8866
  %v8868 = vpop.f32.mrf.mxu0
  %8869 = vmatprep.mubr.bf16.mxu0 0
  %8870 = vmatmul.mubr.bf16.gmra.mxu0 %v8795
  %v8871 = vpop.f32.mrf.mxu0
  %v8872 = vadd.f32 0.0, %v8871
  %v8873 = vpop.f32.mrf.mxu0
  %v8874 = vpop.f32.mrf.mxu0
  %v8875 = vadd.f32 0.0, %v8874
  %v8876 = vpop.f32.mrf.mxu0
  %8877 = vmatprep.mubr.bf16.mxu0 0
  %8878 = vmatmul.mubr.bf16.gmra.mxu0 %v8798
  %v8879 = vpop.f32.mrf.mxu0
  %v8880 = vadd.f32 0.0, %v8879
  %v8881 = vpop.f32.mrf.mxu0
  %v8882 = vpop.f32.mrf.mxu0
  %v8883 = vadd.f32 0.0, %v8882
  %v8884 = vpop.f32.mrf.mxu0
  %8885 = vmatprep.mubr.bf16.mxu0 0
  %8886 = vmatmul.mubr.bf16.gmra.mxu0 %v8801
  %v8887 = vpop.f32.mrf.mxu0
  %v8888 = vadd.f32 0.0, %v8887
  %v8889 = vpop.f32.mrf.mxu0
  %v8890 = vpop.f32.mrf.mxu0
  %v8891 = vadd.f32 0.0, %v8890
  %v8892 = vpop.f32.mrf.mxu0
  %8893 = vmatprep.mubr.bf16.mxu0 0
  %8894 = vmatmul.mubr.bf16.gmra.mxu0 %v8804
  %v8895 = vpop.f32.mrf.mxu0
  %v8896 = vadd.f32 0.0, %v8895
  %v8897 = vpop.f32.mrf.mxu0
  %v8898 = vpop.f32.mrf.mxu0
  %v8899 = vadd.f32 0.0, %v8898
  %v8900 = vpop.f32.mrf.mxu0
  %8901 = vmatprep.mubr.bf16.mxu0 0
  %8902 = vmatmul.mubr.bf16.gmra.mxu0 %v8807
  %v8903 = vpop.f32.mrf.mxu0
  %v8904 = vadd.f32 0.0, %v8903
  %v8905 = vpop.f32.mrf.mxu0
  %v8906 = vpop.f32.mrf.mxu0
  %v8907 = vadd.f32 0.0, %v8906
  %v8908 = vpop.f32.mrf.mxu0
  %8909 = vmatprep.mubr.bf16.mxu0 0
  %8910 = vmatmul.mubr.bf16.gmra.mxu0 %v8810
  %v8911 = vpop.f32.mrf.mxu0
  %v8912 = vadd.f32 0.0, %v8911
  %v8913 = vpop.f32.mrf.mxu0
  %v8914 = vpop.f32.mrf.mxu0
  %v8915 = vadd.f32 0.0, %v8914
  %v8916 = vpop.f32.mrf.mxu0
  %8917 = vmatprep.mubr.bf16.mxu0 0
  %8918 = vmatmul.mubr.bf16.gmra.mxu0 %v8813
  %v8919 = vpop.f32.mrf.mxu0
  %v8920 = vadd.f32 0.0, %v8919
  %v8921 = vpop.f32.mrf.mxu0
  %v8922 = vpop.f32.mrf.mxu0
  %v8923 = vadd.f32 0.0, %v8922
  %v8924 = vpop.f32.mrf.mxu0
  %8925 = vmatprep.mubr.bf16.mxu0 0
  %8926 = vmatmul.mubr.bf16.gmra.mxu0 %v8816
  %v8927 = vpop.f32.mrf.mxu0
  %v8928 = vadd.f32 0.0, %v8927
  %v8929 = vpop.f32.mrf.mxu0
  %v8930 = vpop.f32.mrf.mxu0
  %v8931 = vadd.f32 0.0, %v8930
  %v8932 = vpop.f32.mrf.mxu0
  %8933 = vdwg.mxu0
  %v8934 = vadd.f32 %v8675, %v8856
  %v8935 = vadd.f32 %v8676, %v8859
  %v8936 = vadd.f32 %v8677, %v8864
  %v8937 = vadd.f32 %v8678, %v8867
  %v8938 = vadd.f32 %v8679, %v8872
  %v8939 = vadd.f32 %v8680, %v8875
  %v8940 = vadd.f32 %v8681, %v8880
  %v8941 = vadd.f32 %v8682, %v8883
  %v8942 = vadd.f32 %v8683, %v8888
  %v8943 = vadd.f32 %v8684, %v8891
  %v8944 = vadd.f32 %v8685, %v8896
  %v8945 = vadd.f32 %v8686, %v8899
  %v8946 = vadd.f32 %v8687, %v8904
  %v8947 = vadd.f32 %v8688, %v8907
  %v8948 = vadd.f32 %v8689, %v8912
  %v8949 = vadd.f32 %v8690, %v8915
  %v8950 = vadd.f32 %v8691, %v8920
  %v8951 = vadd.f32 %v8692, %v8923
  %v8952 = vadd.f32 %v8693, %v8928
  %v8953 = vadd.f32 %v8694, %v8931
  %v8954 = vld [vmem:[%s6] sm:$0xff]
  %v8955 = vld [vmem:[%s6 + $0x8] sm:$0xff]
  %v8956 = vld [vmem:[%s6 + $0x10] sm:$0xff]
  %v8957 = vld [vmem:[%s6 + $0x18] sm:$0xff]
  %v8958 = vld [vmem:[%s6 + $0x20] sm:$0xff]
  %v8959 = vld [vmem:[%s6 + $0x28] sm:$0xff]
  %v8960 = vld [vmem:[%s6 + $0x30] sm:$0xff]
  %v8961 = vld [vmem:[%s6 + $0x38] sm:$0xff]
  %v8962 = vld [vmem:[%s6 + $0x40] sm:$0xff]
  %v8963 = vld [vmem:[%s6 + $0x48] sm:$0xff]
  %v8964 = vld [vmem:[%s6 + $0x50] sm:$0xff]
  %v8965 = vld [vmem:[%s6 + $0x58] sm:$0xff]
  %v8966 = vld [vmem:[%s6 + $0x60] sm:$0xff]
  %v8967 = vld [vmem:[%s6 + $0x68] sm:$0xff]
  %v8968 = vld [vmem:[%s6 + $0x70] sm:$0xff]
  %v8969 = vld [vmem:[%s6 + $0x78] sm:$0xff]
  %v8970 = vld [vmem:[%s6 + $0x80] sm:$0xff]
  %v8971 = vld [vmem:[%s6 + $0x88] sm:$0xff]
  %v8972 = vld [vmem:[%s6 + $0x90] sm:$0xff]
  %v8973 = vld [vmem:[%s6 + $0x98] sm:$0xff]
  %8975 = vset.pattern.permute.xlu0 0
  %8976 = vperm.xlu0 %8975, %v8954
  %v8977 = vpop.permute.xlu0 %8976
  %8980 = vset.pattern.permute.xlu0 0
  %8981 = vperm.xlu0 %8980, %v8955
  %v8982 = vpop.permute.xlu0 %8981
  %8985 = vset.pattern.permute.xlu0 0
  %8986 = vperm.xlu0 %8985, %v8956
  %v8987 = vpop.permute.xlu0 %8986
  %8990 = vset.pattern.permute.xlu0 0
  %8991 = vperm.xlu0 %8990, %v8957
  %v8992 = vpop.permute.xlu0 %8991
  %8995 = vset.pattern.permute.xlu0 0
  %8996 = vperm.xlu0 %8995, %v8958
  %v8997 = vpop.permute.xlu0 %8996
  %9000 = vset.pattern.permute.xlu0 0
  %9001 = vperm.xlu0 %9000, %v8959
  %v9002 = vpop.permute.xlu0 %9001
  %9005 = vset.pattern.permute.xlu0 0
  %9006 = vperm.xlu0 %9005, %v8960
  %v9007 = vpop.permute.xlu0 %9006
  %9010 = vset.pattern.permute.xlu0 0
  %9011 = vperm.xlu0 %9010, %v8961
  %v9012 = vpop.permute.xlu0 %9011
  %9015 = vset.pattern.permute.xlu0 0
  %9016 = vperm.xlu0 %9015, %v8962
  %v9017 = vpop.permute.xlu0 %9016
  %9020 = vset.pattern.permute.xlu0 0
  %9021 = vperm.xlu0 %9020, %v8963
  %v9022 = vpop.permute.xlu0 %9021
  %9025 = vset.pattern.permute.xlu0 0
  %9026 = vperm.xlu0 %9025, %v8964
  %v9027 = vpop.permute.xlu0 %9026
  %9030 = vset.pattern.permute.xlu0 0
  %9031 = vperm.xlu0 %9030, %v8965
  %v9032 = vpop.permute.xlu0 %9031
  %9035 = vset.pattern.permute.xlu0 0
  %9036 = vperm.xlu0 %9035, %v8966
  %v9037 = vpop.permute.xlu0 %9036
  %9040 = vset.pattern.permute.xlu0 0
  %9041 = vperm.xlu0 %9040, %v8967
  %v9042 = vpop.permute.xlu0 %9041
  %9045 = vset.pattern.permute.xlu0 0
  %9046 = vperm.xlu0 %9045, %v8968
  %v9047 = vpop.permute.xlu0 %9046
  %9050 = vset.pattern.permute.xlu0 0
  %9051 = vperm.xlu0 %9050, %v8969
  %v9052 = vpop.permute.xlu0 %9051
  %9055 = vset.pattern.permute.xlu0 0
  %9056 = vperm.xlu0 %9055, %v8970
  %v9057 = vpop.permute.xlu0 %9056
  %9060 = vset.pattern.permute.xlu0 0
  %9061 = vperm.xlu0 %9060, %v8971
  %v9062 = vpop.permute.xlu0 %9061
  %9065 = vset.pattern.permute.xlu0 0
  %9066 = vperm.xlu0 %9065, %v8972
  %v9067 = vpop.permute.xlu0 %9066
  %9070 = vset.pattern.permute.xlu0 0
  %9071 = vperm.xlu0 %9070, %v8973
  %v9072 = vpop.permute.xlu0 %9071
  %v9074 = vadd.f32 %v8934, %v8977
  %v9075 = vadd.f32 %v8935, %v8982
  %v9076 = vadd.f32 %v8936, %v8987
  %v9077 = vadd.f32 %v8937, %v8992
  %v9078 = vadd.f32 %v8938, %v8997
  %v9079 = vadd.f32 %v8939, %v9002
  %v9080 = vadd.f32 %v8940, %v9007
  %v9081 = vadd.f32 %v8941, %v9012
  %v9082 = vadd.f32 %v8942, %v9017
  %v9083 = vadd.f32 %v8943, %v9022
  %v9084 = vadd.f32 %v8944, %v9027
  %v9085 = vadd.f32 %v8945, %v9032
  %v9086 = vadd.f32 %v8946, %v9037
  %v9087 = vadd.f32 %v8947, %v9042
  %v9088 = vadd.f32 %v8948, %v9047
  %v9089 = vadd.f32 %v8949, %v9052
  %v9090 = vadd.f32 %v8950, %v9057
  %v9091 = vadd.f32 %v8951, %v9062
  %v9092 = vadd.f32 %v8952, %v9067
  %v9093 = vadd.f32 %v8953, %v9072
  %v9094 = vld [vmem:[%s7] sm:$0xff]
  %v9095 = vld [vmem:[%s7 + $0x8] sm:$0xff]
  %v9096 = vld [vmem:[%s7 + $0x10] sm:$0xff]
  %v9097 = vld [vmem:[%s7 + $0x18] sm:$0xff]
  %v9098 = vld [vmem:[%s7 + $0x20] sm:$0xff]
  %v9099 = vld [vmem:[%s7 + $0x28] sm:$0xff]
  %v9100 = vld [vmem:[%s7 + $0x30] sm:$0xff]
  %v9101 = vld [vmem:[%s7 + $0x38] sm:$0xff]
  %v9102 = vld [vmem:[%s7 + $0x40] sm:$0xff]
  %v9103 = vld [vmem:[%s7 + $0x48] sm:$0xff]
  %v9104 = vpack.c.bf16 %v9075, %v9074
  %v9105 = vpack.c.bf16 %v9077, %v9076
  %v9106 = vpack.c.bf16 %v9079, %v9078
  %v9107 = vpack.c.bf16 %v9081, %v9080
  %v9108 = vpack.c.bf16 %v9083, %v9082
  %v9109 = vpack.c.bf16 %v9085, %v9084
  %v9110 = vpack.c.bf16 %v9087, %v9086
  %v9111 = vpack.c.bf16 %v9089, %v9088
  %v9112 = vpack.c.bf16 %v9091, %v9090
  %v9113 = vpack.c.bf16 %v9093, %v9092
  %v9124 = vunpack.c.l.b16 %v9094
  %v9125 = vunpack.c.h.b16 %v9094
  %v9126 = vunpack.c.l.b16 %v9095
  %v9127 = vunpack.c.h.b16 %v9095
  %v9128 = vunpack.c.l.b16 %v9096
  %v9129 = vunpack.c.h.b16 %v9096
  %v9130 = vunpack.c.l.b16 %v9097
  %v9131 = vunpack.c.h.b16 %v9097
  %v9132 = vunpack.c.l.b16 %v9098
  %v9133 = vunpack.c.h.b16 %v9098
  %v9134 = vunpack.c.l.b16 %v9099
  %v9135 = vunpack.c.h.b16 %v9099
  %v9136 = vunpack.c.l.b16 %v9100
  %v9137 = vunpack.c.h.b16 %v9100
  %v9138 = vunpack.c.l.b16 %v9101
  %v9139 = vunpack.c.h.b16 %v9101
  %v9140 = vunpack.c.l.b16 %v9102
  %v9141 = vunpack.c.h.b16 %v9102
  %v9142 = vunpack.c.l.b16 %v9103
  %v9143 = vunpack.c.h.b16 %v9103
  %v9144 = vpack.c.b16 %v9126, %v9124
  %v9145 = vpack.c.b16 %v9127, %v9125
  %v9146 = vpack.c.b16 %v9130, %v9128
  %v9147 = vpack.c.b16 %v9131, %v9129
  %v9148 = vpack.c.b16 %v9134, %v9132
  %v9149 = vpack.c.b16 %v9135, %v9133
  %v9150 = vpack.c.b16 %v9138, %v9136
  %v9151 = vpack.c.b16 %v9139, %v9137
  %v9152 = vpack.c.b16 %v9142, %v9140
  %v9153 = vpack.c.b16 %v9143, %v9141
  %v9160 = vsel %vm4094, %v9145, 0
  %v9163 = vsel %vm4094, %v9147, 0
  %v9166 = vsel %vm4094, %v9149, 0
  %v9169 = vsel %vm4094, %v9151, 0
  %v9172 = vsel %vm4094, %v9153, 0
  %9174 = vmatprep.subr.bf16.mxu0 0
  %9175 = vmatpush1.bf16.msra.mxu0 %v9111
  %9176 = vmatprep.subr.bf16.mxu0 0
  %9177 = vmatpush1.bf16.msra.mxu0 %v9110
  %9178 = vmatprep.subr.bf16.mxu0 0
  %9179 = vmatpush1.bf16.msra.mxu0 %v9109
  %9180 = vmatprep.subr.bf16.mxu0 0
  %9181 = vmatpush1.bf16.msra.mxu0 %v9108
  %9182 = vmatprep.subr.bf16.mxu0 0
  %9183 = vmatpush1.bf16.msra.mxu0 %v9107
  %9184 = vmatprep.subr.bf16.mxu0 0
  %9185 = vmatpush1.bf16.msra.mxu0 %v9106
  %9186 = vmatprep.subr.bf16.mxu0 0
  %9187 = vmatpush1.bf16.msra.mxu0 %v9105
  %9188 = vmatprep.subr.bf16.mxu0 0
  %9189 = vmatpush1.bf16.msra.mxu0 %v9104
  %9190 = vmatprep.subr.bf16.mxu0 0
  %9191 = vmatpush2.bf16.msra.mxu0 0
  %9192 = vmatprep.subr.bf16.mxu0 0
  %9193 = vmatpush2.bf16.msra.mxu0 0
  %9194 = vmatprep.subr.bf16.mxu0 0
  %9195 = vmatpush2.bf16.msra.mxu0 0
  %9196 = vmatprep.subr.bf16.mxu0 0
  %9197 = vmatpush2.bf16.msra.mxu0 0
  %9198 = vmatprep.subr.bf16.mxu0 0
  %9199 = vmatpush2.bf16.msra.mxu0 0
  %9200 = vmatprep.subr.bf16.mxu0 0
  %9201 = vmatpush2.bf16.msra.mxu0 0
  %9202 = vmatprep.subr.bf16.mxu0 0
  %9203 = vmatpush2.bf16.msra.mxu0 %v9113
  %9204 = vmatprep.subr.bf16.mxu0 0
  %9205 = vmatpush2.bf16.msra.mxu0 %v9112
  %9206 = vmatprep.mubr.bf16.mxu0 %v9160
  %9207 = vmatmul.mubr.bf16.gmra.mxu0 %v9144
  %v9208 = vpop.f32.mrf.mxu0
  %v9209 = vadd.f32 0.0, %v9208
  %v9210 = vpop.f32.mrf.mxu0
  %v9211 = vpop.f32.mrf.mxu0
  %v9212 = vadd.f32 0.0, %v9211
  %v9213 = vpop.f32.mrf.mxu0
  %9214 = vmatprep.mubr.bf16.mxu0 %v9163
  %9215 = vmatmul.mubr.bf16.gmra.mxu0 %v9146
  %v9216 = vpop.f32.mrf.mxu0
  %v9217 = vadd.f32 0.0, %v9216
  %v9218 = vpop.f32.mrf.mxu0
  %v9219 = vpop.f32.mrf.mxu0
  %v9220 = vadd.f32 0.0, %v9219
  %v9221 = vpop.f32.mrf.mxu0
  %9222 = vmatprep.mubr.bf16.mxu0 %v9166
  %9223 = vmatmul.mubr.bf16.gmra.mxu0 %v9148
  %v9224 = vpop.f32.mrf.mxu0
  %v9225 = vadd.f32 0.0, %v9224
  %v9226 = vpop.f32.mrf.mxu0
  %v9227 = vpop.f32.mrf.mxu0
  %v9228 = vadd.f32 0.0, %v9227
  %v9229 = vpop.f32.mrf.mxu0
  %9230 = vmatprep.mubr.bf16.mxu0 %v9169
  %9231 = vmatmul.mubr.bf16.gmra.mxu0 %v9150
  %v9232 = vpop.f32.mrf.mxu0
  %v9233 = vadd.f32 0.0, %v9232
  %v9234 = vpop.f32.mrf.mxu0
  %v9235 = vpop.f32.mrf.mxu0
  %v9236 = vadd.f32 0.0, %v9235
  %v9237 = vpop.f32.mrf.mxu0
  %9238 = vmatprep.mubr.bf16.mxu0 %v9172
  %9239 = vmatmul.mubr.bf16.gmra.mxu0 %v9152
  %v9240 = vpop.f32.mrf.mxu0
  %v9241 = vadd.f32 0.0, %v9240
  %v9242 = vpop.f32.mrf.mxu0
  %v9243 = vpop.f32.mrf.mxu0
  %v9244 = vadd.f32 0.0, %v9243
  %v9245 = vpop.f32.mrf.mxu0
  %9246 = vdwg.mxu0
  %v9247 = vld [vmem:[%s4183] sm:$0xff]
  %v9248 = vld [vmem:[%s4183 + $0x8] sm:$0xff]
  %v9249 = vld [vmem:[%s4183 + $0x10] sm:$0xff]
  %v9250 = vld [vmem:[%s4183 + $0x18] sm:$0xff]
  %v9251 = vld [vmem:[%s4183 + $0x20] sm:$0xff]
  %v9252 = vld [vmem:[%s4183 + $0x28] sm:$0xff]
  %v9253 = vld [vmem:[%s4183 + $0x30] sm:$0xff]
  %v9254 = vld [vmem:[%s4183 + $0x38] sm:$0xff]
  %v9255 = vld [vmem:[%s4183 + $0x40] sm:$0xff]
  %v9256 = vld [vmem:[%s4183 + $0x48] sm:$0xff]
  %v9267 = vunpack.c.l.b16 %v9247
  %v9268 = vunpack.c.h.b16 %v9247
  %v9269 = vunpack.c.l.b16 %v9248
  %v9270 = vunpack.c.h.b16 %v9248
  %v9271 = vunpack.c.l.b16 %v9249
  %v9272 = vunpack.c.h.b16 %v9249
  %v9273 = vunpack.c.l.b16 %v9250
  %v9274 = vunpack.c.h.b16 %v9250
  %v9275 = vunpack.c.l.b16 %v9251
  %v9276 = vunpack.c.h.b16 %v9251
  %v9277 = vunpack.c.l.b16 %v9252
  %v9278 = vunpack.c.h.b16 %v9252
  %v9279 = vunpack.c.l.b16 %v9253
  %v9280 = vunpack.c.h.b16 %v9253
  %v9281 = vunpack.c.l.b16 %v9254
  %v9282 = vunpack.c.h.b16 %v9254
  %v9283 = vunpack.c.l.b16 %v9255
  %v9284 = vunpack.c.h.b16 %v9255
  %v9285 = vunpack.c.l.b16 %v9256
  %v9286 = vunpack.c.h.b16 %v9256
  %v9287 = vpack.c.b16 %v9269, %v9267
  %v9288 = vpack.c.b16 %v9270, %v9268
  %v9289 = vpack.c.b16 %v9273, %v9271
  %v9290 = vpack.c.b16 %v9274, %v9272
  %v9291 = vpack.c.b16 %v9277, %v9275
  %v9292 = vpack.c.b16 %v9278, %v9276
  %v9293 = vpack.c.b16 %v9281, %v9279
  %v9294 = vpack.c.b16 %v9282, %v9280
  %v9295 = vpack.c.b16 %v9285, %v9283
  %v9296 = vpack.c.b16 %v9286, %v9284
  %v9303 = vsel %vm4094, %v9288, 0
  %v9306 = vsel %vm4094, %v9290, 0
  %v9309 = vsel %vm4094, %v9292, 0
  %v9312 = vsel %vm4094, %v9294, 0
  %v9315 = vsel %vm4094, %v9296, 0
  %9317 = vmatprep.subr.bf16.mxu0 0
  %9318 = vmatpush1.bf16.msra.mxu0 %v9111
  %9319 = vmatprep.subr.bf16.mxu0 0
  %9320 = vmatpush1.bf16.msra.mxu0 %v9110
  %9321 = vmatprep.subr.bf16.mxu0 0
  %9322 = vmatpush1.bf16.msra.mxu0 %v9109
  %9323 = vmatprep.subr.bf16.mxu0 0
  %9324 = vmatpush1.bf16.msra.mxu0 %v9108
  %9325 = vmatprep.subr.bf16.mxu0 0
  %9326 = vmatpush1.bf16.msra.mxu0 %v9107
  %9327 = vmatprep.subr.bf16.mxu0 0
  %9328 = vmatpush1.bf16.msra.mxu0 %v9106
  %9329 = vmatprep.subr.bf16.mxu0 0
  %9330 = vmatpush1.bf16.msra.mxu0 %v9105
  %9331 = vmatprep.subr.bf16.mxu0 0
  %9332 = vmatpush1.bf16.msra.mxu0 %v9104
  %9333 = vmatprep.subr.bf16.mxu0 0
  %9334 = vmatpush2.bf16.msra.mxu0 0
  %9335 = vmatprep.subr.bf16.mxu0 0
  %9336 = vmatpush2.bf16.msra.mxu0 0
  %9337 = vmatprep.subr.bf16.mxu0 0
  %9338 = vmatpush2.bf16.msra.mxu0 0
  %9339 = vmatprep.subr.bf16.mxu0 0
  %9340 = vmatpush2.bf16.msra.mxu0 0
  %9341 = vmatprep.subr.bf16.mxu0 0
  %9342 = vmatpush2.bf16.msra.mxu0 0
  %9343 = vmatprep.subr.bf16.mxu0 0
  %9344 = vmatpush2.bf16.msra.mxu0 0
  %9345 = vmatprep.subr.bf16.mxu0 0
  %9346 = vmatpush2.bf16.msra.mxu0 %v9113
  %9347 = vmatprep.subr.bf16.mxu0 0
  %9348 = vmatpush2.bf16.msra.mxu0 %v9112
  %9349 = vmatprep.mubr.bf16.mxu0 %v9303
  %9350 = vmatmul.mubr.bf16.gmra.mxu0 %v9287
  %v9351 = vpop.f32.mrf.mxu0
  %v9352 = vadd.f32 0.0, %v9351
  %v9353 = vpop.f32.mrf.mxu0
  %v9354 = vpop.f32.mrf.mxu0
  %v9355 = vadd.f32 0.0, %v9354
  %v9356 = vpop.f32.mrf.mxu0
  %9357 = vmatprep.mubr.bf16.mxu0 %v9306
  %9358 = vmatmul.mubr.bf16.gmra.mxu0 %v9289
  %v9359 = vpop.f32.mrf.mxu0
  %v9360 = vadd.f32 0.0, %v9359
  %v9361 = vpop.f32.mrf.mxu0
  %v9362 = vpop.f32.mrf.mxu0
  %v9363 = vadd.f32 0.0, %v9362
  %v9364 = vpop.f32.mrf.mxu0
  %9365 = vmatprep.mubr.bf16.mxu0 %v9309
  %9366 = vmatmul.mubr.bf16.gmra.mxu0 %v9291
  %v9367 = vpop.f32.mrf.mxu0
  %v9368 = vadd.f32 0.0, %v9367
  %v9369 = vpop.f32.mrf.mxu0
  %v9370 = vpop.f32.mrf.mxu0
  %v9371 = vadd.f32 0.0, %v9370
  %v9372 = vpop.f32.mrf.mxu0
  %9373 = vmatprep.mubr.bf16.mxu0 %v9312
  %9374 = vmatmul.mubr.bf16.gmra.mxu0 %v9293
  %v9375 = vpop.f32.mrf.mxu0
  %v9376 = vadd.f32 0.0, %v9375
  %v9377 = vpop.f32.mrf.mxu0
  %v9378 = vpop.f32.mrf.mxu0
  %v9379 = vadd.f32 0.0, %v9378
  %v9380 = vpop.f32.mrf.mxu0
  %9381 = vmatprep.mubr.bf16.mxu0 %v9315
  %9382 = vmatmul.mubr.bf16.gmra.mxu0 %v9295
  %v9383 = vpop.f32.mrf.mxu0
  %v9384 = vadd.f32 0.0, %v9383
  %v9385 = vpop.f32.mrf.mxu0
  %v9386 = vpop.f32.mrf.mxu0
  %v9387 = vadd.f32 0.0, %v9386
  %v9388 = vpop.f32.mrf.mxu0
  %9389 = vdwg.mxu0
  %v9390 = vmax.f32 %v9209, %v9352
  %v9391 = vmax.f32 %v9212, %v9355
  %v9392 = vmax.f32 %v9217, %v9360
  %v9393 = vmax.f32 %v9220, %v9363
  %v9394 = vmax.f32 %v9225, %v9368
  %v9395 = vmax.f32 %v9228, %v9371
  %v9396 = vmax.f32 %v9233, %v9376
  %v9397 = vmax.f32 %v9236, %v9379
  %v9398 = vmax.f32 %v9241, %v9384
  %v9399 = vmax.f32 %v9244, %v9387
  %v9400 = vld [vmem:[%s8] sm:$0xf]
  %v9401 = vpack.c.bf16 %v9391, %v9390
  %v9402 = vpack.c.bf16 %v9393, %v9392
  %v9403 = vpack.c.bf16 %v9395, %v9394
  %v9404 = vpack.c.bf16 %v9397, %v9396
  %v9405 = vpack.c.bf16 %v9399, %v9398
  %v9407 = vsel %vm4343, %v9401, 0
  %v9410 = vsel %vm4343, %v9402, 0
  %v9413 = vsel %vm4343, %v9403, 0
  %v9416 = vsel %vm4343, %v9404, 0
  %v9419 = vsel %vm4343, %v9405, 0
  %v9422 = vsel %vm2394, %v9400, 0
  %9424 = vmatprep.subr.bf16.mxu0 0
  %9425 = vmatpush1.bf16.msra.mxu0 0
  %9426 = vmatprep.subr.bf16.mxu0 0
  %9427 = vmatpush1.bf16.msra.mxu0 0
  %9428 = vmatprep.subr.bf16.mxu0 0
  %9429 = vmatpush1.bf16.msra.mxu0 0
  %9430 = vmatprep.subr.bf16.mxu0 0
  %9431 = vmatpush1.bf16.msra.mxu0 0
  %9432 = vmatprep.subr.bf16.mxu0 0
  %9433 = vmatpush1.bf16.msra.mxu0 0
  %9434 = vmatprep.subr.bf16.mxu0 0
  %9435 = vmatpush1.bf16.msra.mxu0 0
  %9436 = vmatprep.subr.bf16.mxu0 0
  %9437 = vmatpush1.bf16.msra.mxu0 0
  %9438 = vmatprep.subr.bf16.mxu0 0
  %9439 = vmatpush1.bf16.msra.mxu0 %v9422
  %9440 = vmatprep.subr.bf16.mxu0 0
  %9441 = vmatpush2.bf16.msra.mxu0 0
  %9442 = vmatprep.subr.bf16.mxu0 0
  %9443 = vmatpush2.bf16.msra.mxu0 0
  %9444 = vmatprep.subr.bf16.mxu0 0
  %9445 = vmatpush2.bf16.msra.mxu0 0
  %9446 = vmatprep.subr.bf16.mxu0 0
  %9447 = vmatpush2.bf16.msra.mxu0 0
  %9448 = vmatprep.subr.bf16.mxu0 0
  %9449 = vmatpush2.bf16.msra.mxu0 0
  %9450 = vmatprep.subr.bf16.mxu0 0
  %9451 = vmatpush2.bf16.msra.mxu0 0
  %9452 = vmatprep.subr.bf16.mxu0 0
  %9453 = vmatpush2.bf16.msra.mxu0 0
  %9454 = vmatprep.subr.bf16.mxu0 0
  %9455 = vmatpush2.bf16.msra.mxu0 0
  %9456 = vmatprep.mubr.bf16.mxu0 0
  %9457 = vmatmul.mubr.bf16.gmra.mxu0 %v9407
  %v9458 = vpop.f32.mrf.mxu0
  %v9459 = vadd.f32 0.0, %v9458
  %v9460 = vpop.f32.mrf.mxu0
  %v9461 = vpop.f32.mrf.mxu0
  %v9462 = vadd.f32 0.0, %v9461
  %v9463 = vpop.f32.mrf.mxu0
  %9464 = vmatprep.mubr.bf16.mxu0 0
  %9465 = vmatmul.mubr.bf16.gmra.mxu0 %v9410
  %v9466 = vpop.f32.mrf.mxu0
  %v9467 = vadd.f32 0.0, %v9466
  %v9468 = vpop.f32.mrf.mxu0
  %v9469 = vpop.f32.mrf.mxu0
  %v9470 = vadd.f32 0.0, %v9469
  %v9471 = vpop.f32.mrf.mxu0
  %9472 = vmatprep.mubr.bf16.mxu0 0
  %9473 = vmatmul.mubr.bf16.gmra.mxu0 %v9413
  %v9474 = vpop.f32.mrf.mxu0
  %v9475 = vadd.f32 0.0, %v9474
  %v9476 = vpop.f32.mrf.mxu0
  %v9477 = vpop.f32.mrf.mxu0
  %v9478 = vadd.f32 0.0, %v9477
  %v9479 = vpop.f32.mrf.mxu0
  %9480 = vmatprep.mubr.bf16.mxu0 0
  %9481 = vmatmul.mubr.bf16.gmra.mxu0 %v9416
  %v9482 = vpop.f32.mrf.mxu0
  %v9483 = vadd.f32 0.0, %v9482
  %v9484 = vpop.f32.mrf.mxu0
  %v9485 = vpop.f32.mrf.mxu0
  %v9486 = vadd.f32 0.0, %v9485
  %v9487 = vpop.f32.mrf.mxu0
  %9488 = vmatprep.mubr.bf16.mxu0 0
  %9489 = vmatmul.mubr.bf16.gmra.mxu0 %v9419
  %v9490 = vpop.f32.mrf.mxu0
  %v9491 = vadd.f32 0.0, %v9490
  %v9492 = vpop.f32.mrf.mxu0
  %v9493 = vpop.f32.mrf.mxu0
  %v9494 = vadd.f32 0.0, %v9493
  %v9495 = vpop.f32.mrf.mxu0
  %9496 = vdwg.mxu0
  %v9497 = vld [vmem:[%s4435] sm:$0xf]
  %v9499 = vsel %vm2394, %v9497, 0
  %9501 = vmatprep.subr.bf16.mxu0 0
  %9502 = vmatpush1.bf16.msra.mxu0 0
  %9503 = vmatprep.subr.bf16.mxu0 0
  %9504 = vmatpush1.bf16.msra.mxu0 0
  %9505 = vmatprep.subr.bf16.mxu0 0
  %9506 = vmatpush1.bf16.msra.mxu0 0
  %9507 = vmatprep.subr.bf16.mxu0 0
  %9508 = vmatpush1.bf16.msra.mxu0 0
  %9509 = vmatprep.subr.bf16.mxu0 0
  %9510 = vmatpush1.bf16.msra.mxu0 0
  %9511 = vmatprep.subr.bf16.mxu0 0
  %9512 = vmatpush1.bf16.msra.mxu0 0
  %9513 = vmatprep.subr.bf16.mxu0 0
  %9514 = vmatpush1.bf16.msra.mxu0 0
  %9515 = vmatprep.subr.bf16.mxu0 0
  %9516 = vmatpush1.bf16.msra.mxu0 %v9499
  %9517 = vmatprep.subr.bf16.mxu0 0
  %9518 = vmatpush2.bf16.msra.mxu0 0
  %9519 = vmatprep.subr.bf16.mxu0 0
  %9520 = vmatpush2.bf16.msra.mxu0 0
  %9521 = vmatprep.subr.bf16.mxu0 0
  %9522 = vmatpush2.bf16.msra.mxu0 0
  %9523 = vmatprep.subr.bf16.mxu0 0
  %9524 = vmatpush2.bf16.msra.mxu0 0
  %9525 = vmatprep.subr.bf16.mxu0 0
  %9526 = vmatpush2.bf16.msra.mxu0 0
  %9527 = vmatprep.subr.bf16.mxu0 0
  %9528 = vmatpush2.bf16.msra.mxu0 0
  %9529 = vmatprep.subr.bf16.mxu0 0
  %9530 = vmatpush2.bf16.msra.mxu0 0
  %9531 = vmatprep.subr.bf16.mxu0 0
  %9532 = vmatpush2.bf16.msra.mxu0 0
  %9533 = vmatprep.mubr.bf16.mxu0 0
  %9534 = vmatmul.mubr.bf16.gmra.mxu0 %v9407
  %v9535 = vpop.f32.mrf.mxu0
  %v9536 = vadd.f32 0.0, %v9535
  %v9537 = vpop.f32.mrf.mxu0
  %v9538 = vpop.f32.mrf.mxu0
  %v9539 = vadd.f32 0.0, %v9538
  %v9540 = vpop.f32.mrf.mxu0
  %9541 = vmatprep.mubr.bf16.mxu0 0
  %9542 = vmatmul.mubr.bf16.gmra.mxu0 %v9410
  %v9543 = vpop.f32.mrf.mxu0
  %v9544 = vadd.f32 0.0, %v9543
  %v9545 = vpop.f32.mrf.mxu0
  %v9546 = vpop.f32.mrf.mxu0
  %v9547 = vadd.f32 0.0, %v9546
  %v9548 = vpop.f32.mrf.mxu0
  %9549 = vmatprep.mubr.bf16.mxu0 0
  %9550 = vmatmul.mubr.bf16.gmra.mxu0 %v9413
  %v9551 = vpop.f32.mrf.mxu0
  %v9552 = vadd.f32 0.0, %v9551
  %v9553 = vpop.f32.mrf.mxu0
  %v9554 = vpop.f32.mrf.mxu0
  %v9555 = vadd.f32 0.0, %v9554
  %v9556 = vpop.f32.mrf.mxu0
  %9557 = vmatprep.mubr.bf16.mxu0 0
  %9558 = vmatmul.mubr.bf16.gmra.mxu0 %v9416
  %v9559 = vpop.f32.mrf.mxu0
  %v9560 = vadd.f32 0.0, %v9559
  %v9561 = vpop.f32.mrf.mxu0
  %v9562 = vpop.f32.mrf.mxu0
  %v9563 = vadd.f32 0.0, %v9562
  %v9564 = vpop.f32.mrf.mxu0
  %9565 = vmatprep.mubr.bf16.mxu0 0
  %9566 = vmatmul.mubr.bf16.gmra.mxu0 %v9419
  %v9567 = vpop.f32.mrf.mxu0
  %v9568 = vadd.f32 0.0, %v9567
  %v9569 = vpop.f32.mrf.mxu0
  %v9570 = vpop.f32.mrf.mxu0
  %v9571 = vadd.f32 0.0, %v9570
  %v9572 = vpop.f32.mrf.mxu0
  %9573 = vdwg.mxu0
  %v9574 = vmax.f32 %v9459, %v9536
  %v9575 = vmax.f32 %v9462, %v9539
  %v9576 = vmax.f32 %v9467, %v9544
  %v9577 = vmax.f32 %v9470, %v9547
  %v9578 = vmax.f32 %v9475, %v9552
  %v9579 = vmax.f32 %v9478, %v9555
  %v9580 = vmax.f32 %v9483, %v9560
  %v9581 = vmax.f32 %v9486, %v9563
  %v9582 = vmax.f32 %v9491, %v9568
  %v9583 = vmax.f32 %v9494, %v9571
  %v9584 = vmax.f32 %v9574, 0.0
  %v9585 = vmax.f32 %v9575, 0.0
  %v9586 = vmax.f32 %v9576, 0.0
  %v9587 = vmax.f32 %v9577, 0.0
  %v9588 = vmax.f32 %v9578, 0.0
  %v9589 = vmax.f32 %v9579, 0.0
  %v9590 = vmax.f32 %v9580, 0.0
  %v9591 = vmax.f32 %v9581, 0.0
  %v9592 = vmax.f32 %v9582, 0.0
  %v9593 = vmax.f32 %v9583, 0.0
  %v9594 = vld [vmem:[%s9] sm:$0xf]
  %v9595 = vld [vmem:[%s9 + $0x4] sm:$0xf]
  %v9596 = vld [vmem:[%s9 + $0x8] sm:$0xf]
  %v9597 = vld [vmem:[%s9 + $0xc] sm:$0xf]
  %v9598 = vld [vmem:[%s9 + $0x10] sm:$0xf]
  %v9599 = vld [vmem:[%s9 + $0x14] sm:$0xf]
  %v9600 = vld [vmem:[%s9 + $0x18] sm:$0x1]
  %v9601 = vpack.c.bf16 %v9585, %v9584
  %v9602 = vpack.c.bf16 %v9587, %v9586
  %v9603 = vpack.c.bf16 %v9589, %v9588
  %v9604 = vpack.c.bf16 %v9591, %v9590
  %v9605 = vpack.c.bf16 %v9593, %v9592
  %v9606 = vld [vmem:[%s4545] sm:$0xf]
  %v9607 = vld [vmem:[%s4545 + $0x4] sm:$0xf]
  %v9608 = vld [vmem:[%s4545 + $0x8] sm:$0xf]
  %v9609 = vld [vmem:[%s4545 + $0xc] sm:$0xf]
  %v9610 = vld [vmem:[%s4545 + $0x10] sm:$0xf]
  %v9611 = vld [vmem:[%s4545 + $0x14] sm:$0xf]
  %v9612 = vld [vmem:[%s4545 + $0x18] sm:$0x1]
  %v9620 = vunpack.c.l.b16 %v9606
  %v9621 = vunpack.c.l.b16 %v9607
  %v9622 = vunpack.c.l.b16 %v9608
  %v9623 = vunpack.c.l.b16 %v9609
  %v9624 = vunpack.c.l.b16 %v9610
  %v9625 = vunpack.c.l.b16 %v9611
  %v9626 = vunpack.c.l.b16 %v9612
  %v9627 = vpack.c.b16 %v9621, %v9620
  %v9628 = vpack.c.b16 %v9623, %v9622
  %v9629 = vpack.c.b16 %v9625, %v9624
  %v9630 = vpack.c.b16 %v9626, %v9626
  %9636 = vrot.lane.b32.xlu0 %v9601, 127
  %v9637 = vpop.permute.xlu0 %9636
  %9638 = vrot.lane.b32.xlu0 %v9602, 127
  %v9639 = vpop.permute.xlu0 %9638
  %9640 = vrot.lane.b32.xlu0 %v9603, 127
  %v9641 = vpop.permute.xlu0 %9640
  %9642 = vrot.lane.b32.xlu0 %v9604, 127
  %v9643 = vpop.permute.xlu0 %9642
  %9644 = vrot.lane.b32.xlu0 %v9605, 127
  %v9645 = vpop.permute.xlu0 %9644
  %v9652 = vsel %vm4591, %v9627, 0
  %v9655 = vsel %vm4591, %v9628, 0
  %v9658 = vsel %vm4591, %v9629, 0
  %v9661 = vsel %vm4591, %v9630, 0
  %9663 = vmatprep.subr.bf16.mxu0 0
  %9664 = vmatpush1.bf16.msra.mxu0 0
  %9665 = vmatprep.subr.bf16.mxu0 0
  %9666 = vmatpush1.bf16.msra.mxu0 0
  %9667 = vmatprep.subr.bf16.mxu0 0
  %9668 = vmatpush1.bf16.msra.mxu0 0
  %9669 = vmatprep.subr.bf16.mxu0 0
  %9670 = vmatpush1.bf16.msra.mxu0 %v9645
  %9671 = vmatprep.subr.bf16.mxu0 0
  %9672 = vmatpush1.bf16.msra.mxu0 %v9643
  %9673 = vmatprep.subr.bf16.mxu0 0
  %9674 = vmatpush1.bf16.msra.mxu0 %v9641
  %9675 = vmatprep.subr.bf16.mxu0 0
  %9676 = vmatpush1.bf16.msra.mxu0 %v9639
  %9677 = vmatprep.subr.bf16.mxu0 0
  %9678 = vmatpush1.bf16.msra.mxu0 %v9637
  %9679 = vmatprep.subr.bf16.mxu0 0
  %9680 = vmatpush2.bf16.msra.mxu0 0
  %9681 = vmatprep.subr.bf16.mxu0 0
  %9682 = vmatpush2.bf16.msra.mxu0 0
  %9683 = vmatprep.subr.bf16.mxu0 0
  %9684 = vmatpush2.bf16.msra.mxu0 0
  %9685 = vmatprep.subr.bf16.mxu0 0
  %9686 = vmatpush2.bf16.msra.mxu0 0
  %9687 = vmatprep.subr.bf16.mxu0 0
  %9688 = vmatpush2.bf16.msra.mxu0 0
  %9689 = vmatprep.subr.bf16.mxu0 0
  %9690 = vmatpush2.bf16.msra.mxu0 0
  %9691 = vmatprep.subr.bf16.mxu0 0
  %9692 = vmatpush2.bf16.msra.mxu0 0
  %9693 = vmatprep.subr.bf16.mxu0 0
  %9694 = vmatpush2.bf16.msra.mxu0 0
  %9695 = vmatprep.mubr.bf16.mxu0 0
  %9696 = vmatmul.mubr.bf16.gmra.mxu0 %v9652
  %v9697 = vpop.f32.mrf.mxu0
  %v9698 = vadd.f32 0.0, %v9697
  %v9699 = vpop.f32.mrf.mxu0
  %v9700 = vpop.f32.mrf.mxu0
  %v9701 = vadd.f32 0.0, %v9700
  %v9702 = vpop.f32.mrf.mxu0
  %9703 = vmatprep.mubr.bf16.mxu0 0
  %9704 = vmatmul.mubr.bf16.gmra.mxu0 %v9655
  %v9705 = vpop.f32.mrf.mxu0
  %v9706 = vadd.f32 0.0, %v9705
  %v9707 = vpop.f32.mrf.mxu0
  %v9708 = vpop.f32.mrf.mxu0
  %v9709 = vadd.f32 0.0, %v9708
  %v9710 = vpop.f32.mrf.mxu0
  %9711 = vmatprep.mubr.bf16.mxu0 0
  %9712 = vmatmul.mubr.bf16.gmra.mxu0 %v9658
  %v9713 = vpop.f32.mrf.mxu0
  %v9714 = vadd.f32 0.0, %v9713
  %v9715 = vpop.f32.mrf.mxu0
  %v9716 = vpop.f32.mrf.mxu0
  %v9717 = vadd.f32 0.0, %v9716
  %v9718 = vpop.f32.mrf.mxu0
  %9719 = vmatprep.mubr.bf16.mxu0 0
  %9720 = vmatmul.mubr.bf16.gmra.mxu0 %v9661
  %v9721 = vpop.f32.mrf.mxu0
  %v9722 = vadd.f32 0.0, %v9721
  %v9723 = vpop.f32.mrf.mxu0
  %v9724 = vpop.f32.mrf.mxu0
  %v9725 = vpop.f32.mrf.mxu0
  %9726 = vdwg.mxu0
  %v9734 = vunpack.c.l.b16 %v9594
  %v9735 = vunpack.c.l.b16 %v9595
  %v9736 = vunpack.c.l.b16 %v9596
  %v9737 = vunpack.c.l.b16 %v9597
  %v9738 = vunpack.c.l.b16 %v9598
  %v9739 = vunpack.c.l.b16 %v9599
  %v9740 = vunpack.c.l.b16 %v9600
  %v9741 = vpack.c.b16 %v9735, %v9734
  %v9742 = vpack.c.b16 %v9737, %v9736
  %v9743 = vpack.c.b16 %v9739, %v9738
  %v9744 = vpack.c.b16 %v9740, %v9740
  %v9746 = vsel %vm4591, %v9741, 0
  %v9749 = vsel %vm4591, %v9742, 0
  %v9752 = vsel %vm4591, %v9743, 0
  %v9755 = vsel %vm4591, %v9744, 0
  %9757 = vmatprep.subr.bf16.mxu0 0
  %9758 = vmatpush1.bf16.msra.mxu0 0
  %9759 = vmatprep.subr.bf16.mxu0 0
  %9760 = vmatpush1.bf16.msra.mxu0 0
  %9761 = vmatprep.subr.bf16.mxu0 0
  %9762 = vmatpush1.bf16.msra.mxu0 0
  %9763 = vmatprep.subr.bf16.mxu0 0
  %9764 = vmatpush1.bf16.msra.mxu0 %v9605
  %9765 = vmatprep.subr.bf16.mxu0 0
  %9766 = vmatpush1.bf16.msra.mxu0 %v9604
  %9767 = vmatprep.subr.bf16.mxu0 0
  %9768 = vmatpush1.bf16.msra.mxu0 %v9603
  %9769 = vmatprep.subr.bf16.mxu0 0
  %9770 = vmatpush1.bf16.msra.mxu0 %v9602
  %9771 = vmatprep.subr.bf16.mxu0 0
  %9772 = vmatpush1.bf16.msra.mxu0 %v9601
  %9773 = vmatprep.subr.bf16.mxu0 0
  %9774 = vmatpush2.bf16.msra.mxu0 0
  %9775 = vmatprep.subr.bf16.mxu0 0
  %9776 = vmatpush2.bf16.msra.mxu0 0
  %9777 = vmatprep.subr.bf16.mxu0 0
  %9778 = vmatpush2.bf16.msra.mxu0 0
  %9779 = vmatprep.subr.bf16.mxu0 0
  %9780 = vmatpush2.bf16.msra.mxu0 0
  %9781 = vmatprep.subr.bf16.mxu0 0
  %9782 = vmatpush2.bf16.msra.mxu0 0
  %9783 = vmatprep.subr.bf16.mxu0 0
  %9784 = vmatpush2.bf16.msra.mxu0 0
  %9785 = vmatprep.subr.bf16.mxu0 0
  %9786 = vmatpush2.bf16.msra.mxu0 0
  %9787 = vmatprep.subr.bf16.mxu0 0
  %9788 = vmatpush2.bf16.msra.mxu0 0
  %9789 = vmatprep.mubr.bf16.mxu0 0
  %9790 = vmatmul.mubr.bf16.gmra.mxu0 %v9746
  %v9791 = vpop.f32.mrf.mxu0
  %v9792 = vadd.f32 %v9698, %v9791
  %v9793 = vpop.f32.mrf.mxu0
  %v9794 = vpop.f32.mrf.mxu0
  %v9795 = vadd.f32 %v9701, %v9794
  %v9796 = vpop.f32.mrf.mxu0
  %9797 = vmatprep.mubr.bf16.mxu0 0
  %9798 = vmatmul.mubr.bf16.gmra.mxu0 %v9749
  %v9799 = vpop.f32.mrf.mxu0
  %v9800 = vadd.f32 %v9706, %v9799
  %v9801 = vpop.f32.mrf.mxu0
  %v9802 = vpop.f32.mrf.mxu0
  %v9803 = vadd.f32 %v9709, %v9802
  %v9804 = vpop.f32.mrf.mxu0
  %9805 = vmatprep.mubr.bf16.mxu0 0
  %9806 = vmatmul.mubr.bf16.gmra.mxu0 %v9752
  %v9807 = vpop.f32.mrf.mxu0
  %v9808 = vadd.f32 %v9714, %v9807
  %v9809 = vpop.f32.mrf.mxu0
  %v9810 = vpop.f32.mrf.mxu0
  %v9811 = vadd.f32 %v9717, %v9810
  %v9812 = vpop.f32.mrf.mxu0
  %9813 = vmatprep.mubr.bf16.mxu0 0
  %9814 = vmatmul.mubr.bf16.gmra.mxu0 %v9755
  %v9815 = vpop.f32.mrf.mxu0
  %v9816 = vadd.f32 %v9722, %v9815
  %v9817 = vpop.f32.mrf.mxu0
  %v9818 = vpop.f32.mrf.mxu0
  %v9819 = vpop.f32.mrf.mxu0
  %9820 = vdwg.mxu0
  %v9821 = vld [vmem:[%s4762] sm:$0xf]
  %v9822 = vld [vmem:[%s4762 + $0x4] sm:$0xf]
  %v9823 = vld [vmem:[%s4762 + $0x8] sm:$0xf]
  %v9824 = vld [vmem:[%s4762 + $0xc] sm:$0xf]
  %v9825 = vld [vmem:[%s4762 + $0x10] sm:$0xf]
  %v9826 = vld [vmem:[%s4762 + $0x14] sm:$0xf]
  %v9827 = vld [vmem:[%s4762 + $0x18] sm:$0x1]
  %v9835 = vunpack.c.l.b16 %v9821
  %v9836 = vunpack.c.l.b16 %v9822
  %v9837 = vunpack.c.l.b16 %v9823
  %v9838 = vunpack.c.l.b16 %v9824
  %v9839 = vunpack.c.l.b16 %v9825
  %v9840 = vunpack.c.l.b16 %v9826
  %v9841 = vunpack.c.l.b16 %v9827
  %v9842 = vpack.c.b16 %v9836, %v9835
  %v9843 = vpack.c.b16 %v9838, %v9837
  %v9844 = vpack.c.b16 %v9840, %v9839
  %v9845 = vpack.c.b16 %v9841, %v9841
  %9846 = vrot.lane.b32.xlu0 %v9601, 126
  %v9847 = vpop.permute.xlu0 %9846
  %9848 = vrot.lane.b32.xlu0 %v9602, 126
  %v9849 = vpop.permute.xlu0 %9848
  %9850 = vrot.lane.b32.xlu0 %v9603, 126
  %v9851 = vpop.permute.xlu0 %9850
  %9852 = vrot.lane.b32.xlu0 %v9604, 126
  %v9853 = vpop.permute.xlu0 %9852
  %9854 = vrot.lane.b32.xlu0 %v9605, 126
  %v9855 = vpop.permute.xlu0 %9854
  %v9862 = vsel %vm4591, %v9842, 0
  %v9865 = vsel %vm4591, %v9843, 0
  %v9868 = vsel %vm4591, %v9844, 0
  %v9871 = vsel %vm4591, %v9845, 0
  %9873 = vmatprep.subr.bf16.mxu0 0
  %9874 = vmatpush1.bf16.msra.mxu0 0
  %9875 = vmatprep.subr.bf16.mxu0 0
  %9876 = vmatpush1.bf16.msra.mxu0 0
  %9877 = vmatprep.subr.bf16.mxu0 0
  %9878 = vmatpush1.bf16.msra.mxu0 0
  %9879 = vmatprep.subr.bf16.mxu0 0
  %9880 = vmatpush1.bf16.msra.mxu0 %v9855
  %9881 = vmatprep.subr.bf16.mxu0 0
  %9882 = vmatpush1.bf16.msra.mxu0 %v9853
  %9883 = vmatprep.subr.bf16.mxu0 0
  %9884 = vmatpush1.bf16.msra.mxu0 %v9851
  %9885 = vmatprep.subr.bf16.mxu0 0
  %9886 = vmatpush1.bf16.msra.mxu0 %v9849
  %9887 = vmatprep.subr.bf16.mxu0 0
  %9888 = vmatpush1.bf16.msra.mxu0 %v9847
  %9889 = vmatprep.subr.bf16.mxu0 0
  %9890 = vmatpush2.bf16.msra.mxu0 0
  %9891 = vmatprep.subr.bf16.mxu0 0
  %9892 = vmatpush2.bf16.msra.mxu0 0
  %9893 = vmatprep.subr.bf16.mxu0 0
  %9894 = vmatpush2.bf16.msra.mxu0 0
  %9895 = vmatprep.subr.bf16.mxu0 0
  %9896 = vmatpush2.bf16.msra.mxu0 0
  %9897 = vmatprep.subr.bf16.mxu0 0
  %9898 = vmatpush2.bf16.msra.mxu0 0
  %9899 = vmatprep.subr.bf16.mxu0 0
  %9900 = vmatpush2.bf16.msra.mxu0 0
  %9901 = vmatprep.subr.bf16.mxu0 0
  %9902 = vmatpush2.bf16.msra.mxu0 0
  %9903 = vmatprep.subr.bf16.mxu0 0
  %9904 = vmatpush2.bf16.msra.mxu0 0
  %9905 = vmatprep.mubr.bf16.mxu0 0
  %9906 = vmatmul.mubr.bf16.gmra.mxu0 %v9862
  %v9907 = vpop.f32.mrf.mxu0
  %v9908 = vadd.f32 0.0, %v9907
  %v9909 = vpop.f32.mrf.mxu0
  %v9910 = vpop.f32.mrf.mxu0
  %v9911 = vadd.f32 0.0, %v9910
  %v9912 = vpop.f32.mrf.mxu0
  %9913 = vmatprep.mubr.bf16.mxu0 0
  %9914 = vmatmul.mubr.bf16.gmra.mxu0 %v9865
  %v9915 = vpop.f32.mrf.mxu0
  %v9916 = vadd.f32 0.0, %v9915
  %v9917 = vpop.f32.mrf.mxu0
  %v9918 = vpop.f32.mrf.mxu0
  %v9919 = vadd.f32 0.0, %v9918
  %v9920 = vpop.f32.mrf.mxu0
  %9921 = vmatprep.mubr.bf16.mxu0 0
  %9922 = vmatmul.mubr.bf16.gmra.mxu0 %v9868
  %v9923 = vpop.f32.mrf.mxu0
  %v9924 = vadd.f32 0.0, %v9923
  %v9925 = vpop.f32.mrf.mxu0
  %v9926 = vpop.f32.mrf.mxu0
  %v9927 = vadd.f32 0.0, %v9926
  %v9928 = vpop.f32.mrf.mxu0
  %9929 = vmatprep.mubr.bf16.mxu0 0
  %9930 = vmatmul.mubr.bf16.gmra.mxu0 %v9871
  %v9931 = vpop.f32.mrf.mxu0
  %v9932 = vadd.f32 0.0, %v9931
  %v9933 = vpop.f32.mrf.mxu0
  %v9934 = vpop.f32.mrf.mxu0
  %v9935 = vpop.f32.mrf.mxu0
  %9936 = vdwg.mxu0
  %v9937 = vadd.f32 %v9792, %v9908
  %v9938 = vadd.f32 %v9795, %v9911
  %v9939 = vadd.f32 %v9800, %v9916
  %v9940 = vadd.f32 %v9803, %v9919
  %v9941 = vadd.f32 %v9808, %v9924
  %v9942 = vadd.f32 %v9811, %v9927
  %v9943 = vadd.f32 %v9816, %v9932
  %v9944 = vld [vmem:[%s4886] sm:$0xf]
  %v9945 = vld [vmem:[%s4886 + $0x4] sm:$0xf]
  %v9946 = vld [vmem:[%s4886 + $0x8] sm:$0xf]
  %v9947 = vld [vmem:[%s4886 + $0xc] sm:$0xf]
  %v9948 = vld [vmem:[%s4886 + $0x10] sm:$0xf]
  %v9949 = vld [vmem:[%s4886 + $0x14] sm:$0xf]
  %v9950 = vld [vmem:[%s4886 + $0x18] sm:$0x1]
  %v9958 = vunpack.c.l.b16 %v9944
  %v9959 = vunpack.c.l.b16 %v9945
  %v9960 = vunpack.c.l.b16 %v9946
  %v9961 = vunpack.c.l.b16 %v9947
  %v9962 = vunpack.c.l.b16 %v9948
  %v9963 = vunpack.c.l.b16 %v9949
  %v9964 = vunpack.c.l.b16 %v9950
  %v9965 = vpack.c.b16 %v9959, %v9958
  %v9966 = vpack.c.b16 %v9961, %v9960
  %v9967 = vpack.c.b16 %v9963, %v9962
  %v9968 = vpack.c.b16 %v9964, %v9964
  %9969 = vrot.lane.b32.xlu0 %v9601, 125
  %v9970 = vpop.permute.xlu0 %9969
  %9971 = vrot.lane.b32.xlu0 %v9602, 125
  %v9972 = vpop.permute.xlu0 %9971
  %9973 = vrot.lane.b32.xlu0 %v9603, 125
  %v9974 = vpop.permute.xlu0 %9973
  %9975 = vrot.lane.b32.xlu0 %v9604, 125
  %v9976 = vpop.permute.xlu0 %9975
  %9977 = vrot.lane.b32.xlu0 %v9605, 125
  %v9978 = vpop.permute.xlu0 %9977
  %v9985 = vsel %vm4591, %v9965, 0
  %v9988 = vsel %vm4591, %v9966, 0
  %v9991 = vsel %vm4591, %v9967, 0
  %v9994 = vsel %vm4591, %v9968, 0
  %9996 = vmatprep.subr.bf16.mxu0 0
  %9997 = vmatpush1.bf16.msra.mxu0 0
  %9998 = vmatprep.subr.bf16.mxu0 0
  %9999 = vmatpush1.bf16.msra.mxu0 0
  %10000 = vmatprep.subr.bf16.mxu0 0
  %10001 = vmatpush1.bf16.msra.mxu0 0
  %10002 = vmatprep.subr.bf16.mxu0 0
  %10003 = vmatpush1.bf16.msra.mxu0 %v9978
  %10004 = vmatprep.subr.bf16.mxu0 0
  %10005 = vmatpush1.bf16.msra.mxu0 %v9976
  %10006 = vmatprep.subr.bf16.mxu0 0
  %10007 = vmatpush1.bf16.msra.mxu0 %v9974
  %10008 = vmatprep.subr.bf16.mxu0 0
  %10009 = vmatpush1.bf16.msra.mxu0 %v9972
  %10010 = vmatprep.subr.bf16.mxu0 0
  %10011 = vmatpush1.bf16.msra.mxu0 %v9970
  %10012 = vmatprep.subr.bf16.mxu0 0
  %10013 = vmatpush2.bf16.msra.mxu0 0
  %10014 = vmatprep.subr.bf16.mxu0 0
  %10015 = vmatpush2.bf16.msra.mxu0 0
  %10016 = vmatprep.subr.bf16.mxu0 0
  %10017 = vmatpush2.bf16.msra.mxu0 0
  %10018 = vmatprep.subr.bf16.mxu0 0
  %10019 = vmatpush2.bf16.msra.mxu0 0
  %10020 = vmatprep.subr.bf16.mxu0 0
  %10021 = vmatpush2.bf16.msra.mxu0 0
  %10022 = vmatprep.subr.bf16.mxu0 0
  %10023 = vmatpush2.bf16.msra.mxu0 0
  %10024 = vmatprep.subr.bf16.mxu0 0
  %10025 = vmatpush2.bf16.msra.mxu0 0
  %10026 = vmatprep.subr.bf16.mxu0 0
  %10027 = vmatpush2.bf16.msra.mxu0 0
  %10028 = vmatprep.mubr.bf16.mxu0 0
  %10029 = vmatmul.mubr.bf16.gmra.mxu0 %v9985
  %v10030 = vpop.f32.mrf.mxu0
  %v10031 = vadd.f32 0.0, %v10030
  %v10032 = vpop.f32.mrf.mxu0
  %v10033 = vpop.f32.mrf.mxu0
  %v10034 = vadd.f32 0.0, %v10033
  %v10035 = vpop.f32.mrf.mxu0
  %10036 = vmatprep.mubr.bf16.mxu0 0
  %10037 = vmatmul.mubr.bf16.gmra.mxu0 %v9988
  %v10038 = vpop.f32.mrf.mxu0
  %v10039 = vadd.f32 0.0, %v10038
  %v10040 = vpop.f32.mrf.mxu0
  %v10041 = vpop.f32.mrf.mxu0
  %v10042 = vadd.f32 0.0, %v10041
  %v10043 = vpop.f32.mrf.mxu0
  %10044 = vmatprep.mubr.bf16.mxu0 0
  %10045 = vmatmul.mubr.bf16.gmra.mxu0 %v9991
  %v10046 = vpop.f32.mrf.mxu0
  %v10047 = vadd.f32 0.0, %v10046
  %v10048 = vpop.f32.mrf.mxu0
  %v10049 = vpop.f32.mrf.mxu0
  %v10050 = vadd.f32 0.0, %v10049
  %v10051 = vpop.f32.mrf.mxu0
  %10052 = vmatprep.mubr.bf16.mxu0 0
  %10053 = vmatmul.mubr.bf16.gmra.mxu0 %v9994
  %v10054 = vpop.f32.mrf.mxu0
  %v10055 = vadd.f32 0.0, %v10054
  %v10056 = vpop.f32.mrf.mxu0
  %v10057 = vpop.f32.mrf.mxu0
  %v10058 = vpop.f32.mrf.mxu0
  %10059 = vdwg.mxu0
  %v10060 = vadd.f32 %v9937, %v10031
  %v10061 = vadd.f32 %v9938, %v10034
  %v10062 = vadd.f32 %v9939, %v10039
  %v10063 = vadd.f32 %v9940, %v10042
  %v10064 = vadd.f32 %v9941, %v10047
  %v10065 = vadd.f32 %v9942, %v10050
  %v10066 = vadd.f32 %v9943, %v10055
  %v10067 = vld [vmem:[%s10] sm:$0xff]
  %v10068 = vld [vmem:[%s10 + $0x8] sm:$0xff]
  %v10069 = vld [vmem:[%s10 + $0x10] sm:$0xff]
  %v10070 = vld [vmem:[%s10 + $0x18] sm:$0xff]
  %v10071 = vld [vmem:[%s10 + $0x20] sm:$0xff]
  %v10072 = vld [vmem:[%s10 + $0x28] sm:$0xff]
  %v10073 = vld [vmem:[%s10 + $0x30] sm:$0x3]
  %v10074 = vadd.f32 %v10060, %v10067
  %v10075 = vadd.f32 %v10061, %v10068
  %v10076 = vadd.f32 %v10062, %v10069
  %v10077 = vadd.f32 %v10063, %v10070
  %v10078 = vadd.f32 %v10064, %v10071
  %v10079 = vadd.f32 %v10065, %v10072
  %v10080 = vadd.f32 %v10066, %v10073
  %v10081 = vmax.f32 %v10074, 0.0
  %v10082 = vmax.f32 %v10075, 0.0
  %v10083 = vmax.f32 %v10076, 0.0
  %v10084 = vmax.f32 %v10077, 0.0
  %v10085 = vmax.f32 %v10078, 0.0
  %v10086 = vmax.f32 %v10079, 0.0
  %v10087 = vmax.f32 %v10080, 0.0
  %v10088 = vld [vmem:[%s11] sm:$0xf]
  %v10089 = vld [vmem:[%s11 + $0x4] sm:$0x1]
  %v10090 = vpack.c.bf16 %v10082, %v10081
  %v10091 = vpack.c.bf16 %v10084, %v10083
  %v10092 = vpack.c.bf16 %v10086, %v10085
  %v10093 = vpack.c.bf16 %v10087, %v10087
  %v10094 = vld [vmem:[%s12] sm:$0xff]
  %v10095 = vld [vmem:[%s12 + $0x8] sm:$0x3]
  %v10098 = vunpack.c.l.b16 %v10088
  %v10099 = vunpack.c.l.b16 %v10089
  %v10100 = vpack.c.b16 %v10099, %v10098
  %v10102 = vsel %vm5044, %v10100, 0
  %v10105 = vsel %vm5048, %v10093, 0
  %10107 = vmatprep.subr.bf16.mxu0 0
  %10108 = vmatpush1.bf16.msra.mxu0 0
  %10109 = vmatprep.subr.bf16.mxu0 0
  %10110 = vmatpush1.bf16.msra.mxu0 0
  %10111 = vmatprep.subr.bf16.mxu0 0
  %10112 = vmatpush1.bf16.msra.mxu0 0
  %10113 = vmatprep.subr.bf16.mxu0 0
  %10114 = vmatpush1.bf16.msra.mxu0 0
  %10115 = vmatprep.subr.bf16.mxu0 0
  %10116 = vmatpush1.bf16.msra.mxu0 %v10105
  %10117 = vmatprep.subr.bf16.mxu0 0
  %10118 = vmatpush1.bf16.msra.mxu0 %v10092
  %10119 = vmatprep.subr.bf16.mxu0 0
  %10120 = vmatpush1.bf16.msra.mxu0 %v10091
  %10121 = vmatprep.subr.bf16.mxu0 0
  %10122 = vmatpush1.bf16.msra.mxu0 %v10090
  %10123 = vmatprep.subr.bf16.mxu0 0
  %10124 = vmatpush2.bf16.msra.mxu0 0
  %10125 = vmatprep.subr.bf16.mxu0 0
  %10126 = vmatpush2.bf16.msra.mxu0 0
  %10127 = vmatprep.subr.bf16.mxu0 0
  %10128 = vmatpush2.bf16.msra.mxu0 0
  %10129 = vmatprep.subr.bf16.mxu0 0
  %10130 = vmatpush2.bf16.msra.mxu0 0
  %10131 = vmatprep.subr.bf16.mxu0 0
  %10132 = vmatpush2.bf16.msra.mxu0 0
  %10133 = vmatprep.subr.bf16.mxu0 0
  %10134 = vmatpush2.bf16.msra.mxu0 0
  %10135 = vmatprep.subr.bf16.mxu0 0
  %10136 = vmatpush2.bf16.msra.mxu0 0
  %10137 = vmatprep.subr.bf16.mxu0 0
  %10138 = vmatpush2.bf16.msra.mxu0 0
  %10139 = vmatprep.mubr.bf16.mxu0 0
  %10140 = vmatmul.mubr.bf16.gmra.mxu0 %v10102
  %v10141 = vpop.f32.mrf.mxu0
  %v10142 = vadd.f32 %v10094, %v10141
  %v10143 = vpop.f32.mrf.mxu0
  %v10144 = vpop.f32.mrf.mxu0
  %v10145 = vadd.f32 %v10095, %v10144
  %v10146 = vpop.f32.mrf.mxu0
  %10147 = vdwg.mxu0
  %v10148 = vsel %vm5093, %v10142, -inf
  %v10149 = vsel %vm5095, %v10145, -inf
  %v10150 = vmax.f32 %v10148, %v10149
  %v10151 = vrot.slane %v10150, 4
  %v10152 = vmax.f32 %v10150, %v10151
  %v10153 = vrot.slane %v10152, 2
  %v10154 = vmax.f32 %v10152, %v10153
  %v10155 = vrot.slane %v10154, 1
  %v10156 = vmax.f32 %v10154, %v10155
  %v10157 = vsub.f32 %v10142, %v10156
  %v10158 = vsub.f32 %v10145, %v10156
  %v10159 = vmul.f32 %v10157, 1.442695
  %v10160 = vpow.pop %v10159
  %v10161 = vmul.f32 %v10158, 1.442695
  %v10162 = vpow.pop %v10161
  %v10163 = vsel %vm5093, %v10160, 0.0
  %v10164 = vsel %vm5095, %v10162, 0.0
  %v10165 = vadd.f32 %v10163, %v10164
  %v10166 = vrot.slane %v10165, 4
  %v10167 = vadd.f32 %v10165, %v10166
  %v10168 = vrot.slane %v10167, 2
  %v10169 = vadd.f32 %v10167, %v10168
  %v10170 = vrot.slane %v10169, 1
  %v10171 = vadd.f32 %v10169, %v10170
  %v10172 = vlog2.pop %v10171
  %v10173 = vmul.f32 %v10172, 0.6931472
  %v10174 = vsub.f32 %v10157, %v10173
  %v10175 = vsub.f32 %v10158, %v10173
  %s10176 = scalar_lea.vmem %s13, 16
  %10177 = vst.msk [vmem:[%s10176] sm:$0xff] %vm5093, %v10174
  %10178 = vst.msk [vmem:[%s10176 + $0x8] sm:$0x3] %vm5095, %v10175
  // Predicated region
  $region54: #{net_forward.1} parent=0 // pred_check
    _
  $region55: #{net_forward.1} parent=0 // pred_check_branch
    %10180 = sbr.rel (0) target = $region57
  $region56: #{net_forward.1} parent=0 // pred_region
    _
  $region57: #{net_forward.1} parent=0 // pred_fallthru
    _
  // Predicated region
  $region58: #{net_forward.1} parent=0 // pred_check
    _
  $region59: #{net_forward.1} parent=0 // pred_check_branch
    %10182 = sbr.rel (0) target = $region61
  $region60: #{net_forward.1} parent=0 // pred_region
    _
  $region61: #{net_forward.1} parent=0 // pred_fallthru
    _

</llo_original>
